<compile_context>
chip_gen: v7x
topology: tpu7x:2x2x1
jax: 0.10.0
libtpu: 0.0.40
codegen_flags: <defaults>
</compile_context>

<pallas_src>
import jax
import jax.numpy as jnp
from jax.experimental import pallas as pl
from jax.experimental.pallas import tpu as pltpu

K = 3          # conv kernel size
C = 3          # channels (in == out for every conv)
EPS = 1e-5     # BatchNorm2d default eps


def _conv_layer(chans, w_ref, b_ref, cin=C, cout=C, k=K):
    """Direct valid 3x3 conv on a per-channel list of (N,H,W) VMEM values.

    Tap-outer / cout-inner accumulation: one shifted window (ci,kh,kw) is live
    at a time and is folded into all `cout` accumulators before the next tap is
    built.  chans: list[cin] of (N,H,W) f32.  w_ref: flat SMEM ref of
    (cout*cin*k*k,) in OIHW order.  b_ref: SMEM ref of (cout,).
    Returns list[cout] of (N,Ho,Wo) f32.
    """
    n, h, w = chans[0].shape
    ho, wo = h - k + 1, w - k + 1
    ckk = cin * k * k
    # Accumulators start at the (broadcast) bias -> bias add is free.
    accs = [jnp.zeros((n, ho, wo), jnp.float32) + b_ref[co] for co in range(cout)]
    t = 0
    for ci in range(cin):
        for kh in range(k):
            for kw in range(k):
                tap = chans[ci][:, kh:kh + ho, kw:kw + wo]   # single live tap
                for co in range(cout):
                    accs[co] = accs[co] + w_ref[co * ckk + t] * tap
                t += 1
    return accs


def fused_kernel(x_ref, w1_ref, b1_ref, w2_ref, b2_ref, w3_ref, b3_ref,
                 gamma_ref, beta_ref, out_ref):
    # x_ref is channel-major (C, N, H, W): each channel is a contiguous slab.
    chans = [x_ref[c].astype(jnp.float32) for c in range(C)]

    chans = _conv_layer(chans, w1_ref, b1_ref)
    chans = _conv_layer(chans, w2_ref, b2_ref)
    chans = _conv_layer(chans, w3_ref, b3_ref)

    # BatchNorm2d (training mode): per-channel batch stats over (N,H,W),
    # biased variance.  Single traversal for sum / sum-of-squares, affine
    # folded into one scale/shift pass.  rsqrt goes to the EUP slot.
    n, ho, wo = chans[0].shape
    inv_cnt = 1.0 / float(n * ho * wo)
    for c in range(C):
        v = chans[c]                                    # (N, Ho, Wo)
        s = jnp.sum(v, keepdims=True)                   # (1,1,1)
        ss = jnp.sum(v * v, keepdims=True)              # (1,1,1)
        mean = s * inv_cnt
        var = ss * inv_cnt - mean * mean                # E[x^2] - mean^2 (f32)
        scale = gamma_ref[c] * jax.lax.rsqrt(var + EPS)
        shift = beta_ref[c] - mean * scale
        # Contiguous per-channel slab store (channel-major output).
        out_ref[c] = (v * scale + shift).astype(out_ref.dtype)


def model_forward(x, params):
    n, _, h, w = x.shape
    ho, wo = h - 3 * (K - 1), w - 3 * (K - 1)
    w1, b1, w2, b2, w3, b3, gamma, beta = params

    # Channel-major layout in/out so every per-channel access in the kernel is
    # one contiguous block; transposes here are cheap wrapper-side plumbing.
    x_cm = jnp.transpose(x, (1, 0, 2, 3))               # (C, N, H, W)

    vmem = pl.BlockSpec(memory_space=pltpu.MemorySpace.VMEM)
    smem = pl.BlockSpec(memory_space=pltpu.MemorySpace.SMEM)

    out_cm = pl.pallas_call(
        fused_kernel,
        out_shape=jax.ShapeDtypeStruct((C, n, ho, wo), jnp.float32),
        in_specs=[vmem, smem, smem, smem, smem, smem, smem, smem, smem],
        out_specs=vmem,
    )(x_cm, w1.reshape(-1), b1, w2.reshape(-1), b2, w3.reshape(-1), b3,
      gamma, beta)

    return jnp.transpose(out_cm, (1, 0, 2, 3))          # back to NCHW


# ---------- pure-JAX reference for a sanity check ----------
def _conv_ref(x, w, b):
    y = jax.lax.conv_general_dilated(
        x, w, window_strides=(1, 1), padding='VALID',
        dimension_numbers=('NCHW', 'OIHW', 'NCHW'))
    return y + b[None, :, None, None]


def model_ref(x, params):
    w1, b1, w2, b2, w3, b3, gamma, beta = params
    v = _conv_ref(x, w1, b1)
    v = _conv_ref(v, w2, b2)
    v = _conv_ref(v, w3, b3)
    mean = jnp.mean(v, axis=(0, 2, 3), keepdims=True)
    var = jnp.mean((v - mean) ** 2, axis=(0, 2, 3), keepdims=True)
    vhat = (v - mean) * jax.lax.rsqrt(var + EPS)
    return vhat * gamma[None, :, None, None] + beta[None, :, None, None]


def init_params(key):
    fan_in = C * K * K
    bound = 1.0 / jnp.sqrt(fan_in)
    keys = jax.random.split(key, 6)

    def u(k, shape):
        return jax.random.uniform(k, shape, jnp.float32, -bound, bound)

    w1 = u(keys[0], (C, C, K, K)); b1 = u(keys[1], (C,))
    w2 = u(keys[2], (C, C, K, K)); b2 = u(keys[3], (C,))
    w3 = u(keys[4], (C, C, K, K)); b3 = u(keys[5], (C,))
    gamma = jnp.ones((C,), jnp.float32)   # BatchNorm2d default weight
    beta = jnp.zeros((C,), jnp.float32)   # BatchNorm2d default bias
    return (w1, b1, w2, b2, w3, b3, gamma, beta)


if __name__ == "__main__":
    key = jax.random.PRNGKey(0)
    kx, kp = jax.random.split(key)
    # Small but valid shape (3 stacked valid 3x3 convs need H,W >= 7).
    x = jax.random.normal(kx, (2, 3, 16, 16), jnp.float32)
    params = init_params(kp)

    out = model_forward(x, params)
    out = jax.block_until_ready(out)

    ref = model_ref(x, params)
    assert out.shape == ref.shape == (2, 3, 10, 10)
    assert jnp.allclose(out, ref, rtol=1e-3, atol=1e-3)
    print("KERNEL_OK")
</pallas_src>

<mosaic_0001>
module attributes {stable_mosaic.version = 11 : i64} {
  func.func @fused_kernel(%arg0: memref<3x2x16x16xf32, #tpu.memory_space<vmem>>, %arg1: memref<81xf32, #tpu.memory_space<smem>>, %arg2: memref<3xf32, #tpu.memory_space<smem>>, %arg3: memref<81xf32, #tpu.memory_space<smem>>, %arg4: memref<3xf32, #tpu.memory_space<smem>>, %arg5: memref<81xf32, #tpu.memory_space<smem>>, %arg6: memref<3xf32, #tpu.memory_space<smem>>, %arg7: memref<3xf32, #tpu.memory_space<smem>>, %arg8: memref<3xf32, #tpu.memory_space<smem>>, %arg9: memref<3x2x10x10xf32, #tpu.memory_space<vmem>>) attributes {dimension_semantics = [], scalar_prefetch = 0 : i64, scratch_operands = 0 : i64, tpu.core_type = #tpu.core_type<tc>} {
    %c0 = arith.constant 0 : index
    %c0_0 = arith.constant 0 : index
    %c0_1 = arith.constant 0 : index
    %c0_2 = arith.constant 0 : index
    %0 = vector.load %arg0[%c0, %c0_0, %c0_1, %c0_2] : memref<3x2x16x16xf32, #tpu.memory_space<vmem>>, vector<1x2x16x16xf32>
    %1 = vector.shape_cast %0 : vector<1x2x16x16xf32> to vector<2x16x16xf32>
    %c1 = arith.constant 1 : index
    %c0_3 = arith.constant 0 : index
    %c0_4 = arith.constant 0 : index
    %c0_5 = arith.constant 0 : index
    %2 = vector.load %arg0[%c1, %c0_3, %c0_4, %c0_5] : memref<3x2x16x16xf32, #tpu.memory_space<vmem>>, vector<1x2x16x16xf32>
    %3 = vector.shape_cast %2 : vector<1x2x16x16xf32> to vector<2x16x16xf32>
    %c2 = arith.constant 2 : index
    %c0_6 = arith.constant 0 : index
    %c0_7 = arith.constant 0 : index
    %c0_8 = arith.constant 0 : index
    %4 = vector.load %arg0[%c2, %c0_6, %c0_7, %c0_8] : memref<3x2x16x16xf32, #tpu.memory_space<vmem>>, vector<1x2x16x16xf32>
    %5 = vector.shape_cast %4 : vector<1x2x16x16xf32> to vector<2x16x16xf32>
    %cst = arith.constant 0.000000e+00 : f32
    %6 = vector.broadcast %cst : f32 to vector<2x14x14xf32>
    %c0_9 = arith.constant 0 : index
    %7 = memref.load %arg2[%c0_9] : memref<3xf32, #tpu.memory_space<smem>>
    %8 = vector.broadcast %7 : f32 to vector<2x14x14xf32>
    %9 = arith.addf %6, %8 : vector<2x14x14xf32>
    %cst_10 = arith.constant 0.000000e+00 : f32
    %10 = vector.broadcast %cst_10 : f32 to vector<2x14x14xf32>
    %c1_11 = arith.constant 1 : index
    %11 = memref.load %arg2[%c1_11] : memref<3xf32, #tpu.memory_space<smem>>
    %12 = vector.broadcast %11 : f32 to vector<2x14x14xf32>
    %13 = arith.addf %10, %12 : vector<2x14x14xf32>
    %cst_12 = arith.constant 0.000000e+00 : f32
    %14 = vector.broadcast %cst_12 : f32 to vector<2x14x14xf32>
    %c2_13 = arith.constant 2 : index
    %15 = memref.load %arg2[%c2_13] : memref<3xf32, #tpu.memory_space<smem>>
    %16 = vector.broadcast %15 : f32 to vector<2x14x14xf32>
    %17 = arith.addf %14, %16 : vector<2x14x14xf32>
    %18 = vector.extract_strided_slice %1 {offsets = [0, 0, 0], sizes = [2, 14, 14], strides = [1, 1, 1]} : vector<2x16x16xf32> to vector<2x14x14xf32>
    %c0_14 = arith.constant 0 : index
    %19 = memref.load %arg1[%c0_14] : memref<81xf32, #tpu.memory_space<smem>>
    %20 = vector.broadcast %19 : f32 to vector<2x14x14xf32>
    %21 = arith.mulf %20, %18 : vector<2x14x14xf32>
    %22 = arith.addf %9, %21 : vector<2x14x14xf32>
    %c27 = arith.constant 27 : index
    %23 = memref.load %arg1[%c27] : memref<81xf32, #tpu.memory_space<smem>>
    %24 = vector.broadcast %23 : f32 to vector<2x14x14xf32>
    %25 = arith.mulf %24, %18 : vector<2x14x14xf32>
    %26 = arith.addf %13, %25 : vector<2x14x14xf32>
    %c54 = arith.constant 54 : index
    %27 = memref.load %arg1[%c54] : memref<81xf32, #tpu.memory_space<smem>>
    %28 = vector.broadcast %27 : f32 to vector<2x14x14xf32>
    %29 = arith.mulf %28, %18 : vector<2x14x14xf32>
    %30 = arith.addf %17, %29 : vector<2x14x14xf32>
    %31 = vector.extract_strided_slice %1 {offsets = [0, 0, 1], sizes = [2, 14, 14], strides = [1, 1, 1]} : vector<2x16x16xf32> to vector<2x14x14xf32>
    %c1_15 = arith.constant 1 : index
    %32 = memref.load %arg1[%c1_15] : memref<81xf32, #tpu.memory_space<smem>>
    %33 = vector.broadcast %32 : f32 to vector<2x14x14xf32>
    %34 = arith.mulf %33, %31 : vector<2x14x14xf32>
    %35 = arith.addf %22, %34 : vector<2x14x14xf32>
    %c28 = arith.constant 28 : index
    %36 = memref.load %arg1[%c28] : memref<81xf32, #tpu.memory_space<smem>>
    %37 = vector.broadcast %36 : f32 to vector<2x14x14xf32>
    %38 = arith.mulf %37, %31 : vector<2x14x14xf32>
    %39 = arith.addf %26, %38 : vector<2x14x14xf32>
    %c55 = arith.constant 55 : index
    %40 = memref.load %arg1[%c55] : memref<81xf32, #tpu.memory_space<smem>>
    %41 = vector.broadcast %40 : f32 to vector<2x14x14xf32>
    %42 = arith.mulf %41, %31 : vector<2x14x14xf32>
    %43 = arith.addf %30, %42 : vector<2x14x14xf32>
    %44 = vector.extract_strided_slice %1 {offsets = [0, 0, 2], sizes = [2, 14, 14], strides = [1, 1, 1]} : vector<2x16x16xf32> to vector<2x14x14xf32>
    %c2_16 = arith.constant 2 : index
    %45 = memref.load %arg1[%c2_16] : memref<81xf32, #tpu.memory_space<smem>>
    %46 = vector.broadcast %45 : f32 to vector<2x14x14xf32>
    %47 = arith.mulf %46, %44 : vector<2x14x14xf32>
    %48 = arith.addf %35, %47 : vector<2x14x14xf32>
    %c29 = arith.constant 29 : index
    %49 = memref.load %arg1[%c29] : memref<81xf32, #tpu.memory_space<smem>>
    %50 = vector.broadcast %49 : f32 to vector<2x14x14xf32>
    %51 = arith.mulf %50, %44 : vector<2x14x14xf32>
    %52 = arith.addf %39, %51 : vector<2x14x14xf32>
    %c56 = arith.constant 56 : index
    %53 = memref.load %arg1[%c56] : memref<81xf32, #tpu.memory_space<smem>>
    %54 = vector.broadcast %53 : f32 to vector<2x14x14xf32>
    %55 = arith.mulf %54, %44 : vector<2x14x14xf32>
    %56 = arith.addf %43, %55 : vector<2x14x14xf32>
    %57 = vector.extract_strided_slice %1 {offsets = [0, 1, 0], sizes = [2, 14, 14], strides = [1, 1, 1]} : vector<2x16x16xf32> to vector<2x14x14xf32>
    %c3 = arith.constant 3 : index
    %58 = memref.load %arg1[%c3] : memref<81xf32, #tpu.memory_space<smem>>
    %59 = vector.broadcast %58 : f32 to vector<2x14x14xf32>
    %60 = arith.mulf %59, %57 : vector<2x14x14xf32>
    %61 = arith.addf %48, %60 : vector<2x14x14xf32>
    %c30 = arith.constant 30 : index
    %62 = memref.load %arg1[%c30] : memref<81xf32, #tpu.memory_space<smem>>
    %63 = vector.broadcast %62 : f32 to vector<2x14x14xf32>
    %64 = arith.mulf %63, %57 : vector<2x14x14xf32>
    %65 = arith.addf %52, %64 : vector<2x14x14xf32>
    %c57 = arith.constant 57 : index
    %66 = memref.load %arg1[%c57] : memref<81xf32, #tpu.memory_space<smem>>
    %67 = vector.broadcast %66 : f32 to vector<2x14x14xf32>
    %68 = arith.mulf %67, %57 : vector<2x14x14xf32>
    %69 = arith.addf %56, %68 : vector<2x14x14xf32>
    %70 = vector.extract_strided_slice %1 {offsets = [0, 1, 1], sizes = [2, 14, 14], strides = [1, 1, 1]} : vector<2x16x16xf32> to vector<2x14x14xf32>
    %c4 = arith.constant 4 : index
    %71 = memref.load %arg1[%c4] : memref<81xf32, #tpu.memory_space<smem>>
    %72 = vector.broadcast %71 : f32 to vector<2x14x14xf32>
    %73 = arith.mulf %72, %70 : vector<2x14x14xf32>
    %74 = arith.addf %61, %73 : vector<2x14x14xf32>
    %c31 = arith.constant 31 : index
    %75 = memref.load %arg1[%c31] : memref<81xf32, #tpu.memory_space<smem>>
    %76 = vector.broadcast %75 : f32 to vector<2x14x14xf32>
    %77 = arith.mulf %76, %70 : vector<2x14x14xf32>
    %78 = arith.addf %65, %77 : vector<2x14x14xf32>
    %c58 = arith.constant 58 : index
    %79 = memref.load %arg1[%c58] : memref<81xf32, #tpu.memory_space<smem>>
    %80 = vector.broadcast %79 : f32 to vector<2x14x14xf32>
    %81 = arith.mulf %80, %70 : vector<2x14x14xf32>
    %82 = arith.addf %69, %81 : vector<2x14x14xf32>
    %83 = vector.extract_strided_slice %1 {offsets = [0, 1, 2], sizes = [2, 14, 14], strides = [1, 1, 1]} : vector<2x16x16xf32> to vector<2x14x14xf32>
    %c5 = arith.constant 5 : index
    %84 = memref.load %arg1[%c5] : memref<81xf32, #tpu.memory_space<smem>>
    %85 = vector.broadcast %84 : f32 to vector<2x14x14xf32>
    %86 = arith.mulf %85, %83 : vector<2x14x14xf32>
    %87 = arith.addf %74, %86 : vector<2x14x14xf32>
    %c32 = arith.constant 32 : index
    %88 = memref.load %arg1[%c32] : memref<81xf32, #tpu.memory_space<smem>>
    %89 = vector.broadcast %88 : f32 to vector<2x14x14xf32>
    %90 = arith.mulf %89, %83 : vector<2x14x14xf32>
    %91 = arith.addf %78, %90 : vector<2x14x14xf32>
    %c59 = arith.constant 59 : index
    %92 = memref.load %arg1[%c59] : memref<81xf32, #tpu.memory_space<smem>>
    %93 = vector.broadcast %92 : f32 to vector<2x14x14xf32>
    %94 = arith.mulf %93, %83 : vector<2x14x14xf32>
    %95 = arith.addf %82, %94 : vector<2x14x14xf32>
    %96 = vector.extract_strided_slice %1 {offsets = [0, 2, 0], sizes = [2, 14, 14], strides = [1, 1, 1]} : vector<2x16x16xf32> to vector<2x14x14xf32>
    %c6 = arith.constant 6 : index
    %97 = memref.load %arg1[%c6] : memref<81xf32, #tpu.memory_space<smem>>
    %98 = vector.broadcast %97 : f32 to vector<2x14x14xf32>
    %99 = arith.mulf %98, %96 : vector<2x14x14xf32>
    %100 = arith.addf %87, %99 : vector<2x14x14xf32>
    %c33 = arith.constant 33 : index
    %101 = memref.load %arg1[%c33] : memref<81xf32, #tpu.memory_space<smem>>
    %102 = vector.broadcast %101 : f32 to vector<2x14x14xf32>
    %103 = arith.mulf %102, %96 : vector<2x14x14xf32>
    %104 = arith.addf %91, %103 : vector<2x14x14xf32>
    %c60 = arith.constant 60 : index
    %105 = memref.load %arg1[%c60] : memref<81xf32, #tpu.memory_space<smem>>
    %106 = vector.broadcast %105 : f32 to vector<2x14x14xf32>
    %107 = arith.mulf %106, %96 : vector<2x14x14xf32>
    %108 = arith.addf %95, %107 : vector<2x14x14xf32>
    %109 = vector.extract_strided_slice %1 {offsets = [0, 2, 1], sizes = [2, 14, 14], strides = [1, 1, 1]} : vector<2x16x16xf32> to vector<2x14x14xf32>
    %c7 = arith.constant 7 : index
    %110 = memref.load %arg1[%c7] : memref<81xf32, #tpu.memory_space<smem>>
    %111 = vector.broadcast %110 : f32 to vector<2x14x14xf32>
    %112 = arith.mulf %111, %109 : vector<2x14x14xf32>
    %113 = arith.addf %100, %112 : vector<2x14x14xf32>
    %c34 = arith.constant 34 : index
    %114 = memref.load %arg1[%c34] : memref<81xf32, #tpu.memory_space<smem>>
    %115 = vector.broadcast %114 : f32 to vector<2x14x14xf32>
    %116 = arith.mulf %115, %109 : vector<2x14x14xf32>
    %117 = arith.addf %104, %116 : vector<2x14x14xf32>
    %c61 = arith.constant 61 : index
    %118 = memref.load %arg1[%c61] : memref<81xf32, #tpu.memory_space<smem>>
    %119 = vector.broadcast %118 : f32 to vector<2x14x14xf32>
    %120 = arith.mulf %119, %109 : vector<2x14x14xf32>
    %121 = arith.addf %108, %120 : vector<2x14x14xf32>
    %122 = vector.extract_strided_slice %1 {offsets = [0, 2, 2], sizes = [2, 14, 14], strides = [1, 1, 1]} : vector<2x16x16xf32> to vector<2x14x14xf32>
    %c8 = arith.constant 8 : index
    %123 = memref.load %arg1[%c8] : memref<81xf32, #tpu.memory_space<smem>>
    %124 = vector.broadcast %123 : f32 to vector<2x14x14xf32>
    %125 = arith.mulf %124, %122 : vector<2x14x14xf32>
    %126 = arith.addf %113, %125 : vector<2x14x14xf32>
    %c35 = arith.constant 35 : index
    %127 = memref.load %arg1[%c35] : memref<81xf32, #tpu.memory_space<smem>>
    %128 = vector.broadcast %127 : f32 to vector<2x14x14xf32>
    %129 = arith.mulf %128, %122 : vector<2x14x14xf32>
    %130 = arith.addf %117, %129 : vector<2x14x14xf32>
    %c62 = arith.constant 62 : index
    %131 = memref.load %arg1[%c62] : memref<81xf32, #tpu.memory_space<smem>>
    %132 = vector.broadcast %131 : f32 to vector<2x14x14xf32>
    %133 = arith.mulf %132, %122 : vector<2x14x14xf32>
    %134 = arith.addf %121, %133 : vector<2x14x14xf32>
    %135 = vector.extract_strided_slice %3 {offsets = [0, 0, 0], sizes = [2, 14, 14], strides = [1, 1, 1]} : vector<2x16x16xf32> to vector<2x14x14xf32>
    %c9 = arith.constant 9 : index
    %136 = memref.load %arg1[%c9] : memref<81xf32, #tpu.memory_space<smem>>
    %137 = vector.broadcast %136 : f32 to vector<2x14x14xf32>
    %138 = arith.mulf %137, %135 : vector<2x14x14xf32>
    %139 = arith.addf %126, %138 : vector<2x14x14xf32>
    %c36 = arith.constant 36 : index
    %140 = memref.load %arg1[%c36] : memref<81xf32, #tpu.memory_space<smem>>
    %141 = vector.broadcast %140 : f32 to vector<2x14x14xf32>
    %142 = arith.mulf %141, %135 : vector<2x14x14xf32>
    %143 = arith.addf %130, %142 : vector<2x14x14xf32>
    %c63 = arith.constant 63 : index
    %144 = memref.load %arg1[%c63] : memref<81xf32, #tpu.memory_space<smem>>
    %145 = vector.broadcast %144 : f32 to vector<2x14x14xf32>
    %146 = arith.mulf %145, %135 : vector<2x14x14xf32>
    %147 = arith.addf %134, %146 : vector<2x14x14xf32>
    %148 = vector.extract_strided_slice %3 {offsets = [0, 0, 1], sizes = [2, 14, 14], strides = [1, 1, 1]} : vector<2x16x16xf32> to vector<2x14x14xf32>
    %c10 = arith.constant 10 : index
    %149 = memref.load %arg1[%c10] : memref<81xf32, #tpu.memory_space<smem>>
    %150 = vector.broadcast %149 : f32 to vector<2x14x14xf32>
    %151 = arith.mulf %150, %148 : vector<2x14x14xf32>
    %152 = arith.addf %139, %151 : vector<2x14x14xf32>
    %c37 = arith.constant 37 : index
    %153 = memref.load %arg1[%c37] : memref<81xf32, #tpu.memory_space<smem>>
    %154 = vector.broadcast %153 : f32 to vector<2x14x14xf32>
    %155 = arith.mulf %154, %148 : vector<2x14x14xf32>
    %156 = arith.addf %143, %155 : vector<2x14x14xf32>
    %c64 = arith.constant 64 : index
    %157 = memref.load %arg1[%c64] : memref<81xf32, #tpu.memory_space<smem>>
    %158 = vector.broadcast %157 : f32 to vector<2x14x14xf32>
    %159 = arith.mulf %158, %148 : vector<2x14x14xf32>
    %160 = arith.addf %147, %159 : vector<2x14x14xf32>
    %161 = vector.extract_strided_slice %3 {offsets = [0, 0, 2], sizes = [2, 14, 14], strides = [1, 1, 1]} : vector<2x16x16xf32> to vector<2x14x14xf32>
    %c11 = arith.constant 11 : index
    %162 = memref.load %arg1[%c11] : memref<81xf32, #tpu.memory_space<smem>>
    %163 = vector.broadcast %162 : f32 to vector<2x14x14xf32>
    %164 = arith.mulf %163, %161 : vector<2x14x14xf32>
    %165 = arith.addf %152, %164 : vector<2x14x14xf32>
    %c38 = arith.constant 38 : index
    %166 = memref.load %arg1[%c38] : memref<81xf32, #tpu.memory_space<smem>>
    %167 = vector.broadcast %166 : f32 to vector<2x14x14xf32>
    %168 = arith.mulf %167, %161 : vector<2x14x14xf32>
    %169 = arith.addf %156, %168 : vector<2x14x14xf32>
    %c65 = arith.constant 65 : index
    %170 = memref.load %arg1[%c65] : memref<81xf32, #tpu.memory_space<smem>>
    %171 = vector.broadcast %170 : f32 to vector<2x14x14xf32>
    %172 = arith.mulf %171, %161 : vector<2x14x14xf32>
    %173 = arith.addf %160, %172 : vector<2x14x14xf32>
    %174 = vector.extract_strided_slice %3 {offsets = [0, 1, 0], sizes = [2, 14, 14], strides = [1, 1, 1]} : vector<2x16x16xf32> to vector<2x14x14xf32>
    %c12 = arith.constant 12 : index
    %175 = memref.load %arg1[%c12] : memref<81xf32, #tpu.memory_space<smem>>
    %176 = vector.broadcast %175 : f32 to vector<2x14x14xf32>
    %177 = arith.mulf %176, %174 : vector<2x14x14xf32>
    %178 = arith.addf %165, %177 : vector<2x14x14xf32>
    %c39 = arith.constant 39 : index
    %179 = memref.load %arg1[%c39] : memref<81xf32, #tpu.memory_space<smem>>
    %180 = vector.broadcast %179 : f32 to vector<2x14x14xf32>
    %181 = arith.mulf %180, %174 : vector<2x14x14xf32>
    %182 = arith.addf %169, %181 : vector<2x14x14xf32>
    %c66 = arith.constant 66 : index
    %183 = memref.load %arg1[%c66] : memref<81xf32, #tpu.memory_space<smem>>
    %184 = vector.broadcast %183 : f32 to vector<2x14x14xf32>
    %185 = arith.mulf %184, %174 : vector<2x14x14xf32>
    %186 = arith.addf %173, %185 : vector<2x14x14xf32>
    %187 = vector.extract_strided_slice %3 {offsets = [0, 1, 1], sizes = [2, 14, 14], strides = [1, 1, 1]} : vector<2x16x16xf32> to vector<2x14x14xf32>
    %c13 = arith.constant 13 : index
    %188 = memref.load %arg1[%c13] : memref<81xf32, #tpu.memory_space<smem>>
    %189 = vector.broadcast %188 : f32 to vector<2x14x14xf32>
    %190 = arith.mulf %189, %187 : vector<2x14x14xf32>
    %191 = arith.addf %178, %190 : vector<2x14x14xf32>
    %c40 = arith.constant 40 : index
    %192 = memref.load %arg1[%c40] : memref<81xf32, #tpu.memory_space<smem>>
    %193 = vector.broadcast %192 : f32 to vector<2x14x14xf32>
    %194 = arith.mulf %193, %187 : vector<2x14x14xf32>
    %195 = arith.addf %182, %194 : vector<2x14x14xf32>
    %c67 = arith.constant 67 : index
    %196 = memref.load %arg1[%c67] : memref<81xf32, #tpu.memory_space<smem>>
    %197 = vector.broadcast %196 : f32 to vector<2x14x14xf32>
    %198 = arith.mulf %197, %187 : vector<2x14x14xf32>
    %199 = arith.addf %186, %198 : vector<2x14x14xf32>
    %200 = vector.extract_strided_slice %3 {offsets = [0, 1, 2], sizes = [2, 14, 14], strides = [1, 1, 1]} : vector<2x16x16xf32> to vector<2x14x14xf32>
    %c14 = arith.constant 14 : index
    %201 = memref.load %arg1[%c14] : memref<81xf32, #tpu.memory_space<smem>>
    %202 = vector.broadcast %201 : f32 to vector<2x14x14xf32>
    %203 = arith.mulf %202, %200 : vector<2x14x14xf32>
    %204 = arith.addf %191, %203 : vector<2x14x14xf32>
    %c41 = arith.constant 41 : index
    %205 = memref.load %arg1[%c41] : memref<81xf32, #tpu.memory_space<smem>>
    %206 = vector.broadcast %205 : f32 to vector<2x14x14xf32>
    %207 = arith.mulf %206, %200 : vector<2x14x14xf32>
    %208 = arith.addf %195, %207 : vector<2x14x14xf32>
    %c68 = arith.constant 68 : index
    %209 = memref.load %arg1[%c68] : memref<81xf32, #tpu.memory_space<smem>>
    %210 = vector.broadcast %209 : f32 to vector<2x14x14xf32>
    %211 = arith.mulf %210, %200 : vector<2x14x14xf32>
    %212 = arith.addf %199, %211 : vector<2x14x14xf32>
    %213 = vector.extract_strided_slice %3 {offsets = [0, 2, 0], sizes = [2, 14, 14], strides = [1, 1, 1]} : vector<2x16x16xf32> to vector<2x14x14xf32>
    %c15 = arith.constant 15 : index
    %214 = memref.load %arg1[%c15] : memref<81xf32, #tpu.memory_space<smem>>
    %215 = vector.broadcast %214 : f32 to vector<2x14x14xf32>
    %216 = arith.mulf %215, %213 : vector<2x14x14xf32>
    %217 = arith.addf %204, %216 : vector<2x14x14xf32>
    %c42 = arith.constant 42 : index
    %218 = memref.load %arg1[%c42] : memref<81xf32, #tpu.memory_space<smem>>
    %219 = vector.broadcast %218 : f32 to vector<2x14x14xf32>
    %220 = arith.mulf %219, %213 : vector<2x14x14xf32>
    %221 = arith.addf %208, %220 : vector<2x14x14xf32>
    %c69 = arith.constant 69 : index
    %222 = memref.load %arg1[%c69] : memref<81xf32, #tpu.memory_space<smem>>
    %223 = vector.broadcast %222 : f32 to vector<2x14x14xf32>
    %224 = arith.mulf %223, %213 : vector<2x14x14xf32>
    %225 = arith.addf %212, %224 : vector<2x14x14xf32>
    %226 = vector.extract_strided_slice %3 {offsets = [0, 2, 1], sizes = [2, 14, 14], strides = [1, 1, 1]} : vector<2x16x16xf32> to vector<2x14x14xf32>
    %c16 = arith.constant 16 : index
    %227 = memref.load %arg1[%c16] : memref<81xf32, #tpu.memory_space<smem>>
    %228 = vector.broadcast %227 : f32 to vector<2x14x14xf32>
    %229 = arith.mulf %228, %226 : vector<2x14x14xf32>
    %230 = arith.addf %217, %229 : vector<2x14x14xf32>
    %c43 = arith.constant 43 : index
    %231 = memref.load %arg1[%c43] : memref<81xf32, #tpu.memory_space<smem>>
    %232 = vector.broadcast %231 : f32 to vector<2x14x14xf32>
    %233 = arith.mulf %232, %226 : vector<2x14x14xf32>
    %234 = arith.addf %221, %233 : vector<2x14x14xf32>
    %c70 = arith.constant 70 : index
    %235 = memref.load %arg1[%c70] : memref<81xf32, #tpu.memory_space<smem>>
    %236 = vector.broadcast %235 : f32 to vector<2x14x14xf32>
    %237 = arith.mulf %236, %226 : vector<2x14x14xf32>
    %238 = arith.addf %225, %237 : vector<2x14x14xf32>
    %239 = vector.extract_strided_slice %3 {offsets = [0, 2, 2], sizes = [2, 14, 14], strides = [1, 1, 1]} : vector<2x16x16xf32> to vector<2x14x14xf32>
    %c17 = arith.constant 17 : index
    %240 = memref.load %arg1[%c17] : memref<81xf32, #tpu.memory_space<smem>>
    %241 = vector.broadcast %240 : f32 to vector<2x14x14xf32>
    %242 = arith.mulf %241, %239 : vector<2x14x14xf32>
    %243 = arith.addf %230, %242 : vector<2x14x14xf32>
    %c44 = arith.constant 44 : index
    %244 = memref.load %arg1[%c44] : memref<81xf32, #tpu.memory_space<smem>>
    %245 = vector.broadcast %244 : f32 to vector<2x14x14xf32>
    %246 = arith.mulf %245, %239 : vector<2x14x14xf32>
    %247 = arith.addf %234, %246 : vector<2x14x14xf32>
    %c71 = arith.constant 71 : index
    %248 = memref.load %arg1[%c71] : memref<81xf32, #tpu.memory_space<smem>>
    %249 = vector.broadcast %248 : f32 to vector<2x14x14xf32>
    %250 = arith.mulf %249, %239 : vector<2x14x14xf32>
    %251 = arith.addf %238, %250 : vector<2x14x14xf32>
    %252 = vector.extract_strided_slice %5 {offsets = [0, 0, 0], sizes = [2, 14, 14], strides = [1, 1, 1]} : vector<2x16x16xf32> to vector<2x14x14xf32>
    %c18 = arith.constant 18 : index
    %253 = memref.load %arg1[%c18] : memref<81xf32, #tpu.memory_space<smem>>
    %254 = vector.broadcast %253 : f32 to vector<2x14x14xf32>
    %255 = arith.mulf %254, %252 : vector<2x14x14xf32>
    %256 = arith.addf %243, %255 : vector<2x14x14xf32>
    %c45 = arith.constant 45 : index
    %257 = memref.load %arg1[%c45] : memref<81xf32, #tpu.memory_space<smem>>
    %258 = vector.broadcast %257 : f32 to vector<2x14x14xf32>
    %259 = arith.mulf %258, %252 : vector<2x14x14xf32>
    %260 = arith.addf %247, %259 : vector<2x14x14xf32>
    %c72 = arith.constant 72 : index
    %261 = memref.load %arg1[%c72] : memref<81xf32, #tpu.memory_space<smem>>
    %262 = vector.broadcast %261 : f32 to vector<2x14x14xf32>
    %263 = arith.mulf %262, %252 : vector<2x14x14xf32>
    %264 = arith.addf %251, %263 : vector<2x14x14xf32>
    %265 = vector.extract_strided_slice %5 {offsets = [0, 0, 1], sizes = [2, 14, 14], strides = [1, 1, 1]} : vector<2x16x16xf32> to vector<2x14x14xf32>
    %c19 = arith.constant 19 : index
    %266 = memref.load %arg1[%c19] : memref<81xf32, #tpu.memory_space<smem>>
    %267 = vector.broadcast %266 : f32 to vector<2x14x14xf32>
    %268 = arith.mulf %267, %265 : vector<2x14x14xf32>
    %269 = arith.addf %256, %268 : vector<2x14x14xf32>
    %c46 = arith.constant 46 : index
    %270 = memref.load %arg1[%c46] : memref<81xf32, #tpu.memory_space<smem>>
    %271 = vector.broadcast %270 : f32 to vector<2x14x14xf32>
    %272 = arith.mulf %271, %265 : vector<2x14x14xf32>
    %273 = arith.addf %260, %272 : vector<2x14x14xf32>
    %c73 = arith.constant 73 : index
    %274 = memref.load %arg1[%c73] : memref<81xf32, #tpu.memory_space<smem>>
    %275 = vector.broadcast %274 : f32 to vector<2x14x14xf32>
    %276 = arith.mulf %275, %265 : vector<2x14x14xf32>
    %277 = arith.addf %264, %276 : vector<2x14x14xf32>
    %278 = vector.extract_strided_slice %5 {offsets = [0, 0, 2], sizes = [2, 14, 14], strides = [1, 1, 1]} : vector<2x16x16xf32> to vector<2x14x14xf32>
    %c20 = arith.constant 20 : index
    %279 = memref.load %arg1[%c20] : memref<81xf32, #tpu.memory_space<smem>>
    %280 = vector.broadcast %279 : f32 to vector<2x14x14xf32>
    %281 = arith.mulf %280, %278 : vector<2x14x14xf32>
    %282 = arith.addf %269, %281 : vector<2x14x14xf32>
    %c47 = arith.constant 47 : index
    %283 = memref.load %arg1[%c47] : memref<81xf32, #tpu.memory_space<smem>>
    %284 = vector.broadcast %283 : f32 to vector<2x14x14xf32>
    %285 = arith.mulf %284, %278 : vector<2x14x14xf32>
    %286 = arith.addf %273, %285 : vector<2x14x14xf32>
    %c74 = arith.constant 74 : index
    %287 = memref.load %arg1[%c74] : memref<81xf32, #tpu.memory_space<smem>>
    %288 = vector.broadcast %287 : f32 to vector<2x14x14xf32>
    %289 = arith.mulf %288, %278 : vector<2x14x14xf32>
    %290 = arith.addf %277, %289 : vector<2x14x14xf32>
    %291 = vector.extract_strided_slice %5 {offsets = [0, 1, 0], sizes = [2, 14, 14], strides = [1, 1, 1]} : vector<2x16x16xf32> to vector<2x14x14xf32>
    %c21 = arith.constant 21 : index
    %292 = memref.load %arg1[%c21] : memref<81xf32, #tpu.memory_space<smem>>
    %293 = vector.broadcast %292 : f32 to vector<2x14x14xf32>
    %294 = arith.mulf %293, %291 : vector<2x14x14xf32>
    %295 = arith.addf %282, %294 : vector<2x14x14xf32>
    %c48 = arith.constant 48 : index
    %296 = memref.load %arg1[%c48] : memref<81xf32, #tpu.memory_space<smem>>
    %297 = vector.broadcast %296 : f32 to vector<2x14x14xf32>
    %298 = arith.mulf %297, %291 : vector<2x14x14xf32>
    %299 = arith.addf %286, %298 : vector<2x14x14xf32>
    %c75 = arith.constant 75 : index
    %300 = memref.load %arg1[%c75] : memref<81xf32, #tpu.memory_space<smem>>
    %301 = vector.broadcast %300 : f32 to vector<2x14x14xf32>
    %302 = arith.mulf %301, %291 : vector<2x14x14xf32>
    %303 = arith.addf %290, %302 : vector<2x14x14xf32>
    %304 = vector.extract_strided_slice %5 {offsets = [0, 1, 1], sizes = [2, 14, 14], strides = [1, 1, 1]} : vector<2x16x16xf32> to vector<2x14x14xf32>
    %c22 = arith.constant 22 : index
    %305 = memref.load %arg1[%c22] : memref<81xf32, #tpu.memory_space<smem>>
    %306 = vector.broadcast %305 : f32 to vector<2x14x14xf32>
    %307 = arith.mulf %306, %304 : vector<2x14x14xf32>
    %308 = arith.addf %295, %307 : vector<2x14x14xf32>
    %c49 = arith.constant 49 : index
    %309 = memref.load %arg1[%c49] : memref<81xf32, #tpu.memory_space<smem>>
    %310 = vector.broadcast %309 : f32 to vector<2x14x14xf32>
    %311 = arith.mulf %310, %304 : vector<2x14x14xf32>
    %312 = arith.addf %299, %311 : vector<2x14x14xf32>
    %c76 = arith.constant 76 : index
    %313 = memref.load %arg1[%c76] : memref<81xf32, #tpu.memory_space<smem>>
    %314 = vector.broadcast %313 : f32 to vector<2x14x14xf32>
    %315 = arith.mulf %314, %304 : vector<2x14x14xf32>
    %316 = arith.addf %303, %315 : vector<2x14x14xf32>
    %317 = vector.extract_strided_slice %5 {offsets = [0, 1, 2], sizes = [2, 14, 14], strides = [1, 1, 1]} : vector<2x16x16xf32> to vector<2x14x14xf32>
    %c23 = arith.constant 23 : index
    %318 = memref.load %arg1[%c23] : memref<81xf32, #tpu.memory_space<smem>>
    %319 = vector.broadcast %318 : f32 to vector<2x14x14xf32>
    %320 = arith.mulf %319, %317 : vector<2x14x14xf32>
    %321 = arith.addf %308, %320 : vector<2x14x14xf32>
    %c50 = arith.constant 50 : index
    %322 = memref.load %arg1[%c50] : memref<81xf32, #tpu.memory_space<smem>>
    %323 = vector.broadcast %322 : f32 to vector<2x14x14xf32>
    %324 = arith.mulf %323, %317 : vector<2x14x14xf32>
    %325 = arith.addf %312, %324 : vector<2x14x14xf32>
    %c77 = arith.constant 77 : index
    %326 = memref.load %arg1[%c77] : memref<81xf32, #tpu.memory_space<smem>>
    %327 = vector.broadcast %326 : f32 to vector<2x14x14xf32>
    %328 = arith.mulf %327, %317 : vector<2x14x14xf32>
    %329 = arith.addf %316, %328 : vector<2x14x14xf32>
    %330 = vector.extract_strided_slice %5 {offsets = [0, 2, 0], sizes = [2, 14, 14], strides = [1, 1, 1]} : vector<2x16x16xf32> to vector<2x14x14xf32>
    %c24 = arith.constant 24 : index
    %331 = memref.load %arg1[%c24] : memref<81xf32, #tpu.memory_space<smem>>
    %332 = vector.broadcast %331 : f32 to vector<2x14x14xf32>
    %333 = arith.mulf %332, %330 : vector<2x14x14xf32>
    %334 = arith.addf %321, %333 : vector<2x14x14xf32>
    %c51 = arith.constant 51 : index
    %335 = memref.load %arg1[%c51] : memref<81xf32, #tpu.memory_space<smem>>
    %336 = vector.broadcast %335 : f32 to vector<2x14x14xf32>
    %337 = arith.mulf %336, %330 : vector<2x14x14xf32>
    %338 = arith.addf %325, %337 : vector<2x14x14xf32>
    %c78 = arith.constant 78 : index
    %339 = memref.load %arg1[%c78] : memref<81xf32, #tpu.memory_space<smem>>
    %340 = vector.broadcast %339 : f32 to vector<2x14x14xf32>
    %341 = arith.mulf %340, %330 : vector<2x14x14xf32>
    %342 = arith.addf %329, %341 : vector<2x14x14xf32>
    %343 = vector.extract_strided_slice %5 {offsets = [0, 2, 1], sizes = [2, 14, 14], strides = [1, 1, 1]} : vector<2x16x16xf32> to vector<2x14x14xf32>
    %c25 = arith.constant 25 : index
    %344 = memref.load %arg1[%c25] : memref<81xf32, #tpu.memory_space<smem>>
    %345 = vector.broadcast %344 : f32 to vector<2x14x14xf32>
    %346 = arith.mulf %345, %343 : vector<2x14x14xf32>
    %347 = arith.addf %334, %346 : vector<2x14x14xf32>
    %c52 = arith.constant 52 : index
    %348 = memref.load %arg1[%c52] : memref<81xf32, #tpu.memory_space<smem>>
    %349 = vector.broadcast %348 : f32 to vector<2x14x14xf32>
    %350 = arith.mulf %349, %343 : vector<2x14x14xf32>
    %351 = arith.addf %338, %350 : vector<2x14x14xf32>
    %c79 = arith.constant 79 : index
    %352 = memref.load %arg1[%c79] : memref<81xf32, #tpu.memory_space<smem>>
    %353 = vector.broadcast %352 : f32 to vector<2x14x14xf32>
    %354 = arith.mulf %353, %343 : vector<2x14x14xf32>
    %355 = arith.addf %342, %354 : vector<2x14x14xf32>
    %356 = vector.extract_strided_slice %5 {offsets = [0, 2, 2], sizes = [2, 14, 14], strides = [1, 1, 1]} : vector<2x16x16xf32> to vector<2x14x14xf32>
    %c26 = arith.constant 26 : index
    %357 = memref.load %arg1[%c26] : memref<81xf32, #tpu.memory_space<smem>>
    %358 = vector.broadcast %357 : f32 to vector<2x14x14xf32>
    %359 = arith.mulf %358, %356 : vector<2x14x14xf32>
    %360 = arith.addf %347, %359 : vector<2x14x14xf32>
    %c53 = arith.constant 53 : index
    %361 = memref.load %arg1[%c53] : memref<81xf32, #tpu.memory_space<smem>>
    %362 = vector.broadcast %361 : f32 to vector<2x14x14xf32>
    %363 = arith.mulf %362, %356 : vector<2x14x14xf32>
    %364 = arith.addf %351, %363 : vector<2x14x14xf32>
    %c80 = arith.constant 80 : index
    %365 = memref.load %arg1[%c80] : memref<81xf32, #tpu.memory_space<smem>>
    %366 = vector.broadcast %365 : f32 to vector<2x14x14xf32>
    %367 = arith.mulf %366, %356 : vector<2x14x14xf32>
    %368 = arith.addf %355, %367 : vector<2x14x14xf32>
    %cst_17 = arith.constant 0.000000e+00 : f32
    %369 = vector.broadcast %cst_17 : f32 to vector<2x12x12xf32>
    %c0_18 = arith.constant 0 : index
    %370 = memref.load %arg4[%c0_18] : memref<3xf32, #tpu.memory_space<smem>>
    %371 = vector.broadcast %370 : f32 to vector<2x12x12xf32>
    %372 = arith.addf %369, %371 : vector<2x12x12xf32>
    %cst_19 = arith.constant 0.000000e+00 : f32
    %373 = vector.broadcast %cst_19 : f32 to vector<2x12x12xf32>
    %c1_20 = arith.constant 1 : index
    %374 = memref.load %arg4[%c1_20] : memref<3xf32, #tpu.memory_space<smem>>
    %375 = vector.broadcast %374 : f32 to vector<2x12x12xf32>
    %376 = arith.addf %373, %375 : vector<2x12x12xf32>
    %cst_21 = arith.constant 0.000000e+00 : f32
    %377 = vector.broadcast %cst_21 : f32 to vector<2x12x12xf32>
    %c2_22 = arith.constant 2 : index
    %378 = memref.load %arg4[%c2_22] : memref<3xf32, #tpu.memory_space<smem>>
    %379 = vector.broadcast %378 : f32 to vector<2x12x12xf32>
    %380 = arith.addf %377, %379 : vector<2x12x12xf32>
    %381 = vector.extract_strided_slice %360 {offsets = [0, 0, 0], sizes = [2, 12, 12], strides = [1, 1, 1]} : vector<2x14x14xf32> to vector<2x12x12xf32>
    %c0_23 = arith.constant 0 : index
    %382 = memref.load %arg3[%c0_23] : memref<81xf32, #tpu.memory_space<smem>>
    %383 = vector.broadcast %382 : f32 to vector<2x12x12xf32>
    %384 = arith.mulf %383, %381 : vector<2x12x12xf32>
    %385 = arith.addf %372, %384 : vector<2x12x12xf32>
    %c27_24 = arith.constant 27 : index
    %386 = memref.load %arg3[%c27_24] : memref<81xf32, #tpu.memory_space<smem>>
    %387 = vector.broadcast %386 : f32 to vector<2x12x12xf32>
    %388 = arith.mulf %387, %381 : vector<2x12x12xf32>
    %389 = arith.addf %376, %388 : vector<2x12x12xf32>
    %c54_25 = arith.constant 54 : index
    %390 = memref.load %arg3[%c54_25] : memref<81xf32, #tpu.memory_space<smem>>
    %391 = vector.broadcast %390 : f32 to vector<2x12x12xf32>
    %392 = arith.mulf %391, %381 : vector<2x12x12xf32>
    %393 = arith.addf %380, %392 : vector<2x12x12xf32>
    %394 = vector.extract_strided_slice %360 {offsets = [0, 0, 1], sizes = [2, 12, 12], strides = [1, 1, 1]} : vector<2x14x14xf32> to vector<2x12x12xf32>
    %c1_26 = arith.constant 1 : index
    %395 = memref.load %arg3[%c1_26] : memref<81xf32, #tpu.memory_space<smem>>
    %396 = vector.broadcast %395 : f32 to vector<2x12x12xf32>
    %397 = arith.mulf %396, %394 : vector<2x12x12xf32>
    %398 = arith.addf %385, %397 : vector<2x12x12xf32>
    %c28_27 = arith.constant 28 : index
    %399 = memref.load %arg3[%c28_27] : memref<81xf32, #tpu.memory_space<smem>>
    %400 = vector.broadcast %399 : f32 to vector<2x12x12xf32>
    %401 = arith.mulf %400, %394 : vector<2x12x12xf32>
    %402 = arith.addf %389, %401 : vector<2x12x12xf32>
    %c55_28 = arith.constant 55 : index
    %403 = memref.load %arg3[%c55_28] : memref<81xf32, #tpu.memory_space<smem>>
    %404 = vector.broadcast %403 : f32 to vector<2x12x12xf32>
    %405 = arith.mulf %404, %394 : vector<2x12x12xf32>
    %406 = arith.addf %393, %405 : vector<2x12x12xf32>
    %407 = vector.extract_strided_slice %360 {offsets = [0, 0, 2], sizes = [2, 12, 12], strides = [1, 1, 1]} : vector<2x14x14xf32> to vector<2x12x12xf32>
    %c2_29 = arith.constant 2 : index
    %408 = memref.load %arg3[%c2_29] : memref<81xf32, #tpu.memory_space<smem>>
    %409 = vector.broadcast %408 : f32 to vector<2x12x12xf32>
    %410 = arith.mulf %409, %407 : vector<2x12x12xf32>
    %411 = arith.addf %398, %410 : vector<2x12x12xf32>
    %c29_30 = arith.constant 29 : index
    %412 = memref.load %arg3[%c29_30] : memref<81xf32, #tpu.memory_space<smem>>
    %413 = vector.broadcast %412 : f32 to vector<2x12x12xf32>
    %414 = arith.mulf %413, %407 : vector<2x12x12xf32>
    %415 = arith.addf %402, %414 : vector<2x12x12xf32>
    %c56_31 = arith.constant 56 : index
    %416 = memref.load %arg3[%c56_31] : memref<81xf32, #tpu.memory_space<smem>>
    %417 = vector.broadcast %416 : f32 to vector<2x12x12xf32>
    %418 = arith.mulf %417, %407 : vector<2x12x12xf32>
    %419 = arith.addf %406, %418 : vector<2x12x12xf32>
    %420 = vector.extract_strided_slice %360 {offsets = [0, 1, 0], sizes = [2, 12, 12], strides = [1, 1, 1]} : vector<2x14x14xf32> to vector<2x12x12xf32>
    %c3_32 = arith.constant 3 : index
    %421 = memref.load %arg3[%c3_32] : memref<81xf32, #tpu.memory_space<smem>>
    %422 = vector.broadcast %421 : f32 to vector<2x12x12xf32>
    %423 = arith.mulf %422, %420 : vector<2x12x12xf32>
    %424 = arith.addf %411, %423 : vector<2x12x12xf32>
    %c30_33 = arith.constant 30 : index
    %425 = memref.load %arg3[%c30_33] : memref<81xf32, #tpu.memory_space<smem>>
    %426 = vector.broadcast %425 : f32 to vector<2x12x12xf32>
    %427 = arith.mulf %426, %420 : vector<2x12x12xf32>
    %428 = arith.addf %415, %427 : vector<2x12x12xf32>
    %c57_34 = arith.constant 57 : index
    %429 = memref.load %arg3[%c57_34] : memref<81xf32, #tpu.memory_space<smem>>
    %430 = vector.broadcast %429 : f32 to vector<2x12x12xf32>
    %431 = arith.mulf %430, %420 : vector<2x12x12xf32>
    %432 = arith.addf %419, %431 : vector<2x12x12xf32>
    %433 = vector.extract_strided_slice %360 {offsets = [0, 1, 1], sizes = [2, 12, 12], strides = [1, 1, 1]} : vector<2x14x14xf32> to vector<2x12x12xf32>
    %c4_35 = arith.constant 4 : index
    %434 = memref.load %arg3[%c4_35] : memref<81xf32, #tpu.memory_space<smem>>
    %435 = vector.broadcast %434 : f32 to vector<2x12x12xf32>
    %436 = arith.mulf %435, %433 : vector<2x12x12xf32>
    %437 = arith.addf %424, %436 : vector<2x12x12xf32>
    %c31_36 = arith.constant 31 : index
    %438 = memref.load %arg3[%c31_36] : memref<81xf32, #tpu.memory_space<smem>>
    %439 = vector.broadcast %438 : f32 to vector<2x12x12xf32>
    %440 = arith.mulf %439, %433 : vector<2x12x12xf32>
    %441 = arith.addf %428, %440 : vector<2x12x12xf32>
    %c58_37 = arith.constant 58 : index
    %442 = memref.load %arg3[%c58_37] : memref<81xf32, #tpu.memory_space<smem>>
    %443 = vector.broadcast %442 : f32 to vector<2x12x12xf32>
    %444 = arith.mulf %443, %433 : vector<2x12x12xf32>
    %445 = arith.addf %432, %444 : vector<2x12x12xf32>
    %446 = vector.extract_strided_slice %360 {offsets = [0, 1, 2], sizes = [2, 12, 12], strides = [1, 1, 1]} : vector<2x14x14xf32> to vector<2x12x12xf32>
    %c5_38 = arith.constant 5 : index
    %447 = memref.load %arg3[%c5_38] : memref<81xf32, #tpu.memory_space<smem>>
    %448 = vector.broadcast %447 : f32 to vector<2x12x12xf32>
    %449 = arith.mulf %448, %446 : vector<2x12x12xf32>
    %450 = arith.addf %437, %449 : vector<2x12x12xf32>
    %c32_39 = arith.constant 32 : index
    %451 = memref.load %arg3[%c32_39] : memref<81xf32, #tpu.memory_space<smem>>
    %452 = vector.broadcast %451 : f32 to vector<2x12x12xf32>
    %453 = arith.mulf %452, %446 : vector<2x12x12xf32>
    %454 = arith.addf %441, %453 : vector<2x12x12xf32>
    %c59_40 = arith.constant 59 : index
    %455 = memref.load %arg3[%c59_40] : memref<81xf32, #tpu.memory_space<smem>>
    %456 = vector.broadcast %455 : f32 to vector<2x12x12xf32>
    %457 = arith.mulf %456, %446 : vector<2x12x12xf32>
    %458 = arith.addf %445, %457 : vector<2x12x12xf32>
    %459 = vector.extract_strided_slice %360 {offsets = [0, 2, 0], sizes = [2, 12, 12], strides = [1, 1, 1]} : vector<2x14x14xf32> to vector<2x12x12xf32>
    %c6_41 = arith.constant 6 : index
    %460 = memref.load %arg3[%c6_41] : memref<81xf32, #tpu.memory_space<smem>>
    %461 = vector.broadcast %460 : f32 to vector<2x12x12xf32>
    %462 = arith.mulf %461, %459 : vector<2x12x12xf32>
    %463 = arith.addf %450, %462 : vector<2x12x12xf32>
    %c33_42 = arith.constant 33 : index
    %464 = memref.load %arg3[%c33_42] : memref<81xf32, #tpu.memory_space<smem>>
    %465 = vector.broadcast %464 : f32 to vector<2x12x12xf32>
    %466 = arith.mulf %465, %459 : vector<2x12x12xf32>
    %467 = arith.addf %454, %466 : vector<2x12x12xf32>
    %c60_43 = arith.constant 60 : index
    %468 = memref.load %arg3[%c60_43] : memref<81xf32, #tpu.memory_space<smem>>
    %469 = vector.broadcast %468 : f32 to vector<2x12x12xf32>
    %470 = arith.mulf %469, %459 : vector<2x12x12xf32>
    %471 = arith.addf %458, %470 : vector<2x12x12xf32>
    %472 = vector.extract_strided_slice %360 {offsets = [0, 2, 1], sizes = [2, 12, 12], strides = [1, 1, 1]} : vector<2x14x14xf32> to vector<2x12x12xf32>
    %c7_44 = arith.constant 7 : index
    %473 = memref.load %arg3[%c7_44] : memref<81xf32, #tpu.memory_space<smem>>
    %474 = vector.broadcast %473 : f32 to vector<2x12x12xf32>
    %475 = arith.mulf %474, %472 : vector<2x12x12xf32>
    %476 = arith.addf %463, %475 : vector<2x12x12xf32>
    %c34_45 = arith.constant 34 : index
    %477 = memref.load %arg3[%c34_45] : memref<81xf32, #tpu.memory_space<smem>>
    %478 = vector.broadcast %477 : f32 to vector<2x12x12xf32>
    %479 = arith.mulf %478, %472 : vector<2x12x12xf32>
    %480 = arith.addf %467, %479 : vector<2x12x12xf32>
    %c61_46 = arith.constant 61 : index
    %481 = memref.load %arg3[%c61_46] : memref<81xf32, #tpu.memory_space<smem>>
    %482 = vector.broadcast %481 : f32 to vector<2x12x12xf32>
    %483 = arith.mulf %482, %472 : vector<2x12x12xf32>
    %484 = arith.addf %471, %483 : vector<2x12x12xf32>
    %485 = vector.extract_strided_slice %360 {offsets = [0, 2, 2], sizes = [2, 12, 12], strides = [1, 1, 1]} : vector<2x14x14xf32> to vector<2x12x12xf32>
    %c8_47 = arith.constant 8 : index
    %486 = memref.load %arg3[%c8_47] : memref<81xf32, #tpu.memory_space<smem>>
    %487 = vector.broadcast %486 : f32 to vector<2x12x12xf32>
    %488 = arith.mulf %487, %485 : vector<2x12x12xf32>
    %489 = arith.addf %476, %488 : vector<2x12x12xf32>
    %c35_48 = arith.constant 35 : index
    %490 = memref.load %arg3[%c35_48] : memref<81xf32, #tpu.memory_space<smem>>
    %491 = vector.broadcast %490 : f32 to vector<2x12x12xf32>
    %492 = arith.mulf %491, %485 : vector<2x12x12xf32>
    %493 = arith.addf %480, %492 : vector<2x12x12xf32>
    %c62_49 = arith.constant 62 : index
    %494 = memref.load %arg3[%c62_49] : memref<81xf32, #tpu.memory_space<smem>>
    %495 = vector.broadcast %494 : f32 to vector<2x12x12xf32>
    %496 = arith.mulf %495, %485 : vector<2x12x12xf32>
    %497 = arith.addf %484, %496 : vector<2x12x12xf32>
    %498 = vector.extract_strided_slice %364 {offsets = [0, 0, 0], sizes = [2, 12, 12], strides = [1, 1, 1]} : vector<2x14x14xf32> to vector<2x12x12xf32>
    %c9_50 = arith.constant 9 : index
    %499 = memref.load %arg3[%c9_50] : memref<81xf32, #tpu.memory_space<smem>>
    %500 = vector.broadcast %499 : f32 to vector<2x12x12xf32>
    %501 = arith.mulf %500, %498 : vector<2x12x12xf32>
    %502 = arith.addf %489, %501 : vector<2x12x12xf32>
    %c36_51 = arith.constant 36 : index
    %503 = memref.load %arg3[%c36_51] : memref<81xf32, #tpu.memory_space<smem>>
    %504 = vector.broadcast %503 : f32 to vector<2x12x12xf32>
    %505 = arith.mulf %504, %498 : vector<2x12x12xf32>
    %506 = arith.addf %493, %505 : vector<2x12x12xf32>
    %c63_52 = arith.constant 63 : index
    %507 = memref.load %arg3[%c63_52] : memref<81xf32, #tpu.memory_space<smem>>
    %508 = vector.broadcast %507 : f32 to vector<2x12x12xf32>
    %509 = arith.mulf %508, %498 : vector<2x12x12xf32>
    %510 = arith.addf %497, %509 : vector<2x12x12xf32>
    %511 = vector.extract_strided_slice %364 {offsets = [0, 0, 1], sizes = [2, 12, 12], strides = [1, 1, 1]} : vector<2x14x14xf32> to vector<2x12x12xf32>
    %c10_53 = arith.constant 10 : index
    %512 = memref.load %arg3[%c10_53] : memref<81xf32, #tpu.memory_space<smem>>
    %513 = vector.broadcast %512 : f32 to vector<2x12x12xf32>
    %514 = arith.mulf %513, %511 : vector<2x12x12xf32>
    %515 = arith.addf %502, %514 : vector<2x12x12xf32>
    %c37_54 = arith.constant 37 : index
    %516 = memref.load %arg3[%c37_54] : memref<81xf32, #tpu.memory_space<smem>>
    %517 = vector.broadcast %516 : f32 to vector<2x12x12xf32>
    %518 = arith.mulf %517, %511 : vector<2x12x12xf32>
    %519 = arith.addf %506, %518 : vector<2x12x12xf32>
    %c64_55 = arith.constant 64 : index
    %520 = memref.load %arg3[%c64_55] : memref<81xf32, #tpu.memory_space<smem>>
    %521 = vector.broadcast %520 : f32 to vector<2x12x12xf32>
    %522 = arith.mulf %521, %511 : vector<2x12x12xf32>
    %523 = arith.addf %510, %522 : vector<2x12x12xf32>
    %524 = vector.extract_strided_slice %364 {offsets = [0, 0, 2], sizes = [2, 12, 12], strides = [1, 1, 1]} : vector<2x14x14xf32> to vector<2x12x12xf32>
    %c11_56 = arith.constant 11 : index
    %525 = memref.load %arg3[%c11_56] : memref<81xf32, #tpu.memory_space<smem>>
    %526 = vector.broadcast %525 : f32 to vector<2x12x12xf32>
    %527 = arith.mulf %526, %524 : vector<2x12x12xf32>
    %528 = arith.addf %515, %527 : vector<2x12x12xf32>
    %c38_57 = arith.constant 38 : index
    %529 = memref.load %arg3[%c38_57] : memref<81xf32, #tpu.memory_space<smem>>
    %530 = vector.broadcast %529 : f32 to vector<2x12x12xf32>
    %531 = arith.mulf %530, %524 : vector<2x12x12xf32>
    %532 = arith.addf %519, %531 : vector<2x12x12xf32>
    %c65_58 = arith.constant 65 : index
    %533 = memref.load %arg3[%c65_58] : memref<81xf32, #tpu.memory_space<smem>>
    %534 = vector.broadcast %533 : f32 to vector<2x12x12xf32>
    %535 = arith.mulf %534, %524 : vector<2x12x12xf32>
    %536 = arith.addf %523, %535 : vector<2x12x12xf32>
    %537 = vector.extract_strided_slice %364 {offsets = [0, 1, 0], sizes = [2, 12, 12], strides = [1, 1, 1]} : vector<2x14x14xf32> to vector<2x12x12xf32>
    %c12_59 = arith.constant 12 : index
    %538 = memref.load %arg3[%c12_59] : memref<81xf32, #tpu.memory_space<smem>>
    %539 = vector.broadcast %538 : f32 to vector<2x12x12xf32>
    %540 = arith.mulf %539, %537 : vector<2x12x12xf32>
    %541 = arith.addf %528, %540 : vector<2x12x12xf32>
    %c39_60 = arith.constant 39 : index
    %542 = memref.load %arg3[%c39_60] : memref<81xf32, #tpu.memory_space<smem>>
    %543 = vector.broadcast %542 : f32 to vector<2x12x12xf32>
    %544 = arith.mulf %543, %537 : vector<2x12x12xf32>
    %545 = arith.addf %532, %544 : vector<2x12x12xf32>
    %c66_61 = arith.constant 66 : index
    %546 = memref.load %arg3[%c66_61] : memref<81xf32, #tpu.memory_space<smem>>
    %547 = vector.broadcast %546 : f32 to vector<2x12x12xf32>
    %548 = arith.mulf %547, %537 : vector<2x12x12xf32>
    %549 = arith.addf %536, %548 : vector<2x12x12xf32>
    %550 = vector.extract_strided_slice %364 {offsets = [0, 1, 1], sizes = [2, 12, 12], strides = [1, 1, 1]} : vector<2x14x14xf32> to vector<2x12x12xf32>
    %c13_62 = arith.constant 13 : index
    %551 = memref.load %arg3[%c13_62] : memref<81xf32, #tpu.memory_space<smem>>
    %552 = vector.broadcast %551 : f32 to vector<2x12x12xf32>
    %553 = arith.mulf %552, %550 : vector<2x12x12xf32>
    %554 = arith.addf %541, %553 : vector<2x12x12xf32>
    %c40_63 = arith.constant 40 : index
    %555 = memref.load %arg3[%c40_63] : memref<81xf32, #tpu.memory_space<smem>>
    %556 = vector.broadcast %555 : f32 to vector<2x12x12xf32>
    %557 = arith.mulf %556, %550 : vector<2x12x12xf32>
    %558 = arith.addf %545, %557 : vector<2x12x12xf32>
    %c67_64 = arith.constant 67 : index
    %559 = memref.load %arg3[%c67_64] : memref<81xf32, #tpu.memory_space<smem>>
    %560 = vector.broadcast %559 : f32 to vector<2x12x12xf32>
    %561 = arith.mulf %560, %550 : vector<2x12x12xf32>
    %562 = arith.addf %549, %561 : vector<2x12x12xf32>
    %563 = vector.extract_strided_slice %364 {offsets = [0, 1, 2], sizes = [2, 12, 12], strides = [1, 1, 1]} : vector<2x14x14xf32> to vector<2x12x12xf32>
    %c14_65 = arith.constant 14 : index
    %564 = memref.load %arg3[%c14_65] : memref<81xf32, #tpu.memory_space<smem>>
    %565 = vector.broadcast %564 : f32 to vector<2x12x12xf32>
    %566 = arith.mulf %565, %563 : vector<2x12x12xf32>
    %567 = arith.addf %554, %566 : vector<2x12x12xf32>
    %c41_66 = arith.constant 41 : index
    %568 = memref.load %arg3[%c41_66] : memref<81xf32, #tpu.memory_space<smem>>
    %569 = vector.broadcast %568 : f32 to vector<2x12x12xf32>
    %570 = arith.mulf %569, %563 : vector<2x12x12xf32>
    %571 = arith.addf %558, %570 : vector<2x12x12xf32>
    %c68_67 = arith.constant 68 : index
    %572 = memref.load %arg3[%c68_67] : memref<81xf32, #tpu.memory_space<smem>>
    %573 = vector.broadcast %572 : f32 to vector<2x12x12xf32>
    %574 = arith.mulf %573, %563 : vector<2x12x12xf32>
    %575 = arith.addf %562, %574 : vector<2x12x12xf32>
    %576 = vector.extract_strided_slice %364 {offsets = [0, 2, 0], sizes = [2, 12, 12], strides = [1, 1, 1]} : vector<2x14x14xf32> to vector<2x12x12xf32>
    %c15_68 = arith.constant 15 : index
    %577 = memref.load %arg3[%c15_68] : memref<81xf32, #tpu.memory_space<smem>>
    %578 = vector.broadcast %577 : f32 to vector<2x12x12xf32>
    %579 = arith.mulf %578, %576 : vector<2x12x12xf32>
    %580 = arith.addf %567, %579 : vector<2x12x12xf32>
    %c42_69 = arith.constant 42 : index
    %581 = memref.load %arg3[%c42_69] : memref<81xf32, #tpu.memory_space<smem>>
    %582 = vector.broadcast %581 : f32 to vector<2x12x12xf32>
    %583 = arith.mulf %582, %576 : vector<2x12x12xf32>
    %584 = arith.addf %571, %583 : vector<2x12x12xf32>
    %c69_70 = arith.constant 69 : index
    %585 = memref.load %arg3[%c69_70] : memref<81xf32, #tpu.memory_space<smem>>
    %586 = vector.broadcast %585 : f32 to vector<2x12x12xf32>
    %587 = arith.mulf %586, %576 : vector<2x12x12xf32>
    %588 = arith.addf %575, %587 : vector<2x12x12xf32>
    %589 = vector.extract_strided_slice %364 {offsets = [0, 2, 1], sizes = [2, 12, 12], strides = [1, 1, 1]} : vector<2x14x14xf32> to vector<2x12x12xf32>
    %c16_71 = arith.constant 16 : index
    %590 = memref.load %arg3[%c16_71] : memref<81xf32, #tpu.memory_space<smem>>
    %591 = vector.broadcast %590 : f32 to vector<2x12x12xf32>
    %592 = arith.mulf %591, %589 : vector<2x12x12xf32>
    %593 = arith.addf %580, %592 : vector<2x12x12xf32>
    %c43_72 = arith.constant 43 : index
    %594 = memref.load %arg3[%c43_72] : memref<81xf32, #tpu.memory_space<smem>>
    %595 = vector.broadcast %594 : f32 to vector<2x12x12xf32>
    %596 = arith.mulf %595, %589 : vector<2x12x12xf32>
    %597 = arith.addf %584, %596 : vector<2x12x12xf32>
    %c70_73 = arith.constant 70 : index
    %598 = memref.load %arg3[%c70_73] : memref<81xf32, #tpu.memory_space<smem>>
    %599 = vector.broadcast %598 : f32 to vector<2x12x12xf32>
    %600 = arith.mulf %599, %589 : vector<2x12x12xf32>
    %601 = arith.addf %588, %600 : vector<2x12x12xf32>
    %602 = vector.extract_strided_slice %364 {offsets = [0, 2, 2], sizes = [2, 12, 12], strides = [1, 1, 1]} : vector<2x14x14xf32> to vector<2x12x12xf32>
    %c17_74 = arith.constant 17 : index
    %603 = memref.load %arg3[%c17_74] : memref<81xf32, #tpu.memory_space<smem>>
    %604 = vector.broadcast %603 : f32 to vector<2x12x12xf32>
    %605 = arith.mulf %604, %602 : vector<2x12x12xf32>
    %606 = arith.addf %593, %605 : vector<2x12x12xf32>
    %c44_75 = arith.constant 44 : index
    %607 = memref.load %arg3[%c44_75] : memref<81xf32, #tpu.memory_space<smem>>
    %608 = vector.broadcast %607 : f32 to vector<2x12x12xf32>
    %609 = arith.mulf %608, %602 : vector<2x12x12xf32>
    %610 = arith.addf %597, %609 : vector<2x12x12xf32>
    %c71_76 = arith.constant 71 : index
    %611 = memref.load %arg3[%c71_76] : memref<81xf32, #tpu.memory_space<smem>>
    %612 = vector.broadcast %611 : f32 to vector<2x12x12xf32>
    %613 = arith.mulf %612, %602 : vector<2x12x12xf32>
    %614 = arith.addf %601, %613 : vector<2x12x12xf32>
    %615 = vector.extract_strided_slice %368 {offsets = [0, 0, 0], sizes = [2, 12, 12], strides = [1, 1, 1]} : vector<2x14x14xf32> to vector<2x12x12xf32>
    %c18_77 = arith.constant 18 : index
    %616 = memref.load %arg3[%c18_77] : memref<81xf32, #tpu.memory_space<smem>>
    %617 = vector.broadcast %616 : f32 to vector<2x12x12xf32>
    %618 = arith.mulf %617, %615 : vector<2x12x12xf32>
    %619 = arith.addf %606, %618 : vector<2x12x12xf32>
    %c45_78 = arith.constant 45 : index
    %620 = memref.load %arg3[%c45_78] : memref<81xf32, #tpu.memory_space<smem>>
    %621 = vector.broadcast %620 : f32 to vector<2x12x12xf32>
    %622 = arith.mulf %621, %615 : vector<2x12x12xf32>
    %623 = arith.addf %610, %622 : vector<2x12x12xf32>
    %c72_79 = arith.constant 72 : index
    %624 = memref.load %arg3[%c72_79] : memref<81xf32, #tpu.memory_space<smem>>
    %625 = vector.broadcast %624 : f32 to vector<2x12x12xf32>
    %626 = arith.mulf %625, %615 : vector<2x12x12xf32>
    %627 = arith.addf %614, %626 : vector<2x12x12xf32>
    %628 = vector.extract_strided_slice %368 {offsets = [0, 0, 1], sizes = [2, 12, 12], strides = [1, 1, 1]} : vector<2x14x14xf32> to vector<2x12x12xf32>
    %c19_80 = arith.constant 19 : index
    %629 = memref.load %arg3[%c19_80] : memref<81xf32, #tpu.memory_space<smem>>
    %630 = vector.broadcast %629 : f32 to vector<2x12x12xf32>
    %631 = arith.mulf %630, %628 : vector<2x12x12xf32>
    %632 = arith.addf %619, %631 : vector<2x12x12xf32>
    %c46_81 = arith.constant 46 : index
    %633 = memref.load %arg3[%c46_81] : memref<81xf32, #tpu.memory_space<smem>>
    %634 = vector.broadcast %633 : f32 to vector<2x12x12xf32>
    %635 = arith.mulf %634, %628 : vector<2x12x12xf32>
    %636 = arith.addf %623, %635 : vector<2x12x12xf32>
    %c73_82 = arith.constant 73 : index
    %637 = memref.load %arg3[%c73_82] : memref<81xf32, #tpu.memory_space<smem>>
    %638 = vector.broadcast %637 : f32 to vector<2x12x12xf32>
    %639 = arith.mulf %638, %628 : vector<2x12x12xf32>
    %640 = arith.addf %627, %639 : vector<2x12x12xf32>
    %641 = vector.extract_strided_slice %368 {offsets = [0, 0, 2], sizes = [2, 12, 12], strides = [1, 1, 1]} : vector<2x14x14xf32> to vector<2x12x12xf32>
    %c20_83 = arith.constant 20 : index
    %642 = memref.load %arg3[%c20_83] : memref<81xf32, #tpu.memory_space<smem>>
    %643 = vector.broadcast %642 : f32 to vector<2x12x12xf32>
    %644 = arith.mulf %643, %641 : vector<2x12x12xf32>
    %645 = arith.addf %632, %644 : vector<2x12x12xf32>
    %c47_84 = arith.constant 47 : index
    %646 = memref.load %arg3[%c47_84] : memref<81xf32, #tpu.memory_space<smem>>
    %647 = vector.broadcast %646 : f32 to vector<2x12x12xf32>
    %648 = arith.mulf %647, %641 : vector<2x12x12xf32>
    %649 = arith.addf %636, %648 : vector<2x12x12xf32>
    %c74_85 = arith.constant 74 : index
    %650 = memref.load %arg3[%c74_85] : memref<81xf32, #tpu.memory_space<smem>>
    %651 = vector.broadcast %650 : f32 to vector<2x12x12xf32>
    %652 = arith.mulf %651, %641 : vector<2x12x12xf32>
    %653 = arith.addf %640, %652 : vector<2x12x12xf32>
    %654 = vector.extract_strided_slice %368 {offsets = [0, 1, 0], sizes = [2, 12, 12], strides = [1, 1, 1]} : vector<2x14x14xf32> to vector<2x12x12xf32>
    %c21_86 = arith.constant 21 : index
    %655 = memref.load %arg3[%c21_86] : memref<81xf32, #tpu.memory_space<smem>>
    %656 = vector.broadcast %655 : f32 to vector<2x12x12xf32>
    %657 = arith.mulf %656, %654 : vector<2x12x12xf32>
    %658 = arith.addf %645, %657 : vector<2x12x12xf32>
    %c48_87 = arith.constant 48 : index
    %659 = memref.load %arg3[%c48_87] : memref<81xf32, #tpu.memory_space<smem>>
    %660 = vector.broadcast %659 : f32 to vector<2x12x12xf32>
    %661 = arith.mulf %660, %654 : vector<2x12x12xf32>
    %662 = arith.addf %649, %661 : vector<2x12x12xf32>
    %c75_88 = arith.constant 75 : index
    %663 = memref.load %arg3[%c75_88] : memref<81xf32, #tpu.memory_space<smem>>
    %664 = vector.broadcast %663 : f32 to vector<2x12x12xf32>
    %665 = arith.mulf %664, %654 : vector<2x12x12xf32>
    %666 = arith.addf %653, %665 : vector<2x12x12xf32>
    %667 = vector.extract_strided_slice %368 {offsets = [0, 1, 1], sizes = [2, 12, 12], strides = [1, 1, 1]} : vector<2x14x14xf32> to vector<2x12x12xf32>
    %c22_89 = arith.constant 22 : index
    %668 = memref.load %arg3[%c22_89] : memref<81xf32, #tpu.memory_space<smem>>
    %669 = vector.broadcast %668 : f32 to vector<2x12x12xf32>
    %670 = arith.mulf %669, %667 : vector<2x12x12xf32>
    %671 = arith.addf %658, %670 : vector<2x12x12xf32>
    %c49_90 = arith.constant 49 : index
    %672 = memref.load %arg3[%c49_90] : memref<81xf32, #tpu.memory_space<smem>>
    %673 = vector.broadcast %672 : f32 to vector<2x12x12xf32>
    %674 = arith.mulf %673, %667 : vector<2x12x12xf32>
    %675 = arith.addf %662, %674 : vector<2x12x12xf32>
    %c76_91 = arith.constant 76 : index
    %676 = memref.load %arg3[%c76_91] : memref<81xf32, #tpu.memory_space<smem>>
    %677 = vector.broadcast %676 : f32 to vector<2x12x12xf32>
    %678 = arith.mulf %677, %667 : vector<2x12x12xf32>
    %679 = arith.addf %666, %678 : vector<2x12x12xf32>
    %680 = vector.extract_strided_slice %368 {offsets = [0, 1, 2], sizes = [2, 12, 12], strides = [1, 1, 1]} : vector<2x14x14xf32> to vector<2x12x12xf32>
    %c23_92 = arith.constant 23 : index
    %681 = memref.load %arg3[%c23_92] : memref<81xf32, #tpu.memory_space<smem>>
    %682 = vector.broadcast %681 : f32 to vector<2x12x12xf32>
    %683 = arith.mulf %682, %680 : vector<2x12x12xf32>
    %684 = arith.addf %671, %683 : vector<2x12x12xf32>
    %c50_93 = arith.constant 50 : index
    %685 = memref.load %arg3[%c50_93] : memref<81xf32, #tpu.memory_space<smem>>
    %686 = vector.broadcast %685 : f32 to vector<2x12x12xf32>
    %687 = arith.mulf %686, %680 : vector<2x12x12xf32>
    %688 = arith.addf %675, %687 : vector<2x12x12xf32>
    %c77_94 = arith.constant 77 : index
    %689 = memref.load %arg3[%c77_94] : memref<81xf32, #tpu.memory_space<smem>>
    %690 = vector.broadcast %689 : f32 to vector<2x12x12xf32>
    %691 = arith.mulf %690, %680 : vector<2x12x12xf32>
    %692 = arith.addf %679, %691 : vector<2x12x12xf32>
    %693 = vector.extract_strided_slice %368 {offsets = [0, 2, 0], sizes = [2, 12, 12], strides = [1, 1, 1]} : vector<2x14x14xf32> to vector<2x12x12xf32>
    %c24_95 = arith.constant 24 : index
    %694 = memref.load %arg3[%c24_95] : memref<81xf32, #tpu.memory_space<smem>>
    %695 = vector.broadcast %694 : f32 to vector<2x12x12xf32>
    %696 = arith.mulf %695, %693 : vector<2x12x12xf32>
    %697 = arith.addf %684, %696 : vector<2x12x12xf32>
    %c51_96 = arith.constant 51 : index
    %698 = memref.load %arg3[%c51_96] : memref<81xf32, #tpu.memory_space<smem>>
    %699 = vector.broadcast %698 : f32 to vector<2x12x12xf32>
    %700 = arith.mulf %699, %693 : vector<2x12x12xf32>
    %701 = arith.addf %688, %700 : vector<2x12x12xf32>
    %c78_97 = arith.constant 78 : index
    %702 = memref.load %arg3[%c78_97] : memref<81xf32, #tpu.memory_space<smem>>
    %703 = vector.broadcast %702 : f32 to vector<2x12x12xf32>
    %704 = arith.mulf %703, %693 : vector<2x12x12xf32>
    %705 = arith.addf %692, %704 : vector<2x12x12xf32>
    %706 = vector.extract_strided_slice %368 {offsets = [0, 2, 1], sizes = [2, 12, 12], strides = [1, 1, 1]} : vector<2x14x14xf32> to vector<2x12x12xf32>
    %c25_98 = arith.constant 25 : index
    %707 = memref.load %arg3[%c25_98] : memref<81xf32, #tpu.memory_space<smem>>
    %708 = vector.broadcast %707 : f32 to vector<2x12x12xf32>
    %709 = arith.mulf %708, %706 : vector<2x12x12xf32>
    %710 = arith.addf %697, %709 : vector<2x12x12xf32>
    %c52_99 = arith.constant 52 : index
    %711 = memref.load %arg3[%c52_99] : memref<81xf32, #tpu.memory_space<smem>>
    %712 = vector.broadcast %711 : f32 to vector<2x12x12xf32>
    %713 = arith.mulf %712, %706 : vector<2x12x12xf32>
    %714 = arith.addf %701, %713 : vector<2x12x12xf32>
    %c79_100 = arith.constant 79 : index
    %715 = memref.load %arg3[%c79_100] : memref<81xf32, #tpu.memory_space<smem>>
    %716 = vector.broadcast %715 : f32 to vector<2x12x12xf32>
    %717 = arith.mulf %716, %706 : vector<2x12x12xf32>
    %718 = arith.addf %705, %717 : vector<2x12x12xf32>
    %719 = vector.extract_strided_slice %368 {offsets = [0, 2, 2], sizes = [2, 12, 12], strides = [1, 1, 1]} : vector<2x14x14xf32> to vector<2x12x12xf32>
    %c26_101 = arith.constant 26 : index
    %720 = memref.load %arg3[%c26_101] : memref<81xf32, #tpu.memory_space<smem>>
    %721 = vector.broadcast %720 : f32 to vector<2x12x12xf32>
    %722 = arith.mulf %721, %719 : vector<2x12x12xf32>
    %723 = arith.addf %710, %722 : vector<2x12x12xf32>
    %c53_102 = arith.constant 53 : index
    %724 = memref.load %arg3[%c53_102] : memref<81xf32, #tpu.memory_space<smem>>
    %725 = vector.broadcast %724 : f32 to vector<2x12x12xf32>
    %726 = arith.mulf %725, %719 : vector<2x12x12xf32>
    %727 = arith.addf %714, %726 : vector<2x12x12xf32>
    %c80_103 = arith.constant 80 : index
    %728 = memref.load %arg3[%c80_103] : memref<81xf32, #tpu.memory_space<smem>>
    %729 = vector.broadcast %728 : f32 to vector<2x12x12xf32>
    %730 = arith.mulf %729, %719 : vector<2x12x12xf32>
    %731 = arith.addf %718, %730 : vector<2x12x12xf32>
    %cst_104 = arith.constant 0.000000e+00 : f32
    %732 = vector.broadcast %cst_104 : f32 to vector<2x10x10xf32>
    %c0_105 = arith.constant 0 : index
    %733 = memref.load %arg6[%c0_105] : memref<3xf32, #tpu.memory_space<smem>>
    %734 = vector.broadcast %733 : f32 to vector<2x10x10xf32>
    %735 = arith.addf %732, %734 : vector<2x10x10xf32>
    %cst_106 = arith.constant 0.000000e+00 : f32
    %736 = vector.broadcast %cst_106 : f32 to vector<2x10x10xf32>
    %c1_107 = arith.constant 1 : index
    %737 = memref.load %arg6[%c1_107] : memref<3xf32, #tpu.memory_space<smem>>
    %738 = vector.broadcast %737 : f32 to vector<2x10x10xf32>
    %739 = arith.addf %736, %738 : vector<2x10x10xf32>
    %cst_108 = arith.constant 0.000000e+00 : f32
    %740 = vector.broadcast %cst_108 : f32 to vector<2x10x10xf32>
    %c2_109 = arith.constant 2 : index
    %741 = memref.load %arg6[%c2_109] : memref<3xf32, #tpu.memory_space<smem>>
    %742 = vector.broadcast %741 : f32 to vector<2x10x10xf32>
    %743 = arith.addf %740, %742 : vector<2x10x10xf32>
    %744 = vector.extract_strided_slice %723 {offsets = [0, 0, 0], sizes = [2, 10, 10], strides = [1, 1, 1]} : vector<2x12x12xf32> to vector<2x10x10xf32>
    %c0_110 = arith.constant 0 : index
    %745 = memref.load %arg5[%c0_110] : memref<81xf32, #tpu.memory_space<smem>>
    %746 = vector.broadcast %745 : f32 to vector<2x10x10xf32>
    %747 = arith.mulf %746, %744 : vector<2x10x10xf32>
    %748 = arith.addf %735, %747 : vector<2x10x10xf32>
    %c27_111 = arith.constant 27 : index
    %749 = memref.load %arg5[%c27_111] : memref<81xf32, #tpu.memory_space<smem>>
    %750 = vector.broadcast %749 : f32 to vector<2x10x10xf32>
    %751 = arith.mulf %750, %744 : vector<2x10x10xf32>
    %752 = arith.addf %739, %751 : vector<2x10x10xf32>
    %c54_112 = arith.constant 54 : index
    %753 = memref.load %arg5[%c54_112] : memref<81xf32, #tpu.memory_space<smem>>
    %754 = vector.broadcast %753 : f32 to vector<2x10x10xf32>
    %755 = arith.mulf %754, %744 : vector<2x10x10xf32>
    %756 = arith.addf %743, %755 : vector<2x10x10xf32>
    %757 = vector.extract_strided_slice %723 {offsets = [0, 0, 1], sizes = [2, 10, 10], strides = [1, 1, 1]} : vector<2x12x12xf32> to vector<2x10x10xf32>
    %c1_113 = arith.constant 1 : index
    %758 = memref.load %arg5[%c1_113] : memref<81xf32, #tpu.memory_space<smem>>
    %759 = vector.broadcast %758 : f32 to vector<2x10x10xf32>
    %760 = arith.mulf %759, %757 : vector<2x10x10xf32>
    %761 = arith.addf %748, %760 : vector<2x10x10xf32>
    %c28_114 = arith.constant 28 : index
    %762 = memref.load %arg5[%c28_114] : memref<81xf32, #tpu.memory_space<smem>>
    %763 = vector.broadcast %762 : f32 to vector<2x10x10xf32>
    %764 = arith.mulf %763, %757 : vector<2x10x10xf32>
    %765 = arith.addf %752, %764 : vector<2x10x10xf32>
    %c55_115 = arith.constant 55 : index
    %766 = memref.load %arg5[%c55_115] : memref<81xf32, #tpu.memory_space<smem>>
    %767 = vector.broadcast %766 : f32 to vector<2x10x10xf32>
    %768 = arith.mulf %767, %757 : vector<2x10x10xf32>
    %769 = arith.addf %756, %768 : vector<2x10x10xf32>
    %770 = vector.extract_strided_slice %723 {offsets = [0, 0, 2], sizes = [2, 10, 10], strides = [1, 1, 1]} : vector<2x12x12xf32> to vector<2x10x10xf32>
    %c2_116 = arith.constant 2 : index
    %771 = memref.load %arg5[%c2_116] : memref<81xf32, #tpu.memory_space<smem>>
    %772 = vector.broadcast %771 : f32 to vector<2x10x10xf32>
    %773 = arith.mulf %772, %770 : vector<2x10x10xf32>
    %774 = arith.addf %761, %773 : vector<2x10x10xf32>
    %c29_117 = arith.constant 29 : index
    %775 = memref.load %arg5[%c29_117] : memref<81xf32, #tpu.memory_space<smem>>
    %776 = vector.broadcast %775 : f32 to vector<2x10x10xf32>
    %777 = arith.mulf %776, %770 : vector<2x10x10xf32>
    %778 = arith.addf %765, %777 : vector<2x10x10xf32>
    %c56_118 = arith.constant 56 : index
    %779 = memref.load %arg5[%c56_118] : memref<81xf32, #tpu.memory_space<smem>>
    %780 = vector.broadcast %779 : f32 to vector<2x10x10xf32>
    %781 = arith.mulf %780, %770 : vector<2x10x10xf32>
    %782 = arith.addf %769, %781 : vector<2x10x10xf32>
    %783 = vector.extract_strided_slice %723 {offsets = [0, 1, 0], sizes = [2, 10, 10], strides = [1, 1, 1]} : vector<2x12x12xf32> to vector<2x10x10xf32>
    %c3_119 = arith.constant 3 : index
    %784 = memref.load %arg5[%c3_119] : memref<81xf32, #tpu.memory_space<smem>>
    %785 = vector.broadcast %784 : f32 to vector<2x10x10xf32>
    %786 = arith.mulf %785, %783 : vector<2x10x10xf32>
    %787 = arith.addf %774, %786 : vector<2x10x10xf32>
    %c30_120 = arith.constant 30 : index
    %788 = memref.load %arg5[%c30_120] : memref<81xf32, #tpu.memory_space<smem>>
    %789 = vector.broadcast %788 : f32 to vector<2x10x10xf32>
    %790 = arith.mulf %789, %783 : vector<2x10x10xf32>
    %791 = arith.addf %778, %790 : vector<2x10x10xf32>
    %c57_121 = arith.constant 57 : index
    %792 = memref.load %arg5[%c57_121] : memref<81xf32, #tpu.memory_space<smem>>
    %793 = vector.broadcast %792 : f32 to vector<2x10x10xf32>
    %794 = arith.mulf %793, %783 : vector<2x10x10xf32>
    %795 = arith.addf %782, %794 : vector<2x10x10xf32>
    %796 = vector.extract_strided_slice %723 {offsets = [0, 1, 1], sizes = [2, 10, 10], strides = [1, 1, 1]} : vector<2x12x12xf32> to vector<2x10x10xf32>
    %c4_122 = arith.constant 4 : index
    %797 = memref.load %arg5[%c4_122] : memref<81xf32, #tpu.memory_space<smem>>
    %798 = vector.broadcast %797 : f32 to vector<2x10x10xf32>
    %799 = arith.mulf %798, %796 : vector<2x10x10xf32>
    %800 = arith.addf %787, %799 : vector<2x10x10xf32>
    %c31_123 = arith.constant 31 : index
    %801 = memref.load %arg5[%c31_123] : memref<81xf32, #tpu.memory_space<smem>>
    %802 = vector.broadcast %801 : f32 to vector<2x10x10xf32>
    %803 = arith.mulf %802, %796 : vector<2x10x10xf32>
    %804 = arith.addf %791, %803 : vector<2x10x10xf32>
    %c58_124 = arith.constant 58 : index
    %805 = memref.load %arg5[%c58_124] : memref<81xf32, #tpu.memory_space<smem>>
    %806 = vector.broadcast %805 : f32 to vector<2x10x10xf32>
    %807 = arith.mulf %806, %796 : vector<2x10x10xf32>
    %808 = arith.addf %795, %807 : vector<2x10x10xf32>
    %809 = vector.extract_strided_slice %723 {offsets = [0, 1, 2], sizes = [2, 10, 10], strides = [1, 1, 1]} : vector<2x12x12xf32> to vector<2x10x10xf32>
    %c5_125 = arith.constant 5 : index
    %810 = memref.load %arg5[%c5_125] : memref<81xf32, #tpu.memory_space<smem>>
    %811 = vector.broadcast %810 : f32 to vector<2x10x10xf32>
    %812 = arith.mulf %811, %809 : vector<2x10x10xf32>
    %813 = arith.addf %800, %812 : vector<2x10x10xf32>
    %c32_126 = arith.constant 32 : index
    %814 = memref.load %arg5[%c32_126] : memref<81xf32, #tpu.memory_space<smem>>
    %815 = vector.broadcast %814 : f32 to vector<2x10x10xf32>
    %816 = arith.mulf %815, %809 : vector<2x10x10xf32>
    %817 = arith.addf %804, %816 : vector<2x10x10xf32>
    %c59_127 = arith.constant 59 : index
    %818 = memref.load %arg5[%c59_127] : memref<81xf32, #tpu.memory_space<smem>>
    %819 = vector.broadcast %818 : f32 to vector<2x10x10xf32>
    %820 = arith.mulf %819, %809 : vector<2x10x10xf32>
    %821 = arith.addf %808, %820 : vector<2x10x10xf32>
    %822 = vector.extract_strided_slice %723 {offsets = [0, 2, 0], sizes = [2, 10, 10], strides = [1, 1, 1]} : vector<2x12x12xf32> to vector<2x10x10xf32>
    %c6_128 = arith.constant 6 : index
    %823 = memref.load %arg5[%c6_128] : memref<81xf32, #tpu.memory_space<smem>>
    %824 = vector.broadcast %823 : f32 to vector<2x10x10xf32>
    %825 = arith.mulf %824, %822 : vector<2x10x10xf32>
    %826 = arith.addf %813, %825 : vector<2x10x10xf32>
    %c33_129 = arith.constant 33 : index
    %827 = memref.load %arg5[%c33_129] : memref<81xf32, #tpu.memory_space<smem>>
    %828 = vector.broadcast %827 : f32 to vector<2x10x10xf32>
    %829 = arith.mulf %828, %822 : vector<2x10x10xf32>
    %830 = arith.addf %817, %829 : vector<2x10x10xf32>
    %c60_130 = arith.constant 60 : index
    %831 = memref.load %arg5[%c60_130] : memref<81xf32, #tpu.memory_space<smem>>
    %832 = vector.broadcast %831 : f32 to vector<2x10x10xf32>
    %833 = arith.mulf %832, %822 : vector<2x10x10xf32>
    %834 = arith.addf %821, %833 : vector<2x10x10xf32>
    %835 = vector.extract_strided_slice %723 {offsets = [0, 2, 1], sizes = [2, 10, 10], strides = [1, 1, 1]} : vector<2x12x12xf32> to vector<2x10x10xf32>
    %c7_131 = arith.constant 7 : index
    %836 = memref.load %arg5[%c7_131] : memref<81xf32, #tpu.memory_space<smem>>
    %837 = vector.broadcast %836 : f32 to vector<2x10x10xf32>
    %838 = arith.mulf %837, %835 : vector<2x10x10xf32>
    %839 = arith.addf %826, %838 : vector<2x10x10xf32>
    %c34_132 = arith.constant 34 : index
    %840 = memref.load %arg5[%c34_132] : memref<81xf32, #tpu.memory_space<smem>>
    %841 = vector.broadcast %840 : f32 to vector<2x10x10xf32>
    %842 = arith.mulf %841, %835 : vector<2x10x10xf32>
    %843 = arith.addf %830, %842 : vector<2x10x10xf32>
    %c61_133 = arith.constant 61 : index
    %844 = memref.load %arg5[%c61_133] : memref<81xf32, #tpu.memory_space<smem>>
    %845 = vector.broadcast %844 : f32 to vector<2x10x10xf32>
    %846 = arith.mulf %845, %835 : vector<2x10x10xf32>
    %847 = arith.addf %834, %846 : vector<2x10x10xf32>
    %848 = vector.extract_strided_slice %723 {offsets = [0, 2, 2], sizes = [2, 10, 10], strides = [1, 1, 1]} : vector<2x12x12xf32> to vector<2x10x10xf32>
    %c8_134 = arith.constant 8 : index
    %849 = memref.load %arg5[%c8_134] : memref<81xf32, #tpu.memory_space<smem>>
    %850 = vector.broadcast %849 : f32 to vector<2x10x10xf32>
    %851 = arith.mulf %850, %848 : vector<2x10x10xf32>
    %852 = arith.addf %839, %851 : vector<2x10x10xf32>
    %c35_135 = arith.constant 35 : index
    %853 = memref.load %arg5[%c35_135] : memref<81xf32, #tpu.memory_space<smem>>
    %854 = vector.broadcast %853 : f32 to vector<2x10x10xf32>
    %855 = arith.mulf %854, %848 : vector<2x10x10xf32>
    %856 = arith.addf %843, %855 : vector<2x10x10xf32>
    %c62_136 = arith.constant 62 : index
    %857 = memref.load %arg5[%c62_136] : memref<81xf32, #tpu.memory_space<smem>>
    %858 = vector.broadcast %857 : f32 to vector<2x10x10xf32>
    %859 = arith.mulf %858, %848 : vector<2x10x10xf32>
    %860 = arith.addf %847, %859 : vector<2x10x10xf32>
    %861 = vector.extract_strided_slice %727 {offsets = [0, 0, 0], sizes = [2, 10, 10], strides = [1, 1, 1]} : vector<2x12x12xf32> to vector<2x10x10xf32>
    %c9_137 = arith.constant 9 : index
    %862 = memref.load %arg5[%c9_137] : memref<81xf32, #tpu.memory_space<smem>>
    %863 = vector.broadcast %862 : f32 to vector<2x10x10xf32>
    %864 = arith.mulf %863, %861 : vector<2x10x10xf32>
    %865 = arith.addf %852, %864 : vector<2x10x10xf32>
    %c36_138 = arith.constant 36 : index
    %866 = memref.load %arg5[%c36_138] : memref<81xf32, #tpu.memory_space<smem>>
    %867 = vector.broadcast %866 : f32 to vector<2x10x10xf32>
    %868 = arith.mulf %867, %861 : vector<2x10x10xf32>
    %869 = arith.addf %856, %868 : vector<2x10x10xf32>
    %c63_139 = arith.constant 63 : index
    %870 = memref.load %arg5[%c63_139] : memref<81xf32, #tpu.memory_space<smem>>
    %871 = vector.broadcast %870 : f32 to vector<2x10x10xf32>
    %872 = arith.mulf %871, %861 : vector<2x10x10xf32>
    %873 = arith.addf %860, %872 : vector<2x10x10xf32>
    %874 = vector.extract_strided_slice %727 {offsets = [0, 0, 1], sizes = [2, 10, 10], strides = [1, 1, 1]} : vector<2x12x12xf32> to vector<2x10x10xf32>
    %c10_140 = arith.constant 10 : index
    %875 = memref.load %arg5[%c10_140] : memref<81xf32, #tpu.memory_space<smem>>
    %876 = vector.broadcast %875 : f32 to vector<2x10x10xf32>
    %877 = arith.mulf %876, %874 : vector<2x10x10xf32>
    %878 = arith.addf %865, %877 : vector<2x10x10xf32>
    %c37_141 = arith.constant 37 : index
    %879 = memref.load %arg5[%c37_141] : memref<81xf32, #tpu.memory_space<smem>>
    %880 = vector.broadcast %879 : f32 to vector<2x10x10xf32>
    %881 = arith.mulf %880, %874 : vector<2x10x10xf32>
    %882 = arith.addf %869, %881 : vector<2x10x10xf32>
    %c64_142 = arith.constant 64 : index
    %883 = memref.load %arg5[%c64_142] : memref<81xf32, #tpu.memory_space<smem>>
    %884 = vector.broadcast %883 : f32 to vector<2x10x10xf32>
    %885 = arith.mulf %884, %874 : vector<2x10x10xf32>
    %886 = arith.addf %873, %885 : vector<2x10x10xf32>
    %887 = vector.extract_strided_slice %727 {offsets = [0, 0, 2], sizes = [2, 10, 10], strides = [1, 1, 1]} : vector<2x12x12xf32> to vector<2x10x10xf32>
    %c11_143 = arith.constant 11 : index
    %888 = memref.load %arg5[%c11_143] : memref<81xf32, #tpu.memory_space<smem>>
    %889 = vector.broadcast %888 : f32 to vector<2x10x10xf32>
    %890 = arith.mulf %889, %887 : vector<2x10x10xf32>
    %891 = arith.addf %878, %890 : vector<2x10x10xf32>
    %c38_144 = arith.constant 38 : index
    %892 = memref.load %arg5[%c38_144] : memref<81xf32, #tpu.memory_space<smem>>
    %893 = vector.broadcast %892 : f32 to vector<2x10x10xf32>
    %894 = arith.mulf %893, %887 : vector<2x10x10xf32>
    %895 = arith.addf %882, %894 : vector<2x10x10xf32>
    %c65_145 = arith.constant 65 : index
    %896 = memref.load %arg5[%c65_145] : memref<81xf32, #tpu.memory_space<smem>>
    %897 = vector.broadcast %896 : f32 to vector<2x10x10xf32>
    %898 = arith.mulf %897, %887 : vector<2x10x10xf32>
    %899 = arith.addf %886, %898 : vector<2x10x10xf32>
    %900 = vector.extract_strided_slice %727 {offsets = [0, 1, 0], sizes = [2, 10, 10], strides = [1, 1, 1]} : vector<2x12x12xf32> to vector<2x10x10xf32>
    %c12_146 = arith.constant 12 : index
    %901 = memref.load %arg5[%c12_146] : memref<81xf32, #tpu.memory_space<smem>>
    %902 = vector.broadcast %901 : f32 to vector<2x10x10xf32>
    %903 = arith.mulf %902, %900 : vector<2x10x10xf32>
    %904 = arith.addf %891, %903 : vector<2x10x10xf32>
    %c39_147 = arith.constant 39 : index
    %905 = memref.load %arg5[%c39_147] : memref<81xf32, #tpu.memory_space<smem>>
    %906 = vector.broadcast %905 : f32 to vector<2x10x10xf32>
    %907 = arith.mulf %906, %900 : vector<2x10x10xf32>
    %908 = arith.addf %895, %907 : vector<2x10x10xf32>
    %c66_148 = arith.constant 66 : index
    %909 = memref.load %arg5[%c66_148] : memref<81xf32, #tpu.memory_space<smem>>
    %910 = vector.broadcast %909 : f32 to vector<2x10x10xf32>
    %911 = arith.mulf %910, %900 : vector<2x10x10xf32>
    %912 = arith.addf %899, %911 : vector<2x10x10xf32>
    %913 = vector.extract_strided_slice %727 {offsets = [0, 1, 1], sizes = [2, 10, 10], strides = [1, 1, 1]} : vector<2x12x12xf32> to vector<2x10x10xf32>
    %c13_149 = arith.constant 13 : index
    %914 = memref.load %arg5[%c13_149] : memref<81xf32, #tpu.memory_space<smem>>
    %915 = vector.broadcast %914 : f32 to vector<2x10x10xf32>
    %916 = arith.mulf %915, %913 : vector<2x10x10xf32>
    %917 = arith.addf %904, %916 : vector<2x10x10xf32>
    %c40_150 = arith.constant 40 : index
    %918 = memref.load %arg5[%c40_150] : memref<81xf32, #tpu.memory_space<smem>>
    %919 = vector.broadcast %918 : f32 to vector<2x10x10xf32>
    %920 = arith.mulf %919, %913 : vector<2x10x10xf32>
    %921 = arith.addf %908, %920 : vector<2x10x10xf32>
    %c67_151 = arith.constant 67 : index
    %922 = memref.load %arg5[%c67_151] : memref<81xf32, #tpu.memory_space<smem>>
    %923 = vector.broadcast %922 : f32 to vector<2x10x10xf32>
    %924 = arith.mulf %923, %913 : vector<2x10x10xf32>
    %925 = arith.addf %912, %924 : vector<2x10x10xf32>
    %926 = vector.extract_strided_slice %727 {offsets = [0, 1, 2], sizes = [2, 10, 10], strides = [1, 1, 1]} : vector<2x12x12xf32> to vector<2x10x10xf32>
    %c14_152 = arith.constant 14 : index
    %927 = memref.load %arg5[%c14_152] : memref<81xf32, #tpu.memory_space<smem>>
    %928 = vector.broadcast %927 : f32 to vector<2x10x10xf32>
    %929 = arith.mulf %928, %926 : vector<2x10x10xf32>
    %930 = arith.addf %917, %929 : vector<2x10x10xf32>
    %c41_153 = arith.constant 41 : index
    %931 = memref.load %arg5[%c41_153] : memref<81xf32, #tpu.memory_space<smem>>
    %932 = vector.broadcast %931 : f32 to vector<2x10x10xf32>
    %933 = arith.mulf %932, %926 : vector<2x10x10xf32>
    %934 = arith.addf %921, %933 : vector<2x10x10xf32>
    %c68_154 = arith.constant 68 : index
    %935 = memref.load %arg5[%c68_154] : memref<81xf32, #tpu.memory_space<smem>>
    %936 = vector.broadcast %935 : f32 to vector<2x10x10xf32>
    %937 = arith.mulf %936, %926 : vector<2x10x10xf32>
    %938 = arith.addf %925, %937 : vector<2x10x10xf32>
    %939 = vector.extract_strided_slice %727 {offsets = [0, 2, 0], sizes = [2, 10, 10], strides = [1, 1, 1]} : vector<2x12x12xf32> to vector<2x10x10xf32>
    %c15_155 = arith.constant 15 : index
    %940 = memref.load %arg5[%c15_155] : memref<81xf32, #tpu.memory_space<smem>>
    %941 = vector.broadcast %940 : f32 to vector<2x10x10xf32>
    %942 = arith.mulf %941, %939 : vector<2x10x10xf32>
    %943 = arith.addf %930, %942 : vector<2x10x10xf32>
    %c42_156 = arith.constant 42 : index
    %944 = memref.load %arg5[%c42_156] : memref<81xf32, #tpu.memory_space<smem>>
    %945 = vector.broadcast %944 : f32 to vector<2x10x10xf32>
    %946 = arith.mulf %945, %939 : vector<2x10x10xf32>
    %947 = arith.addf %934, %946 : vector<2x10x10xf32>
    %c69_157 = arith.constant 69 : index
    %948 = memref.load %arg5[%c69_157] : memref<81xf32, #tpu.memory_space<smem>>
    %949 = vector.broadcast %948 : f32 to vector<2x10x10xf32>
    %950 = arith.mulf %949, %939 : vector<2x10x10xf32>
    %951 = arith.addf %938, %950 : vector<2x10x10xf32>
    %952 = vector.extract_strided_slice %727 {offsets = [0, 2, 1], sizes = [2, 10, 10], strides = [1, 1, 1]} : vector<2x12x12xf32> to vector<2x10x10xf32>
    %c16_158 = arith.constant 16 : index
    %953 = memref.load %arg5[%c16_158] : memref<81xf32, #tpu.memory_space<smem>>
    %954 = vector.broadcast %953 : f32 to vector<2x10x10xf32>
    %955 = arith.mulf %954, %952 : vector<2x10x10xf32>
    %956 = arith.addf %943, %955 : vector<2x10x10xf32>
    %c43_159 = arith.constant 43 : index
    %957 = memref.load %arg5[%c43_159] : memref<81xf32, #tpu.memory_space<smem>>
    %958 = vector.broadcast %957 : f32 to vector<2x10x10xf32>
    %959 = arith.mulf %958, %952 : vector<2x10x10xf32>
    %960 = arith.addf %947, %959 : vector<2x10x10xf32>
    %c70_160 = arith.constant 70 : index
    %961 = memref.load %arg5[%c70_160] : memref<81xf32, #tpu.memory_space<smem>>
    %962 = vector.broadcast %961 : f32 to vector<2x10x10xf32>
    %963 = arith.mulf %962, %952 : vector<2x10x10xf32>
    %964 = arith.addf %951, %963 : vector<2x10x10xf32>
    %965 = vector.extract_strided_slice %727 {offsets = [0, 2, 2], sizes = [2, 10, 10], strides = [1, 1, 1]} : vector<2x12x12xf32> to vector<2x10x10xf32>
    %c17_161 = arith.constant 17 : index
    %966 = memref.load %arg5[%c17_161] : memref<81xf32, #tpu.memory_space<smem>>
    %967 = vector.broadcast %966 : f32 to vector<2x10x10xf32>
    %968 = arith.mulf %967, %965 : vector<2x10x10xf32>
    %969 = arith.addf %956, %968 : vector<2x10x10xf32>
    %c44_162 = arith.constant 44 : index
    %970 = memref.load %arg5[%c44_162] : memref<81xf32, #tpu.memory_space<smem>>
    %971 = vector.broadcast %970 : f32 to vector<2x10x10xf32>
    %972 = arith.mulf %971, %965 : vector<2x10x10xf32>
    %973 = arith.addf %960, %972 : vector<2x10x10xf32>
    %c71_163 = arith.constant 71 : index
    %974 = memref.load %arg5[%c71_163] : memref<81xf32, #tpu.memory_space<smem>>
    %975 = vector.broadcast %974 : f32 to vector<2x10x10xf32>
    %976 = arith.mulf %975, %965 : vector<2x10x10xf32>
    %977 = arith.addf %964, %976 : vector<2x10x10xf32>
    %978 = vector.extract_strided_slice %731 {offsets = [0, 0, 0], sizes = [2, 10, 10], strides = [1, 1, 1]} : vector<2x12x12xf32> to vector<2x10x10xf32>
    %c18_164 = arith.constant 18 : index
    %979 = memref.load %arg5[%c18_164] : memref<81xf32, #tpu.memory_space<smem>>
    %980 = vector.broadcast %979 : f32 to vector<2x10x10xf32>
    %981 = arith.mulf %980, %978 : vector<2x10x10xf32>
    %982 = arith.addf %969, %981 : vector<2x10x10xf32>
    %c45_165 = arith.constant 45 : index
    %983 = memref.load %arg5[%c45_165] : memref<81xf32, #tpu.memory_space<smem>>
    %984 = vector.broadcast %983 : f32 to vector<2x10x10xf32>
    %985 = arith.mulf %984, %978 : vector<2x10x10xf32>
    %986 = arith.addf %973, %985 : vector<2x10x10xf32>
    %c72_166 = arith.constant 72 : index
    %987 = memref.load %arg5[%c72_166] : memref<81xf32, #tpu.memory_space<smem>>
    %988 = vector.broadcast %987 : f32 to vector<2x10x10xf32>
    %989 = arith.mulf %988, %978 : vector<2x10x10xf32>
    %990 = arith.addf %977, %989 : vector<2x10x10xf32>
    %991 = vector.extract_strided_slice %731 {offsets = [0, 0, 1], sizes = [2, 10, 10], strides = [1, 1, 1]} : vector<2x12x12xf32> to vector<2x10x10xf32>
    %c19_167 = arith.constant 19 : index
    %992 = memref.load %arg5[%c19_167] : memref<81xf32, #tpu.memory_space<smem>>
    %993 = vector.broadcast %992 : f32 to vector<2x10x10xf32>
    %994 = arith.mulf %993, %991 : vector<2x10x10xf32>
    %995 = arith.addf %982, %994 : vector<2x10x10xf32>
    %c46_168 = arith.constant 46 : index
    %996 = memref.load %arg5[%c46_168] : memref<81xf32, #tpu.memory_space<smem>>
    %997 = vector.broadcast %996 : f32 to vector<2x10x10xf32>
    %998 = arith.mulf %997, %991 : vector<2x10x10xf32>
    %999 = arith.addf %986, %998 : vector<2x10x10xf32>
    %c73_169 = arith.constant 73 : index
    %1000 = memref.load %arg5[%c73_169] : memref<81xf32, #tpu.memory_space<smem>>
    %1001 = vector.broadcast %1000 : f32 to vector<2x10x10xf32>
    %1002 = arith.mulf %1001, %991 : vector<2x10x10xf32>
    %1003 = arith.addf %990, %1002 : vector<2x10x10xf32>
    %1004 = vector.extract_strided_slice %731 {offsets = [0, 0, 2], sizes = [2, 10, 10], strides = [1, 1, 1]} : vector<2x12x12xf32> to vector<2x10x10xf32>
    %c20_170 = arith.constant 20 : index
    %1005 = memref.load %arg5[%c20_170] : memref<81xf32, #tpu.memory_space<smem>>
    %1006 = vector.broadcast %1005 : f32 to vector<2x10x10xf32>
    %1007 = arith.mulf %1006, %1004 : vector<2x10x10xf32>
    %1008 = arith.addf %995, %1007 : vector<2x10x10xf32>
    %c47_171 = arith.constant 47 : index
    %1009 = memref.load %arg5[%c47_171] : memref<81xf32, #tpu.memory_space<smem>>
    %1010 = vector.broadcast %1009 : f32 to vector<2x10x10xf32>
    %1011 = arith.mulf %1010, %1004 : vector<2x10x10xf32>
    %1012 = arith.addf %999, %1011 : vector<2x10x10xf32>
    %c74_172 = arith.constant 74 : index
    %1013 = memref.load %arg5[%c74_172] : memref<81xf32, #tpu.memory_space<smem>>
    %1014 = vector.broadcast %1013 : f32 to vector<2x10x10xf32>
    %1015 = arith.mulf %1014, %1004 : vector<2x10x10xf32>
    %1016 = arith.addf %1003, %1015 : vector<2x10x10xf32>
    %1017 = vector.extract_strided_slice %731 {offsets = [0, 1, 0], sizes = [2, 10, 10], strides = [1, 1, 1]} : vector<2x12x12xf32> to vector<2x10x10xf32>
    %c21_173 = arith.constant 21 : index
    %1018 = memref.load %arg5[%c21_173] : memref<81xf32, #tpu.memory_space<smem>>
    %1019 = vector.broadcast %1018 : f32 to vector<2x10x10xf32>
    %1020 = arith.mulf %1019, %1017 : vector<2x10x10xf32>
    %1021 = arith.addf %1008, %1020 : vector<2x10x10xf32>
    %c48_174 = arith.constant 48 : index
    %1022 = memref.load %arg5[%c48_174] : memref<81xf32, #tpu.memory_space<smem>>
    %1023 = vector.broadcast %1022 : f32 to vector<2x10x10xf32>
    %1024 = arith.mulf %1023, %1017 : vector<2x10x10xf32>
    %1025 = arith.addf %1012, %1024 : vector<2x10x10xf32>
    %c75_175 = arith.constant 75 : index
    %1026 = memref.load %arg5[%c75_175] : memref<81xf32, #tpu.memory_space<smem>>
    %1027 = vector.broadcast %1026 : f32 to vector<2x10x10xf32>
    %1028 = arith.mulf %1027, %1017 : vector<2x10x10xf32>
    %1029 = arith.addf %1016, %1028 : vector<2x10x10xf32>
    %1030 = vector.extract_strided_slice %731 {offsets = [0, 1, 1], sizes = [2, 10, 10], strides = [1, 1, 1]} : vector<2x12x12xf32> to vector<2x10x10xf32>
    %c22_176 = arith.constant 22 : index
    %1031 = memref.load %arg5[%c22_176] : memref<81xf32, #tpu.memory_space<smem>>
    %1032 = vector.broadcast %1031 : f32 to vector<2x10x10xf32>
    %1033 = arith.mulf %1032, %1030 : vector<2x10x10xf32>
    %1034 = arith.addf %1021, %1033 : vector<2x10x10xf32>
    %c49_177 = arith.constant 49 : index
    %1035 = memref.load %arg5[%c49_177] : memref<81xf32, #tpu.memory_space<smem>>
    %1036 = vector.broadcast %1035 : f32 to vector<2x10x10xf32>
    %1037 = arith.mulf %1036, %1030 : vector<2x10x10xf32>
    %1038 = arith.addf %1025, %1037 : vector<2x10x10xf32>
    %c76_178 = arith.constant 76 : index
    %1039 = memref.load %arg5[%c76_178] : memref<81xf32, #tpu.memory_space<smem>>
    %1040 = vector.broadcast %1039 : f32 to vector<2x10x10xf32>
    %1041 = arith.mulf %1040, %1030 : vector<2x10x10xf32>
    %1042 = arith.addf %1029, %1041 : vector<2x10x10xf32>
    %1043 = vector.extract_strided_slice %731 {offsets = [0, 1, 2], sizes = [2, 10, 10], strides = [1, 1, 1]} : vector<2x12x12xf32> to vector<2x10x10xf32>
    %c23_179 = arith.constant 23 : index
    %1044 = memref.load %arg5[%c23_179] : memref<81xf32, #tpu.memory_space<smem>>
    %1045 = vector.broadcast %1044 : f32 to vector<2x10x10xf32>
    %1046 = arith.mulf %1045, %1043 : vector<2x10x10xf32>
    %1047 = arith.addf %1034, %1046 : vector<2x10x10xf32>
    %c50_180 = arith.constant 50 : index
    %1048 = memref.load %arg5[%c50_180] : memref<81xf32, #tpu.memory_space<smem>>
    %1049 = vector.broadcast %1048 : f32 to vector<2x10x10xf32>
    %1050 = arith.mulf %1049, %1043 : vector<2x10x10xf32>
    %1051 = arith.addf %1038, %1050 : vector<2x10x10xf32>
    %c77_181 = arith.constant 77 : index
    %1052 = memref.load %arg5[%c77_181] : memref<81xf32, #tpu.memory_space<smem>>
    %1053 = vector.broadcast %1052 : f32 to vector<2x10x10xf32>
    %1054 = arith.mulf %1053, %1043 : vector<2x10x10xf32>
    %1055 = arith.addf %1042, %1054 : vector<2x10x10xf32>
    %1056 = vector.extract_strided_slice %731 {offsets = [0, 2, 0], sizes = [2, 10, 10], strides = [1, 1, 1]} : vector<2x12x12xf32> to vector<2x10x10xf32>
    %c24_182 = arith.constant 24 : index
    %1057 = memref.load %arg5[%c24_182] : memref<81xf32, #tpu.memory_space<smem>>
    %1058 = vector.broadcast %1057 : f32 to vector<2x10x10xf32>
    %1059 = arith.mulf %1058, %1056 : vector<2x10x10xf32>
    %1060 = arith.addf %1047, %1059 : vector<2x10x10xf32>
    %c51_183 = arith.constant 51 : index
    %1061 = memref.load %arg5[%c51_183] : memref<81xf32, #tpu.memory_space<smem>>
    %1062 = vector.broadcast %1061 : f32 to vector<2x10x10xf32>
    %1063 = arith.mulf %1062, %1056 : vector<2x10x10xf32>
    %1064 = arith.addf %1051, %1063 : vector<2x10x10xf32>
    %c78_184 = arith.constant 78 : index
    %1065 = memref.load %arg5[%c78_184] : memref<81xf32, #tpu.memory_space<smem>>
    %1066 = vector.broadcast %1065 : f32 to vector<2x10x10xf32>
    %1067 = arith.mulf %1066, %1056 : vector<2x10x10xf32>
    %1068 = arith.addf %1055, %1067 : vector<2x10x10xf32>
    %1069 = vector.extract_strided_slice %731 {offsets = [0, 2, 1], sizes = [2, 10, 10], strides = [1, 1, 1]} : vector<2x12x12xf32> to vector<2x10x10xf32>
    %c25_185 = arith.constant 25 : index
    %1070 = memref.load %arg5[%c25_185] : memref<81xf32, #tpu.memory_space<smem>>
    %1071 = vector.broadcast %1070 : f32 to vector<2x10x10xf32>
    %1072 = arith.mulf %1071, %1069 : vector<2x10x10xf32>
    %1073 = arith.addf %1060, %1072 : vector<2x10x10xf32>
    %c52_186 = arith.constant 52 : index
    %1074 = memref.load %arg5[%c52_186] : memref<81xf32, #tpu.memory_space<smem>>
    %1075 = vector.broadcast %1074 : f32 to vector<2x10x10xf32>
    %1076 = arith.mulf %1075, %1069 : vector<2x10x10xf32>
    %1077 = arith.addf %1064, %1076 : vector<2x10x10xf32>
    %c79_187 = arith.constant 79 : index
    %1078 = memref.load %arg5[%c79_187] : memref<81xf32, #tpu.memory_space<smem>>
    %1079 = vector.broadcast %1078 : f32 to vector<2x10x10xf32>
    %1080 = arith.mulf %1079, %1069 : vector<2x10x10xf32>
    %1081 = arith.addf %1068, %1080 : vector<2x10x10xf32>
    %1082 = vector.extract_strided_slice %731 {offsets = [0, 2, 2], sizes = [2, 10, 10], strides = [1, 1, 1]} : vector<2x12x12xf32> to vector<2x10x10xf32>
    %c26_188 = arith.constant 26 : index
    %1083 = memref.load %arg5[%c26_188] : memref<81xf32, #tpu.memory_space<smem>>
    %1084 = vector.broadcast %1083 : f32 to vector<2x10x10xf32>
    %1085 = arith.mulf %1084, %1082 : vector<2x10x10xf32>
    %1086 = arith.addf %1073, %1085 : vector<2x10x10xf32>
    %c53_189 = arith.constant 53 : index
    %1087 = memref.load %arg5[%c53_189] : memref<81xf32, #tpu.memory_space<smem>>
    %1088 = vector.broadcast %1087 : f32 to vector<2x10x10xf32>
    %1089 = arith.mulf %1088, %1082 : vector<2x10x10xf32>
    %1090 = arith.addf %1077, %1089 : vector<2x10x10xf32>
    %c80_190 = arith.constant 80 : index
    %1091 = memref.load %arg5[%c80_190] : memref<81xf32, #tpu.memory_space<smem>>
    %1092 = vector.broadcast %1091 : f32 to vector<2x10x10xf32>
    %1093 = arith.mulf %1092, %1082 : vector<2x10x10xf32>
    %1094 = arith.addf %1081, %1093 : vector<2x10x10xf32>
    %1095 = vector.shape_cast %1086 : vector<2x10x10xf32> to vector<1x2x10x10xf32>
    %cst_191 = arith.constant dense<0.000000e+00> : vector<1xf32>
    %1096 = vector.multi_reduction <add>, %1095, %cst_191 [1, 2, 3] : vector<1x2x10x10xf32> to vector<1xf32>
    %1097 = vector.shape_cast %1096 : vector<1xf32> to vector<1x1x1x1xf32>
    %1098 = vector.extract %1097[0, 0, 0, 0] : f32 from vector<1x1x1x1xf32>
    %1099 = vector.broadcast %1098 : f32 to vector<1x1x1xf32>
    %1100 = arith.mulf %1086, %1086 : vector<2x10x10xf32>
    %1101 = vector.shape_cast %1100 : vector<2x10x10xf32> to vector<1x2x10x10xf32>
    %cst_192 = arith.constant dense<0.000000e+00> : vector<1xf32>
    %1102 = vector.multi_reduction <add>, %1101, %cst_192 [1, 2, 3] : vector<1x2x10x10xf32> to vector<1xf32>
    %1103 = vector.shape_cast %1102 : vector<1xf32> to vector<1x1x1x1xf32>
    %1104 = vector.extract %1103[0, 0, 0, 0] : f32 from vector<1x1x1x1xf32>
    %1105 = vector.broadcast %1104 : f32 to vector<1x1x1xf32>
    %cst_193 = arith.constant 5.000000e-03 : f32
    %1106 = vector.broadcast %cst_193 : f32 to vector<1x1x1xf32>
    %1107 = arith.mulf %1099, %1106 : vector<1x1x1xf32>
    %cst_194 = arith.constant 5.000000e-03 : f32
    %1108 = vector.broadcast %cst_194 : f32 to vector<1x1x1xf32>
    %1109 = arith.mulf %1105, %1108 : vector<1x1x1xf32>
    %1110 = arith.mulf %1107, %1107 : vector<1x1x1xf32>
    %1111 = arith.subf %1109, %1110 : vector<1x1x1xf32>
    %c0_195 = arith.constant 0 : index
    %1112 = memref.load %arg7[%c0_195] : memref<3xf32, #tpu.memory_space<smem>>
    %cst_196 = arith.constant 9.99999974E-6 : f32
    %1113 = vector.broadcast %cst_196 : f32 to vector<1x1x1xf32>
    %1114 = arith.addf %1111, %1113 : vector<1x1x1xf32>
    %1115 = math.rsqrt %1114 : vector<1x1x1xf32>
    %1116 = vector.broadcast %1112 : f32 to vector<1x1x1xf32>
    %1117 = arith.mulf %1116, %1115 : vector<1x1x1xf32>
    %c0_197 = arith.constant 0 : index
    %1118 = memref.load %arg8[%c0_197] : memref<3xf32, #tpu.memory_space<smem>>
    %1119 = arith.mulf %1107, %1117 : vector<1x1x1xf32>
    %1120 = vector.broadcast %1118 : f32 to vector<1x1x1xf32>
    %1121 = arith.subf %1120, %1119 : vector<1x1x1xf32>
    %1122 = vector.broadcast %1117 : vector<1x1x1xf32> to vector<2x10x10xf32>
    %1123 = arith.mulf %1086, %1122 : vector<2x10x10xf32>
    %1124 = vector.broadcast %1121 : vector<1x1x1xf32> to vector<2x10x10xf32>
    %1125 = arith.addf %1123, %1124 : vector<2x10x10xf32>
    %c0_198 = arith.constant 0 : index
    %c0_199 = arith.constant 0 : index
    %c0_200 = arith.constant 0 : index
    %c0_201 = arith.constant 0 : index
    %1126 = vector.load %arg9[%c0_198, %c0_199, %c0_200, %c0_201] : memref<3x2x10x10xf32, #tpu.memory_space<vmem>>, vector<1x2x10x10xf32>
    %1127 = vector.shape_cast %1126 : vector<1x2x10x10xf32> to vector<2x10x10xf32>
    %1128 = vector.shape_cast %1125 : vector<2x10x10xf32> to vector<1x2x10x10xf32>
    tpu.vector_store %arg9[%c0_198, %c0_199, %c0_200, %c0_201], %1128 {strides = array<i32>} : memref<3x2x10x10xf32, #tpu.memory_space<vmem>>, vector<1x2x10x10xf32>,
    %1129 = vector.shape_cast %1090 : vector<2x10x10xf32> to vector<1x2x10x10xf32>
    %cst_202 = arith.constant dense<0.000000e+00> : vector<1xf32>
    %1130 = vector.multi_reduction <add>, %1129, %cst_202 [1, 2, 3] : vector<1x2x10x10xf32> to vector<1xf32>
    %1131 = vector.shape_cast %1130 : vector<1xf32> to vector<1x1x1x1xf32>
    %1132 = vector.extract %1131[0, 0, 0, 0] : f32 from vector<1x1x1x1xf32>
    %1133 = vector.broadcast %1132 : f32 to vector<1x1x1xf32>
    %1134 = arith.mulf %1090, %1090 : vector<2x10x10xf32>
    %1135 = vector.shape_cast %1134 : vector<2x10x10xf32> to vector<1x2x10x10xf32>
    %cst_203 = arith.constant dense<0.000000e+00> : vector<1xf32>
    %1136 = vector.multi_reduction <add>, %1135, %cst_203 [1, 2, 3] : vector<1x2x10x10xf32> to vector<1xf32>
    %1137 = vector.shape_cast %1136 : vector<1xf32> to vector<1x1x1x1xf32>
    %1138 = vector.extract %1137[0, 0, 0, 0] : f32 from vector<1x1x1x1xf32>
    %1139 = vector.broadcast %1138 : f32 to vector<1x1x1xf32>
    %cst_204 = arith.constant 5.000000e-03 : f32
    %1140 = vector.broadcast %cst_204 : f32 to vector<1x1x1xf32>
    %1141 = arith.mulf %1133, %1140 : vector<1x1x1xf32>
    %cst_205 = arith.constant 5.000000e-03 : f32
    %1142 = vector.broadcast %cst_205 : f32 to vector<1x1x1xf32>
    %1143 = arith.mulf %1139, %1142 : vector<1x1x1xf32>
    %1144 = arith.mulf %1141, %1141 : vector<1x1x1xf32>
    %1145 = arith.subf %1143, %1144 : vector<1x1x1xf32>
    %c1_206 = arith.constant 1 : index
    %1146 = memref.load %arg7[%c1_206] : memref<3xf32, #tpu.memory_space<smem>>
    %cst_207 = arith.constant 9.99999974E-6 : f32
    %1147 = vector.broadcast %cst_207 : f32 to vector<1x1x1xf32>
    %1148 = arith.addf %1145, %1147 : vector<1x1x1xf32>
    %1149 = math.rsqrt %1148 : vector<1x1x1xf32>
    %1150 = vector.broadcast %1146 : f32 to vector<1x1x1xf32>
    %1151 = arith.mulf %1150, %1149 : vector<1x1x1xf32>
    %c1_208 = arith.constant 1 : index
    %1152 = memref.load %arg8[%c1_208] : memref<3xf32, #tpu.memory_space<smem>>
    %1153 = arith.mulf %1141, %1151 : vector<1x1x1xf32>
    %1154 = vector.broadcast %1152 : f32 to vector<1x1x1xf32>
    %1155 = arith.subf %1154, %1153 : vector<1x1x1xf32>
    %1156 = vector.broadcast %1151 : vector<1x1x1xf32> to vector<2x10x10xf32>
    %1157 = arith.mulf %1090, %1156 : vector<2x10x10xf32>
    %1158 = vector.broadcast %1155 : vector<1x1x1xf32> to vector<2x10x10xf32>
    %1159 = arith.addf %1157, %1158 : vector<2x10x10xf32>
    %c1_209 = arith.constant 1 : index
    %c0_210 = arith.constant 0 : index
    %c0_211 = arith.constant 0 : index
    %c0_212 = arith.constant 0 : index
    %1160 = vector.load %arg9[%c1_209, %c0_210, %c0_211, %c0_212] : memref<3x2x10x10xf32, #tpu.memory_space<vmem>>, vector<1x2x10x10xf32>
    %1161 = vector.shape_cast %1160 : vector<1x2x10x10xf32> to vector<2x10x10xf32>
    %1162 = vector.shape_cast %1159 : vector<2x10x10xf32> to vector<1x2x10x10xf32>
    tpu.vector_store %arg9[%c1_209, %c0_210, %c0_211, %c0_212], %1162 {strides = array<i32>} : memref<3x2x10x10xf32, #tpu.memory_space<vmem>>, vector<1x2x10x10xf32>,
    %1163 = vector.shape_cast %1094 : vector<2x10x10xf32> to vector<1x2x10x10xf32>
    %cst_213 = arith.constant dense<0.000000e+00> : vector<1xf32>
    %1164 = vector.multi_reduction <add>, %1163, %cst_213 [1, 2, 3] : vector<1x2x10x10xf32> to vector<1xf32>
    %1165 = vector.shape_cast %1164 : vector<1xf32> to vector<1x1x1x1xf32>
    %1166 = vector.extract %1165[0, 0, 0, 0] : f32 from vector<1x1x1x1xf32>
    %1167 = vector.broadcast %1166 : f32 to vector<1x1x1xf32>
    %1168 = arith.mulf %1094, %1094 : vector<2x10x10xf32>
    %1169 = vector.shape_cast %1168 : vector<2x10x10xf32> to vector<1x2x10x10xf32>
    %cst_214 = arith.constant dense<0.000000e+00> : vector<1xf32>
    %1170 = vector.multi_reduction <add>, %1169, %cst_214 [1, 2, 3] : vector<1x2x10x10xf32> to vector<1xf32>
    %1171 = vector.shape_cast %1170 : vector<1xf32> to vector<1x1x1x1xf32>
    %1172 = vector.extract %1171[0, 0, 0, 0] : f32 from vector<1x1x1x1xf32>
    %1173 = vector.broadcast %1172 : f32 to vector<1x1x1xf32>
    %cst_215 = arith.constant 5.000000e-03 : f32
    %1174 = vector.broadcast %cst_215 : f32 to vector<1x1x1xf32>
    %1175 = arith.mulf %1167, %1174 : vector<1x1x1xf32>
    %cst_216 = arith.constant 5.000000e-03 : f32
    %1176 = vector.broadcast %cst_216 : f32 to vector<1x1x1xf32>
    %1177 = arith.mulf %1173, %1176 : vector<1x1x1xf32>
    %1178 = arith.mulf %1175, %1175 : vector<1x1x1xf32>
    %1179 = arith.subf %1177, %1178 : vector<1x1x1xf32>
    %c2_217 = arith.constant 2 : index
    %1180 = memref.load %arg7[%c2_217] : memref<3xf32, #tpu.memory_space<smem>>
    %cst_218 = arith.constant 9.99999974E-6 : f32
    %1181 = vector.broadcast %cst_218 : f32 to vector<1x1x1xf32>
    %1182 = arith.addf %1179, %1181 : vector<1x1x1xf32>
    %1183 = math.rsqrt %1182 : vector<1x1x1xf32>
    %1184 = vector.broadcast %1180 : f32 to vector<1x1x1xf32>
    %1185 = arith.mulf %1184, %1183 : vector<1x1x1xf32>
    %c2_219 = arith.constant 2 : index
    %1186 = memref.load %arg8[%c2_219] : memref<3xf32, #tpu.memory_space<smem>>
    %1187 = arith.mulf %1175, %1185 : vector<1x1x1xf32>
    %1188 = vector.broadcast %1186 : f32 to vector<1x1x1xf32>
    %1189 = arith.subf %1188, %1187 : vector<1x1x1xf32>
    %1190 = vector.broadcast %1185 : vector<1x1x1xf32> to vector<2x10x10xf32>
    %1191 = arith.mulf %1094, %1190 : vector<2x10x10xf32>
    %1192 = vector.broadcast %1189 : vector<1x1x1xf32> to vector<2x10x10xf32>
    %1193 = arith.addf %1191, %1192 : vector<2x10x10xf32>
    %c2_220 = arith.constant 2 : index
    %c0_221 = arith.constant 0 : index
    %c0_222 = arith.constant 0 : index
    %c0_223 = arith.constant 0 : index
    %1194 = vector.load %arg9[%c2_220, %c0_221, %c0_222, %c0_223] : memref<3x2x10x10xf32, #tpu.memory_space<vmem>>, vector<1x2x10x10xf32>
    %1195 = vector.shape_cast %1194 : vector<1x2x10x10xf32> to vector<2x10x10xf32>
    %1196 = vector.shape_cast %1193 : vector<2x10x10xf32> to vector<1x2x10x10xf32>
    tpu.vector_store %arg9[%c2_220, %c0_221, %c0_222, %c0_223], %1196 {strides = array<i32>} : memref<3x2x10x10xf32, #tpu.memory_space<vmem>>, vector<1x2x10x10xf32>,
    return
  }
}

</mosaic_0001>

<llo_original>
// kernel: tpu_custom_call.1
$region0: #{tpu_custom_call.1}
  #allocation0 [shape = 'u32[]', space=smem, size = 0x4, offset = 0x4, fixed_abs, tag = 'smem constant byte address 0x4 - core index']
  #allocation1 [shape = 'u32[144,128]{1,0:T(1,128)}', space=vmem, size = 0x12000, scoped, tag = 'internal scratch']
  %s0 = inlined_call_operand.hbm [shape: f32[3,2,16,16], index: 0, kind: input, shape index: {}]
  %s1 = inlined_call_operand.vmem [shape: f32[81], index: 1, kind: input, shape index: {}]
  %s2 = inlined_call_operand.vmem [shape: f32[3], index: 2, kind: input, shape index: {}]
  %s3 = inlined_call_operand.vmem [shape: f32[81], index: 3, kind: input, shape index: {}]
  %s4 = inlined_call_operand.vmem [shape: f32[3], index: 4, kind: input, shape index: {}]
  %s5 = inlined_call_operand.vmem [shape: f32[81], index: 5, kind: input, shape index: {}]
  %s6 = inlined_call_operand.vmem [shape: f32[3], index: 6, kind: input, shape index: {}]
  %s7 = inlined_call_operand.vmem [shape: f32[3], index: 7, kind: input, shape index: {}]
  %s8 = inlined_call_operand.vmem [shape: f32[3], index: 8, kind: input, shape index: {}]
  %s9 = inlined_call_operand.vmem [shape: f32[3,2,10,10], index: 9, kind: output, shape index: {}]
  %s10 = sld [smem:[#allocation0]]
  $region82: #{tpu_custom_call.1} parent=0
    _
  %s12 = ssub.s32 1, %s10
  %s13 = scalar_select 0, %s12, %s10
  $region1: #{tpu_custom_call.1} parent=0
    #allocation2 [shape = 'u8[49152]{0}', space=vmem, size = 0xc000, scoped, tag = 'input window, operand 0, single buffered']
    #allocation3 [shape = 's32[1]{0}', space=sflag, size = 0x4, scoped, tag = 'scoped memory for tpu_custom_call.1']
    #allocation4 [shape = 's32[1]{0}', space=sflag, size = 0x4, scoped, tag = 'scoped memory for tpu_custom_call.1']
    #allocation5 [shape = 'u8[512]{0}', space=smem, size = 0x200, scoped, tag = 'input window, operand 1, single buffered']
    #allocation6 [shape = 'u8[512]{0}', space=smem, size = 0x200, scoped, tag = 'input window, operand 2, single buffered']
    #allocation7 [shape = 's32[1]{0}', space=sflag, size = 0x4, scoped, tag = 'scoped memory for tpu_custom_call.1']
    #allocation8 [shape = 'u8[512]{0}', space=smem, size = 0x200, scoped, tag = 'input window, operand 3, single buffered']
    #allocation9 [shape = 'u8[512]{0}', space=smem, size = 0x200, scoped, tag = 'input window, operand 4, single buffered']
    #allocation10 [shape = 's32[1]{0}', space=sflag, size = 0x4, scoped, tag = 'scoped memory for tpu_custom_call.1']
    #allocation11 [shape = 'u8[512]{0}', space=smem, size = 0x200, scoped, tag = 'input window, operand 5, single buffered']
    #allocation12 [shape = 'u8[512]{0}', space=smem, size = 0x200, scoped, tag = 'input window, operand 6, single buffered']
    #allocation13 [shape = 's32[1]{0}', space=sflag, size = 0x4, scoped, tag = 'scoped memory for tpu_custom_call.1']
    #allocation14 [shape = 'u8[512]{0}', space=smem, size = 0x200, scoped, tag = 'input window, operand 7, single buffered']
    #allocation15 [shape = 'u8[512]{0}', space=smem, size = 0x200, scoped, tag = 'input window, operand 8, single buffered']
    #allocation16 [shape = 's32[1]{0}', space=sflag, size = 0x4, scoped, tag = 'scoped memory for tpu_custom_call.1']
    %14 = vsyncpa [#allocation3], 0
    %15 = vsyncpa [#allocation4], 0
    %16 = vsyncpa [#allocation7], 0
    %17 = vsyncpa [#allocation10], 0
    %18 = vsyncpa [#allocation13], 0
    %19 = vsyncpa [#allocation16], 0
    // Predicated region
    $region2: #{tpu_custom_call.1} parent=1 // pred_check
      _
    $region3: #{tpu_custom_call.1} parent=1 // pred_check_branch
      %21 = sbr.rel (0) target = $region5
    $region4: #{tpu_custom_call.1} parent=1 // pred_region
      %s23 = ssub.s32 1536, 1536
      %24 = vsyncadd [#allocation3], %s23
      %s25 = sshll.u32 [#allocation2], 4
      %s26 = int_to_ptr.vmem [resolvable:$true] %s25
      %31 = dma.hbm_to_vmem [thread:$0]  %s0, 1536, %s26, [#allocation3], 128, 128, 8
    $region5: #{tpu_custom_call.1} parent=1 // pred_fallthru
      _
    // Predicated region
    $region6: #{tpu_custom_call.1} parent=1 // pred_check
      _
    $region7: #{tpu_custom_call.1} parent=1 // pred_check_branch
      %33 = sbr.rel (0) target = $region9
    $region8: #{tpu_custom_call.1} parent=1 // pred_region
      %s35 = ssub.s32 16, 16
      %36 = vsyncadd [#allocation4], %s35
      %s38 = sshll.u32 %s1, 4
      %s39 = int_to_ptr.vmem [resolvable:$true] %s38
      %41 = dma.vmem_to_smem %s39, 16, [#allocation5], [#allocation4]
    $region9: #{tpu_custom_call.1} parent=1 // pred_fallthru
      _
    // Predicated region
    $region10: #{tpu_custom_call.1} parent=1 // pred_check
      _
    $region11: #{tpu_custom_call.1} parent=1 // pred_check_branch
      %43 = sbr.rel (0) target = $region13
    $region12: #{tpu_custom_call.1} parent=1 // pred_region
      %s45 = ssub.s32 16, 16
      %46 = vsyncadd [#allocation7], %s45
      %s48 = sshll.u32 %s2, 4
      %s49 = int_to_ptr.vmem [resolvable:$true] %s48
      %51 = dma.vmem_to_smem %s49, 16, [#allocation6], [#allocation7]
    $region13: #{tpu_custom_call.1} parent=1 // pred_fallthru
      _
    // Predicated region
    $region14: #{tpu_custom_call.1} parent=1 // pred_check
      _
    $region15: #{tpu_custom_call.1} parent=1 // pred_check_branch
      %53 = sbr.rel (0) target = $region17
    $region16: #{tpu_custom_call.1} parent=1 // pred_region
      %s55 = ssub.s32 16, 16
      %56 = vsyncadd [#allocation7], %s55
      %s58 = sshll.u32 %s3, 4
      %s59 = int_to_ptr.vmem [resolvable:$true] %s58
      %61 = dma.vmem_to_smem %s59, 16, [#allocation8], [#allocation7]
    $region17: #{tpu_custom_call.1} parent=1 // pred_fallthru
      _
    // Predicated region
    $region18: #{tpu_custom_call.1} parent=1 // pred_check
      _
    $region19: #{tpu_custom_call.1} parent=1 // pred_check_branch
      %63 = sbr.rel (0) target = $region21
    $region20: #{tpu_custom_call.1} parent=1 // pred_region
      %s65 = ssub.s32 16, 16
      %66 = vsyncadd [#allocation10], %s65
      %s68 = sshll.u32 %s4, 4
      %s69 = int_to_ptr.vmem [resolvable:$true] %s68
      %71 = dma.vmem_to_smem %s69, 16, [#allocation9], [#allocation10]
    $region21: #{tpu_custom_call.1} parent=1 // pred_fallthru
      _
    // Predicated region
    $region22: #{tpu_custom_call.1} parent=1 // pred_check
      _
    $region23: #{tpu_custom_call.1} parent=1 // pred_check_branch
      %73 = sbr.rel (0) target = $region25
    $region24: #{tpu_custom_call.1} parent=1 // pred_region
      %s75 = ssub.s32 16, 16
      %76 = vsyncadd [#allocation10], %s75
      %s78 = sshll.u32 %s5, 4
      %s79 = int_to_ptr.vmem [resolvable:$true] %s78
      %81 = dma.vmem_to_smem %s79, 16, [#allocation11], [#allocation10]
    $region25: #{tpu_custom_call.1} parent=1 // pred_fallthru
      _
    // Predicated region
    $region26: #{tpu_custom_call.1} parent=1 // pred_check
      _
    $region27: #{tpu_custom_call.1} parent=1 // pred_check_branch
      %83 = sbr.rel (0) target = $region29
    $region28: #{tpu_custom_call.1} parent=1 // pred_region
      %s85 = ssub.s32 16, 16
      %86 = vsyncadd [#allocation13], %s85
      %s88 = sshll.u32 %s6, 4
      %s89 = int_to_ptr.vmem [resolvable:$true] %s88
      %91 = dma.vmem_to_smem %s89, 16, [#allocation12], [#allocation13]
    $region29: #{tpu_custom_call.1} parent=1 // pred_fallthru
      _
    // Predicated region
    $region30: #{tpu_custom_call.1} parent=1 // pred_check
      _
    $region31: #{tpu_custom_call.1} parent=1 // pred_check_branch
      %93 = sbr.rel (0) target = $region33
    $region32: #{tpu_custom_call.1} parent=1 // pred_region
      %s95 = ssub.s32 16, 16
      %96 = vsyncadd [#allocation13], %s95
      %s98 = sshll.u32 %s7, 4
      %s99 = int_to_ptr.vmem [resolvable:$true] %s98
      %101 = dma.vmem_to_smem %s99, 16, [#allocation14], [#allocation13]
    $region33: #{tpu_custom_call.1} parent=1 // pred_fallthru
      _
    // Predicated region
    $region34: #{tpu_custom_call.1} parent=1 // pred_check
      _
    $region35: #{tpu_custom_call.1} parent=1 // pred_check_branch
      %103 = sbr.rel (0) target = $region37
    $region36: #{tpu_custom_call.1} parent=1 // pred_region
      %s105 = ssub.s32 16, 16
      %106 = vsyncadd [#allocation16], %s105
      %s108 = sshll.u32 %s8, 4
      %s109 = int_to_ptr.vmem [resolvable:$true] %s108
      %111 = dma.vmem_to_smem %s109, 16, [#allocation15], [#allocation16]
    $region37: #{tpu_custom_call.1} parent=1 // pred_fallthru
      _
    // Predicated region
    $region38: #{tpu_custom_call.1} parent=1 // pred_check
      _
    $region39: #{tpu_custom_call.1} parent=1 // pred_check_branch
      %113 = sbr.rel (0) target = $region41
    $region40: #{tpu_custom_call.1} parent=1 // pred_region
      %114 = dma.done [#allocation3], 1536
    $region41: #{tpu_custom_call.1} parent=1 // pred_fallthru
      _
    // Predicated region
    $region42: #{tpu_custom_call.1} parent=1 // pred_check
      _
    $region43: #{tpu_custom_call.1} parent=1 // pred_check_branch
      %116 = sbr.rel (0) target = $region45
    $region44: #{tpu_custom_call.1} parent=1 // pred_region
      %117 = dma.done [#allocation4], 16
    $region45: #{tpu_custom_call.1} parent=1 // pred_fallthru
      _
    // Predicated region
    $region46: #{tpu_custom_call.1} parent=1 // pred_check
      _
    $region47: #{tpu_custom_call.1} parent=1 // pred_check_branch
      %119 = sbr.rel (0) target = $region49
    $region48: #{tpu_custom_call.1} parent=1 // pred_region
      %120 = dma.done [#allocation7], 16
    $region49: #{tpu_custom_call.1} parent=1 // pred_fallthru
      _
    // Predicated region
    $region50: #{tpu_custom_call.1} parent=1 // pred_check
      _
    $region51: #{tpu_custom_call.1} parent=1 // pred_check_branch
      %122 = sbr.rel (0) target = $region53
    $region52: #{tpu_custom_call.1} parent=1 // pred_region
      %123 = dma.done [#allocation7], 16
    $region53: #{tpu_custom_call.1} parent=1 // pred_fallthru
      _
    // Predicated region
    $region54: #{tpu_custom_call.1} parent=1 // pred_check
      _
    $region55: #{tpu_custom_call.1} parent=1 // pred_check_branch
      %125 = sbr.rel (0) target = $region57
    $region56: #{tpu_custom_call.1} parent=1 // pred_region
      %126 = dma.done [#allocation10], 16
    $region57: #{tpu_custom_call.1} parent=1 // pred_fallthru
      _
    // Predicated region
    $region58: #{tpu_custom_call.1} parent=1 // pred_check
      _
    $region59: #{tpu_custom_call.1} parent=1 // pred_check_branch
      %128 = sbr.rel (0) target = $region61
    $region60: #{tpu_custom_call.1} parent=1 // pred_region
      %129 = dma.done [#allocation10], 16
    $region61: #{tpu_custom_call.1} parent=1 // pred_fallthru
      _
    // Predicated region
    $region62: #{tpu_custom_call.1} parent=1 // pred_check
      _
    $region63: #{tpu_custom_call.1} parent=1 // pred_check_branch
      %131 = sbr.rel (0) target = $region65
    $region64: #{tpu_custom_call.1} parent=1 // pred_region
      %132 = dma.done [#allocation13], 16
    $region65: #{tpu_custom_call.1} parent=1 // pred_fallthru
      _
    // Predicated region
    $region66: #{tpu_custom_call.1} parent=1 // pred_check
      _
    $region67: #{tpu_custom_call.1} parent=1 // pred_check_branch
      %134 = sbr.rel (0) target = $region69
    $region68: #{tpu_custom_call.1} parent=1 // pred_region
      %135 = dma.done [#allocation13], 16
    $region69: #{tpu_custom_call.1} parent=1 // pred_fallthru
      _
    // Predicated region
    $region70: #{tpu_custom_call.1} parent=1 // pred_check
      _
    $region71: #{tpu_custom_call.1} parent=1 // pred_check_branch
      %137 = sbr.rel (0) target = $region73
    $region72: #{tpu_custom_call.1} parent=1 // pred_region
      %138 = dma.done [#allocation16], 16
    $region73: #{tpu_custom_call.1} parent=1 // pred_fallthru
      _
    %139 = sfence
    %v140 = vld [vmem:[#allocation2] sm:$0xff]
    %v141 = vld [vmem:[#allocation2 + $0x8] sm:$0xff]
    %v142 = vld [vmem:[#allocation2 + $0x10] sm:$0xff]
    %v143 = vld [vmem:[#allocation2 + $0x18] sm:$0xff]
    %s144 = scalar_lea.vmem [#allocation2], 32
    %v145 = vld [vmem:[%s144] sm:$0xff]
    %v146 = vld [vmem:[%s144 + $0x8] sm:$0xff]
    %v147 = vld [vmem:[%s144 + $0x10] sm:$0xff]
    %v148 = vld [vmem:[%s144 + $0x18] sm:$0xff]
    %s149 = scalar_lea.vmem [#allocation2], 64
    %v150 = vld [vmem:[%s149] sm:$0xff]
    %v151 = vld [vmem:[%s149 + $0x8] sm:$0xff]
    %v152 = vld [vmem:[%s149 + $0x10] sm:$0xff]
    %v153 = vld [vmem:[%s149 + $0x18] sm:$0xff]
    %s154 = sld [smem:[#allocation6]]
    %v155 = vstv %s154
    %v156 = vadd.f32 %v155, 0.0
    %s157 = sld [smem:[#allocation6 + $0x1]]
    %v158 = vstv %s157
    %v159 = vadd.f32 %v158, 0.0
    %s160 = sld [smem:[#allocation6 + $0x2]]
    %v161 = vstv %s160
    %v162 = vadd.f32 %v161, 0.0
    %s163 = sld [smem:[#allocation5]]
    %v164 = vstv %s163
    %v165 = vmul.f32 %v164, %v140
    %v166 = vmul.f32 %v164, %v141
    %v167 = vmul.f32 %v164, %v142
    %v168 = vmul.f32 %v164, %v143
    %v169 = vadd.f32 %v156, %v165
    %v170 = vadd.f32 %v156, %v166
    %v171 = vadd.f32 %v156, %v167
    %v172 = vadd.f32 %v156, %v168
    %s173 = sld [smem:[#allocation5 + $0x1b]]
    %v174 = vstv %s173
    %v175 = vmul.f32 %v174, %v140
    %v176 = vmul.f32 %v174, %v141
    %v177 = vmul.f32 %v174, %v142
    %v178 = vmul.f32 %v174, %v143
    %v179 = vadd.f32 %v159, %v175
    %v180 = vadd.f32 %v159, %v176
    %v181 = vadd.f32 %v159, %v177
    %v182 = vadd.f32 %v159, %v178
    %s183 = sld [smem:[#allocation5 + $0x36]]
    %v184 = vstv %s183
    %v185 = vmul.f32 %v184, %v140
    %v186 = vmul.f32 %v184, %v141
    %v187 = vmul.f32 %v184, %v142
    %v188 = vmul.f32 %v184, %v143
    %v189 = vadd.f32 %v162, %v185
    %v190 = vadd.f32 %v162, %v186
    %v191 = vadd.f32 %v162, %v187
    %v192 = vadd.f32 %v162, %v188
    %s193 = sld [smem:[#allocation5 + $0x1]]
    %v194 = vstv %s193
    %v195 = vmul.f32 %v194, %v140
    %v196 = vmul.f32 %v194, %v141
    %v197 = vmul.f32 %v194, %v142
    %v198 = vmul.f32 %v194, %v143
    %203 = vrot.lane.b32.xlu0 %v195, 127
    %v204 = vpop.permute.xlu0 %203
    %205 = vrot.lane.b32.xlu0 %v196, 127
    %v206 = vpop.permute.xlu0 %205
    %207 = vrot.lane.b32.xlu0 %v197, 127
    %v208 = vpop.permute.xlu0 %207
    %209 = vrot.lane.b32.xlu0 %v198, 127
    %v210 = vpop.permute.xlu0 %209
    %v215 = vadd.f32 %v169, %v204
    %v216 = vadd.f32 %v170, %v206
    %v217 = vadd.f32 %v171, %v208
    %v218 = vadd.f32 %v172, %v210
    %s219 = sld [smem:[#allocation5 + $0x1c]]
    %v220 = vstv %s219
    %v221 = vmul.f32 %v220, %v140
    %v222 = vmul.f32 %v220, %v141
    %v223 = vmul.f32 %v220, %v142
    %v224 = vmul.f32 %v220, %v143
    %229 = vrot.lane.b32.xlu0 %v221, 127
    %v230 = vpop.permute.xlu0 %229
    %231 = vrot.lane.b32.xlu0 %v222, 127
    %v232 = vpop.permute.xlu0 %231
    %233 = vrot.lane.b32.xlu0 %v223, 127
    %v234 = vpop.permute.xlu0 %233
    %235 = vrot.lane.b32.xlu0 %v224, 127
    %v236 = vpop.permute.xlu0 %235
    %v241 = vadd.f32 %v179, %v230
    %v242 = vadd.f32 %v180, %v232
    %v243 = vadd.f32 %v181, %v234
    %v244 = vadd.f32 %v182, %v236
    %s245 = sld [smem:[#allocation5 + $0x37]]
    %v246 = vstv %s245
    %v247 = vmul.f32 %v246, %v140
    %v248 = vmul.f32 %v246, %v141
    %v249 = vmul.f32 %v246, %v142
    %v250 = vmul.f32 %v246, %v143
    %255 = vrot.lane.b32.xlu0 %v247, 127
    %v256 = vpop.permute.xlu0 %255
    %257 = vrot.lane.b32.xlu0 %v248, 127
    %v258 = vpop.permute.xlu0 %257
    %259 = vrot.lane.b32.xlu0 %v249, 127
    %v260 = vpop.permute.xlu0 %259
    %261 = vrot.lane.b32.xlu0 %v250, 127
    %v262 = vpop.permute.xlu0 %261
    %v267 = vadd.f32 %v189, %v256
    %v268 = vadd.f32 %v190, %v258
    %v269 = vadd.f32 %v191, %v260
    %v270 = vadd.f32 %v192, %v262
    %s271 = sld [smem:[#allocation5 + $0x2]]
    %v272 = vstv %s271
    %v273 = vmul.f32 %v272, %v140
    %v274 = vmul.f32 %v272, %v141
    %v275 = vmul.f32 %v272, %v142
    %v276 = vmul.f32 %v272, %v143
    %281 = vrot.lane.b32.xlu0 %v273, 126
    %v282 = vpop.permute.xlu0 %281
    %283 = vrot.lane.b32.xlu0 %v274, 126
    %v284 = vpop.permute.xlu0 %283
    %285 = vrot.lane.b32.xlu0 %v275, 126
    %v286 = vpop.permute.xlu0 %285
    %287 = vrot.lane.b32.xlu0 %v276, 126
    %v288 = vpop.permute.xlu0 %287
    %v293 = vadd.f32 %v215, %v282
    %v294 = vadd.f32 %v216, %v284
    %v295 = vadd.f32 %v217, %v286
    %v296 = vadd.f32 %v218, %v288
    %s297 = sld [smem:[#allocation5 + $0x1d]]
    %v298 = vstv %s297
    %v299 = vmul.f32 %v298, %v140
    %v300 = vmul.f32 %v298, %v141
    %v301 = vmul.f32 %v298, %v142
    %v302 = vmul.f32 %v298, %v143
    %307 = vrot.lane.b32.xlu0 %v299, 126
    %v308 = vpop.permute.xlu0 %307
    %309 = vrot.lane.b32.xlu0 %v300, 126
    %v310 = vpop.permute.xlu0 %309
    %311 = vrot.lane.b32.xlu0 %v301, 126
    %v312 = vpop.permute.xlu0 %311
    %313 = vrot.lane.b32.xlu0 %v302, 126
    %v314 = vpop.permute.xlu0 %313
    %v319 = vadd.f32 %v241, %v308
    %v320 = vadd.f32 %v242, %v310
    %v321 = vadd.f32 %v243, %v312
    %v322 = vadd.f32 %v244, %v314
    %s323 = sld [smem:[#allocation5 + $0x38]]
    %v324 = vstv %s323
    %v325 = vmul.f32 %v324, %v140
    %v326 = vmul.f32 %v324, %v141
    %v327 = vmul.f32 %v324, %v142
    %v328 = vmul.f32 %v324, %v143
    %333 = vrot.lane.b32.xlu0 %v325, 126
    %v334 = vpop.permute.xlu0 %333
    %335 = vrot.lane.b32.xlu0 %v326, 126
    %v336 = vpop.permute.xlu0 %335
    %337 = vrot.lane.b32.xlu0 %v327, 126
    %v338 = vpop.permute.xlu0 %337
    %339 = vrot.lane.b32.xlu0 %v328, 126
    %v340 = vpop.permute.xlu0 %339
    %v345 = vadd.f32 %v267, %v334
    %v346 = vadd.f32 %v268, %v336
    %v347 = vadd.f32 %v269, %v338
    %v348 = vadd.f32 %v270, %v340
    %s349 = sld [smem:[#allocation5 + $0x3]]
    %v350 = vstv %s349
    %v351 = vmul.f32 %v350, %v140
    %v352 = vmul.f32 %v350, %v141
    %v353 = vmul.f32 %v350, %v142
    %v354 = vmul.f32 %v350, %v143
    %vm359 = vcmask 1046528
    %v360 = vrot.slane %v351, 1
    %v361 = vrot.slane %v352, 1
    %v362 = vsel %vm359, %v360, %v361
    %v363 = vrot.slane %v353, 1
    %v364 = vrot.slane %v354, 1
    %v365 = vsel %vm359, %v363, %v364
    %v370 = vadd.f32 %v293, %v362
    %v371 = vadd.f32 %v294, %v361
    %v372 = vadd.f32 %v295, %v365
    %v373 = vadd.f32 %v296, %v364
    %s374 = sld [smem:[#allocation5 + $0x1e]]
    %v375 = vstv %s374
    %v376 = vmul.f32 %v375, %v140
    %v377 = vmul.f32 %v375, %v141
    %v378 = vmul.f32 %v375, %v142
    %v379 = vmul.f32 %v375, %v143
    %v384 = vrot.slane %v376, 1
    %v385 = vrot.slane %v377, 1
    %v386 = vsel %vm359, %v384, %v385
    %v387 = vrot.slane %v378, 1
    %v388 = vrot.slane %v379, 1
    %v389 = vsel %vm359, %v387, %v388
    %v394 = vadd.f32 %v319, %v386
    %v395 = vadd.f32 %v320, %v385
    %v396 = vadd.f32 %v321, %v389
    %v397 = vadd.f32 %v322, %v388
    %s398 = sld [smem:[#allocation5 + $0x39]]
    %v399 = vstv %s398
    %v400 = vmul.f32 %v399, %v140
    %v401 = vmul.f32 %v399, %v141
    %v402 = vmul.f32 %v399, %v142
    %v403 = vmul.f32 %v399, %v143
    %v408 = vrot.slane %v400, 1
    %v409 = vrot.slane %v401, 1
    %v410 = vsel %vm359, %v408, %v409
    %v411 = vrot.slane %v402, 1
    %v412 = vrot.slane %v403, 1
    %v413 = vsel %vm359, %v411, %v412
    %v418 = vadd.f32 %v345, %v410
    %v419 = vadd.f32 %v346, %v409
    %v420 = vadd.f32 %v347, %v413
    %v421 = vadd.f32 %v348, %v412
    %s422 = sld [smem:[#allocation5 + $0x4]]
    %v423 = vstv %s422
    %v424 = vmul.f32 %v423, %v140
    %v425 = vmul.f32 %v423, %v141
    %v426 = vmul.f32 %v423, %v142
    %v427 = vmul.f32 %v423, %v143
    %v432 = vrot.slane %v424, 1
    %v433 = vrot.slane %v425, 1
    %v434 = vsel %vm359, %v432, %v433
    %v435 = vrot.slane %v426, 1
    %v436 = vrot.slane %v427, 1
    %v437 = vsel %vm359, %v435, %v436
    %438 = vrot.lane.b32.xlu0 %v434, 127
    %v439 = vpop.permute.xlu0 %438
    %440 = vrot.lane.b32.xlu0 %v433, 127
    %v441 = vpop.permute.xlu0 %440
    %442 = vrot.lane.b32.xlu0 %v437, 127
    %v443 = vpop.permute.xlu0 %442
    %444 = vrot.lane.b32.xlu0 %v436, 127
    %v445 = vpop.permute.xlu0 %444
    %v450 = vadd.f32 %v370, %v439
    %v451 = vadd.f32 %v371, %v441
    %v452 = vadd.f32 %v372, %v443
    %v453 = vadd.f32 %v373, %v445
    %s454 = sld [smem:[#allocation5 + $0x1f]]
    %v455 = vstv %s454
    %v456 = vmul.f32 %v455, %v140
    %v457 = vmul.f32 %v455, %v141
    %v458 = vmul.f32 %v455, %v142
    %v459 = vmul.f32 %v455, %v143
    %v464 = vrot.slane %v456, 1
    %v465 = vrot.slane %v457, 1
    %v466 = vsel %vm359, %v464, %v465
    %v467 = vrot.slane %v458, 1
    %v468 = vrot.slane %v459, 1
    %v469 = vsel %vm359, %v467, %v468
    %470 = vrot.lane.b32.xlu0 %v466, 127
    %v471 = vpop.permute.xlu0 %470
    %472 = vrot.lane.b32.xlu0 %v465, 127
    %v473 = vpop.permute.xlu0 %472
    %474 = vrot.lane.b32.xlu0 %v469, 127
    %v475 = vpop.permute.xlu0 %474
    %476 = vrot.lane.b32.xlu0 %v468, 127
    %v477 = vpop.permute.xlu0 %476
    %v482 = vadd.f32 %v394, %v471
    %v483 = vadd.f32 %v395, %v473
    %v484 = vadd.f32 %v396, %v475
    %v485 = vadd.f32 %v397, %v477
    %s486 = sld [smem:[#allocation5 + $0x3a]]
    %v487 = vstv %s486
    %v488 = vmul.f32 %v487, %v140
    %v489 = vmul.f32 %v487, %v141
    %v490 = vmul.f32 %v487, %v142
    %v491 = vmul.f32 %v487, %v143
    %v496 = vrot.slane %v488, 1
    %v497 = vrot.slane %v489, 1
    %v498 = vsel %vm359, %v496, %v497
    %v499 = vrot.slane %v490, 1
    %v500 = vrot.slane %v491, 1
    %v501 = vsel %vm359, %v499, %v500
    %502 = vrot.lane.b32.xlu0 %v498, 127
    %v503 = vpop.permute.xlu0 %502
    %504 = vrot.lane.b32.xlu0 %v497, 127
    %v505 = vpop.permute.xlu0 %504
    %506 = vrot.lane.b32.xlu0 %v501, 127
    %v507 = vpop.permute.xlu0 %506
    %508 = vrot.lane.b32.xlu0 %v500, 127
    %v509 = vpop.permute.xlu0 %508
    %v514 = vadd.f32 %v418, %v503
    %v515 = vadd.f32 %v419, %v505
    %v516 = vadd.f32 %v420, %v507
    %v517 = vadd.f32 %v421, %v509
    %s518 = sld [smem:[#allocation5 + $0x5]]
    %v519 = vstv %s518
    %v520 = vmul.f32 %v519, %v140
    %v521 = vmul.f32 %v519, %v141
    %v522 = vmul.f32 %v519, %v142
    %v523 = vmul.f32 %v519, %v143
    %v528 = vrot.slane %v520, 1
    %v529 = vrot.slane %v521, 1
    %v530 = vsel %vm359, %v528, %v529
    %v531 = vrot.slane %v522, 1
    %v532 = vrot.slane %v523, 1
    %v533 = vsel %vm359, %v531, %v532
    %534 = vrot.lane.b32.xlu0 %v530, 126
    %v535 = vpop.permute.xlu0 %534
    %536 = vrot.lane.b32.xlu0 %v529, 126
    %v537 = vpop.permute.xlu0 %536
    %538 = vrot.lane.b32.xlu0 %v533, 126
    %v539 = vpop.permute.xlu0 %538
    %540 = vrot.lane.b32.xlu0 %v532, 126
    %v541 = vpop.permute.xlu0 %540
    %v546 = vadd.f32 %v450, %v535
    %v547 = vadd.f32 %v451, %v537
    %v548 = vadd.f32 %v452, %v539
    %v549 = vadd.f32 %v453, %v541
    %s550 = sld [smem:[#allocation5 + $0x20]]
    %v551 = vstv %s550
    %v552 = vmul.f32 %v551, %v140
    %v553 = vmul.f32 %v551, %v141
    %v554 = vmul.f32 %v551, %v142
    %v555 = vmul.f32 %v551, %v143
    %v560 = vrot.slane %v552, 1
    %v561 = vrot.slane %v553, 1
    %v562 = vsel %vm359, %v560, %v561
    %v563 = vrot.slane %v554, 1
    %v564 = vrot.slane %v555, 1
    %v565 = vsel %vm359, %v563, %v564
    %566 = vrot.lane.b32.xlu0 %v562, 126
    %v567 = vpop.permute.xlu0 %566
    %568 = vrot.lane.b32.xlu0 %v561, 126
    %v569 = vpop.permute.xlu0 %568
    %570 = vrot.lane.b32.xlu0 %v565, 126
    %v571 = vpop.permute.xlu0 %570
    %572 = vrot.lane.b32.xlu0 %v564, 126
    %v573 = vpop.permute.xlu0 %572
    %v578 = vadd.f32 %v482, %v567
    %v579 = vadd.f32 %v483, %v569
    %v580 = vadd.f32 %v484, %v571
    %v581 = vadd.f32 %v485, %v573
    %s582 = sld [smem:[#allocation5 + $0x3b]]
    %v583 = vstv %s582
    %v584 = vmul.f32 %v583, %v140
    %v585 = vmul.f32 %v583, %v141
    %v586 = vmul.f32 %v583, %v142
    %v587 = vmul.f32 %v583, %v143
    %v592 = vrot.slane %v584, 1
    %v593 = vrot.slane %v585, 1
    %v594 = vsel %vm359, %v592, %v593
    %v595 = vrot.slane %v586, 1
    %v596 = vrot.slane %v587, 1
    %v597 = vsel %vm359, %v595, %v596
    %598 = vrot.lane.b32.xlu0 %v594, 126
    %v599 = vpop.permute.xlu0 %598
    %600 = vrot.lane.b32.xlu0 %v593, 126
    %v601 = vpop.permute.xlu0 %600
    %602 = vrot.lane.b32.xlu0 %v597, 126
    %v603 = vpop.permute.xlu0 %602
    %604 = vrot.lane.b32.xlu0 %v596, 126
    %v605 = vpop.permute.xlu0 %604
    %v610 = vadd.f32 %v514, %v599
    %v611 = vadd.f32 %v515, %v601
    %v612 = vadd.f32 %v516, %v603
    %v613 = vadd.f32 %v517, %v605
    %s614 = sld [smem:[#allocation5 + $0x6]]
    %v615 = vstv %s614
    %v616 = vmul.f32 %v615, %v140
    %v617 = vmul.f32 %v615, %v141
    %v618 = vmul.f32 %v615, %v142
    %v619 = vmul.f32 %v615, %v143
    %vm624 = vcmask 1045504
    %v625 = vrot.slane %v616, 2
    %v626 = vrot.slane %v617, 2
    %v627 = vsel %vm624, %v625, %v626
    %v628 = vrot.slane %v618, 2
    %v629 = vrot.slane %v619, 2
    %v630 = vsel %vm624, %v628, %v629
    %v635 = vadd.f32 %v546, %v627
    %v636 = vadd.f32 %v547, %v626
    %v637 = vadd.f32 %v548, %v630
    %v638 = vadd.f32 %v549, %v629
    %s639 = sld [smem:[#allocation5 + $0x21]]
    %v640 = vstv %s639
    %v641 = vmul.f32 %v640, %v140
    %v642 = vmul.f32 %v640, %v141
    %v643 = vmul.f32 %v640, %v142
    %v644 = vmul.f32 %v640, %v143
    %v649 = vrot.slane %v641, 2
    %v650 = vrot.slane %v642, 2
    %v651 = vsel %vm624, %v649, %v650
    %v652 = vrot.slane %v643, 2
    %v653 = vrot.slane %v644, 2
    %v654 = vsel %vm624, %v652, %v653
    %v659 = vadd.f32 %v578, %v651
    %v660 = vadd.f32 %v579, %v650
    %v661 = vadd.f32 %v580, %v654
    %v662 = vadd.f32 %v581, %v653
    %s663 = sld [smem:[#allocation5 + $0x3c]]
    %v664 = vstv %s663
    %v665 = vmul.f32 %v664, %v140
    %v666 = vmul.f32 %v664, %v141
    %v667 = vmul.f32 %v664, %v142
    %v668 = vmul.f32 %v664, %v143
    %v673 = vrot.slane %v665, 2
    %v674 = vrot.slane %v666, 2
    %v675 = vsel %vm624, %v673, %v674
    %v676 = vrot.slane %v667, 2
    %v677 = vrot.slane %v668, 2
    %v678 = vsel %vm624, %v676, %v677
    %v683 = vadd.f32 %v610, %v675
    %v684 = vadd.f32 %v611, %v674
    %v685 = vadd.f32 %v612, %v678
    %v686 = vadd.f32 %v613, %v677
    %s687 = sld [smem:[#allocation5 + $0x7]]
    %v688 = vstv %s687
    %v689 = vmul.f32 %v688, %v140
    %v690 = vmul.f32 %v688, %v141
    %v691 = vmul.f32 %v688, %v142
    %v692 = vmul.f32 %v688, %v143
    %v697 = vrot.slane %v689, 2
    %v698 = vrot.slane %v690, 2
    %v699 = vsel %vm624, %v697, %v698
    %v700 = vrot.slane %v691, 2
    %v701 = vrot.slane %v692, 2
    %v702 = vsel %vm624, %v700, %v701
    %703 = vrot.lane.b32.xlu0 %v699, 127
    %v704 = vpop.permute.xlu0 %703
    %705 = vrot.lane.b32.xlu0 %v698, 127
    %v706 = vpop.permute.xlu0 %705
    %707 = vrot.lane.b32.xlu0 %v702, 127
    %v708 = vpop.permute.xlu0 %707
    %709 = vrot.lane.b32.xlu0 %v701, 127
    %v710 = vpop.permute.xlu0 %709
    %v715 = vadd.f32 %v635, %v704
    %v716 = vadd.f32 %v636, %v706
    %v717 = vadd.f32 %v637, %v708
    %v718 = vadd.f32 %v638, %v710
    %s719 = sld [smem:[#allocation5 + $0x22]]
    %v720 = vstv %s719
    %v721 = vmul.f32 %v720, %v140
    %v722 = vmul.f32 %v720, %v141
    %v723 = vmul.f32 %v720, %v142
    %v724 = vmul.f32 %v720, %v143
    %v729 = vrot.slane %v721, 2
    %v730 = vrot.slane %v722, 2
    %v731 = vsel %vm624, %v729, %v730
    %v732 = vrot.slane %v723, 2
    %v733 = vrot.slane %v724, 2
    %v734 = vsel %vm624, %v732, %v733
    %735 = vrot.lane.b32.xlu0 %v731, 127
    %v736 = vpop.permute.xlu0 %735
    %737 = vrot.lane.b32.xlu0 %v730, 127
    %v738 = vpop.permute.xlu0 %737
    %739 = vrot.lane.b32.xlu0 %v734, 127
    %v740 = vpop.permute.xlu0 %739
    %741 = vrot.lane.b32.xlu0 %v733, 127
    %v742 = vpop.permute.xlu0 %741
    %v747 = vadd.f32 %v659, %v736
    %v748 = vadd.f32 %v660, %v738
    %v749 = vadd.f32 %v661, %v740
    %v750 = vadd.f32 %v662, %v742
    %s751 = sld [smem:[#allocation5 + $0x3d]]
    %v752 = vstv %s751
    %v753 = vmul.f32 %v752, %v140
    %v754 = vmul.f32 %v752, %v141
    %v755 = vmul.f32 %v752, %v142
    %v756 = vmul.f32 %v752, %v143
    %v761 = vrot.slane %v753, 2
    %v762 = vrot.slane %v754, 2
    %v763 = vsel %vm624, %v761, %v762
    %v764 = vrot.slane %v755, 2
    %v765 = vrot.slane %v756, 2
    %v766 = vsel %vm624, %v764, %v765
    %767 = vrot.lane.b32.xlu0 %v763, 127
    %v768 = vpop.permute.xlu0 %767
    %769 = vrot.lane.b32.xlu0 %v762, 127
    %v770 = vpop.permute.xlu0 %769
    %771 = vrot.lane.b32.xlu0 %v766, 127
    %v772 = vpop.permute.xlu0 %771
    %773 = vrot.lane.b32.xlu0 %v765, 127
    %v774 = vpop.permute.xlu0 %773
    %v779 = vadd.f32 %v683, %v768
    %v780 = vadd.f32 %v684, %v770
    %v781 = vadd.f32 %v685, %v772
    %v782 = vadd.f32 %v686, %v774
    %s783 = sld [smem:[#allocation5 + $0x8]]
    %v784 = vstv %s783
    %v785 = vmul.f32 %v784, %v140
    %v786 = vmul.f32 %v784, %v141
    %v787 = vmul.f32 %v784, %v142
    %v788 = vmul.f32 %v784, %v143
    %v793 = vrot.slane %v785, 2
    %v794 = vrot.slane %v786, 2
    %v795 = vsel %vm624, %v793, %v794
    %v796 = vrot.slane %v787, 2
    %v797 = vrot.slane %v788, 2
    %v798 = vsel %vm624, %v796, %v797
    %799 = vrot.lane.b32.xlu0 %v795, 126
    %v800 = vpop.permute.xlu0 %799
    %801 = vrot.lane.b32.xlu0 %v794, 126
    %v802 = vpop.permute.xlu0 %801
    %803 = vrot.lane.b32.xlu0 %v798, 126
    %v804 = vpop.permute.xlu0 %803
    %805 = vrot.lane.b32.xlu0 %v797, 126
    %v806 = vpop.permute.xlu0 %805
    %v811 = vadd.f32 %v715, %v800
    %v812 = vadd.f32 %v716, %v802
    %v813 = vadd.f32 %v717, %v804
    %v814 = vadd.f32 %v718, %v806
    %s815 = sld [smem:[#allocation5 + $0x23]]
    %v816 = vstv %s815
    %v817 = vmul.f32 %v816, %v140
    %v818 = vmul.f32 %v816, %v141
    %v819 = vmul.f32 %v816, %v142
    %v820 = vmul.f32 %v816, %v143
    %v825 = vrot.slane %v817, 2
    %v826 = vrot.slane %v818, 2
    %v827 = vsel %vm624, %v825, %v826
    %v828 = vrot.slane %v819, 2
    %v829 = vrot.slane %v820, 2
    %v830 = vsel %vm624, %v828, %v829
    %831 = vrot.lane.b32.xlu0 %v827, 126
    %v832 = vpop.permute.xlu0 %831
    %833 = vrot.lane.b32.xlu0 %v826, 126
    %v834 = vpop.permute.xlu0 %833
    %835 = vrot.lane.b32.xlu0 %v830, 126
    %v836 = vpop.permute.xlu0 %835
    %837 = vrot.lane.b32.xlu0 %v829, 126
    %v838 = vpop.permute.xlu0 %837
    %v843 = vadd.f32 %v747, %v832
    %v844 = vadd.f32 %v748, %v834
    %v845 = vadd.f32 %v749, %v836
    %v846 = vadd.f32 %v750, %v838
    %s847 = sld [smem:[#allocation5 + $0x3e]]
    %v848 = vstv %s847
    %v849 = vmul.f32 %v848, %v140
    %v850 = vmul.f32 %v848, %v141
    %v851 = vmul.f32 %v848, %v142
    %v852 = vmul.f32 %v848, %v143
    %v857 = vrot.slane %v849, 2
    %v858 = vrot.slane %v850, 2
    %v859 = vsel %vm624, %v857, %v858
    %v860 = vrot.slane %v851, 2
    %v861 = vrot.slane %v852, 2
    %v862 = vsel %vm624, %v860, %v861
    %863 = vrot.lane.b32.xlu0 %v859, 126
    %v864 = vpop.permute.xlu0 %863
    %865 = vrot.lane.b32.xlu0 %v858, 126
    %v866 = vpop.permute.xlu0 %865
    %867 = vrot.lane.b32.xlu0 %v862, 126
    %v868 = vpop.permute.xlu0 %867
    %869 = vrot.lane.b32.xlu0 %v861, 126
    %v870 = vpop.permute.xlu0 %869
    %v875 = vadd.f32 %v779, %v864
    %v876 = vadd.f32 %v780, %v866
    %v877 = vadd.f32 %v781, %v868
    %v878 = vadd.f32 %v782, %v870
    %s879 = sld [smem:[#allocation5 + $0x9]]
    %v880 = vstv %s879
    %v881 = vmul.f32 %v880, %v145
    %v882 = vmul.f32 %v880, %v146
    %v883 = vmul.f32 %v880, %v147
    %v884 = vmul.f32 %v880, %v148
    %v885 = vadd.f32 %v811, %v881
    %v886 = vadd.f32 %v812, %v882
    %v887 = vadd.f32 %v813, %v883
    %v888 = vadd.f32 %v814, %v884
    %s889 = sld [smem:[#allocation5 + $0x24]]
    %v890 = vstv %s889
    %v891 = vmul.f32 %v890, %v145
    %v892 = vmul.f32 %v890, %v146
    %v893 = vmul.f32 %v890, %v147
    %v894 = vmul.f32 %v890, %v148
    %v895 = vadd.f32 %v843, %v891
    %v896 = vadd.f32 %v844, %v892
    %v897 = vadd.f32 %v845, %v893
    %v898 = vadd.f32 %v846, %v894
    %s899 = sld [smem:[#allocation5 + $0x3f]]
    %v900 = vstv %s899
    %v901 = vmul.f32 %v900, %v145
    %v902 = vmul.f32 %v900, %v146
    %v903 = vmul.f32 %v900, %v147
    %v904 = vmul.f32 %v900, %v148
    %v905 = vadd.f32 %v875, %v901
    %v906 = vadd.f32 %v876, %v902
    %v907 = vadd.f32 %v877, %v903
    %v908 = vadd.f32 %v878, %v904
    %s909 = sld [smem:[#allocation5 + $0xa]]
    %v910 = vstv %s909
    %v911 = vmul.f32 %v910, %v145
    %v912 = vmul.f32 %v910, %v146
    %v913 = vmul.f32 %v910, %v147
    %v914 = vmul.f32 %v910, %v148
    %919 = vrot.lane.b32.xlu0 %v911, 127
    %v920 = vpop.permute.xlu0 %919
    %921 = vrot.lane.b32.xlu0 %v912, 127
    %v922 = vpop.permute.xlu0 %921
    %923 = vrot.lane.b32.xlu0 %v913, 127
    %v924 = vpop.permute.xlu0 %923
    %925 = vrot.lane.b32.xlu0 %v914, 127
    %v926 = vpop.permute.xlu0 %925
    %v931 = vadd.f32 %v885, %v920
    %v932 = vadd.f32 %v886, %v922
    %v933 = vadd.f32 %v887, %v924
    %v934 = vadd.f32 %v888, %v926
    %s935 = sld [smem:[#allocation5 + $0x25]]
    %v936 = vstv %s935
    %v937 = vmul.f32 %v936, %v145
    %v938 = vmul.f32 %v936, %v146
    %v939 = vmul.f32 %v936, %v147
    %v940 = vmul.f32 %v936, %v148
    %945 = vrot.lane.b32.xlu0 %v937, 127
    %v946 = vpop.permute.xlu0 %945
    %947 = vrot.lane.b32.xlu0 %v938, 127
    %v948 = vpop.permute.xlu0 %947
    %949 = vrot.lane.b32.xlu0 %v939, 127
    %v950 = vpop.permute.xlu0 %949
    %951 = vrot.lane.b32.xlu0 %v940, 127
    %v952 = vpop.permute.xlu0 %951
    %v957 = vadd.f32 %v895, %v946
    %v958 = vadd.f32 %v896, %v948
    %v959 = vadd.f32 %v897, %v950
    %v960 = vadd.f32 %v898, %v952
    %s961 = sld [smem:[#allocation5 + $0x40]]
    %v962 = vstv %s961
    %v963 = vmul.f32 %v962, %v145
    %v964 = vmul.f32 %v962, %v146
    %v965 = vmul.f32 %v962, %v147
    %v966 = vmul.f32 %v962, %v148
    %971 = vrot.lane.b32.xlu0 %v963, 127
    %v972 = vpop.permute.xlu0 %971
    %973 = vrot.lane.b32.xlu0 %v964, 127
    %v974 = vpop.permute.xlu0 %973
    %975 = vrot.lane.b32.xlu0 %v965, 127
    %v976 = vpop.permute.xlu0 %975
    %977 = vrot.lane.b32.xlu0 %v966, 127
    %v978 = vpop.permute.xlu0 %977
    %v983 = vadd.f32 %v905, %v972
    %v984 = vadd.f32 %v906, %v974
    %v985 = vadd.f32 %v907, %v976
    %v986 = vadd.f32 %v908, %v978
    %s987 = sld [smem:[#allocation5 + $0xb]]
    %v988 = vstv %s987
    %v989 = vmul.f32 %v988, %v145
    %v990 = vmul.f32 %v988, %v146
    %v991 = vmul.f32 %v988, %v147
    %v992 = vmul.f32 %v988, %v148
    %997 = vrot.lane.b32.xlu0 %v989, 126
    %v998 = vpop.permute.xlu0 %997
    %999 = vrot.lane.b32.xlu0 %v990, 126
    %v1000 = vpop.permute.xlu0 %999
    %1001 = vrot.lane.b32.xlu0 %v991, 126
    %v1002 = vpop.permute.xlu0 %1001
    %1003 = vrot.lane.b32.xlu0 %v992, 126
    %v1004 = vpop.permute.xlu0 %1003
    %v1009 = vadd.f32 %v931, %v998
    %v1010 = vadd.f32 %v932, %v1000
    %v1011 = vadd.f32 %v933, %v1002
    %v1012 = vadd.f32 %v934, %v1004
    %s1013 = sld [smem:[#allocation5 + $0x26]]
    %v1014 = vstv %s1013
    %v1015 = vmul.f32 %v1014, %v145
    %v1016 = vmul.f32 %v1014, %v146
    %v1017 = vmul.f32 %v1014, %v147
    %v1018 = vmul.f32 %v1014, %v148
    %1023 = vrot.lane.b32.xlu0 %v1015, 126
    %v1024 = vpop.permute.xlu0 %1023
    %1025 = vrot.lane.b32.xlu0 %v1016, 126
    %v1026 = vpop.permute.xlu0 %1025
    %1027 = vrot.lane.b32.xlu0 %v1017, 126
    %v1028 = vpop.permute.xlu0 %1027
    %1029 = vrot.lane.b32.xlu0 %v1018, 126
    %v1030 = vpop.permute.xlu0 %1029
    %v1035 = vadd.f32 %v957, %v1024
    %v1036 = vadd.f32 %v958, %v1026
    %v1037 = vadd.f32 %v959, %v1028
    %v1038 = vadd.f32 %v960, %v1030
    %s1039 = sld [smem:[#allocation5 + $0x41]]
    %v1040 = vstv %s1039
    %v1041 = vmul.f32 %v1040, %v145
    %v1042 = vmul.f32 %v1040, %v146
    %v1043 = vmul.f32 %v1040, %v147
    %v1044 = vmul.f32 %v1040, %v148
    %1049 = vrot.lane.b32.xlu0 %v1041, 126
    %v1050 = vpop.permute.xlu0 %1049
    %1051 = vrot.lane.b32.xlu0 %v1042, 126
    %v1052 = vpop.permute.xlu0 %1051
    %1053 = vrot.lane.b32.xlu0 %v1043, 126
    %v1054 = vpop.permute.xlu0 %1053
    %1055 = vrot.lane.b32.xlu0 %v1044, 126
    %v1056 = vpop.permute.xlu0 %1055
    %v1061 = vadd.f32 %v983, %v1050
    %v1062 = vadd.f32 %v984, %v1052
    %v1063 = vadd.f32 %v985, %v1054
    %v1064 = vadd.f32 %v986, %v1056
    %s1065 = sld [smem:[#allocation5 + $0xc]]
    %v1066 = vstv %s1065
    %v1067 = vmul.f32 %v1066, %v145
    %v1068 = vmul.f32 %v1066, %v146
    %v1069 = vmul.f32 %v1066, %v147
    %v1070 = vmul.f32 %v1066, %v148
    %v1075 = vrot.slane %v1067, 1
    %v1076 = vrot.slane %v1068, 1
    %v1077 = vsel %vm359, %v1075, %v1076
    %v1078 = vrot.slane %v1069, 1
    %v1079 = vrot.slane %v1070, 1
    %v1080 = vsel %vm359, %v1078, %v1079
    %v1085 = vadd.f32 %v1009, %v1077
    %v1086 = vadd.f32 %v1010, %v1076
    %v1087 = vadd.f32 %v1011, %v1080
    %v1088 = vadd.f32 %v1012, %v1079
    %s1089 = sld [smem:[#allocation5 + $0x27]]
    %v1090 = vstv %s1089
    %v1091 = vmul.f32 %v1090, %v145
    %v1092 = vmul.f32 %v1090, %v146
    %v1093 = vmul.f32 %v1090, %v147
    %v1094 = vmul.f32 %v1090, %v148
    %v1099 = vrot.slane %v1091, 1
    %v1100 = vrot.slane %v1092, 1
    %v1101 = vsel %vm359, %v1099, %v1100
    %v1102 = vrot.slane %v1093, 1
    %v1103 = vrot.slane %v1094, 1
    %v1104 = vsel %vm359, %v1102, %v1103
    %v1109 = vadd.f32 %v1035, %v1101
    %v1110 = vadd.f32 %v1036, %v1100
    %v1111 = vadd.f32 %v1037, %v1104
    %v1112 = vadd.f32 %v1038, %v1103
    %s1113 = sld [smem:[#allocation5 + $0x42]]
    %v1114 = vstv %s1113
    %v1115 = vmul.f32 %v1114, %v145
    %v1116 = vmul.f32 %v1114, %v146
    %v1117 = vmul.f32 %v1114, %v147
    %v1118 = vmul.f32 %v1114, %v148
    %v1123 = vrot.slane %v1115, 1
    %v1124 = vrot.slane %v1116, 1
    %v1125 = vsel %vm359, %v1123, %v1124
    %v1126 = vrot.slane %v1117, 1
    %v1127 = vrot.slane %v1118, 1
    %v1128 = vsel %vm359, %v1126, %v1127
    %v1133 = vadd.f32 %v1061, %v1125
    %v1134 = vadd.f32 %v1062, %v1124
    %v1135 = vadd.f32 %v1063, %v1128
    %v1136 = vadd.f32 %v1064, %v1127
    %s1137 = sld [smem:[#allocation5 + $0xd]]
    %v1138 = vstv %s1137
    %v1139 = vmul.f32 %v1138, %v145
    %v1140 = vmul.f32 %v1138, %v146
    %v1141 = vmul.f32 %v1138, %v147
    %v1142 = vmul.f32 %v1138, %v148
    %v1147 = vrot.slane %v1139, 1
    %v1148 = vrot.slane %v1140, 1
    %v1149 = vsel %vm359, %v1147, %v1148
    %v1150 = vrot.slane %v1141, 1
    %v1151 = vrot.slane %v1142, 1
    %v1152 = vsel %vm359, %v1150, %v1151
    %1153 = vrot.lane.b32.xlu0 %v1149, 127
    %v1154 = vpop.permute.xlu0 %1153
    %1155 = vrot.lane.b32.xlu0 %v1148, 127
    %v1156 = vpop.permute.xlu0 %1155
    %1157 = vrot.lane.b32.xlu0 %v1152, 127
    %v1158 = vpop.permute.xlu0 %1157
    %1159 = vrot.lane.b32.xlu0 %v1151, 127
    %v1160 = vpop.permute.xlu0 %1159
    %v1165 = vadd.f32 %v1085, %v1154
    %v1166 = vadd.f32 %v1086, %v1156
    %v1167 = vadd.f32 %v1087, %v1158
    %v1168 = vadd.f32 %v1088, %v1160
    %s1169 = sld [smem:[#allocation5 + $0x28]]
    %v1170 = vstv %s1169
    %v1171 = vmul.f32 %v1170, %v145
    %v1172 = vmul.f32 %v1170, %v146
    %v1173 = vmul.f32 %v1170, %v147
    %v1174 = vmul.f32 %v1170, %v148
    %v1179 = vrot.slane %v1171, 1
    %v1180 = vrot.slane %v1172, 1
    %v1181 = vsel %vm359, %v1179, %v1180
    %v1182 = vrot.slane %v1173, 1
    %v1183 = vrot.slane %v1174, 1
    %v1184 = vsel %vm359, %v1182, %v1183
    %1185 = vrot.lane.b32.xlu0 %v1181, 127
    %v1186 = vpop.permute.xlu0 %1185
    %1187 = vrot.lane.b32.xlu0 %v1180, 127
    %v1188 = vpop.permute.xlu0 %1187
    %1189 = vrot.lane.b32.xlu0 %v1184, 127
    %v1190 = vpop.permute.xlu0 %1189
    %1191 = vrot.lane.b32.xlu0 %v1183, 127
    %v1192 = vpop.permute.xlu0 %1191
    %v1197 = vadd.f32 %v1109, %v1186
    %v1198 = vadd.f32 %v1110, %v1188
    %v1199 = vadd.f32 %v1111, %v1190
    %v1200 = vadd.f32 %v1112, %v1192
    %s1201 = sld [smem:[#allocation5 + $0x43]]
    %v1202 = vstv %s1201
    %v1203 = vmul.f32 %v1202, %v145
    %v1204 = vmul.f32 %v1202, %v146
    %v1205 = vmul.f32 %v1202, %v147
    %v1206 = vmul.f32 %v1202, %v148
    %v1211 = vrot.slane %v1203, 1
    %v1212 = vrot.slane %v1204, 1
    %v1213 = vsel %vm359, %v1211, %v1212
    %v1214 = vrot.slane %v1205, 1
    %v1215 = vrot.slane %v1206, 1
    %v1216 = vsel %vm359, %v1214, %v1215
    %1217 = vrot.lane.b32.xlu0 %v1213, 127
    %v1218 = vpop.permute.xlu0 %1217
    %1219 = vrot.lane.b32.xlu0 %v1212, 127
    %v1220 = vpop.permute.xlu0 %1219
    %1221 = vrot.lane.b32.xlu0 %v1216, 127
    %v1222 = vpop.permute.xlu0 %1221
    %1223 = vrot.lane.b32.xlu0 %v1215, 127
    %v1224 = vpop.permute.xlu0 %1223
    %v1229 = vadd.f32 %v1133, %v1218
    %v1230 = vadd.f32 %v1134, %v1220
    %v1231 = vadd.f32 %v1135, %v1222
    %v1232 = vadd.f32 %v1136, %v1224
    %s1233 = sld [smem:[#allocation5 + $0xe]]
    %v1234 = vstv %s1233
    %v1235 = vmul.f32 %v1234, %v145
    %v1236 = vmul.f32 %v1234, %v146
    %v1237 = vmul.f32 %v1234, %v147
    %v1238 = vmul.f32 %v1234, %v148
    %v1243 = vrot.slane %v1235, 1
    %v1244 = vrot.slane %v1236, 1
    %v1245 = vsel %vm359, %v1243, %v1244
    %v1246 = vrot.slane %v1237, 1
    %v1247 = vrot.slane %v1238, 1
    %v1248 = vsel %vm359, %v1246, %v1247
    %1249 = vrot.lane.b32.xlu0 %v1245, 126
    %v1250 = vpop.permute.xlu0 %1249
    %1251 = vrot.lane.b32.xlu0 %v1244, 126
    %v1252 = vpop.permute.xlu0 %1251
    %1253 = vrot.lane.b32.xlu0 %v1248, 126
    %v1254 = vpop.permute.xlu0 %1253
    %1255 = vrot.lane.b32.xlu0 %v1247, 126
    %v1256 = vpop.permute.xlu0 %1255
    %v1261 = vadd.f32 %v1165, %v1250
    %v1262 = vadd.f32 %v1166, %v1252
    %v1263 = vadd.f32 %v1167, %v1254
    %v1264 = vadd.f32 %v1168, %v1256
    %s1265 = sld [smem:[#allocation5 + $0x29]]
    %v1266 = vstv %s1265
    %v1267 = vmul.f32 %v1266, %v145
    %v1268 = vmul.f32 %v1266, %v146
    %v1269 = vmul.f32 %v1266, %v147
    %v1270 = vmul.f32 %v1266, %v148
    %v1275 = vrot.slane %v1267, 1
    %v1276 = vrot.slane %v1268, 1
    %v1277 = vsel %vm359, %v1275, %v1276
    %v1278 = vrot.slane %v1269, 1
    %v1279 = vrot.slane %v1270, 1
    %v1280 = vsel %vm359, %v1278, %v1279
    %1281 = vrot.lane.b32.xlu0 %v1277, 126
    %v1282 = vpop.permute.xlu0 %1281
    %1283 = vrot.lane.b32.xlu0 %v1276, 126
    %v1284 = vpop.permute.xlu0 %1283
    %1285 = vrot.lane.b32.xlu0 %v1280, 126
    %v1286 = vpop.permute.xlu0 %1285
    %1287 = vrot.lane.b32.xlu0 %v1279, 126
    %v1288 = vpop.permute.xlu0 %1287
    %v1293 = vadd.f32 %v1197, %v1282
    %v1294 = vadd.f32 %v1198, %v1284
    %v1295 = vadd.f32 %v1199, %v1286
    %v1296 = vadd.f32 %v1200, %v1288
    %s1297 = sld [smem:[#allocation5 + $0x44]]
    %v1298 = vstv %s1297
    %v1299 = vmul.f32 %v1298, %v145
    %v1300 = vmul.f32 %v1298, %v146
    %v1301 = vmul.f32 %v1298, %v147
    %v1302 = vmul.f32 %v1298, %v148
    %v1307 = vrot.slane %v1299, 1
    %v1308 = vrot.slane %v1300, 1
    %v1309 = vsel %vm359, %v1307, %v1308
    %v1310 = vrot.slane %v1301, 1
    %v1311 = vrot.slane %v1302, 1
    %v1312 = vsel %vm359, %v1310, %v1311
    %1313 = vrot.lane.b32.xlu0 %v1309, 126
    %v1314 = vpop.permute.xlu0 %1313
    %1315 = vrot.lane.b32.xlu0 %v1308, 126
    %v1316 = vpop.permute.xlu0 %1315
    %1317 = vrot.lane.b32.xlu0 %v1312, 126
    %v1318 = vpop.permute.xlu0 %1317
    %1319 = vrot.lane.b32.xlu0 %v1311, 126
    %v1320 = vpop.permute.xlu0 %1319
    %v1325 = vadd.f32 %v1229, %v1314
    %v1326 = vadd.f32 %v1230, %v1316
    %v1327 = vadd.f32 %v1231, %v1318
    %v1328 = vadd.f32 %v1232, %v1320
    %s1329 = sld [smem:[#allocation5 + $0xf]]
    %v1330 = vstv %s1329
    %v1331 = vmul.f32 %v1330, %v145
    %v1332 = vmul.f32 %v1330, %v146
    %v1333 = vmul.f32 %v1330, %v147
    %v1334 = vmul.f32 %v1330, %v148
    %v1339 = vrot.slane %v1331, 2
    %v1340 = vrot.slane %v1332, 2
    %v1341 = vsel %vm624, %v1339, %v1340
    %v1342 = vrot.slane %v1333, 2
    %v1343 = vrot.slane %v1334, 2
    %v1344 = vsel %vm624, %v1342, %v1343
    %v1349 = vadd.f32 %v1261, %v1341
    %v1350 = vadd.f32 %v1262, %v1340
    %v1351 = vadd.f32 %v1263, %v1344
    %v1352 = vadd.f32 %v1264, %v1343
    %s1353 = sld [smem:[#allocation5 + $0x2a]]
    %v1354 = vstv %s1353
    %v1355 = vmul.f32 %v1354, %v145
    %v1356 = vmul.f32 %v1354, %v146
    %v1357 = vmul.f32 %v1354, %v147
    %v1358 = vmul.f32 %v1354, %v148
    %v1363 = vrot.slane %v1355, 2
    %v1364 = vrot.slane %v1356, 2
    %v1365 = vsel %vm624, %v1363, %v1364
    %v1366 = vrot.slane %v1357, 2
    %v1367 = vrot.slane %v1358, 2
    %v1368 = vsel %vm624, %v1366, %v1367
    %v1373 = vadd.f32 %v1293, %v1365
    %v1374 = vadd.f32 %v1294, %v1364
    %v1375 = vadd.f32 %v1295, %v1368
    %v1376 = vadd.f32 %v1296, %v1367
    %s1377 = sld [smem:[#allocation5 + $0x45]]
    %v1378 = vstv %s1377
    %v1379 = vmul.f32 %v1378, %v145
    %v1380 = vmul.f32 %v1378, %v146
    %v1381 = vmul.f32 %v1378, %v147
    %v1382 = vmul.f32 %v1378, %v148
    %v1387 = vrot.slane %v1379, 2
    %v1388 = vrot.slane %v1380, 2
    %v1389 = vsel %vm624, %v1387, %v1388
    %v1390 = vrot.slane %v1381, 2
    %v1391 = vrot.slane %v1382, 2
    %v1392 = vsel %vm624, %v1390, %v1391
    %v1397 = vadd.f32 %v1325, %v1389
    %v1398 = vadd.f32 %v1326, %v1388
    %v1399 = vadd.f32 %v1327, %v1392
    %v1400 = vadd.f32 %v1328, %v1391
    %s1401 = sld [smem:[#allocation5 + $0x10]]
    %v1402 = vstv %s1401
    %v1403 = vmul.f32 %v1402, %v145
    %v1404 = vmul.f32 %v1402, %v146
    %v1405 = vmul.f32 %v1402, %v147
    %v1406 = vmul.f32 %v1402, %v148
    %v1411 = vrot.slane %v1403, 2
    %v1412 = vrot.slane %v1404, 2
    %v1413 = vsel %vm624, %v1411, %v1412
    %v1414 = vrot.slane %v1405, 2
    %v1415 = vrot.slane %v1406, 2
    %v1416 = vsel %vm624, %v1414, %v1415
    %1417 = vrot.lane.b32.xlu0 %v1413, 127
    %v1418 = vpop.permute.xlu0 %1417
    %1419 = vrot.lane.b32.xlu0 %v1412, 127
    %v1420 = vpop.permute.xlu0 %1419
    %1421 = vrot.lane.b32.xlu0 %v1416, 127
    %v1422 = vpop.permute.xlu0 %1421
    %1423 = vrot.lane.b32.xlu0 %v1415, 127
    %v1424 = vpop.permute.xlu0 %1423
    %v1429 = vadd.f32 %v1349, %v1418
    %v1430 = vadd.f32 %v1350, %v1420
    %v1431 = vadd.f32 %v1351, %v1422
    %v1432 = vadd.f32 %v1352, %v1424
    %s1433 = sld [smem:[#allocation5 + $0x2b]]
    %v1434 = vstv %s1433
    %v1435 = vmul.f32 %v1434, %v145
    %v1436 = vmul.f32 %v1434, %v146
    %v1437 = vmul.f32 %v1434, %v147
    %v1438 = vmul.f32 %v1434, %v148
    %v1443 = vrot.slane %v1435, 2
    %v1444 = vrot.slane %v1436, 2
    %v1445 = vsel %vm624, %v1443, %v1444
    %v1446 = vrot.slane %v1437, 2
    %v1447 = vrot.slane %v1438, 2
    %v1448 = vsel %vm624, %v1446, %v1447
    %1449 = vrot.lane.b32.xlu0 %v1445, 127
    %v1450 = vpop.permute.xlu0 %1449
    %1451 = vrot.lane.b32.xlu0 %v1444, 127
    %v1452 = vpop.permute.xlu0 %1451
    %1453 = vrot.lane.b32.xlu0 %v1448, 127
    %v1454 = vpop.permute.xlu0 %1453
    %1455 = vrot.lane.b32.xlu0 %v1447, 127
    %v1456 = vpop.permute.xlu0 %1455
    %v1461 = vadd.f32 %v1373, %v1450
    %v1462 = vadd.f32 %v1374, %v1452
    %v1463 = vadd.f32 %v1375, %v1454
    %v1464 = vadd.f32 %v1376, %v1456
    %s1465 = sld [smem:[#allocation5 + $0x46]]
    %v1466 = vstv %s1465
    %v1467 = vmul.f32 %v1466, %v145
    %v1468 = vmul.f32 %v1466, %v146
    %v1469 = vmul.f32 %v1466, %v147
    %v1470 = vmul.f32 %v1466, %v148
    %v1475 = vrot.slane %v1467, 2
    %v1476 = vrot.slane %v1468, 2
    %v1477 = vsel %vm624, %v1475, %v1476
    %v1478 = vrot.slane %v1469, 2
    %v1479 = vrot.slane %v1470, 2
    %v1480 = vsel %vm624, %v1478, %v1479
    %1481 = vrot.lane.b32.xlu0 %v1477, 127
    %v1482 = vpop.permute.xlu0 %1481
    %1483 = vrot.lane.b32.xlu0 %v1476, 127
    %v1484 = vpop.permute.xlu0 %1483
    %1485 = vrot.lane.b32.xlu0 %v1480, 127
    %v1486 = vpop.permute.xlu0 %1485
    %1487 = vrot.lane.b32.xlu0 %v1479, 127
    %v1488 = vpop.permute.xlu0 %1487
    %v1493 = vadd.f32 %v1397, %v1482
    %v1494 = vadd.f32 %v1398, %v1484
    %v1495 = vadd.f32 %v1399, %v1486
    %v1496 = vadd.f32 %v1400, %v1488
    %s1497 = sld [smem:[#allocation5 + $0x11]]
    %v1498 = vstv %s1497
    %v1499 = vmul.f32 %v1498, %v145
    %v1500 = vmul.f32 %v1498, %v146
    %v1501 = vmul.f32 %v1498, %v147
    %v1502 = vmul.f32 %v1498, %v148
    %v1507 = vrot.slane %v1499, 2
    %v1508 = vrot.slane %v1500, 2
    %v1509 = vsel %vm624, %v1507, %v1508
    %v1510 = vrot.slane %v1501, 2
    %v1511 = vrot.slane %v1502, 2
    %v1512 = vsel %vm624, %v1510, %v1511
    %1513 = vrot.lane.b32.xlu0 %v1509, 126
    %v1514 = vpop.permute.xlu0 %1513
    %1515 = vrot.lane.b32.xlu0 %v1508, 126
    %v1516 = vpop.permute.xlu0 %1515
    %1517 = vrot.lane.b32.xlu0 %v1512, 126
    %v1518 = vpop.permute.xlu0 %1517
    %1519 = vrot.lane.b32.xlu0 %v1511, 126
    %v1520 = vpop.permute.xlu0 %1519
    %v1525 = vadd.f32 %v1429, %v1514
    %v1526 = vadd.f32 %v1430, %v1516
    %v1527 = vadd.f32 %v1431, %v1518
    %v1528 = vadd.f32 %v1432, %v1520
    %s1529 = sld [smem:[#allocation5 + $0x2c]]
    %v1530 = vstv %s1529
    %v1531 = vmul.f32 %v1530, %v145
    %v1532 = vmul.f32 %v1530, %v146
    %v1533 = vmul.f32 %v1530, %v147
    %v1534 = vmul.f32 %v1530, %v148
    %v1539 = vrot.slane %v1531, 2
    %v1540 = vrot.slane %v1532, 2
    %v1541 = vsel %vm624, %v1539, %v1540
    %v1542 = vrot.slane %v1533, 2
    %v1543 = vrot.slane %v1534, 2
    %v1544 = vsel %vm624, %v1542, %v1543
    %1545 = vrot.lane.b32.xlu0 %v1541, 126
    %v1546 = vpop.permute.xlu0 %1545
    %1547 = vrot.lane.b32.xlu0 %v1540, 126
    %v1548 = vpop.permute.xlu0 %1547
    %1549 = vrot.lane.b32.xlu0 %v1544, 126
    %v1550 = vpop.permute.xlu0 %1549
    %1551 = vrot.lane.b32.xlu0 %v1543, 126
    %v1552 = vpop.permute.xlu0 %1551
    %v1557 = vadd.f32 %v1461, %v1546
    %v1558 = vadd.f32 %v1462, %v1548
    %v1559 = vadd.f32 %v1463, %v1550
    %v1560 = vadd.f32 %v1464, %v1552
    %s1561 = sld [smem:[#allocation5 + $0x47]]
    %v1562 = vstv %s1561
    %v1563 = vmul.f32 %v1562, %v145
    %v1564 = vmul.f32 %v1562, %v146
    %v1565 = vmul.f32 %v1562, %v147
    %v1566 = vmul.f32 %v1562, %v148
    %v1571 = vrot.slane %v1563, 2
    %v1572 = vrot.slane %v1564, 2
    %v1573 = vsel %vm624, %v1571, %v1572
    %v1574 = vrot.slane %v1565, 2
    %v1575 = vrot.slane %v1566, 2
    %v1576 = vsel %vm624, %v1574, %v1575
    %1577 = vrot.lane.b32.xlu0 %v1573, 126
    %v1578 = vpop.permute.xlu0 %1577
    %1579 = vrot.lane.b32.xlu0 %v1572, 126
    %v1580 = vpop.permute.xlu0 %1579
    %1581 = vrot.lane.b32.xlu0 %v1576, 126
    %v1582 = vpop.permute.xlu0 %1581
    %1583 = vrot.lane.b32.xlu0 %v1575, 126
    %v1584 = vpop.permute.xlu0 %1583
    %v1589 = vadd.f32 %v1493, %v1578
    %v1590 = vadd.f32 %v1494, %v1580
    %v1591 = vadd.f32 %v1495, %v1582
    %v1592 = vadd.f32 %v1496, %v1584
    %s1593 = sld [smem:[#allocation5 + $0x12]]
    %v1594 = vstv %s1593
    %v1595 = vmul.f32 %v1594, %v150
    %v1596 = vmul.f32 %v1594, %v151
    %v1597 = vmul.f32 %v1594, %v152
    %v1598 = vmul.f32 %v1594, %v153
    %v1599 = vadd.f32 %v1525, %v1595
    %v1600 = vadd.f32 %v1526, %v1596
    %v1601 = vadd.f32 %v1527, %v1597
    %v1602 = vadd.f32 %v1528, %v1598
    %s1603 = sld [smem:[#allocation5 + $0x2d]]
    %v1604 = vstv %s1603
    %v1605 = vmul.f32 %v1604, %v150
    %v1606 = vmul.f32 %v1604, %v151
    %v1607 = vmul.f32 %v1604, %v152
    %v1608 = vmul.f32 %v1604, %v153
    %v1609 = vadd.f32 %v1557, %v1605
    %v1610 = vadd.f32 %v1558, %v1606
    %v1611 = vadd.f32 %v1559, %v1607
    %v1612 = vadd.f32 %v1560, %v1608
    %s1613 = sld [smem:[#allocation5 + $0x48]]
    %v1614 = vstv %s1613
    %v1615 = vmul.f32 %v1614, %v150
    %v1616 = vmul.f32 %v1614, %v151
    %v1617 = vmul.f32 %v1614, %v152
    %v1618 = vmul.f32 %v1614, %v153
    %v1619 = vadd.f32 %v1589, %v1615
    %v1620 = vadd.f32 %v1590, %v1616
    %v1621 = vadd.f32 %v1591, %v1617
    %v1622 = vadd.f32 %v1592, %v1618
    %s1623 = sld [smem:[#allocation5 + $0x13]]
    %v1624 = vstv %s1623
    %v1625 = vmul.f32 %v1624, %v150
    %v1626 = vmul.f32 %v1624, %v151
    %v1627 = vmul.f32 %v1624, %v152
    %v1628 = vmul.f32 %v1624, %v153
    %1633 = vrot.lane.b32.xlu0 %v1625, 127
    %v1634 = vpop.permute.xlu0 %1633
    %1635 = vrot.lane.b32.xlu0 %v1626, 127
    %v1636 = vpop.permute.xlu0 %1635
    %1637 = vrot.lane.b32.xlu0 %v1627, 127
    %v1638 = vpop.permute.xlu0 %1637
    %1639 = vrot.lane.b32.xlu0 %v1628, 127
    %v1640 = vpop.permute.xlu0 %1639
    %v1645 = vadd.f32 %v1599, %v1634
    %v1646 = vadd.f32 %v1600, %v1636
    %v1647 = vadd.f32 %v1601, %v1638
    %v1648 = vadd.f32 %v1602, %v1640
    %s1649 = sld [smem:[#allocation5 + $0x2e]]
    %v1650 = vstv %s1649
    %v1651 = vmul.f32 %v1650, %v150
    %v1652 = vmul.f32 %v1650, %v151
    %v1653 = vmul.f32 %v1650, %v152
    %v1654 = vmul.f32 %v1650, %v153
    %1659 = vrot.lane.b32.xlu0 %v1651, 127
    %v1660 = vpop.permute.xlu0 %1659
    %1661 = vrot.lane.b32.xlu0 %v1652, 127
    %v1662 = vpop.permute.xlu0 %1661
    %1663 = vrot.lane.b32.xlu0 %v1653, 127
    %v1664 = vpop.permute.xlu0 %1663
    %1665 = vrot.lane.b32.xlu0 %v1654, 127
    %v1666 = vpop.permute.xlu0 %1665
    %v1671 = vadd.f32 %v1609, %v1660
    %v1672 = vadd.f32 %v1610, %v1662
    %v1673 = vadd.f32 %v1611, %v1664
    %v1674 = vadd.f32 %v1612, %v1666
    %s1675 = sld [smem:[#allocation5 + $0x49]]
    %v1676 = vstv %s1675
    %v1677 = vmul.f32 %v1676, %v150
    %v1678 = vmul.f32 %v1676, %v151
    %v1679 = vmul.f32 %v1676, %v152
    %v1680 = vmul.f32 %v1676, %v153
    %1685 = vrot.lane.b32.xlu0 %v1677, 127
    %v1686 = vpop.permute.xlu0 %1685
    %1687 = vrot.lane.b32.xlu0 %v1678, 127
    %v1688 = vpop.permute.xlu0 %1687
    %1689 = vrot.lane.b32.xlu0 %v1679, 127
    %v1690 = vpop.permute.xlu0 %1689
    %1691 = vrot.lane.b32.xlu0 %v1680, 127
    %v1692 = vpop.permute.xlu0 %1691
    %v1697 = vadd.f32 %v1619, %v1686
    %v1698 = vadd.f32 %v1620, %v1688
    %v1699 = vadd.f32 %v1621, %v1690
    %v1700 = vadd.f32 %v1622, %v1692
    %s1701 = sld [smem:[#allocation5 + $0x14]]
    %v1702 = vstv %s1701
    %v1703 = vmul.f32 %v1702, %v150
    %v1704 = vmul.f32 %v1702, %v151
    %v1705 = vmul.f32 %v1702, %v152
    %v1706 = vmul.f32 %v1702, %v153
    %1711 = vrot.lane.b32.xlu0 %v1703, 126
    %v1712 = vpop.permute.xlu0 %1711
    %1713 = vrot.lane.b32.xlu0 %v1704, 126
    %v1714 = vpop.permute.xlu0 %1713
    %1715 = vrot.lane.b32.xlu0 %v1705, 126
    %v1716 = vpop.permute.xlu0 %1715
    %1717 = vrot.lane.b32.xlu0 %v1706, 126
    %v1718 = vpop.permute.xlu0 %1717
    %v1723 = vadd.f32 %v1645, %v1712
    %v1724 = vadd.f32 %v1646, %v1714
    %v1725 = vadd.f32 %v1647, %v1716
    %v1726 = vadd.f32 %v1648, %v1718
    %s1727 = sld [smem:[#allocation5 + $0x2f]]
    %v1728 = vstv %s1727
    %v1729 = vmul.f32 %v1728, %v150
    %v1730 = vmul.f32 %v1728, %v151
    %v1731 = vmul.f32 %v1728, %v152
    %v1732 = vmul.f32 %v1728, %v153
    %1737 = vrot.lane.b32.xlu0 %v1729, 126
    %v1738 = vpop.permute.xlu0 %1737
    %1739 = vrot.lane.b32.xlu0 %v1730, 126
    %v1740 = vpop.permute.xlu0 %1739
    %1741 = vrot.lane.b32.xlu0 %v1731, 126
    %v1742 = vpop.permute.xlu0 %1741
    %1743 = vrot.lane.b32.xlu0 %v1732, 126
    %v1744 = vpop.permute.xlu0 %1743
    %v1749 = vadd.f32 %v1671, %v1738
    %v1750 = vadd.f32 %v1672, %v1740
    %v1751 = vadd.f32 %v1673, %v1742
    %v1752 = vadd.f32 %v1674, %v1744
    %s1753 = sld [smem:[#allocation5 + $0x4a]]
    %v1754 = vstv %s1753
    %v1755 = vmul.f32 %v1754, %v150
    %v1756 = vmul.f32 %v1754, %v151
    %v1757 = vmul.f32 %v1754, %v152
    %v1758 = vmul.f32 %v1754, %v153
    %1763 = vrot.lane.b32.xlu0 %v1755, 126
    %v1764 = vpop.permute.xlu0 %1763
    %1765 = vrot.lane.b32.xlu0 %v1756, 126
    %v1766 = vpop.permute.xlu0 %1765
    %1767 = vrot.lane.b32.xlu0 %v1757, 126
    %v1768 = vpop.permute.xlu0 %1767
    %1769 = vrot.lane.b32.xlu0 %v1758, 126
    %v1770 = vpop.permute.xlu0 %1769
    %v1775 = vadd.f32 %v1697, %v1764
    %v1776 = vadd.f32 %v1698, %v1766
    %v1777 = vadd.f32 %v1699, %v1768
    %v1778 = vadd.f32 %v1700, %v1770
    %s1779 = sld [smem:[#allocation5 + $0x15]]
    %v1780 = vstv %s1779
    %v1781 = vmul.f32 %v1780, %v150
    %v1782 = vmul.f32 %v1780, %v151
    %v1783 = vmul.f32 %v1780, %v152
    %v1784 = vmul.f32 %v1780, %v153
    %v1789 = vrot.slane %v1781, 1
    %v1790 = vrot.slane %v1782, 1
    %v1791 = vsel %vm359, %v1789, %v1790
    %v1792 = vrot.slane %v1783, 1
    %v1793 = vrot.slane %v1784, 1
    %v1794 = vsel %vm359, %v1792, %v1793
    %v1799 = vadd.f32 %v1723, %v1791
    %v1800 = vadd.f32 %v1724, %v1790
    %v1801 = vadd.f32 %v1725, %v1794
    %v1802 = vadd.f32 %v1726, %v1793
    %s1803 = sld [smem:[#allocation5 + $0x30]]
    %v1804 = vstv %s1803
    %v1805 = vmul.f32 %v1804, %v150
    %v1806 = vmul.f32 %v1804, %v151
    %v1807 = vmul.f32 %v1804, %v152
    %v1808 = vmul.f32 %v1804, %v153
    %v1813 = vrot.slane %v1805, 1
    %v1814 = vrot.slane %v1806, 1
    %v1815 = vsel %vm359, %v1813, %v1814
    %v1816 = vrot.slane %v1807, 1
    %v1817 = vrot.slane %v1808, 1
    %v1818 = vsel %vm359, %v1816, %v1817
    %v1823 = vadd.f32 %v1749, %v1815
    %v1824 = vadd.f32 %v1750, %v1814
    %v1825 = vadd.f32 %v1751, %v1818
    %v1826 = vadd.f32 %v1752, %v1817
    %s1827 = sld [smem:[#allocation5 + $0x4b]]
    %v1828 = vstv %s1827
    %v1829 = vmul.f32 %v1828, %v150
    %v1830 = vmul.f32 %v1828, %v151
    %v1831 = vmul.f32 %v1828, %v152
    %v1832 = vmul.f32 %v1828, %v153
    %v1837 = vrot.slane %v1829, 1
    %v1838 = vrot.slane %v1830, 1
    %v1839 = vsel %vm359, %v1837, %v1838
    %v1840 = vrot.slane %v1831, 1
    %v1841 = vrot.slane %v1832, 1
    %v1842 = vsel %vm359, %v1840, %v1841
    %v1847 = vadd.f32 %v1775, %v1839
    %v1848 = vadd.f32 %v1776, %v1838
    %v1849 = vadd.f32 %v1777, %v1842
    %v1850 = vadd.f32 %v1778, %v1841
    %s1851 = sld [smem:[#allocation5 + $0x16]]
    %v1852 = vstv %s1851
    %v1853 = vmul.f32 %v1852, %v150
    %v1854 = vmul.f32 %v1852, %v151
    %v1855 = vmul.f32 %v1852, %v152
    %v1856 = vmul.f32 %v1852, %v153
    %v1861 = vrot.slane %v1853, 1
    %v1862 = vrot.slane %v1854, 1
    %v1863 = vsel %vm359, %v1861, %v1862
    %v1864 = vrot.slane %v1855, 1
    %v1865 = vrot.slane %v1856, 1
    %v1866 = vsel %vm359, %v1864, %v1865
    %1867 = vrot.lane.b32.xlu0 %v1863, 127
    %v1868 = vpop.permute.xlu0 %1867
    %1869 = vrot.lane.b32.xlu0 %v1862, 127
    %v1870 = vpop.permute.xlu0 %1869
    %1871 = vrot.lane.b32.xlu0 %v1866, 127
    %v1872 = vpop.permute.xlu0 %1871
    %1873 = vrot.lane.b32.xlu0 %v1865, 127
    %v1874 = vpop.permute.xlu0 %1873
    %v1879 = vadd.f32 %v1799, %v1868
    %v1880 = vadd.f32 %v1800, %v1870
    %v1881 = vadd.f32 %v1801, %v1872
    %v1882 = vadd.f32 %v1802, %v1874
    %s1883 = sld [smem:[#allocation5 + $0x31]]
    %v1884 = vstv %s1883
    %v1885 = vmul.f32 %v1884, %v150
    %v1886 = vmul.f32 %v1884, %v151
    %v1887 = vmul.f32 %v1884, %v152
    %v1888 = vmul.f32 %v1884, %v153
    %v1893 = vrot.slane %v1885, 1
    %v1894 = vrot.slane %v1886, 1
    %v1895 = vsel %vm359, %v1893, %v1894
    %v1896 = vrot.slane %v1887, 1
    %v1897 = vrot.slane %v1888, 1
    %v1898 = vsel %vm359, %v1896, %v1897
    %1899 = vrot.lane.b32.xlu0 %v1895, 127
    %v1900 = vpop.permute.xlu0 %1899
    %1901 = vrot.lane.b32.xlu0 %v1894, 127
    %v1902 = vpop.permute.xlu0 %1901
    %1903 = vrot.lane.b32.xlu0 %v1898, 127
    %v1904 = vpop.permute.xlu0 %1903
    %1905 = vrot.lane.b32.xlu0 %v1897, 127
    %v1906 = vpop.permute.xlu0 %1905
    %v1911 = vadd.f32 %v1823, %v1900
    %v1912 = vadd.f32 %v1824, %v1902
    %v1913 = vadd.f32 %v1825, %v1904
    %v1914 = vadd.f32 %v1826, %v1906
    %s1915 = sld [smem:[#allocation5 + $0x4c]]
    %v1916 = vstv %s1915
    %v1917 = vmul.f32 %v1916, %v150
    %v1918 = vmul.f32 %v1916, %v151
    %v1919 = vmul.f32 %v1916, %v152
    %v1920 = vmul.f32 %v1916, %v153
    %v1925 = vrot.slane %v1917, 1
    %v1926 = vrot.slane %v1918, 1
    %v1927 = vsel %vm359, %v1925, %v1926
    %v1928 = vrot.slane %v1919, 1
    %v1929 = vrot.slane %v1920, 1
    %v1930 = vsel %vm359, %v1928, %v1929
    %1931 = vrot.lane.b32.xlu0 %v1927, 127
    %v1932 = vpop.permute.xlu0 %1931
    %1933 = vrot.lane.b32.xlu0 %v1926, 127
    %v1934 = vpop.permute.xlu0 %1933
    %1935 = vrot.lane.b32.xlu0 %v1930, 127
    %v1936 = vpop.permute.xlu0 %1935
    %1937 = vrot.lane.b32.xlu0 %v1929, 127
    %v1938 = vpop.permute.xlu0 %1937
    %v1943 = vadd.f32 %v1847, %v1932
    %v1944 = vadd.f32 %v1848, %v1934
    %v1945 = vadd.f32 %v1849, %v1936
    %v1946 = vadd.f32 %v1850, %v1938
    %s1947 = sld [smem:[#allocation5 + $0x17]]
    %v1948 = vstv %s1947
    %v1949 = vmul.f32 %v1948, %v150
    %v1950 = vmul.f32 %v1948, %v151
    %v1951 = vmul.f32 %v1948, %v152
    %v1952 = vmul.f32 %v1948, %v153
    %v1957 = vrot.slane %v1949, 1
    %v1958 = vrot.slane %v1950, 1
    %v1959 = vsel %vm359, %v1957, %v1958
    %v1960 = vrot.slane %v1951, 1
    %v1961 = vrot.slane %v1952, 1
    %v1962 = vsel %vm359, %v1960, %v1961
    %1963 = vrot.lane.b32.xlu0 %v1959, 126
    %v1964 = vpop.permute.xlu0 %1963
    %1965 = vrot.lane.b32.xlu0 %v1958, 126
    %v1966 = vpop.permute.xlu0 %1965
    %1967 = vrot.lane.b32.xlu0 %v1962, 126
    %v1968 = vpop.permute.xlu0 %1967
    %1969 = vrot.lane.b32.xlu0 %v1961, 126
    %v1970 = vpop.permute.xlu0 %1969
    %v1975 = vadd.f32 %v1879, %v1964
    %v1976 = vadd.f32 %v1880, %v1966
    %v1977 = vadd.f32 %v1881, %v1968
    %v1978 = vadd.f32 %v1882, %v1970
    %s1979 = sld [smem:[#allocation5 + $0x32]]
    %v1980 = vstv %s1979
    %v1981 = vmul.f32 %v1980, %v150
    %v1982 = vmul.f32 %v1980, %v151
    %v1983 = vmul.f32 %v1980, %v152
    %v1984 = vmul.f32 %v1980, %v153
    %v1989 = vrot.slane %v1981, 1
    %v1990 = vrot.slane %v1982, 1
    %v1991 = vsel %vm359, %v1989, %v1990
    %v1992 = vrot.slane %v1983, 1
    %v1993 = vrot.slane %v1984, 1
    %v1994 = vsel %vm359, %v1992, %v1993
    %1995 = vrot.lane.b32.xlu0 %v1991, 126
    %v1996 = vpop.permute.xlu0 %1995
    %1997 = vrot.lane.b32.xlu0 %v1990, 126
    %v1998 = vpop.permute.xlu0 %1997
    %1999 = vrot.lane.b32.xlu0 %v1994, 126
    %v2000 = vpop.permute.xlu0 %1999
    %2001 = vrot.lane.b32.xlu0 %v1993, 126
    %v2002 = vpop.permute.xlu0 %2001
    %v2007 = vadd.f32 %v1911, %v1996
    %v2008 = vadd.f32 %v1912, %v1998
    %v2009 = vadd.f32 %v1913, %v2000
    %v2010 = vadd.f32 %v1914, %v2002
    %s2011 = sld [smem:[#allocation5 + $0x4d]]
    %v2012 = vstv %s2011
    %v2013 = vmul.f32 %v2012, %v150
    %v2014 = vmul.f32 %v2012, %v151
    %v2015 = vmul.f32 %v2012, %v152
    %v2016 = vmul.f32 %v2012, %v153
    %v2021 = vrot.slane %v2013, 1
    %v2022 = vrot.slane %v2014, 1
    %v2023 = vsel %vm359, %v2021, %v2022
    %v2024 = vrot.slane %v2015, 1
    %v2025 = vrot.slane %v2016, 1
    %v2026 = vsel %vm359, %v2024, %v2025
    %2027 = vrot.lane.b32.xlu0 %v2023, 126
    %v2028 = vpop.permute.xlu0 %2027
    %2029 = vrot.lane.b32.xlu0 %v2022, 126
    %v2030 = vpop.permute.xlu0 %2029
    %2031 = vrot.lane.b32.xlu0 %v2026, 126
    %v2032 = vpop.permute.xlu0 %2031
    %2033 = vrot.lane.b32.xlu0 %v2025, 126
    %v2034 = vpop.permute.xlu0 %2033
    %v2039 = vadd.f32 %v1943, %v2028
    %v2040 = vadd.f32 %v1944, %v2030
    %v2041 = vadd.f32 %v1945, %v2032
    %v2042 = vadd.f32 %v1946, %v2034
    %s2043 = sld [smem:[#allocation5 + $0x18]]
    %v2044 = vstv %s2043
    %v2045 = vmul.f32 %v2044, %v150
    %v2046 = vmul.f32 %v2044, %v151
    %v2047 = vmul.f32 %v2044, %v152
    %v2048 = vmul.f32 %v2044, %v153
    %v2053 = vrot.slane %v2045, 2
    %v2054 = vrot.slane %v2046, 2
    %v2055 = vsel %vm624, %v2053, %v2054
    %v2056 = vrot.slane %v2047, 2
    %v2057 = vrot.slane %v2048, 2
    %v2058 = vsel %vm624, %v2056, %v2057
    %v2063 = vadd.f32 %v1975, %v2055
    %v2064 = vadd.f32 %v1976, %v2054
    %v2065 = vadd.f32 %v1977, %v2058
    %v2066 = vadd.f32 %v1978, %v2057
    %s2067 = sld [smem:[#allocation5 + $0x33]]
    %v2068 = vstv %s2067
    %v2069 = vmul.f32 %v2068, %v150
    %v2070 = vmul.f32 %v2068, %v151
    %v2071 = vmul.f32 %v2068, %v152
    %v2072 = vmul.f32 %v2068, %v153
    %v2077 = vrot.slane %v2069, 2
    %v2078 = vrot.slane %v2070, 2
    %v2079 = vsel %vm624, %v2077, %v2078
    %v2080 = vrot.slane %v2071, 2
    %v2081 = vrot.slane %v2072, 2
    %v2082 = vsel %vm624, %v2080, %v2081
    %v2087 = vadd.f32 %v2007, %v2079
    %v2088 = vadd.f32 %v2008, %v2078
    %v2089 = vadd.f32 %v2009, %v2082
    %v2090 = vadd.f32 %v2010, %v2081
    %s2091 = sld [smem:[#allocation5 + $0x4e]]
    %v2092 = vstv %s2091
    %v2093 = vmul.f32 %v2092, %v150
    %v2094 = vmul.f32 %v2092, %v151
    %v2095 = vmul.f32 %v2092, %v152
    %v2096 = vmul.f32 %v2092, %v153
    %v2101 = vrot.slane %v2093, 2
    %v2102 = vrot.slane %v2094, 2
    %v2103 = vsel %vm624, %v2101, %v2102
    %v2104 = vrot.slane %v2095, 2
    %v2105 = vrot.slane %v2096, 2
    %v2106 = vsel %vm624, %v2104, %v2105
    %v2111 = vadd.f32 %v2039, %v2103
    %v2112 = vadd.f32 %v2040, %v2102
    %v2113 = vadd.f32 %v2041, %v2106
    %v2114 = vadd.f32 %v2042, %v2105
    %s2115 = sld [smem:[#allocation5 + $0x19]]
    %v2116 = vstv %s2115
    %v2117 = vmul.f32 %v2116, %v150
    %v2118 = vmul.f32 %v2116, %v151
    %v2119 = vmul.f32 %v2116, %v152
    %v2120 = vmul.f32 %v2116, %v153
    %v2125 = vrot.slane %v2117, 2
    %v2126 = vrot.slane %v2118, 2
    %v2127 = vsel %vm624, %v2125, %v2126
    %v2128 = vrot.slane %v2119, 2
    %v2129 = vrot.slane %v2120, 2
    %v2130 = vsel %vm624, %v2128, %v2129
    %2131 = vrot.lane.b32.xlu0 %v2127, 127
    %v2132 = vpop.permute.xlu0 %2131
    %2133 = vrot.lane.b32.xlu0 %v2126, 127
    %v2134 = vpop.permute.xlu0 %2133
    %2135 = vrot.lane.b32.xlu0 %v2130, 127
    %v2136 = vpop.permute.xlu0 %2135
    %2137 = vrot.lane.b32.xlu0 %v2129, 127
    %v2138 = vpop.permute.xlu0 %2137
    %v2143 = vadd.f32 %v2063, %v2132
    %v2144 = vadd.f32 %v2064, %v2134
    %v2145 = vadd.f32 %v2065, %v2136
    %v2146 = vadd.f32 %v2066, %v2138
    %s2147 = sld [smem:[#allocation5 + $0x34]]
    %v2148 = vstv %s2147
    %v2149 = vmul.f32 %v2148, %v150
    %v2150 = vmul.f32 %v2148, %v151
    %v2151 = vmul.f32 %v2148, %v152
    %v2152 = vmul.f32 %v2148, %v153
    %v2157 = vrot.slane %v2149, 2
    %v2158 = vrot.slane %v2150, 2
    %v2159 = vsel %vm624, %v2157, %v2158
    %v2160 = vrot.slane %v2151, 2
    %v2161 = vrot.slane %v2152, 2
    %v2162 = vsel %vm624, %v2160, %v2161
    %2163 = vrot.lane.b32.xlu0 %v2159, 127
    %v2164 = vpop.permute.xlu0 %2163
    %2165 = vrot.lane.b32.xlu0 %v2158, 127
    %v2166 = vpop.permute.xlu0 %2165
    %2167 = vrot.lane.b32.xlu0 %v2162, 127
    %v2168 = vpop.permute.xlu0 %2167
    %2169 = vrot.lane.b32.xlu0 %v2161, 127
    %v2170 = vpop.permute.xlu0 %2169
    %v2175 = vadd.f32 %v2087, %v2164
    %v2176 = vadd.f32 %v2088, %v2166
    %v2177 = vadd.f32 %v2089, %v2168
    %v2178 = vadd.f32 %v2090, %v2170
    %s2179 = sld [smem:[#allocation5 + $0x4f]]
    %v2180 = vstv %s2179
    %v2181 = vmul.f32 %v2180, %v150
    %v2182 = vmul.f32 %v2180, %v151
    %v2183 = vmul.f32 %v2180, %v152
    %v2184 = vmul.f32 %v2180, %v153
    %v2189 = vrot.slane %v2181, 2
    %v2190 = vrot.slane %v2182, 2
    %v2191 = vsel %vm624, %v2189, %v2190
    %v2192 = vrot.slane %v2183, 2
    %v2193 = vrot.slane %v2184, 2
    %v2194 = vsel %vm624, %v2192, %v2193
    %2195 = vrot.lane.b32.xlu0 %v2191, 127
    %v2196 = vpop.permute.xlu0 %2195
    %2197 = vrot.lane.b32.xlu0 %v2190, 127
    %v2198 = vpop.permute.xlu0 %2197
    %2199 = vrot.lane.b32.xlu0 %v2194, 127
    %v2200 = vpop.permute.xlu0 %2199
    %2201 = vrot.lane.b32.xlu0 %v2193, 127
    %v2202 = vpop.permute.xlu0 %2201
    %v2207 = vadd.f32 %v2111, %v2196
    %v2208 = vadd.f32 %v2112, %v2198
    %v2209 = vadd.f32 %v2113, %v2200
    %v2210 = vadd.f32 %v2114, %v2202
    %s2211 = sld [smem:[#allocation5 + $0x1a]]
    %v2212 = vstv %s2211
    %v2213 = vmul.f32 %v2212, %v150
    %v2214 = vmul.f32 %v2212, %v151
    %v2215 = vmul.f32 %v2212, %v152
    %v2216 = vmul.f32 %v2212, %v153
    %v2221 = vrot.slane %v2213, 2
    %v2222 = vrot.slane %v2214, 2
    %v2223 = vsel %vm624, %v2221, %v2222
    %v2224 = vrot.slane %v2215, 2
    %v2225 = vrot.slane %v2216, 2
    %v2226 = vsel %vm624, %v2224, %v2225
    %2227 = vrot.lane.b32.xlu0 %v2223, 126
    %v2228 = vpop.permute.xlu0 %2227
    %2229 = vrot.lane.b32.xlu0 %v2222, 126
    %v2230 = vpop.permute.xlu0 %2229
    %2231 = vrot.lane.b32.xlu0 %v2226, 126
    %v2232 = vpop.permute.xlu0 %2231
    %2233 = vrot.lane.b32.xlu0 %v2225, 126
    %v2234 = vpop.permute.xlu0 %2233
    %v2239 = vadd.f32 %v2143, %v2228
    %v2240 = vadd.f32 %v2144, %v2230
    %v2241 = vadd.f32 %v2145, %v2232
    %v2242 = vadd.f32 %v2146, %v2234
    %s2243 = sld [smem:[#allocation5 + $0x35]]
    %v2244 = vstv %s2243
    %v2245 = vmul.f32 %v2244, %v150
    %v2246 = vmul.f32 %v2244, %v151
    %v2247 = vmul.f32 %v2244, %v152
    %v2248 = vmul.f32 %v2244, %v153
    %v2253 = vrot.slane %v2245, 2
    %v2254 = vrot.slane %v2246, 2
    %v2255 = vsel %vm624, %v2253, %v2254
    %v2256 = vrot.slane %v2247, 2
    %v2257 = vrot.slane %v2248, 2
    %v2258 = vsel %vm624, %v2256, %v2257
    %2259 = vrot.lane.b32.xlu0 %v2255, 126
    %v2260 = vpop.permute.xlu0 %2259
    %2261 = vrot.lane.b32.xlu0 %v2254, 126
    %v2262 = vpop.permute.xlu0 %2261
    %2263 = vrot.lane.b32.xlu0 %v2258, 126
    %v2264 = vpop.permute.xlu0 %2263
    %2265 = vrot.lane.b32.xlu0 %v2257, 126
    %v2266 = vpop.permute.xlu0 %2265
    %v2271 = vadd.f32 %v2175, %v2260
    %v2272 = vadd.f32 %v2176, %v2262
    %v2273 = vadd.f32 %v2177, %v2264
    %v2274 = vadd.f32 %v2178, %v2266
    %s2275 = sld [smem:[#allocation5 + $0x50]]
    %v2276 = vstv %s2275
    %v2277 = vmul.f32 %v2276, %v150
    %v2278 = vmul.f32 %v2276, %v151
    %v2279 = vmul.f32 %v2276, %v152
    %v2280 = vmul.f32 %v2276, %v153
    %v2285 = vrot.slane %v2277, 2
    %v2286 = vrot.slane %v2278, 2
    %v2287 = vsel %vm624, %v2285, %v2286
    %v2288 = vrot.slane %v2279, 2
    %v2289 = vrot.slane %v2280, 2
    %v2290 = vsel %vm624, %v2288, %v2289
    %2291 = vrot.lane.b32.xlu0 %v2287, 126
    %v2292 = vpop.permute.xlu0 %2291
    %2293 = vrot.lane.b32.xlu0 %v2286, 126
    %v2294 = vpop.permute.xlu0 %2293
    %2295 = vrot.lane.b32.xlu0 %v2290, 126
    %v2296 = vpop.permute.xlu0 %2295
    %2297 = vrot.lane.b32.xlu0 %v2289, 126
    %v2298 = vpop.permute.xlu0 %2297
    %v2303 = vadd.f32 %v2207, %v2292
    %v2304 = vadd.f32 %v2208, %v2294
    %v2305 = vadd.f32 %v2209, %v2296
    %v2306 = vadd.f32 %v2210, %v2298
    %s2307 = sld [smem:[#allocation9]]
    %v2308 = vstv %s2307
    %v2309 = vadd.f32 %v2308, 0.0
    %s2310 = sld [smem:[#allocation9 + $0x1]]
    %v2311 = vstv %s2310
    %v2312 = vadd.f32 %v2311, 0.0
    %s2313 = sld [smem:[#allocation9 + $0x2]]
    %v2314 = vstv %s2313
    %v2315 = vadd.f32 %v2314, 0.0
    %s2316 = sld [smem:[#allocation8]]
    %v2317 = vstv %s2316
    %v2318 = vmul.f32 %v2317, %v2239
    %v2319 = vmul.f32 %v2317, %v2240
    %v2320 = vmul.f32 %v2317, %v2241
    %v2321 = vmul.f32 %v2317, %v2242
    %v2322 = vadd.f32 %v2309, %v2318
    %v2323 = vadd.f32 %v2309, %v2319
    %v2324 = vadd.f32 %v2309, %v2320
    %v2325 = vadd.f32 %v2309, %v2321
    %s2326 = sld [smem:[#allocation8 + $0x1b]]
    %v2327 = vstv %s2326
    %v2328 = vmul.f32 %v2327, %v2239
    %v2329 = vmul.f32 %v2327, %v2240
    %v2330 = vmul.f32 %v2327, %v2241
    %v2331 = vmul.f32 %v2327, %v2242
    %v2332 = vadd.f32 %v2312, %v2328
    %v2333 = vadd.f32 %v2312, %v2329
    %v2334 = vadd.f32 %v2312, %v2330
    %v2335 = vadd.f32 %v2312, %v2331
    %s2336 = sld [smem:[#allocation8 + $0x36]]
    %v2337 = vstv %s2336
    %v2338 = vmul.f32 %v2337, %v2239
    %v2339 = vmul.f32 %v2337, %v2240
    %v2340 = vmul.f32 %v2337, %v2241
    %v2341 = vmul.f32 %v2337, %v2242
    %v2342 = vadd.f32 %v2315, %v2338
    %v2343 = vadd.f32 %v2315, %v2339
    %v2344 = vadd.f32 %v2315, %v2340
    %v2345 = vadd.f32 %v2315, %v2341
    %s2346 = sld [smem:[#allocation8 + $0x1]]
    %v2347 = vstv %s2346
    %v2348 = vmul.f32 %v2347, %v2239
    %v2349 = vmul.f32 %v2347, %v2240
    %v2350 = vmul.f32 %v2347, %v2241
    %v2351 = vmul.f32 %v2347, %v2242
    %2356 = vrot.lane.b32.xlu0 %v2348, 127
    %v2357 = vpop.permute.xlu0 %2356
    %2358 = vrot.lane.b32.xlu0 %v2349, 127
    %v2359 = vpop.permute.xlu0 %2358
    %2360 = vrot.lane.b32.xlu0 %v2350, 127
    %v2361 = vpop.permute.xlu0 %2360
    %2362 = vrot.lane.b32.xlu0 %v2351, 127
    %v2363 = vpop.permute.xlu0 %2362
    %v2368 = vadd.f32 %v2322, %v2357
    %v2369 = vadd.f32 %v2323, %v2359
    %v2370 = vadd.f32 %v2324, %v2361
    %v2371 = vadd.f32 %v2325, %v2363
    %s2372 = sld [smem:[#allocation8 + $0x1c]]
    %v2373 = vstv %s2372
    %v2374 = vmul.f32 %v2373, %v2239
    %v2375 = vmul.f32 %v2373, %v2240
    %v2376 = vmul.f32 %v2373, %v2241
    %v2377 = vmul.f32 %v2373, %v2242
    %2382 = vrot.lane.b32.xlu0 %v2374, 127
    %v2383 = vpop.permute.xlu0 %2382
    %2384 = vrot.lane.b32.xlu0 %v2375, 127
    %v2385 = vpop.permute.xlu0 %2384
    %2386 = vrot.lane.b32.xlu0 %v2376, 127
    %v2387 = vpop.permute.xlu0 %2386
    %2388 = vrot.lane.b32.xlu0 %v2377, 127
    %v2389 = vpop.permute.xlu0 %2388
    %v2394 = vadd.f32 %v2332, %v2383
    %v2395 = vadd.f32 %v2333, %v2385
    %v2396 = vadd.f32 %v2334, %v2387
    %v2397 = vadd.f32 %v2335, %v2389
    %s2398 = sld [smem:[#allocation8 + $0x37]]
    %v2399 = vstv %s2398
    %v2400 = vmul.f32 %v2399, %v2239
    %v2401 = vmul.f32 %v2399, %v2240
    %v2402 = vmul.f32 %v2399, %v2241
    %v2403 = vmul.f32 %v2399, %v2242
    %2408 = vrot.lane.b32.xlu0 %v2400, 127
    %v2409 = vpop.permute.xlu0 %2408
    %2410 = vrot.lane.b32.xlu0 %v2401, 127
    %v2411 = vpop.permute.xlu0 %2410
    %2412 = vrot.lane.b32.xlu0 %v2402, 127
    %v2413 = vpop.permute.xlu0 %2412
    %2414 = vrot.lane.b32.xlu0 %v2403, 127
    %v2415 = vpop.permute.xlu0 %2414
    %v2420 = vadd.f32 %v2342, %v2409
    %v2421 = vadd.f32 %v2343, %v2411
    %v2422 = vadd.f32 %v2344, %v2413
    %v2423 = vadd.f32 %v2345, %v2415
    %s2424 = sld [smem:[#allocation8 + $0x2]]
    %v2425 = vstv %s2424
    %v2426 = vmul.f32 %v2425, %v2239
    %v2427 = vmul.f32 %v2425, %v2240
    %v2428 = vmul.f32 %v2425, %v2241
    %v2429 = vmul.f32 %v2425, %v2242
    %2434 = vrot.lane.b32.xlu0 %v2426, 126
    %v2435 = vpop.permute.xlu0 %2434
    %2436 = vrot.lane.b32.xlu0 %v2427, 126
    %v2437 = vpop.permute.xlu0 %2436
    %2438 = vrot.lane.b32.xlu0 %v2428, 126
    %v2439 = vpop.permute.xlu0 %2438
    %2440 = vrot.lane.b32.xlu0 %v2429, 126
    %v2441 = vpop.permute.xlu0 %2440
    %v2446 = vadd.f32 %v2368, %v2435
    %v2447 = vadd.f32 %v2369, %v2437
    %v2448 = vadd.f32 %v2370, %v2439
    %v2449 = vadd.f32 %v2371, %v2441
    %s2450 = sld [smem:[#allocation8 + $0x1d]]
    %v2451 = vstv %s2450
    %v2452 = vmul.f32 %v2451, %v2239
    %v2453 = vmul.f32 %v2451, %v2240
    %v2454 = vmul.f32 %v2451, %v2241
    %v2455 = vmul.f32 %v2451, %v2242
    %2460 = vrot.lane.b32.xlu0 %v2452, 126
    %v2461 = vpop.permute.xlu0 %2460
    %2462 = vrot.lane.b32.xlu0 %v2453, 126
    %v2463 = vpop.permute.xlu0 %2462
    %2464 = vrot.lane.b32.xlu0 %v2454, 126
    %v2465 = vpop.permute.xlu0 %2464
    %2466 = vrot.lane.b32.xlu0 %v2455, 126
    %v2467 = vpop.permute.xlu0 %2466
    %v2472 = vadd.f32 %v2394, %v2461
    %v2473 = vadd.f32 %v2395, %v2463
    %v2474 = vadd.f32 %v2396, %v2465
    %v2475 = vadd.f32 %v2397, %v2467
    %s2476 = sld [smem:[#allocation8 + $0x38]]
    %v2477 = vstv %s2476
    %v2478 = vmul.f32 %v2477, %v2239
    %v2479 = vmul.f32 %v2477, %v2240
    %v2480 = vmul.f32 %v2477, %v2241
    %v2481 = vmul.f32 %v2477, %v2242
    %2486 = vrot.lane.b32.xlu0 %v2478, 126
    %v2487 = vpop.permute.xlu0 %2486
    %2488 = vrot.lane.b32.xlu0 %v2479, 126
    %v2489 = vpop.permute.xlu0 %2488
    %2490 = vrot.lane.b32.xlu0 %v2480, 126
    %v2491 = vpop.permute.xlu0 %2490
    %2492 = vrot.lane.b32.xlu0 %v2481, 126
    %v2493 = vpop.permute.xlu0 %2492
    %v2498 = vadd.f32 %v2420, %v2487
    %v2499 = vadd.f32 %v2421, %v2489
    %v2500 = vadd.f32 %v2422, %v2491
    %v2501 = vadd.f32 %v2423, %v2493
    %s2502 = sld [smem:[#allocation8 + $0x3]]
    %v2503 = vstv %s2502
    %v2504 = vmul.f32 %v2503, %v2239
    %v2505 = vmul.f32 %v2503, %v2240
    %v2506 = vmul.f32 %v2503, %v2241
    %v2507 = vmul.f32 %v2503, %v2242
    %v2512 = vrot.slane %v2504, 1
    %v2513 = vrot.slane %v2505, 1
    %v2514 = vsel %vm359, %v2512, %v2513
    %v2515 = vrot.slane %v2506, 1
    %v2516 = vrot.slane %v2507, 1
    %v2517 = vsel %vm359, %v2515, %v2516
    %v2522 = vadd.f32 %v2446, %v2514
    %v2523 = vadd.f32 %v2447, %v2513
    %v2524 = vadd.f32 %v2448, %v2517
    %v2525 = vadd.f32 %v2449, %v2516
    %s2526 = sld [smem:[#allocation8 + $0x1e]]
    %v2527 = vstv %s2526
    %v2528 = vmul.f32 %v2527, %v2239
    %v2529 = vmul.f32 %v2527, %v2240
    %v2530 = vmul.f32 %v2527, %v2241
    %v2531 = vmul.f32 %v2527, %v2242
    %v2536 = vrot.slane %v2528, 1
    %v2537 = vrot.slane %v2529, 1
    %v2538 = vsel %vm359, %v2536, %v2537
    %v2539 = vrot.slane %v2530, 1
    %v2540 = vrot.slane %v2531, 1
    %v2541 = vsel %vm359, %v2539, %v2540
    %v2546 = vadd.f32 %v2472, %v2538
    %v2547 = vadd.f32 %v2473, %v2537
    %v2548 = vadd.f32 %v2474, %v2541
    %v2549 = vadd.f32 %v2475, %v2540
    %s2550 = sld [smem:[#allocation8 + $0x39]]
    %v2551 = vstv %s2550
    %v2552 = vmul.f32 %v2551, %v2239
    %v2553 = vmul.f32 %v2551, %v2240
    %v2554 = vmul.f32 %v2551, %v2241
    %v2555 = vmul.f32 %v2551, %v2242
    %v2560 = vrot.slane %v2552, 1
    %v2561 = vrot.slane %v2553, 1
    %v2562 = vsel %vm359, %v2560, %v2561
    %v2563 = vrot.slane %v2554, 1
    %v2564 = vrot.slane %v2555, 1
    %v2565 = vsel %vm359, %v2563, %v2564
    %v2570 = vadd.f32 %v2498, %v2562
    %v2571 = vadd.f32 %v2499, %v2561
    %v2572 = vadd.f32 %v2500, %v2565
    %v2573 = vadd.f32 %v2501, %v2564
    %s2574 = sld [smem:[#allocation8 + $0x4]]
    %v2575 = vstv %s2574
    %v2576 = vmul.f32 %v2575, %v2239
    %v2577 = vmul.f32 %v2575, %v2240
    %v2578 = vmul.f32 %v2575, %v2241
    %v2579 = vmul.f32 %v2575, %v2242
    %v2584 = vrot.slane %v2576, 1
    %v2585 = vrot.slane %v2577, 1
    %v2586 = vsel %vm359, %v2584, %v2585
    %v2587 = vrot.slane %v2578, 1
    %v2588 = vrot.slane %v2579, 1
    %v2589 = vsel %vm359, %v2587, %v2588
    %2590 = vrot.lane.b32.xlu0 %v2586, 127
    %v2591 = vpop.permute.xlu0 %2590
    %2592 = vrot.lane.b32.xlu0 %v2585, 127
    %v2593 = vpop.permute.xlu0 %2592
    %2594 = vrot.lane.b32.xlu0 %v2589, 127
    %v2595 = vpop.permute.xlu0 %2594
    %2596 = vrot.lane.b32.xlu0 %v2588, 127
    %v2597 = vpop.permute.xlu0 %2596
    %v2602 = vadd.f32 %v2522, %v2591
    %v2603 = vadd.f32 %v2523, %v2593
    %v2604 = vadd.f32 %v2524, %v2595
    %v2605 = vadd.f32 %v2525, %v2597
    %s2606 = sld [smem:[#allocation8 + $0x1f]]
    %v2607 = vstv %s2606
    %v2608 = vmul.f32 %v2607, %v2239
    %v2609 = vmul.f32 %v2607, %v2240
    %v2610 = vmul.f32 %v2607, %v2241
    %v2611 = vmul.f32 %v2607, %v2242
    %v2616 = vrot.slane %v2608, 1
    %v2617 = vrot.slane %v2609, 1
    %v2618 = vsel %vm359, %v2616, %v2617
    %v2619 = vrot.slane %v2610, 1
    %v2620 = vrot.slane %v2611, 1
    %v2621 = vsel %vm359, %v2619, %v2620
    %2622 = vrot.lane.b32.xlu0 %v2618, 127
    %v2623 = vpop.permute.xlu0 %2622
    %2624 = vrot.lane.b32.xlu0 %v2617, 127
    %v2625 = vpop.permute.xlu0 %2624
    %2626 = vrot.lane.b32.xlu0 %v2621, 127
    %v2627 = vpop.permute.xlu0 %2626
    %2628 = vrot.lane.b32.xlu0 %v2620, 127
    %v2629 = vpop.permute.xlu0 %2628
    %v2634 = vadd.f32 %v2546, %v2623
    %v2635 = vadd.f32 %v2547, %v2625
    %v2636 = vadd.f32 %v2548, %v2627
    %v2637 = vadd.f32 %v2549, %v2629
    %s2638 = sld [smem:[#allocation8 + $0x3a]]
    %v2639 = vstv %s2638
    %v2640 = vmul.f32 %v2639, %v2239
    %v2641 = vmul.f32 %v2639, %v2240
    %v2642 = vmul.f32 %v2639, %v2241
    %v2643 = vmul.f32 %v2639, %v2242
    %v2648 = vrot.slane %v2640, 1
    %v2649 = vrot.slane %v2641, 1
    %v2650 = vsel %vm359, %v2648, %v2649
    %v2651 = vrot.slane %v2642, 1
    %v2652 = vrot.slane %v2643, 1
    %v2653 = vsel %vm359, %v2651, %v2652
    %2654 = vrot.lane.b32.xlu0 %v2650, 127
    %v2655 = vpop.permute.xlu0 %2654
    %2656 = vrot.lane.b32.xlu0 %v2649, 127
    %v2657 = vpop.permute.xlu0 %2656
    %2658 = vrot.lane.b32.xlu0 %v2653, 127
    %v2659 = vpop.permute.xlu0 %2658
    %2660 = vrot.lane.b32.xlu0 %v2652, 127
    %v2661 = vpop.permute.xlu0 %2660
    %v2666 = vadd.f32 %v2570, %v2655
    %v2667 = vadd.f32 %v2571, %v2657
    %v2668 = vadd.f32 %v2572, %v2659
    %v2669 = vadd.f32 %v2573, %v2661
    %s2670 = sld [smem:[#allocation8 + $0x5]]
    %v2671 = vstv %s2670
    %v2672 = vmul.f32 %v2671, %v2239
    %v2673 = vmul.f32 %v2671, %v2240
    %v2674 = vmul.f32 %v2671, %v2241
    %v2675 = vmul.f32 %v2671, %v2242
    %v2680 = vrot.slane %v2672, 1
    %v2681 = vrot.slane %v2673, 1
    %v2682 = vsel %vm359, %v2680, %v2681
    %v2683 = vrot.slane %v2674, 1
    %v2684 = vrot.slane %v2675, 1
    %v2685 = vsel %vm359, %v2683, %v2684
    %2686 = vrot.lane.b32.xlu0 %v2682, 126
    %v2687 = vpop.permute.xlu0 %2686
    %2688 = vrot.lane.b32.xlu0 %v2681, 126
    %v2689 = vpop.permute.xlu0 %2688
    %2690 = vrot.lane.b32.xlu0 %v2685, 126
    %v2691 = vpop.permute.xlu0 %2690
    %2692 = vrot.lane.b32.xlu0 %v2684, 126
    %v2693 = vpop.permute.xlu0 %2692
    %v2698 = vadd.f32 %v2602, %v2687
    %v2699 = vadd.f32 %v2603, %v2689
    %v2700 = vadd.f32 %v2604, %v2691
    %v2701 = vadd.f32 %v2605, %v2693
    %s2702 = sld [smem:[#allocation8 + $0x20]]
    %v2703 = vstv %s2702
    %v2704 = vmul.f32 %v2703, %v2239
    %v2705 = vmul.f32 %v2703, %v2240
    %v2706 = vmul.f32 %v2703, %v2241
    %v2707 = vmul.f32 %v2703, %v2242
    %v2712 = vrot.slane %v2704, 1
    %v2713 = vrot.slane %v2705, 1
    %v2714 = vsel %vm359, %v2712, %v2713
    %v2715 = vrot.slane %v2706, 1
    %v2716 = vrot.slane %v2707, 1
    %v2717 = vsel %vm359, %v2715, %v2716
    %2718 = vrot.lane.b32.xlu0 %v2714, 126
    %v2719 = vpop.permute.xlu0 %2718
    %2720 = vrot.lane.b32.xlu0 %v2713, 126
    %v2721 = vpop.permute.xlu0 %2720
    %2722 = vrot.lane.b32.xlu0 %v2717, 126
    %v2723 = vpop.permute.xlu0 %2722
    %2724 = vrot.lane.b32.xlu0 %v2716, 126
    %v2725 = vpop.permute.xlu0 %2724
    %v2730 = vadd.f32 %v2634, %v2719
    %v2731 = vadd.f32 %v2635, %v2721
    %v2732 = vadd.f32 %v2636, %v2723
    %v2733 = vadd.f32 %v2637, %v2725
    %s2734 = sld [smem:[#allocation8 + $0x3b]]
    %v2735 = vstv %s2734
    %v2736 = vmul.f32 %v2735, %v2239
    %v2737 = vmul.f32 %v2735, %v2240
    %v2738 = vmul.f32 %v2735, %v2241
    %v2739 = vmul.f32 %v2735, %v2242
    %v2744 = vrot.slane %v2736, 1
    %v2745 = vrot.slane %v2737, 1
    %v2746 = vsel %vm359, %v2744, %v2745
    %v2747 = vrot.slane %v2738, 1
    %v2748 = vrot.slane %v2739, 1
    %v2749 = vsel %vm359, %v2747, %v2748
    %2750 = vrot.lane.b32.xlu0 %v2746, 126
    %v2751 = vpop.permute.xlu0 %2750
    %2752 = vrot.lane.b32.xlu0 %v2745, 126
    %v2753 = vpop.permute.xlu0 %2752
    %2754 = vrot.lane.b32.xlu0 %v2749, 126
    %v2755 = vpop.permute.xlu0 %2754
    %2756 = vrot.lane.b32.xlu0 %v2748, 126
    %v2757 = vpop.permute.xlu0 %2756
    %v2762 = vadd.f32 %v2666, %v2751
    %v2763 = vadd.f32 %v2667, %v2753
    %v2764 = vadd.f32 %v2668, %v2755
    %v2765 = vadd.f32 %v2669, %v2757
    %s2766 = sld [smem:[#allocation8 + $0x6]]
    %v2767 = vstv %s2766
    %v2768 = vmul.f32 %v2767, %v2239
    %v2769 = vmul.f32 %v2767, %v2240
    %v2770 = vmul.f32 %v2767, %v2241
    %v2771 = vmul.f32 %v2767, %v2242
    %v2776 = vrot.slane %v2768, 2
    %v2777 = vrot.slane %v2769, 2
    %v2778 = vsel %vm624, %v2776, %v2777
    %v2779 = vrot.slane %v2770, 2
    %v2780 = vrot.slane %v2771, 2
    %v2781 = vsel %vm624, %v2779, %v2780
    %v2786 = vadd.f32 %v2698, %v2778
    %v2787 = vadd.f32 %v2699, %v2777
    %v2788 = vadd.f32 %v2700, %v2781
    %v2789 = vadd.f32 %v2701, %v2780
    %s2790 = sld [smem:[#allocation8 + $0x21]]
    %v2791 = vstv %s2790
    %v2792 = vmul.f32 %v2791, %v2239
    %v2793 = vmul.f32 %v2791, %v2240
    %v2794 = vmul.f32 %v2791, %v2241
    %v2795 = vmul.f32 %v2791, %v2242
    %v2800 = vrot.slane %v2792, 2
    %v2801 = vrot.slane %v2793, 2
    %v2802 = vsel %vm624, %v2800, %v2801
    %v2803 = vrot.slane %v2794, 2
    %v2804 = vrot.slane %v2795, 2
    %v2805 = vsel %vm624, %v2803, %v2804
    %v2810 = vadd.f32 %v2730, %v2802
    %v2811 = vadd.f32 %v2731, %v2801
    %v2812 = vadd.f32 %v2732, %v2805
    %v2813 = vadd.f32 %v2733, %v2804
    %s2814 = sld [smem:[#allocation8 + $0x3c]]
    %v2815 = vstv %s2814
    %v2816 = vmul.f32 %v2815, %v2239
    %v2817 = vmul.f32 %v2815, %v2240
    %v2818 = vmul.f32 %v2815, %v2241
    %v2819 = vmul.f32 %v2815, %v2242
    %v2824 = vrot.slane %v2816, 2
    %v2825 = vrot.slane %v2817, 2
    %v2826 = vsel %vm624, %v2824, %v2825
    %v2827 = vrot.slane %v2818, 2
    %v2828 = vrot.slane %v2819, 2
    %v2829 = vsel %vm624, %v2827, %v2828
    %v2834 = vadd.f32 %v2762, %v2826
    %v2835 = vadd.f32 %v2763, %v2825
    %v2836 = vadd.f32 %v2764, %v2829
    %v2837 = vadd.f32 %v2765, %v2828
    %s2838 = sld [smem:[#allocation8 + $0x7]]
    %v2839 = vstv %s2838
    %v2840 = vmul.f32 %v2839, %v2239
    %v2841 = vmul.f32 %v2839, %v2240
    %v2842 = vmul.f32 %v2839, %v2241
    %v2843 = vmul.f32 %v2839, %v2242
    %v2848 = vrot.slane %v2840, 2
    %v2849 = vrot.slane %v2841, 2
    %v2850 = vsel %vm624, %v2848, %v2849
    %v2851 = vrot.slane %v2842, 2
    %v2852 = vrot.slane %v2843, 2
    %v2853 = vsel %vm624, %v2851, %v2852
    %2854 = vrot.lane.b32.xlu0 %v2850, 127
    %v2855 = vpop.permute.xlu0 %2854
    %2856 = vrot.lane.b32.xlu0 %v2849, 127
    %v2857 = vpop.permute.xlu0 %2856
    %2858 = vrot.lane.b32.xlu0 %v2853, 127
    %v2859 = vpop.permute.xlu0 %2858
    %2860 = vrot.lane.b32.xlu0 %v2852, 127
    %v2861 = vpop.permute.xlu0 %2860
    %v2866 = vadd.f32 %v2786, %v2855
    %v2867 = vadd.f32 %v2787, %v2857
    %v2868 = vadd.f32 %v2788, %v2859
    %v2869 = vadd.f32 %v2789, %v2861
    %s2870 = sld [smem:[#allocation8 + $0x22]]
    %v2871 = vstv %s2870
    %v2872 = vmul.f32 %v2871, %v2239
    %v2873 = vmul.f32 %v2871, %v2240
    %v2874 = vmul.f32 %v2871, %v2241
    %v2875 = vmul.f32 %v2871, %v2242
    %v2880 = vrot.slane %v2872, 2
    %v2881 = vrot.slane %v2873, 2
    %v2882 = vsel %vm624, %v2880, %v2881
    %v2883 = vrot.slane %v2874, 2
    %v2884 = vrot.slane %v2875, 2
    %v2885 = vsel %vm624, %v2883, %v2884
    %2886 = vrot.lane.b32.xlu0 %v2882, 127
    %v2887 = vpop.permute.xlu0 %2886
    %2888 = vrot.lane.b32.xlu0 %v2881, 127
    %v2889 = vpop.permute.xlu0 %2888
    %2890 = vrot.lane.b32.xlu0 %v2885, 127
    %v2891 = vpop.permute.xlu0 %2890
    %2892 = vrot.lane.b32.xlu0 %v2884, 127
    %v2893 = vpop.permute.xlu0 %2892
    %v2898 = vadd.f32 %v2810, %v2887
    %v2899 = vadd.f32 %v2811, %v2889
    %v2900 = vadd.f32 %v2812, %v2891
    %v2901 = vadd.f32 %v2813, %v2893
    %s2902 = sld [smem:[#allocation8 + $0x3d]]
    %v2903 = vstv %s2902
    %v2904 = vmul.f32 %v2903, %v2239
    %v2905 = vmul.f32 %v2903, %v2240
    %v2906 = vmul.f32 %v2903, %v2241
    %v2907 = vmul.f32 %v2903, %v2242
    %v2912 = vrot.slane %v2904, 2
    %v2913 = vrot.slane %v2905, 2
    %v2914 = vsel %vm624, %v2912, %v2913
    %v2915 = vrot.slane %v2906, 2
    %v2916 = vrot.slane %v2907, 2
    %v2917 = vsel %vm624, %v2915, %v2916
    %2918 = vrot.lane.b32.xlu0 %v2914, 127
    %v2919 = vpop.permute.xlu0 %2918
    %2920 = vrot.lane.b32.xlu0 %v2913, 127
    %v2921 = vpop.permute.xlu0 %2920
    %2922 = vrot.lane.b32.xlu0 %v2917, 127
    %v2923 = vpop.permute.xlu0 %2922
    %2924 = vrot.lane.b32.xlu0 %v2916, 127
    %v2925 = vpop.permute.xlu0 %2924
    %v2930 = vadd.f32 %v2834, %v2919
    %v2931 = vadd.f32 %v2835, %v2921
    %v2932 = vadd.f32 %v2836, %v2923
    %v2933 = vadd.f32 %v2837, %v2925
    %s2934 = sld [smem:[#allocation8 + $0x8]]
    %v2935 = vstv %s2934
    %v2936 = vmul.f32 %v2935, %v2239
    %v2937 = vmul.f32 %v2935, %v2240
    %v2938 = vmul.f32 %v2935, %v2241
    %v2939 = vmul.f32 %v2935, %v2242
    %v2944 = vrot.slane %v2936, 2
    %v2945 = vrot.slane %v2937, 2
    %v2946 = vsel %vm624, %v2944, %v2945
    %v2947 = vrot.slane %v2938, 2
    %v2948 = vrot.slane %v2939, 2
    %v2949 = vsel %vm624, %v2947, %v2948
    %2950 = vrot.lane.b32.xlu0 %v2946, 126
    %v2951 = vpop.permute.xlu0 %2950
    %2952 = vrot.lane.b32.xlu0 %v2945, 126
    %v2953 = vpop.permute.xlu0 %2952
    %2954 = vrot.lane.b32.xlu0 %v2949, 126
    %v2955 = vpop.permute.xlu0 %2954
    %2956 = vrot.lane.b32.xlu0 %v2948, 126
    %v2957 = vpop.permute.xlu0 %2956
    %v2962 = vadd.f32 %v2866, %v2951
    %v2963 = vadd.f32 %v2867, %v2953
    %v2964 = vadd.f32 %v2868, %v2955
    %v2965 = vadd.f32 %v2869, %v2957
    %s2966 = sld [smem:[#allocation8 + $0x23]]
    %v2967 = vstv %s2966
    %v2968 = vmul.f32 %v2967, %v2239
    %v2969 = vmul.f32 %v2967, %v2240
    %v2970 = vmul.f32 %v2967, %v2241
    %v2971 = vmul.f32 %v2967, %v2242
    %v2976 = vrot.slane %v2968, 2
    %v2977 = vrot.slane %v2969, 2
    %v2978 = vsel %vm624, %v2976, %v2977
    %v2979 = vrot.slane %v2970, 2
    %v2980 = vrot.slane %v2971, 2
    %v2981 = vsel %vm624, %v2979, %v2980
    %2982 = vrot.lane.b32.xlu0 %v2978, 126
    %v2983 = vpop.permute.xlu0 %2982
    %2984 = vrot.lane.b32.xlu0 %v2977, 126
    %v2985 = vpop.permute.xlu0 %2984
    %2986 = vrot.lane.b32.xlu0 %v2981, 126
    %v2987 = vpop.permute.xlu0 %2986
    %2988 = vrot.lane.b32.xlu0 %v2980, 126
    %v2989 = vpop.permute.xlu0 %2988
    %v2994 = vadd.f32 %v2898, %v2983
    %v2995 = vadd.f32 %v2899, %v2985
    %v2996 = vadd.f32 %v2900, %v2987
    %v2997 = vadd.f32 %v2901, %v2989
    %s2998 = sld [smem:[#allocation8 + $0x3e]]
    %v2999 = vstv %s2998
    %v3000 = vmul.f32 %v2999, %v2239
    %v3001 = vmul.f32 %v2999, %v2240
    %v3002 = vmul.f32 %v2999, %v2241
    %v3003 = vmul.f32 %v2999, %v2242
    %v3008 = vrot.slane %v3000, 2
    %v3009 = vrot.slane %v3001, 2
    %v3010 = vsel %vm624, %v3008, %v3009
    %v3011 = vrot.slane %v3002, 2
    %v3012 = vrot.slane %v3003, 2
    %v3013 = vsel %vm624, %v3011, %v3012
    %3014 = vrot.lane.b32.xlu0 %v3010, 126
    %v3015 = vpop.permute.xlu0 %3014
    %3016 = vrot.lane.b32.xlu0 %v3009, 126
    %v3017 = vpop.permute.xlu0 %3016
    %3018 = vrot.lane.b32.xlu0 %v3013, 126
    %v3019 = vpop.permute.xlu0 %3018
    %3020 = vrot.lane.b32.xlu0 %v3012, 126
    %v3021 = vpop.permute.xlu0 %3020
    %v3026 = vadd.f32 %v2930, %v3015
    %v3027 = vadd.f32 %v2931, %v3017
    %v3028 = vadd.f32 %v2932, %v3019
    %v3029 = vadd.f32 %v2933, %v3021
    %s3030 = sld [smem:[#allocation8 + $0x9]]
    %v3031 = vstv %s3030
    %v3032 = vmul.f32 %v3031, %v2271
    %v3033 = vmul.f32 %v3031, %v2272
    %v3034 = vmul.f32 %v3031, %v2273
    %v3035 = vmul.f32 %v3031, %v2274
    %v3036 = vadd.f32 %v2962, %v3032
    %v3037 = vadd.f32 %v2963, %v3033
    %v3038 = vadd.f32 %v2964, %v3034
    %v3039 = vadd.f32 %v2965, %v3035
    %s3040 = sld [smem:[#allocation8 + $0x24]]
    %v3041 = vstv %s3040
    %v3042 = vmul.f32 %v3041, %v2271
    %v3043 = vmul.f32 %v3041, %v2272
    %v3044 = vmul.f32 %v3041, %v2273
    %v3045 = vmul.f32 %v3041, %v2274
    %v3046 = vadd.f32 %v2994, %v3042
    %v3047 = vadd.f32 %v2995, %v3043
    %v3048 = vadd.f32 %v2996, %v3044
    %v3049 = vadd.f32 %v2997, %v3045
    %s3050 = sld [smem:[#allocation8 + $0x3f]]
    %v3051 = vstv %s3050
    %v3052 = vmul.f32 %v3051, %v2271
    %v3053 = vmul.f32 %v3051, %v2272
    %v3054 = vmul.f32 %v3051, %v2273
    %v3055 = vmul.f32 %v3051, %v2274
    %v3056 = vadd.f32 %v3026, %v3052
    %v3057 = vadd.f32 %v3027, %v3053
    %v3058 = vadd.f32 %v3028, %v3054
    %v3059 = vadd.f32 %v3029, %v3055
    %s3060 = sld [smem:[#allocation8 + $0xa]]
    %v3061 = vstv %s3060
    %v3062 = vmul.f32 %v3061, %v2271
    %v3063 = vmul.f32 %v3061, %v2272
    %v3064 = vmul.f32 %v3061, %v2273
    %v3065 = vmul.f32 %v3061, %v2274
    %3070 = vrot.lane.b32.xlu0 %v3062, 127
    %v3071 = vpop.permute.xlu0 %3070
    %3072 = vrot.lane.b32.xlu0 %v3063, 127
    %v3073 = vpop.permute.xlu0 %3072
    %3074 = vrot.lane.b32.xlu0 %v3064, 127
    %v3075 = vpop.permute.xlu0 %3074
    %3076 = vrot.lane.b32.xlu0 %v3065, 127
    %v3077 = vpop.permute.xlu0 %3076
    %v3082 = vadd.f32 %v3036, %v3071
    %v3083 = vadd.f32 %v3037, %v3073
    %v3084 = vadd.f32 %v3038, %v3075
    %v3085 = vadd.f32 %v3039, %v3077
    %s3086 = sld [smem:[#allocation8 + $0x25]]
    %v3087 = vstv %s3086
    %v3088 = vmul.f32 %v3087, %v2271
    %v3089 = vmul.f32 %v3087, %v2272
    %v3090 = vmul.f32 %v3087, %v2273
    %v3091 = vmul.f32 %v3087, %v2274
    %3096 = vrot.lane.b32.xlu0 %v3088, 127
    %v3097 = vpop.permute.xlu0 %3096
    %3098 = vrot.lane.b32.xlu0 %v3089, 127
    %v3099 = vpop.permute.xlu0 %3098
    %3100 = vrot.lane.b32.xlu0 %v3090, 127
    %v3101 = vpop.permute.xlu0 %3100
    %3102 = vrot.lane.b32.xlu0 %v3091, 127
    %v3103 = vpop.permute.xlu0 %3102
    %v3108 = vadd.f32 %v3046, %v3097
    %v3109 = vadd.f32 %v3047, %v3099
    %v3110 = vadd.f32 %v3048, %v3101
    %v3111 = vadd.f32 %v3049, %v3103
    %s3112 = sld [smem:[#allocation8 + $0x40]]
    %v3113 = vstv %s3112
    %v3114 = vmul.f32 %v3113, %v2271
    %v3115 = vmul.f32 %v3113, %v2272
    %v3116 = vmul.f32 %v3113, %v2273
    %v3117 = vmul.f32 %v3113, %v2274
    %3122 = vrot.lane.b32.xlu0 %v3114, 127
    %v3123 = vpop.permute.xlu0 %3122
    %3124 = vrot.lane.b32.xlu0 %v3115, 127
    %v3125 = vpop.permute.xlu0 %3124
    %3126 = vrot.lane.b32.xlu0 %v3116, 127
    %v3127 = vpop.permute.xlu0 %3126
    %3128 = vrot.lane.b32.xlu0 %v3117, 127
    %v3129 = vpop.permute.xlu0 %3128
    %v3134 = vadd.f32 %v3056, %v3123
    %v3135 = vadd.f32 %v3057, %v3125
    %v3136 = vadd.f32 %v3058, %v3127
    %v3137 = vadd.f32 %v3059, %v3129
    %s3138 = sld [smem:[#allocation8 + $0xb]]
    %v3139 = vstv %s3138
    %v3140 = vmul.f32 %v3139, %v2271
    %v3141 = vmul.f32 %v3139, %v2272
    %v3142 = vmul.f32 %v3139, %v2273
    %v3143 = vmul.f32 %v3139, %v2274
    %3148 = vrot.lane.b32.xlu0 %v3140, 126
    %v3149 = vpop.permute.xlu0 %3148
    %3150 = vrot.lane.b32.xlu0 %v3141, 126
    %v3151 = vpop.permute.xlu0 %3150
    %3152 = vrot.lane.b32.xlu0 %v3142, 126
    %v3153 = vpop.permute.xlu0 %3152
    %3154 = vrot.lane.b32.xlu0 %v3143, 126
    %v3155 = vpop.permute.xlu0 %3154
    %v3160 = vadd.f32 %v3082, %v3149
    %v3161 = vadd.f32 %v3083, %v3151
    %v3162 = vadd.f32 %v3084, %v3153
    %v3163 = vadd.f32 %v3085, %v3155
    %s3164 = sld [smem:[#allocation8 + $0x26]]
    %v3165 = vstv %s3164
    %v3166 = vmul.f32 %v3165, %v2271
    %v3167 = vmul.f32 %v3165, %v2272
    %v3168 = vmul.f32 %v3165, %v2273
    %v3169 = vmul.f32 %v3165, %v2274
    %3174 = vrot.lane.b32.xlu0 %v3166, 126
    %v3175 = vpop.permute.xlu0 %3174
    %3176 = vrot.lane.b32.xlu0 %v3167, 126
    %v3177 = vpop.permute.xlu0 %3176
    %3178 = vrot.lane.b32.xlu0 %v3168, 126
    %v3179 = vpop.permute.xlu0 %3178
    %3180 = vrot.lane.b32.xlu0 %v3169, 126
    %v3181 = vpop.permute.xlu0 %3180
    %v3186 = vadd.f32 %v3108, %v3175
    %v3187 = vadd.f32 %v3109, %v3177
    %v3188 = vadd.f32 %v3110, %v3179
    %v3189 = vadd.f32 %v3111, %v3181
    %s3190 = sld [smem:[#allocation8 + $0x41]]
    %v3191 = vstv %s3190
    %v3192 = vmul.f32 %v3191, %v2271
    %v3193 = vmul.f32 %v3191, %v2272
    %v3194 = vmul.f32 %v3191, %v2273
    %v3195 = vmul.f32 %v3191, %v2274
    %3200 = vrot.lane.b32.xlu0 %v3192, 126
    %v3201 = vpop.permute.xlu0 %3200
    %3202 = vrot.lane.b32.xlu0 %v3193, 126
    %v3203 = vpop.permute.xlu0 %3202
    %3204 = vrot.lane.b32.xlu0 %v3194, 126
    %v3205 = vpop.permute.xlu0 %3204
    %3206 = vrot.lane.b32.xlu0 %v3195, 126
    %v3207 = vpop.permute.xlu0 %3206
    %v3212 = vadd.f32 %v3134, %v3201
    %v3213 = vadd.f32 %v3135, %v3203
    %v3214 = vadd.f32 %v3136, %v3205
    %v3215 = vadd.f32 %v3137, %v3207
    %s3216 = sld [smem:[#allocation8 + $0xc]]
    %v3217 = vstv %s3216
    %v3218 = vmul.f32 %v3217, %v2271
    %v3219 = vmul.f32 %v3217, %v2272
    %v3220 = vmul.f32 %v3217, %v2273
    %v3221 = vmul.f32 %v3217, %v2274
    %v3226 = vrot.slane %v3218, 1
    %v3227 = vrot.slane %v3219, 1
    %v3228 = vsel %vm359, %v3226, %v3227
    %v3229 = vrot.slane %v3220, 1
    %v3230 = vrot.slane %v3221, 1
    %v3231 = vsel %vm359, %v3229, %v3230
    %v3236 = vadd.f32 %v3160, %v3228
    %v3237 = vadd.f32 %v3161, %v3227
    %v3238 = vadd.f32 %v3162, %v3231
    %v3239 = vadd.f32 %v3163, %v3230
    %s3240 = sld [smem:[#allocation8 + $0x27]]
    %v3241 = vstv %s3240
    %v3242 = vmul.f32 %v3241, %v2271
    %v3243 = vmul.f32 %v3241, %v2272
    %v3244 = vmul.f32 %v3241, %v2273
    %v3245 = vmul.f32 %v3241, %v2274
    %v3250 = vrot.slane %v3242, 1
    %v3251 = vrot.slane %v3243, 1
    %v3252 = vsel %vm359, %v3250, %v3251
    %v3253 = vrot.slane %v3244, 1
    %v3254 = vrot.slane %v3245, 1
    %v3255 = vsel %vm359, %v3253, %v3254
    %v3260 = vadd.f32 %v3186, %v3252
    %v3261 = vadd.f32 %v3187, %v3251
    %v3262 = vadd.f32 %v3188, %v3255
    %v3263 = vadd.f32 %v3189, %v3254
    %s3264 = sld [smem:[#allocation8 + $0x42]]
    %v3265 = vstv %s3264
    %v3266 = vmul.f32 %v3265, %v2271
    %v3267 = vmul.f32 %v3265, %v2272
    %v3268 = vmul.f32 %v3265, %v2273
    %v3269 = vmul.f32 %v3265, %v2274
    %v3274 = vrot.slane %v3266, 1
    %v3275 = vrot.slane %v3267, 1
    %v3276 = vsel %vm359, %v3274, %v3275
    %v3277 = vrot.slane %v3268, 1
    %v3278 = vrot.slane %v3269, 1
    %v3279 = vsel %vm359, %v3277, %v3278
    %v3284 = vadd.f32 %v3212, %v3276
    %v3285 = vadd.f32 %v3213, %v3275
    %v3286 = vadd.f32 %v3214, %v3279
    %v3287 = vadd.f32 %v3215, %v3278
    %s3288 = sld [smem:[#allocation8 + $0xd]]
    %v3289 = vstv %s3288
    %v3290 = vmul.f32 %v3289, %v2271
    %v3291 = vmul.f32 %v3289, %v2272
    %v3292 = vmul.f32 %v3289, %v2273
    %v3293 = vmul.f32 %v3289, %v2274
    %v3298 = vrot.slane %v3290, 1
    %v3299 = vrot.slane %v3291, 1
    %v3300 = vsel %vm359, %v3298, %v3299
    %v3301 = vrot.slane %v3292, 1
    %v3302 = vrot.slane %v3293, 1
    %v3303 = vsel %vm359, %v3301, %v3302
    %3304 = vrot.lane.b32.xlu0 %v3300, 127
    %v3305 = vpop.permute.xlu0 %3304
    %3306 = vrot.lane.b32.xlu0 %v3299, 127
    %v3307 = vpop.permute.xlu0 %3306
    %3308 = vrot.lane.b32.xlu0 %v3303, 127
    %v3309 = vpop.permute.xlu0 %3308
    %3310 = vrot.lane.b32.xlu0 %v3302, 127
    %v3311 = vpop.permute.xlu0 %3310
    %v3316 = vadd.f32 %v3236, %v3305
    %v3317 = vadd.f32 %v3237, %v3307
    %v3318 = vadd.f32 %v3238, %v3309
    %v3319 = vadd.f32 %v3239, %v3311
    %s3320 = sld [smem:[#allocation8 + $0x28]]
    %v3321 = vstv %s3320
    %v3322 = vmul.f32 %v3321, %v2271
    %v3323 = vmul.f32 %v3321, %v2272
    %v3324 = vmul.f32 %v3321, %v2273
    %v3325 = vmul.f32 %v3321, %v2274
    %v3330 = vrot.slane %v3322, 1
    %v3331 = vrot.slane %v3323, 1
    %v3332 = vsel %vm359, %v3330, %v3331
    %v3333 = vrot.slane %v3324, 1
    %v3334 = vrot.slane %v3325, 1
    %v3335 = vsel %vm359, %v3333, %v3334
    %3336 = vrot.lane.b32.xlu0 %v3332, 127
    %v3337 = vpop.permute.xlu0 %3336
    %3338 = vrot.lane.b32.xlu0 %v3331, 127
    %v3339 = vpop.permute.xlu0 %3338
    %3340 = vrot.lane.b32.xlu0 %v3335, 127
    %v3341 = vpop.permute.xlu0 %3340
    %3342 = vrot.lane.b32.xlu0 %v3334, 127
    %v3343 = vpop.permute.xlu0 %3342
    %v3348 = vadd.f32 %v3260, %v3337
    %v3349 = vadd.f32 %v3261, %v3339
    %v3350 = vadd.f32 %v3262, %v3341
    %v3351 = vadd.f32 %v3263, %v3343
    %s3352 = sld [smem:[#allocation8 + $0x43]]
    %v3353 = vstv %s3352
    %v3354 = vmul.f32 %v3353, %v2271
    %v3355 = vmul.f32 %v3353, %v2272
    %v3356 = vmul.f32 %v3353, %v2273
    %v3357 = vmul.f32 %v3353, %v2274
    %v3362 = vrot.slane %v3354, 1
    %v3363 = vrot.slane %v3355, 1
    %v3364 = vsel %vm359, %v3362, %v3363
    %v3365 = vrot.slane %v3356, 1
    %v3366 = vrot.slane %v3357, 1
    %v3367 = vsel %vm359, %v3365, %v3366
    %3368 = vrot.lane.b32.xlu0 %v3364, 127
    %v3369 = vpop.permute.xlu0 %3368
    %3370 = vrot.lane.b32.xlu0 %v3363, 127
    %v3371 = vpop.permute.xlu0 %3370
    %3372 = vrot.lane.b32.xlu0 %v3367, 127
    %v3373 = vpop.permute.xlu0 %3372
    %3374 = vrot.lane.b32.xlu0 %v3366, 127
    %v3375 = vpop.permute.xlu0 %3374
    %v3380 = vadd.f32 %v3284, %v3369
    %v3381 = vadd.f32 %v3285, %v3371
    %v3382 = vadd.f32 %v3286, %v3373
    %v3383 = vadd.f32 %v3287, %v3375
    %s3384 = sld [smem:[#allocation8 + $0xe]]
    %v3385 = vstv %s3384
    %v3386 = vmul.f32 %v3385, %v2271
    %v3387 = vmul.f32 %v3385, %v2272
    %v3388 = vmul.f32 %v3385, %v2273
    %v3389 = vmul.f32 %v3385, %v2274
    %v3394 = vrot.slane %v3386, 1
    %v3395 = vrot.slane %v3387, 1
    %v3396 = vsel %vm359, %v3394, %v3395
    %v3397 = vrot.slane %v3388, 1
    %v3398 = vrot.slane %v3389, 1
    %v3399 = vsel %vm359, %v3397, %v3398
    %3400 = vrot.lane.b32.xlu0 %v3396, 126
    %v3401 = vpop.permute.xlu0 %3400
    %3402 = vrot.lane.b32.xlu0 %v3395, 126
    %v3403 = vpop.permute.xlu0 %3402
    %3404 = vrot.lane.b32.xlu0 %v3399, 126
    %v3405 = vpop.permute.xlu0 %3404
    %3406 = vrot.lane.b32.xlu0 %v3398, 126
    %v3407 = vpop.permute.xlu0 %3406
    %v3412 = vadd.f32 %v3316, %v3401
    %v3413 = vadd.f32 %v3317, %v3403
    %v3414 = vadd.f32 %v3318, %v3405
    %v3415 = vadd.f32 %v3319, %v3407
    %s3416 = sld [smem:[#allocation8 + $0x29]]
    %v3417 = vstv %s3416
    %v3418 = vmul.f32 %v3417, %v2271
    %v3419 = vmul.f32 %v3417, %v2272
    %v3420 = vmul.f32 %v3417, %v2273
    %v3421 = vmul.f32 %v3417, %v2274
    %v3426 = vrot.slane %v3418, 1
    %v3427 = vrot.slane %v3419, 1
    %v3428 = vsel %vm359, %v3426, %v3427
    %v3429 = vrot.slane %v3420, 1
    %v3430 = vrot.slane %v3421, 1
    %v3431 = vsel %vm359, %v3429, %v3430
    %3432 = vrot.lane.b32.xlu0 %v3428, 126
    %v3433 = vpop.permute.xlu0 %3432
    %3434 = vrot.lane.b32.xlu0 %v3427, 126
    %v3435 = vpop.permute.xlu0 %3434
    %3436 = vrot.lane.b32.xlu0 %v3431, 126
    %v3437 = vpop.permute.xlu0 %3436
    %3438 = vrot.lane.b32.xlu0 %v3430, 126
    %v3439 = vpop.permute.xlu0 %3438
    %v3444 = vadd.f32 %v3348, %v3433
    %v3445 = vadd.f32 %v3349, %v3435
    %v3446 = vadd.f32 %v3350, %v3437
    %v3447 = vadd.f32 %v3351, %v3439
    %s3448 = sld [smem:[#allocation8 + $0x44]]
    %v3449 = vstv %s3448
    %v3450 = vmul.f32 %v3449, %v2271
    %v3451 = vmul.f32 %v3449, %v2272
    %v3452 = vmul.f32 %v3449, %v2273
    %v3453 = vmul.f32 %v3449, %v2274
    %v3458 = vrot.slane %v3450, 1
    %v3459 = vrot.slane %v3451, 1
    %v3460 = vsel %vm359, %v3458, %v3459
    %v3461 = vrot.slane %v3452, 1
    %v3462 = vrot.slane %v3453, 1
    %v3463 = vsel %vm359, %v3461, %v3462
    %3464 = vrot.lane.b32.xlu0 %v3460, 126
    %v3465 = vpop.permute.xlu0 %3464
    %3466 = vrot.lane.b32.xlu0 %v3459, 126
    %v3467 = vpop.permute.xlu0 %3466
    %3468 = vrot.lane.b32.xlu0 %v3463, 126
    %v3469 = vpop.permute.xlu0 %3468
    %3470 = vrot.lane.b32.xlu0 %v3462, 126
    %v3471 = vpop.permute.xlu0 %3470
    %v3476 = vadd.f32 %v3380, %v3465
    %v3477 = vadd.f32 %v3381, %v3467
    %v3478 = vadd.f32 %v3382, %v3469
    %v3479 = vadd.f32 %v3383, %v3471
    %s3480 = sld [smem:[#allocation8 + $0xf]]
    %v3481 = vstv %s3480
    %v3482 = vmul.f32 %v3481, %v2271
    %v3483 = vmul.f32 %v3481, %v2272
    %v3484 = vmul.f32 %v3481, %v2273
    %v3485 = vmul.f32 %v3481, %v2274
    %v3490 = vrot.slane %v3482, 2
    %v3491 = vrot.slane %v3483, 2
    %v3492 = vsel %vm624, %v3490, %v3491
    %v3493 = vrot.slane %v3484, 2
    %v3494 = vrot.slane %v3485, 2
    %v3495 = vsel %vm624, %v3493, %v3494
    %v3500 = vadd.f32 %v3412, %v3492
    %v3501 = vadd.f32 %v3413, %v3491
    %v3502 = vadd.f32 %v3414, %v3495
    %v3503 = vadd.f32 %v3415, %v3494
    %s3504 = sld [smem:[#allocation8 + $0x2a]]
    %v3505 = vstv %s3504
    %v3506 = vmul.f32 %v3505, %v2271
    %v3507 = vmul.f32 %v3505, %v2272
    %v3508 = vmul.f32 %v3505, %v2273
    %v3509 = vmul.f32 %v3505, %v2274
    %v3514 = vrot.slane %v3506, 2
    %v3515 = vrot.slane %v3507, 2
    %v3516 = vsel %vm624, %v3514, %v3515
    %v3517 = vrot.slane %v3508, 2
    %v3518 = vrot.slane %v3509, 2
    %v3519 = vsel %vm624, %v3517, %v3518
    %v3524 = vadd.f32 %v3444, %v3516
    %v3525 = vadd.f32 %v3445, %v3515
    %v3526 = vadd.f32 %v3446, %v3519
    %v3527 = vadd.f32 %v3447, %v3518
    %s3528 = sld [smem:[#allocation8 + $0x45]]
    %v3529 = vstv %s3528
    %v3530 = vmul.f32 %v3529, %v2271
    %v3531 = vmul.f32 %v3529, %v2272
    %v3532 = vmul.f32 %v3529, %v2273
    %v3533 = vmul.f32 %v3529, %v2274
    %v3538 = vrot.slane %v3530, 2
    %v3539 = vrot.slane %v3531, 2
    %v3540 = vsel %vm624, %v3538, %v3539
    %v3541 = vrot.slane %v3532, 2
    %v3542 = vrot.slane %v3533, 2
    %v3543 = vsel %vm624, %v3541, %v3542
    %v3548 = vadd.f32 %v3476, %v3540
    %v3549 = vadd.f32 %v3477, %v3539
    %v3550 = vadd.f32 %v3478, %v3543
    %v3551 = vadd.f32 %v3479, %v3542
    %s3552 = sld [smem:[#allocation8 + $0x10]]
    %v3553 = vstv %s3552
    %v3554 = vmul.f32 %v3553, %v2271
    %v3555 = vmul.f32 %v3553, %v2272
    %v3556 = vmul.f32 %v3553, %v2273
    %v3557 = vmul.f32 %v3553, %v2274
    %v3562 = vrot.slane %v3554, 2
    %v3563 = vrot.slane %v3555, 2
    %v3564 = vsel %vm624, %v3562, %v3563
    %v3565 = vrot.slane %v3556, 2
    %v3566 = vrot.slane %v3557, 2
    %v3567 = vsel %vm624, %v3565, %v3566
    %3568 = vrot.lane.b32.xlu0 %v3564, 127
    %v3569 = vpop.permute.xlu0 %3568
    %3570 = vrot.lane.b32.xlu0 %v3563, 127
    %v3571 = vpop.permute.xlu0 %3570
    %3572 = vrot.lane.b32.xlu0 %v3567, 127
    %v3573 = vpop.permute.xlu0 %3572
    %3574 = vrot.lane.b32.xlu0 %v3566, 127
    %v3575 = vpop.permute.xlu0 %3574
    %v3580 = vadd.f32 %v3500, %v3569
    %v3581 = vadd.f32 %v3501, %v3571
    %v3582 = vadd.f32 %v3502, %v3573
    %v3583 = vadd.f32 %v3503, %v3575
    %s3584 = sld [smem:[#allocation8 + $0x2b]]
    %v3585 = vstv %s3584
    %v3586 = vmul.f32 %v3585, %v2271
    %v3587 = vmul.f32 %v3585, %v2272
    %v3588 = vmul.f32 %v3585, %v2273
    %v3589 = vmul.f32 %v3585, %v2274
    %v3594 = vrot.slane %v3586, 2
    %v3595 = vrot.slane %v3587, 2
    %v3596 = vsel %vm624, %v3594, %v3595
    %v3597 = vrot.slane %v3588, 2
    %v3598 = vrot.slane %v3589, 2
    %v3599 = vsel %vm624, %v3597, %v3598
    %3600 = vrot.lane.b32.xlu0 %v3596, 127
    %v3601 = vpop.permute.xlu0 %3600
    %3602 = vrot.lane.b32.xlu0 %v3595, 127
    %v3603 = vpop.permute.xlu0 %3602
    %3604 = vrot.lane.b32.xlu0 %v3599, 127
    %v3605 = vpop.permute.xlu0 %3604
    %3606 = vrot.lane.b32.xlu0 %v3598, 127
    %v3607 = vpop.permute.xlu0 %3606
    %v3612 = vadd.f32 %v3524, %v3601
    %v3613 = vadd.f32 %v3525, %v3603
    %v3614 = vadd.f32 %v3526, %v3605
    %v3615 = vadd.f32 %v3527, %v3607
    %s3616 = sld [smem:[#allocation8 + $0x46]]
    %v3617 = vstv %s3616
    %v3618 = vmul.f32 %v3617, %v2271
    %v3619 = vmul.f32 %v3617, %v2272
    %v3620 = vmul.f32 %v3617, %v2273
    %v3621 = vmul.f32 %v3617, %v2274
    %v3626 = vrot.slane %v3618, 2
    %v3627 = vrot.slane %v3619, 2
    %v3628 = vsel %vm624, %v3626, %v3627
    %v3629 = vrot.slane %v3620, 2
    %v3630 = vrot.slane %v3621, 2
    %v3631 = vsel %vm624, %v3629, %v3630
    %3632 = vrot.lane.b32.xlu0 %v3628, 127
    %v3633 = vpop.permute.xlu0 %3632
    %3634 = vrot.lane.b32.xlu0 %v3627, 127
    %v3635 = vpop.permute.xlu0 %3634
    %3636 = vrot.lane.b32.xlu0 %v3631, 127
    %v3637 = vpop.permute.xlu0 %3636
    %3638 = vrot.lane.b32.xlu0 %v3630, 127
    %v3639 = vpop.permute.xlu0 %3638
    %v3644 = vadd.f32 %v3548, %v3633
    %v3645 = vadd.f32 %v3549, %v3635
    %v3646 = vadd.f32 %v3550, %v3637
    %v3647 = vadd.f32 %v3551, %v3639
    %s3648 = sld [smem:[#allocation8 + $0x11]]
    %v3649 = vstv %s3648
    %v3650 = vmul.f32 %v3649, %v2271
    %v3651 = vmul.f32 %v3649, %v2272
    %v3652 = vmul.f32 %v3649, %v2273
    %v3653 = vmul.f32 %v3649, %v2274
    %v3658 = vrot.slane %v3650, 2
    %v3659 = vrot.slane %v3651, 2
    %v3660 = vsel %vm624, %v3658, %v3659
    %v3661 = vrot.slane %v3652, 2
    %v3662 = vrot.slane %v3653, 2
    %v3663 = vsel %vm624, %v3661, %v3662
    %3664 = vrot.lane.b32.xlu0 %v3660, 126
    %v3665 = vpop.permute.xlu0 %3664
    %3666 = vrot.lane.b32.xlu0 %v3659, 126
    %v3667 = vpop.permute.xlu0 %3666
    %3668 = vrot.lane.b32.xlu0 %v3663, 126
    %v3669 = vpop.permute.xlu0 %3668
    %3670 = vrot.lane.b32.xlu0 %v3662, 126
    %v3671 = vpop.permute.xlu0 %3670
    %v3676 = vadd.f32 %v3580, %v3665
    %v3677 = vadd.f32 %v3581, %v3667
    %v3678 = vadd.f32 %v3582, %v3669
    %v3679 = vadd.f32 %v3583, %v3671
    %s3680 = sld [smem:[#allocation8 + $0x2c]]
    %v3681 = vstv %s3680
    %v3682 = vmul.f32 %v3681, %v2271
    %v3683 = vmul.f32 %v3681, %v2272
    %v3684 = vmul.f32 %v3681, %v2273
    %v3685 = vmul.f32 %v3681, %v2274
    %v3690 = vrot.slane %v3682, 2
    %v3691 = vrot.slane %v3683, 2
    %v3692 = vsel %vm624, %v3690, %v3691
    %v3693 = vrot.slane %v3684, 2
    %v3694 = vrot.slane %v3685, 2
    %v3695 = vsel %vm624, %v3693, %v3694
    %3696 = vrot.lane.b32.xlu0 %v3692, 126
    %v3697 = vpop.permute.xlu0 %3696
    %3698 = vrot.lane.b32.xlu0 %v3691, 126
    %v3699 = vpop.permute.xlu0 %3698
    %3700 = vrot.lane.b32.xlu0 %v3695, 126
    %v3701 = vpop.permute.xlu0 %3700
    %3702 = vrot.lane.b32.xlu0 %v3694, 126
    %v3703 = vpop.permute.xlu0 %3702
    %v3708 = vadd.f32 %v3612, %v3697
    %v3709 = vadd.f32 %v3613, %v3699
    %v3710 = vadd.f32 %v3614, %v3701
    %v3711 = vadd.f32 %v3615, %v3703
    %s3712 = sld [smem:[#allocation8 + $0x47]]
    %v3713 = vstv %s3712
    %v3714 = vmul.f32 %v3713, %v2271
    %v3715 = vmul.f32 %v3713, %v2272
    %v3716 = vmul.f32 %v3713, %v2273
    %v3717 = vmul.f32 %v3713, %v2274
    %v3722 = vrot.slane %v3714, 2
    %v3723 = vrot.slane %v3715, 2
    %v3724 = vsel %vm624, %v3722, %v3723
    %v3725 = vrot.slane %v3716, 2
    %v3726 = vrot.slane %v3717, 2
    %v3727 = vsel %vm624, %v3725, %v3726
    %3728 = vrot.lane.b32.xlu0 %v3724, 126
    %v3729 = vpop.permute.xlu0 %3728
    %3730 = vrot.lane.b32.xlu0 %v3723, 126
    %v3731 = vpop.permute.xlu0 %3730
    %3732 = vrot.lane.b32.xlu0 %v3727, 126
    %v3733 = vpop.permute.xlu0 %3732
    %3734 = vrot.lane.b32.xlu0 %v3726, 126
    %v3735 = vpop.permute.xlu0 %3734
    %v3740 = vadd.f32 %v3644, %v3729
    %v3741 = vadd.f32 %v3645, %v3731
    %v3742 = vadd.f32 %v3646, %v3733
    %v3743 = vadd.f32 %v3647, %v3735
    %s3744 = sld [smem:[#allocation8 + $0x12]]
    %v3745 = vstv %s3744
    %v3746 = vmul.f32 %v3745, %v2303
    %v3747 = vmul.f32 %v3745, %v2304
    %v3748 = vmul.f32 %v3745, %v2305
    %v3749 = vmul.f32 %v3745, %v2306
    %v3750 = vadd.f32 %v3676, %v3746
    %v3751 = vadd.f32 %v3677, %v3747
    %v3752 = vadd.f32 %v3678, %v3748
    %v3753 = vadd.f32 %v3679, %v3749
    %s3754 = sld [smem:[#allocation8 + $0x2d]]
    %v3755 = vstv %s3754
    %v3756 = vmul.f32 %v3755, %v2303
    %v3757 = vmul.f32 %v3755, %v2304
    %v3758 = vmul.f32 %v3755, %v2305
    %v3759 = vmul.f32 %v3755, %v2306
    %v3760 = vadd.f32 %v3708, %v3756
    %v3761 = vadd.f32 %v3709, %v3757
    %v3762 = vadd.f32 %v3710, %v3758
    %v3763 = vadd.f32 %v3711, %v3759
    %s3764 = sld [smem:[#allocation8 + $0x48]]
    %v3765 = vstv %s3764
    %v3766 = vmul.f32 %v3765, %v2303
    %v3767 = vmul.f32 %v3765, %v2304
    %v3768 = vmul.f32 %v3765, %v2305
    %v3769 = vmul.f32 %v3765, %v2306
    %v3770 = vadd.f32 %v3740, %v3766
    %v3771 = vadd.f32 %v3741, %v3767
    %v3772 = vadd.f32 %v3742, %v3768
    %v3773 = vadd.f32 %v3743, %v3769
    %s3774 = sld [smem:[#allocation8 + $0x13]]
    %v3775 = vstv %s3774
    %v3776 = vmul.f32 %v3775, %v2303
    %v3777 = vmul.f32 %v3775, %v2304
    %v3778 = vmul.f32 %v3775, %v2305
    %v3779 = vmul.f32 %v3775, %v2306
    %3784 = vrot.lane.b32.xlu0 %v3776, 127
    %v3785 = vpop.permute.xlu0 %3784
    %3786 = vrot.lane.b32.xlu0 %v3777, 127
    %v3787 = vpop.permute.xlu0 %3786
    %3788 = vrot.lane.b32.xlu0 %v3778, 127
    %v3789 = vpop.permute.xlu0 %3788
    %3790 = vrot.lane.b32.xlu0 %v3779, 127
    %v3791 = vpop.permute.xlu0 %3790
    %v3796 = vadd.f32 %v3750, %v3785
    %v3797 = vadd.f32 %v3751, %v3787
    %v3798 = vadd.f32 %v3752, %v3789
    %v3799 = vadd.f32 %v3753, %v3791
    %s3800 = sld [smem:[#allocation8 + $0x2e]]
    %v3801 = vstv %s3800
    %v3802 = vmul.f32 %v3801, %v2303
    %v3803 = vmul.f32 %v3801, %v2304
    %v3804 = vmul.f32 %v3801, %v2305
    %v3805 = vmul.f32 %v3801, %v2306
    %3810 = vrot.lane.b32.xlu0 %v3802, 127
    %v3811 = vpop.permute.xlu0 %3810
    %3812 = vrot.lane.b32.xlu0 %v3803, 127
    %v3813 = vpop.permute.xlu0 %3812
    %3814 = vrot.lane.b32.xlu0 %v3804, 127
    %v3815 = vpop.permute.xlu0 %3814
    %3816 = vrot.lane.b32.xlu0 %v3805, 127
    %v3817 = vpop.permute.xlu0 %3816
    %v3822 = vadd.f32 %v3760, %v3811
    %v3823 = vadd.f32 %v3761, %v3813
    %v3824 = vadd.f32 %v3762, %v3815
    %v3825 = vadd.f32 %v3763, %v3817
    %s3826 = sld [smem:[#allocation8 + $0x49]]
    %v3827 = vstv %s3826
    %v3828 = vmul.f32 %v3827, %v2303
    %v3829 = vmul.f32 %v3827, %v2304
    %v3830 = vmul.f32 %v3827, %v2305
    %v3831 = vmul.f32 %v3827, %v2306
    %3836 = vrot.lane.b32.xlu0 %v3828, 127
    %v3837 = vpop.permute.xlu0 %3836
    %3838 = vrot.lane.b32.xlu0 %v3829, 127
    %v3839 = vpop.permute.xlu0 %3838
    %3840 = vrot.lane.b32.xlu0 %v3830, 127
    %v3841 = vpop.permute.xlu0 %3840
    %3842 = vrot.lane.b32.xlu0 %v3831, 127
    %v3843 = vpop.permute.xlu0 %3842
    %v3848 = vadd.f32 %v3770, %v3837
    %v3849 = vadd.f32 %v3771, %v3839
    %v3850 = vadd.f32 %v3772, %v3841
    %v3851 = vadd.f32 %v3773, %v3843
    %s3852 = sld [smem:[#allocation8 + $0x14]]
    %v3853 = vstv %s3852
    %v3854 = vmul.f32 %v3853, %v2303
    %v3855 = vmul.f32 %v3853, %v2304
    %v3856 = vmul.f32 %v3853, %v2305
    %v3857 = vmul.f32 %v3853, %v2306
    %3862 = vrot.lane.b32.xlu0 %v3854, 126
    %v3863 = vpop.permute.xlu0 %3862
    %3864 = vrot.lane.b32.xlu0 %v3855, 126
    %v3865 = vpop.permute.xlu0 %3864
    %3866 = vrot.lane.b32.xlu0 %v3856, 126
    %v3867 = vpop.permute.xlu0 %3866
    %3868 = vrot.lane.b32.xlu0 %v3857, 126
    %v3869 = vpop.permute.xlu0 %3868
    %v3874 = vadd.f32 %v3796, %v3863
    %v3875 = vadd.f32 %v3797, %v3865
    %v3876 = vadd.f32 %v3798, %v3867
    %v3877 = vadd.f32 %v3799, %v3869
    %s3878 = sld [smem:[#allocation8 + $0x2f]]
    %v3879 = vstv %s3878
    %v3880 = vmul.f32 %v3879, %v2303
    %v3881 = vmul.f32 %v3879, %v2304
    %v3882 = vmul.f32 %v3879, %v2305
    %v3883 = vmul.f32 %v3879, %v2306
    %3888 = vrot.lane.b32.xlu0 %v3880, 126
    %v3889 = vpop.permute.xlu0 %3888
    %3890 = vrot.lane.b32.xlu0 %v3881, 126
    %v3891 = vpop.permute.xlu0 %3890
    %3892 = vrot.lane.b32.xlu0 %v3882, 126
    %v3893 = vpop.permute.xlu0 %3892
    %3894 = vrot.lane.b32.xlu0 %v3883, 126
    %v3895 = vpop.permute.xlu0 %3894
    %v3900 = vadd.f32 %v3822, %v3889
    %v3901 = vadd.f32 %v3823, %v3891
    %v3902 = vadd.f32 %v3824, %v3893
    %v3903 = vadd.f32 %v3825, %v3895
    %s3904 = sld [smem:[#allocation8 + $0x4a]]
    %v3905 = vstv %s3904
    %v3906 = vmul.f32 %v3905, %v2303
    %v3907 = vmul.f32 %v3905, %v2304
    %v3908 = vmul.f32 %v3905, %v2305
    %v3909 = vmul.f32 %v3905, %v2306
    %3914 = vrot.lane.b32.xlu0 %v3906, 126
    %v3915 = vpop.permute.xlu0 %3914
    %3916 = vrot.lane.b32.xlu0 %v3907, 126
    %v3917 = vpop.permute.xlu0 %3916
    %3918 = vrot.lane.b32.xlu0 %v3908, 126
    %v3919 = vpop.permute.xlu0 %3918
    %3920 = vrot.lane.b32.xlu0 %v3909, 126
    %v3921 = vpop.permute.xlu0 %3920
    %v3926 = vadd.f32 %v3848, %v3915
    %v3927 = vadd.f32 %v3849, %v3917
    %v3928 = vadd.f32 %v3850, %v3919
    %v3929 = vadd.f32 %v3851, %v3921
    %s3930 = sld [smem:[#allocation8 + $0x15]]
    %v3931 = vstv %s3930
    %v3932 = vmul.f32 %v3931, %v2303
    %v3933 = vmul.f32 %v3931, %v2304
    %v3934 = vmul.f32 %v3931, %v2305
    %v3935 = vmul.f32 %v3931, %v2306
    %v3940 = vrot.slane %v3932, 1
    %v3941 = vrot.slane %v3933, 1
    %v3942 = vsel %vm359, %v3940, %v3941
    %v3943 = vrot.slane %v3934, 1
    %v3944 = vrot.slane %v3935, 1
    %v3945 = vsel %vm359, %v3943, %v3944
    %v3950 = vadd.f32 %v3874, %v3942
    %v3951 = vadd.f32 %v3875, %v3941
    %v3952 = vadd.f32 %v3876, %v3945
    %v3953 = vadd.f32 %v3877, %v3944
    %s3954 = sld [smem:[#allocation8 + $0x30]]
    %v3955 = vstv %s3954
    %v3956 = vmul.f32 %v3955, %v2303
    %v3957 = vmul.f32 %v3955, %v2304
    %v3958 = vmul.f32 %v3955, %v2305
    %v3959 = vmul.f32 %v3955, %v2306
    %v3964 = vrot.slane %v3956, 1
    %v3965 = vrot.slane %v3957, 1
    %v3966 = vsel %vm359, %v3964, %v3965
    %v3967 = vrot.slane %v3958, 1
    %v3968 = vrot.slane %v3959, 1
    %v3969 = vsel %vm359, %v3967, %v3968
    %v3974 = vadd.f32 %v3900, %v3966
    %v3975 = vadd.f32 %v3901, %v3965
    %v3976 = vadd.f32 %v3902, %v3969
    %v3977 = vadd.f32 %v3903, %v3968
    %s3978 = sld [smem:[#allocation8 + $0x4b]]
    %v3979 = vstv %s3978
    %v3980 = vmul.f32 %v3979, %v2303
    %v3981 = vmul.f32 %v3979, %v2304
    %v3982 = vmul.f32 %v3979, %v2305
    %v3983 = vmul.f32 %v3979, %v2306
    %v3988 = vrot.slane %v3980, 1
    %v3989 = vrot.slane %v3981, 1
    %v3990 = vsel %vm359, %v3988, %v3989
    %v3991 = vrot.slane %v3982, 1
    %v3992 = vrot.slane %v3983, 1
    %v3993 = vsel %vm359, %v3991, %v3992
    %v3998 = vadd.f32 %v3926, %v3990
    %v3999 = vadd.f32 %v3927, %v3989
    %v4000 = vadd.f32 %v3928, %v3993
    %v4001 = vadd.f32 %v3929, %v3992
    %s4002 = sld [smem:[#allocation8 + $0x16]]
    %v4003 = vstv %s4002
    %v4004 = vmul.f32 %v4003, %v2303
    %v4005 = vmul.f32 %v4003, %v2304
    %v4006 = vmul.f32 %v4003, %v2305
    %v4007 = vmul.f32 %v4003, %v2306
    %v4012 = vrot.slane %v4004, 1
    %v4013 = vrot.slane %v4005, 1
    %v4014 = vsel %vm359, %v4012, %v4013
    %v4015 = vrot.slane %v4006, 1
    %v4016 = vrot.slane %v4007, 1
    %v4017 = vsel %vm359, %v4015, %v4016
    %4018 = vrot.lane.b32.xlu0 %v4014, 127
    %v4019 = vpop.permute.xlu0 %4018
    %4020 = vrot.lane.b32.xlu0 %v4013, 127
    %v4021 = vpop.permute.xlu0 %4020
    %4022 = vrot.lane.b32.xlu0 %v4017, 127
    %v4023 = vpop.permute.xlu0 %4022
    %4024 = vrot.lane.b32.xlu0 %v4016, 127
    %v4025 = vpop.permute.xlu0 %4024
    %v4030 = vadd.f32 %v3950, %v4019
    %v4031 = vadd.f32 %v3951, %v4021
    %v4032 = vadd.f32 %v3952, %v4023
    %v4033 = vadd.f32 %v3953, %v4025
    %s4034 = sld [smem:[#allocation8 + $0x31]]
    %v4035 = vstv %s4034
    %v4036 = vmul.f32 %v4035, %v2303
    %v4037 = vmul.f32 %v4035, %v2304
    %v4038 = vmul.f32 %v4035, %v2305
    %v4039 = vmul.f32 %v4035, %v2306
    %v4044 = vrot.slane %v4036, 1
    %v4045 = vrot.slane %v4037, 1
    %v4046 = vsel %vm359, %v4044, %v4045
    %v4047 = vrot.slane %v4038, 1
    %v4048 = vrot.slane %v4039, 1
    %v4049 = vsel %vm359, %v4047, %v4048
    %4050 = vrot.lane.b32.xlu0 %v4046, 127
    %v4051 = vpop.permute.xlu0 %4050
    %4052 = vrot.lane.b32.xlu0 %v4045, 127
    %v4053 = vpop.permute.xlu0 %4052
    %4054 = vrot.lane.b32.xlu0 %v4049, 127
    %v4055 = vpop.permute.xlu0 %4054
    %4056 = vrot.lane.b32.xlu0 %v4048, 127
    %v4057 = vpop.permute.xlu0 %4056
    %v4062 = vadd.f32 %v3974, %v4051
    %v4063 = vadd.f32 %v3975, %v4053
    %v4064 = vadd.f32 %v3976, %v4055
    %v4065 = vadd.f32 %v3977, %v4057
    %s4066 = sld [smem:[#allocation8 + $0x4c]]
    %v4067 = vstv %s4066
    %v4068 = vmul.f32 %v4067, %v2303
    %v4069 = vmul.f32 %v4067, %v2304
    %v4070 = vmul.f32 %v4067, %v2305
    %v4071 = vmul.f32 %v4067, %v2306
    %v4076 = vrot.slane %v4068, 1
    %v4077 = vrot.slane %v4069, 1
    %v4078 = vsel %vm359, %v4076, %v4077
    %v4079 = vrot.slane %v4070, 1
    %v4080 = vrot.slane %v4071, 1
    %v4081 = vsel %vm359, %v4079, %v4080
    %4082 = vrot.lane.b32.xlu0 %v4078, 127
    %v4083 = vpop.permute.xlu0 %4082
    %4084 = vrot.lane.b32.xlu0 %v4077, 127
    %v4085 = vpop.permute.xlu0 %4084
    %4086 = vrot.lane.b32.xlu0 %v4081, 127
    %v4087 = vpop.permute.xlu0 %4086
    %4088 = vrot.lane.b32.xlu0 %v4080, 127
    %v4089 = vpop.permute.xlu0 %4088
    %v4094 = vadd.f32 %v3998, %v4083
    %v4095 = vadd.f32 %v3999, %v4085
    %v4096 = vadd.f32 %v4000, %v4087
    %v4097 = vadd.f32 %v4001, %v4089
    %s4098 = sld [smem:[#allocation8 + $0x17]]
    %v4099 = vstv %s4098
    %v4100 = vmul.f32 %v4099, %v2303
    %v4101 = vmul.f32 %v4099, %v2304
    %v4102 = vmul.f32 %v4099, %v2305
    %v4103 = vmul.f32 %v4099, %v2306
    %v4108 = vrot.slane %v4100, 1
    %v4109 = vrot.slane %v4101, 1
    %v4110 = vsel %vm359, %v4108, %v4109
    %v4111 = vrot.slane %v4102, 1
    %v4112 = vrot.slane %v4103, 1
    %v4113 = vsel %vm359, %v4111, %v4112
    %4114 = vrot.lane.b32.xlu0 %v4110, 126
    %v4115 = vpop.permute.xlu0 %4114
    %4116 = vrot.lane.b32.xlu0 %v4109, 126
    %v4117 = vpop.permute.xlu0 %4116
    %4118 = vrot.lane.b32.xlu0 %v4113, 126
    %v4119 = vpop.permute.xlu0 %4118
    %4120 = vrot.lane.b32.xlu0 %v4112, 126
    %v4121 = vpop.permute.xlu0 %4120
    %v4126 = vadd.f32 %v4030, %v4115
    %v4127 = vadd.f32 %v4031, %v4117
    %v4128 = vadd.f32 %v4032, %v4119
    %v4129 = vadd.f32 %v4033, %v4121
    %s4130 = sld [smem:[#allocation8 + $0x32]]
    %v4131 = vstv %s4130
    %v4132 = vmul.f32 %v4131, %v2303
    %v4133 = vmul.f32 %v4131, %v2304
    %v4134 = vmul.f32 %v4131, %v2305
    %v4135 = vmul.f32 %v4131, %v2306
    %v4140 = vrot.slane %v4132, 1
    %v4141 = vrot.slane %v4133, 1
    %v4142 = vsel %vm359, %v4140, %v4141
    %v4143 = vrot.slane %v4134, 1
    %v4144 = vrot.slane %v4135, 1
    %v4145 = vsel %vm359, %v4143, %v4144
    %4146 = vrot.lane.b32.xlu0 %v4142, 126
    %v4147 = vpop.permute.xlu0 %4146
    %4148 = vrot.lane.b32.xlu0 %v4141, 126
    %v4149 = vpop.permute.xlu0 %4148
    %4150 = vrot.lane.b32.xlu0 %v4145, 126
    %v4151 = vpop.permute.xlu0 %4150
    %4152 = vrot.lane.b32.xlu0 %v4144, 126
    %v4153 = vpop.permute.xlu0 %4152
    %v4158 = vadd.f32 %v4062, %v4147
    %v4159 = vadd.f32 %v4063, %v4149
    %v4160 = vadd.f32 %v4064, %v4151
    %v4161 = vadd.f32 %v4065, %v4153
    %s4162 = sld [smem:[#allocation8 + $0x4d]]
    %v4163 = vstv %s4162
    %v4164 = vmul.f32 %v4163, %v2303
    %v4165 = vmul.f32 %v4163, %v2304
    %v4166 = vmul.f32 %v4163, %v2305
    %v4167 = vmul.f32 %v4163, %v2306
    %v4172 = vrot.slane %v4164, 1
    %v4173 = vrot.slane %v4165, 1
    %v4174 = vsel %vm359, %v4172, %v4173
    %v4175 = vrot.slane %v4166, 1
    %v4176 = vrot.slane %v4167, 1
    %v4177 = vsel %vm359, %v4175, %v4176
    %4178 = vrot.lane.b32.xlu0 %v4174, 126
    %v4179 = vpop.permute.xlu0 %4178
    %4180 = vrot.lane.b32.xlu0 %v4173, 126
    %v4181 = vpop.permute.xlu0 %4180
    %4182 = vrot.lane.b32.xlu0 %v4177, 126
    %v4183 = vpop.permute.xlu0 %4182
    %4184 = vrot.lane.b32.xlu0 %v4176, 126
    %v4185 = vpop.permute.xlu0 %4184
    %v4190 = vadd.f32 %v4094, %v4179
    %v4191 = vadd.f32 %v4095, %v4181
    %v4192 = vadd.f32 %v4096, %v4183
    %v4193 = vadd.f32 %v4097, %v4185
    %s4194 = sld [smem:[#allocation8 + $0x18]]
    %v4195 = vstv %s4194
    %v4196 = vmul.f32 %v4195, %v2303
    %v4197 = vmul.f32 %v4195, %v2304
    %v4198 = vmul.f32 %v4195, %v2305
    %v4199 = vmul.f32 %v4195, %v2306
    %v4204 = vrot.slane %v4196, 2
    %v4205 = vrot.slane %v4197, 2
    %v4206 = vsel %vm624, %v4204, %v4205
    %v4207 = vrot.slane %v4198, 2
    %v4208 = vrot.slane %v4199, 2
    %v4209 = vsel %vm624, %v4207, %v4208
    %v4214 = vadd.f32 %v4126, %v4206
    %v4215 = vadd.f32 %v4127, %v4205
    %v4216 = vadd.f32 %v4128, %v4209
    %v4217 = vadd.f32 %v4129, %v4208
    %s4218 = sld [smem:[#allocation8 + $0x33]]
    %v4219 = vstv %s4218
    %v4220 = vmul.f32 %v4219, %v2303
    %v4221 = vmul.f32 %v4219, %v2304
    %v4222 = vmul.f32 %v4219, %v2305
    %v4223 = vmul.f32 %v4219, %v2306
    %v4228 = vrot.slane %v4220, 2
    %v4229 = vrot.slane %v4221, 2
    %v4230 = vsel %vm624, %v4228, %v4229
    %v4231 = vrot.slane %v4222, 2
    %v4232 = vrot.slane %v4223, 2
    %v4233 = vsel %vm624, %v4231, %v4232
    %v4238 = vadd.f32 %v4158, %v4230
    %v4239 = vadd.f32 %v4159, %v4229
    %v4240 = vadd.f32 %v4160, %v4233
    %v4241 = vadd.f32 %v4161, %v4232
    %s4242 = sld [smem:[#allocation8 + $0x4e]]
    %v4243 = vstv %s4242
    %v4244 = vmul.f32 %v4243, %v2303
    %v4245 = vmul.f32 %v4243, %v2304
    %v4246 = vmul.f32 %v4243, %v2305
    %v4247 = vmul.f32 %v4243, %v2306
    %v4252 = vrot.slane %v4244, 2
    %v4253 = vrot.slane %v4245, 2
    %v4254 = vsel %vm624, %v4252, %v4253
    %v4255 = vrot.slane %v4246, 2
    %v4256 = vrot.slane %v4247, 2
    %v4257 = vsel %vm624, %v4255, %v4256
    %v4262 = vadd.f32 %v4190, %v4254
    %v4263 = vadd.f32 %v4191, %v4253
    %v4264 = vadd.f32 %v4192, %v4257
    %v4265 = vadd.f32 %v4193, %v4256
    %s4266 = sld [smem:[#allocation8 + $0x19]]
    %v4267 = vstv %s4266
    %v4268 = vmul.f32 %v4267, %v2303
    %v4269 = vmul.f32 %v4267, %v2304
    %v4270 = vmul.f32 %v4267, %v2305
    %v4271 = vmul.f32 %v4267, %v2306
    %v4276 = vrot.slane %v4268, 2
    %v4277 = vrot.slane %v4269, 2
    %v4278 = vsel %vm624, %v4276, %v4277
    %v4279 = vrot.slane %v4270, 2
    %v4280 = vrot.slane %v4271, 2
    %v4281 = vsel %vm624, %v4279, %v4280
    %4282 = vrot.lane.b32.xlu0 %v4278, 127
    %v4283 = vpop.permute.xlu0 %4282
    %4284 = vrot.lane.b32.xlu0 %v4277, 127
    %v4285 = vpop.permute.xlu0 %4284
    %4286 = vrot.lane.b32.xlu0 %v4281, 127
    %v4287 = vpop.permute.xlu0 %4286
    %4288 = vrot.lane.b32.xlu0 %v4280, 127
    %v4289 = vpop.permute.xlu0 %4288
    %v4294 = vadd.f32 %v4214, %v4283
    %v4295 = vadd.f32 %v4215, %v4285
    %v4296 = vadd.f32 %v4216, %v4287
    %v4297 = vadd.f32 %v4217, %v4289
    %s4298 = sld [smem:[#allocation8 + $0x34]]
    %v4299 = vstv %s4298
    %v4300 = vmul.f32 %v4299, %v2303
    %v4301 = vmul.f32 %v4299, %v2304
    %v4302 = vmul.f32 %v4299, %v2305
    %v4303 = vmul.f32 %v4299, %v2306
    %v4308 = vrot.slane %v4300, 2
    %v4309 = vrot.slane %v4301, 2
    %v4310 = vsel %vm624, %v4308, %v4309
    %v4311 = vrot.slane %v4302, 2
    %v4312 = vrot.slane %v4303, 2
    %v4313 = vsel %vm624, %v4311, %v4312
    %4314 = vrot.lane.b32.xlu0 %v4310, 127
    %v4315 = vpop.permute.xlu0 %4314
    %4316 = vrot.lane.b32.xlu0 %v4309, 127
    %v4317 = vpop.permute.xlu0 %4316
    %4318 = vrot.lane.b32.xlu0 %v4313, 127
    %v4319 = vpop.permute.xlu0 %4318
    %4320 = vrot.lane.b32.xlu0 %v4312, 127
    %v4321 = vpop.permute.xlu0 %4320
    %v4326 = vadd.f32 %v4238, %v4315
    %v4327 = vadd.f32 %v4239, %v4317
    %v4328 = vadd.f32 %v4240, %v4319
    %v4329 = vadd.f32 %v4241, %v4321
    %s4330 = sld [smem:[#allocation8 + $0x4f]]
    %v4331 = vstv %s4330
    %v4332 = vmul.f32 %v4331, %v2303
    %v4333 = vmul.f32 %v4331, %v2304
    %v4334 = vmul.f32 %v4331, %v2305
    %v4335 = vmul.f32 %v4331, %v2306
    %v4340 = vrot.slane %v4332, 2
    %v4341 = vrot.slane %v4333, 2
    %v4342 = vsel %vm624, %v4340, %v4341
    %v4343 = vrot.slane %v4334, 2
    %v4344 = vrot.slane %v4335, 2
    %v4345 = vsel %vm624, %v4343, %v4344
    %4346 = vrot.lane.b32.xlu0 %v4342, 127
    %v4347 = vpop.permute.xlu0 %4346
    %4348 = vrot.lane.b32.xlu0 %v4341, 127
    %v4349 = vpop.permute.xlu0 %4348
    %4350 = vrot.lane.b32.xlu0 %v4345, 127
    %v4351 = vpop.permute.xlu0 %4350
    %4352 = vrot.lane.b32.xlu0 %v4344, 127
    %v4353 = vpop.permute.xlu0 %4352
    %v4358 = vadd.f32 %v4262, %v4347
    %v4359 = vadd.f32 %v4263, %v4349
    %v4360 = vadd.f32 %v4264, %v4351
    %v4361 = vadd.f32 %v4265, %v4353
    %s4362 = sld [smem:[#allocation8 + $0x1a]]
    %v4363 = vstv %s4362
    %v4364 = vmul.f32 %v4363, %v2303
    %v4365 = vmul.f32 %v4363, %v2304
    %v4366 = vmul.f32 %v4363, %v2305
    %v4367 = vmul.f32 %v4363, %v2306
    %v4372 = vrot.slane %v4364, 2
    %v4373 = vrot.slane %v4365, 2
    %v4374 = vsel %vm624, %v4372, %v4373
    %v4375 = vrot.slane %v4366, 2
    %v4376 = vrot.slane %v4367, 2
    %v4377 = vsel %vm624, %v4375, %v4376
    %4378 = vrot.lane.b32.xlu0 %v4374, 126
    %v4379 = vpop.permute.xlu0 %4378
    %4380 = vrot.lane.b32.xlu0 %v4373, 126
    %v4381 = vpop.permute.xlu0 %4380
    %4382 = vrot.lane.b32.xlu0 %v4377, 126
    %v4383 = vpop.permute.xlu0 %4382
    %4384 = vrot.lane.b32.xlu0 %v4376, 126
    %v4385 = vpop.permute.xlu0 %4384
    %v4390 = vadd.f32 %v4294, %v4379
    %v4391 = vadd.f32 %v4295, %v4381
    %v4392 = vadd.f32 %v4296, %v4383
    %v4393 = vadd.f32 %v4297, %v4385
    %s4394 = sld [smem:[#allocation8 + $0x35]]
    %v4395 = vstv %s4394
    %v4396 = vmul.f32 %v4395, %v2303
    %v4397 = vmul.f32 %v4395, %v2304
    %v4398 = vmul.f32 %v4395, %v2305
    %v4399 = vmul.f32 %v4395, %v2306
    %v4404 = vrot.slane %v4396, 2
    %v4405 = vrot.slane %v4397, 2
    %v4406 = vsel %vm624, %v4404, %v4405
    %v4407 = vrot.slane %v4398, 2
    %v4408 = vrot.slane %v4399, 2
    %v4409 = vsel %vm624, %v4407, %v4408
    %4410 = vrot.lane.b32.xlu0 %v4406, 126
    %v4411 = vpop.permute.xlu0 %4410
    %4412 = vrot.lane.b32.xlu0 %v4405, 126
    %v4413 = vpop.permute.xlu0 %4412
    %4414 = vrot.lane.b32.xlu0 %v4409, 126
    %v4415 = vpop.permute.xlu0 %4414
    %4416 = vrot.lane.b32.xlu0 %v4408, 126
    %v4417 = vpop.permute.xlu0 %4416
    %v4422 = vadd.f32 %v4326, %v4411
    %v4423 = vadd.f32 %v4327, %v4413
    %v4424 = vadd.f32 %v4328, %v4415
    %v4425 = vadd.f32 %v4329, %v4417
    %s4426 = sld [smem:[#allocation8 + $0x50]]
    %v4427 = vstv %s4426
    %v4428 = vmul.f32 %v4427, %v2303
    %v4429 = vmul.f32 %v4427, %v2304
    %v4430 = vmul.f32 %v4427, %v2305
    %v4431 = vmul.f32 %v4427, %v2306
    %v4436 = vrot.slane %v4428, 2
    %v4437 = vrot.slane %v4429, 2
    %v4438 = vsel %vm624, %v4436, %v4437
    %v4439 = vrot.slane %v4430, 2
    %v4440 = vrot.slane %v4431, 2
    %v4441 = vsel %vm624, %v4439, %v4440
    %4442 = vrot.lane.b32.xlu0 %v4438, 126
    %v4443 = vpop.permute.xlu0 %4442
    %4444 = vrot.lane.b32.xlu0 %v4437, 126
    %v4445 = vpop.permute.xlu0 %4444
    %4446 = vrot.lane.b32.xlu0 %v4441, 126
    %v4447 = vpop.permute.xlu0 %4446
    %4448 = vrot.lane.b32.xlu0 %v4440, 126
    %v4449 = vpop.permute.xlu0 %4448
    %v4454 = vadd.f32 %v4358, %v4443
    %v4455 = vadd.f32 %v4359, %v4445
    %v4456 = vadd.f32 %v4360, %v4447
    %v4457 = vadd.f32 %v4361, %v4449
    %s4458 = sld [smem:[#allocation12]]
    %v4459 = vstv %s4458
    %v4460 = vadd.f32 %v4459, 0.0
    %s4461 = sld [smem:[#allocation12 + $0x1]]
    %v4462 = vstv %s4461
    %v4463 = vadd.f32 %v4462, 0.0
    %s4464 = sld [smem:[#allocation12 + $0x2]]
    %v4465 = vstv %s4464
    %v4466 = vadd.f32 %v4465, 0.0
    %s4467 = sld [smem:[#allocation11]]
    %v4468 = vstv %s4467
    %v4469 = vmul.f32 %v4468, %v4390
    %v4470 = vmul.f32 %v4468, %v4391
    %v4471 = vmul.f32 %v4468, %v4392
    %v4472 = vmul.f32 %v4468, %v4393
    %v4473 = vadd.f32 %v4460, %v4469
    %v4474 = vadd.f32 %v4460, %v4470
    %v4475 = vadd.f32 %v4460, %v4471
    %v4476 = vadd.f32 %v4460, %v4472
    %s4477 = sld [smem:[#allocation11 + $0x1b]]
    %v4478 = vstv %s4477
    %v4479 = vmul.f32 %v4478, %v4390
    %v4480 = vmul.f32 %v4478, %v4391
    %v4481 = vmul.f32 %v4478, %v4392
    %v4482 = vmul.f32 %v4478, %v4393
    %v4483 = vadd.f32 %v4463, %v4479
    %v4484 = vadd.f32 %v4463, %v4480
    %v4485 = vadd.f32 %v4463, %v4481
    %v4486 = vadd.f32 %v4463, %v4482
    %s4487 = sld [smem:[#allocation11 + $0x36]]
    %v4488 = vstv %s4487
    %v4489 = vmul.f32 %v4488, %v4390
    %v4490 = vmul.f32 %v4488, %v4391
    %v4491 = vmul.f32 %v4488, %v4392
    %v4492 = vmul.f32 %v4488, %v4393
    %v4493 = vadd.f32 %v4466, %v4489
    %v4494 = vadd.f32 %v4466, %v4490
    %v4495 = vadd.f32 %v4466, %v4491
    %v4496 = vadd.f32 %v4466, %v4492
    %s4497 = sld [smem:[#allocation11 + $0x1]]
    %v4498 = vstv %s4497
    %v4499 = vmul.f32 %v4498, %v4390
    %v4500 = vmul.f32 %v4498, %v4391
    %v4501 = vmul.f32 %v4498, %v4392
    %v4502 = vmul.f32 %v4498, %v4393
    %4507 = vrot.lane.b32.xlu0 %v4499, 127
    %v4508 = vpop.permute.xlu0 %4507
    %4509 = vrot.lane.b32.xlu0 %v4500, 127
    %v4510 = vpop.permute.xlu0 %4509
    %4511 = vrot.lane.b32.xlu0 %v4501, 127
    %v4512 = vpop.permute.xlu0 %4511
    %4513 = vrot.lane.b32.xlu0 %v4502, 127
    %v4514 = vpop.permute.xlu0 %4513
    %v4519 = vadd.f32 %v4473, %v4508
    %v4520 = vadd.f32 %v4474, %v4510
    %v4521 = vadd.f32 %v4475, %v4512
    %v4522 = vadd.f32 %v4476, %v4514
    %s4523 = sld [smem:[#allocation11 + $0x1c]]
    %v4524 = vstv %s4523
    %v4525 = vmul.f32 %v4524, %v4390
    %v4526 = vmul.f32 %v4524, %v4391
    %v4527 = vmul.f32 %v4524, %v4392
    %v4528 = vmul.f32 %v4524, %v4393
    %4533 = vrot.lane.b32.xlu0 %v4525, 127
    %v4534 = vpop.permute.xlu0 %4533
    %4535 = vrot.lane.b32.xlu0 %v4526, 127
    %v4536 = vpop.permute.xlu0 %4535
    %4537 = vrot.lane.b32.xlu0 %v4527, 127
    %v4538 = vpop.permute.xlu0 %4537
    %4539 = vrot.lane.b32.xlu0 %v4528, 127
    %v4540 = vpop.permute.xlu0 %4539
    %v4545 = vadd.f32 %v4483, %v4534
    %v4546 = vadd.f32 %v4484, %v4536
    %v4547 = vadd.f32 %v4485, %v4538
    %v4548 = vadd.f32 %v4486, %v4540
    %s4549 = sld [smem:[#allocation11 + $0x37]]
    %v4550 = vstv %s4549
    %v4551 = vmul.f32 %v4550, %v4390
    %v4552 = vmul.f32 %v4550, %v4391
    %v4553 = vmul.f32 %v4550, %v4392
    %v4554 = vmul.f32 %v4550, %v4393
    %4559 = vrot.lane.b32.xlu0 %v4551, 127
    %v4560 = vpop.permute.xlu0 %4559
    %4561 = vrot.lane.b32.xlu0 %v4552, 127
    %v4562 = vpop.permute.xlu0 %4561
    %4563 = vrot.lane.b32.xlu0 %v4553, 127
    %v4564 = vpop.permute.xlu0 %4563
    %4565 = vrot.lane.b32.xlu0 %v4554, 127
    %v4566 = vpop.permute.xlu0 %4565
    %v4571 = vadd.f32 %v4493, %v4560
    %v4572 = vadd.f32 %v4494, %v4562
    %v4573 = vadd.f32 %v4495, %v4564
    %v4574 = vadd.f32 %v4496, %v4566
    %s4575 = sld [smem:[#allocation11 + $0x2]]
    %v4576 = vstv %s4575
    %v4577 = vmul.f32 %v4576, %v4390
    %v4578 = vmul.f32 %v4576, %v4391
    %v4579 = vmul.f32 %v4576, %v4392
    %v4580 = vmul.f32 %v4576, %v4393
    %4585 = vrot.lane.b32.xlu0 %v4577, 126
    %v4586 = vpop.permute.xlu0 %4585
    %4587 = vrot.lane.b32.xlu0 %v4578, 126
    %v4588 = vpop.permute.xlu0 %4587
    %4589 = vrot.lane.b32.xlu0 %v4579, 126
    %v4590 = vpop.permute.xlu0 %4589
    %4591 = vrot.lane.b32.xlu0 %v4580, 126
    %v4592 = vpop.permute.xlu0 %4591
    %v4597 = vadd.f32 %v4519, %v4586
    %v4598 = vadd.f32 %v4520, %v4588
    %v4599 = vadd.f32 %v4521, %v4590
    %v4600 = vadd.f32 %v4522, %v4592
    %s4601 = sld [smem:[#allocation11 + $0x1d]]
    %v4602 = vstv %s4601
    %v4603 = vmul.f32 %v4602, %v4390
    %v4604 = vmul.f32 %v4602, %v4391
    %v4605 = vmul.f32 %v4602, %v4392
    %v4606 = vmul.f32 %v4602, %v4393
    %4611 = vrot.lane.b32.xlu0 %v4603, 126
    %v4612 = vpop.permute.xlu0 %4611
    %4613 = vrot.lane.b32.xlu0 %v4604, 126
    %v4614 = vpop.permute.xlu0 %4613
    %4615 = vrot.lane.b32.xlu0 %v4605, 126
    %v4616 = vpop.permute.xlu0 %4615
    %4617 = vrot.lane.b32.xlu0 %v4606, 126
    %v4618 = vpop.permute.xlu0 %4617
    %v4623 = vadd.f32 %v4545, %v4612
    %v4624 = vadd.f32 %v4546, %v4614
    %v4625 = vadd.f32 %v4547, %v4616
    %v4626 = vadd.f32 %v4548, %v4618
    %s4627 = sld [smem:[#allocation11 + $0x38]]
    %v4628 = vstv %s4627
    %v4629 = vmul.f32 %v4628, %v4390
    %v4630 = vmul.f32 %v4628, %v4391
    %v4631 = vmul.f32 %v4628, %v4392
    %v4632 = vmul.f32 %v4628, %v4393
    %4637 = vrot.lane.b32.xlu0 %v4629, 126
    %v4638 = vpop.permute.xlu0 %4637
    %4639 = vrot.lane.b32.xlu0 %v4630, 126
    %v4640 = vpop.permute.xlu0 %4639
    %4641 = vrot.lane.b32.xlu0 %v4631, 126
    %v4642 = vpop.permute.xlu0 %4641
    %4643 = vrot.lane.b32.xlu0 %v4632, 126
    %v4644 = vpop.permute.xlu0 %4643
    %v4649 = vadd.f32 %v4571, %v4638
    %v4650 = vadd.f32 %v4572, %v4640
    %v4651 = vadd.f32 %v4573, %v4642
    %v4652 = vadd.f32 %v4574, %v4644
    %s4653 = sld [smem:[#allocation11 + $0x3]]
    %v4654 = vstv %s4653
    %v4655 = vmul.f32 %v4654, %v4390
    %v4656 = vmul.f32 %v4654, %v4391
    %v4657 = vmul.f32 %v4654, %v4392
    %v4658 = vmul.f32 %v4654, %v4393
    %v4663 = vrot.slane %v4655, 1
    %v4664 = vrot.slane %v4656, 1
    %v4665 = vsel %vm359, %v4663, %v4664
    %v4666 = vrot.slane %v4657, 1
    %v4667 = vrot.slane %v4658, 1
    %v4668 = vsel %vm359, %v4666, %v4667
    %v4673 = vadd.f32 %v4597, %v4665
    %v4674 = vadd.f32 %v4598, %v4664
    %v4675 = vadd.f32 %v4599, %v4668
    %v4676 = vadd.f32 %v4600, %v4667
    %s4677 = sld [smem:[#allocation11 + $0x1e]]
    %v4678 = vstv %s4677
    %v4679 = vmul.f32 %v4678, %v4390
    %v4680 = vmul.f32 %v4678, %v4391
    %v4681 = vmul.f32 %v4678, %v4392
    %v4682 = vmul.f32 %v4678, %v4393
    %v4687 = vrot.slane %v4679, 1
    %v4688 = vrot.slane %v4680, 1
    %v4689 = vsel %vm359, %v4687, %v4688
    %v4690 = vrot.slane %v4681, 1
    %v4691 = vrot.slane %v4682, 1
    %v4692 = vsel %vm359, %v4690, %v4691
    %v4697 = vadd.f32 %v4623, %v4689
    %v4698 = vadd.f32 %v4624, %v4688
    %v4699 = vadd.f32 %v4625, %v4692
    %v4700 = vadd.f32 %v4626, %v4691
    %s4701 = sld [smem:[#allocation11 + $0x39]]
    %v4702 = vstv %s4701
    %v4703 = vmul.f32 %v4702, %v4390
    %v4704 = vmul.f32 %v4702, %v4391
    %v4705 = vmul.f32 %v4702, %v4392
    %v4706 = vmul.f32 %v4702, %v4393
    %v4711 = vrot.slane %v4703, 1
    %v4712 = vrot.slane %v4704, 1
    %v4713 = vsel %vm359, %v4711, %v4712
    %v4714 = vrot.slane %v4705, 1
    %v4715 = vrot.slane %v4706, 1
    %v4716 = vsel %vm359, %v4714, %v4715
    %v4721 = vadd.f32 %v4649, %v4713
    %v4722 = vadd.f32 %v4650, %v4712
    %v4723 = vadd.f32 %v4651, %v4716
    %v4724 = vadd.f32 %v4652, %v4715
    %s4725 = sld [smem:[#allocation11 + $0x4]]
    %v4726 = vstv %s4725
    %v4727 = vmul.f32 %v4726, %v4390
    %v4728 = vmul.f32 %v4726, %v4391
    %v4729 = vmul.f32 %v4726, %v4392
    %v4730 = vmul.f32 %v4726, %v4393
    %v4735 = vrot.slane %v4727, 1
    %v4736 = vrot.slane %v4728, 1
    %v4737 = vsel %vm359, %v4735, %v4736
    %v4738 = vrot.slane %v4729, 1
    %v4739 = vrot.slane %v4730, 1
    %v4740 = vsel %vm359, %v4738, %v4739
    %4741 = vrot.lane.b32.xlu0 %v4737, 127
    %v4742 = vpop.permute.xlu0 %4741
    %4743 = vrot.lane.b32.xlu0 %v4736, 127
    %v4744 = vpop.permute.xlu0 %4743
    %4745 = vrot.lane.b32.xlu0 %v4740, 127
    %v4746 = vpop.permute.xlu0 %4745
    %4747 = vrot.lane.b32.xlu0 %v4739, 127
    %v4748 = vpop.permute.xlu0 %4747
    %v4753 = vadd.f32 %v4673, %v4742
    %v4754 = vadd.f32 %v4674, %v4744
    %v4755 = vadd.f32 %v4675, %v4746
    %v4756 = vadd.f32 %v4676, %v4748
    %s4757 = sld [smem:[#allocation11 + $0x1f]]
    %v4758 = vstv %s4757
    %v4759 = vmul.f32 %v4758, %v4390
    %v4760 = vmul.f32 %v4758, %v4391
    %v4761 = vmul.f32 %v4758, %v4392
    %v4762 = vmul.f32 %v4758, %v4393
    %v4767 = vrot.slane %v4759, 1
    %v4768 = vrot.slane %v4760, 1
    %v4769 = vsel %vm359, %v4767, %v4768
    %v4770 = vrot.slane %v4761, 1
    %v4771 = vrot.slane %v4762, 1
    %v4772 = vsel %vm359, %v4770, %v4771
    %4773 = vrot.lane.b32.xlu0 %v4769, 127
    %v4774 = vpop.permute.xlu0 %4773
    %4775 = vrot.lane.b32.xlu0 %v4768, 127
    %v4776 = vpop.permute.xlu0 %4775
    %4777 = vrot.lane.b32.xlu0 %v4772, 127
    %v4778 = vpop.permute.xlu0 %4777
    %4779 = vrot.lane.b32.xlu0 %v4771, 127
    %v4780 = vpop.permute.xlu0 %4779
    %v4785 = vadd.f32 %v4697, %v4774
    %v4786 = vadd.f32 %v4698, %v4776
    %v4787 = vadd.f32 %v4699, %v4778
    %v4788 = vadd.f32 %v4700, %v4780
    %s4789 = sld [smem:[#allocation11 + $0x3a]]
    %v4790 = vstv %s4789
    %v4791 = vmul.f32 %v4790, %v4390
    %v4792 = vmul.f32 %v4790, %v4391
    %v4793 = vmul.f32 %v4790, %v4392
    %v4794 = vmul.f32 %v4790, %v4393
    %v4799 = vrot.slane %v4791, 1
    %v4800 = vrot.slane %v4792, 1
    %v4801 = vsel %vm359, %v4799, %v4800
    %v4802 = vrot.slane %v4793, 1
    %v4803 = vrot.slane %v4794, 1
    %v4804 = vsel %vm359, %v4802, %v4803
    %4805 = vrot.lane.b32.xlu0 %v4801, 127
    %v4806 = vpop.permute.xlu0 %4805
    %4807 = vrot.lane.b32.xlu0 %v4800, 127
    %v4808 = vpop.permute.xlu0 %4807
    %4809 = vrot.lane.b32.xlu0 %v4804, 127
    %v4810 = vpop.permute.xlu0 %4809
    %4811 = vrot.lane.b32.xlu0 %v4803, 127
    %v4812 = vpop.permute.xlu0 %4811
    %v4817 = vadd.f32 %v4721, %v4806
    %v4818 = vadd.f32 %v4722, %v4808
    %v4819 = vadd.f32 %v4723, %v4810
    %v4820 = vadd.f32 %v4724, %v4812
    %s4821 = sld [smem:[#allocation11 + $0x5]]
    %v4822 = vstv %s4821
    %v4823 = vmul.f32 %v4822, %v4390
    %v4824 = vmul.f32 %v4822, %v4391
    %v4825 = vmul.f32 %v4822, %v4392
    %v4826 = vmul.f32 %v4822, %v4393
    %v4831 = vrot.slane %v4823, 1
    %v4832 = vrot.slane %v4824, 1
    %v4833 = vsel %vm359, %v4831, %v4832
    %v4834 = vrot.slane %v4825, 1
    %v4835 = vrot.slane %v4826, 1
    %v4836 = vsel %vm359, %v4834, %v4835
    %4837 = vrot.lane.b32.xlu0 %v4833, 126
    %v4838 = vpop.permute.xlu0 %4837
    %4839 = vrot.lane.b32.xlu0 %v4832, 126
    %v4840 = vpop.permute.xlu0 %4839
    %4841 = vrot.lane.b32.xlu0 %v4836, 126
    %v4842 = vpop.permute.xlu0 %4841
    %4843 = vrot.lane.b32.xlu0 %v4835, 126
    %v4844 = vpop.permute.xlu0 %4843
    %v4849 = vadd.f32 %v4753, %v4838
    %v4850 = vadd.f32 %v4754, %v4840
    %v4851 = vadd.f32 %v4755, %v4842
    %v4852 = vadd.f32 %v4756, %v4844
    %s4853 = sld [smem:[#allocation11 + $0x20]]
    %v4854 = vstv %s4853
    %v4855 = vmul.f32 %v4854, %v4390
    %v4856 = vmul.f32 %v4854, %v4391
    %v4857 = vmul.f32 %v4854, %v4392
    %v4858 = vmul.f32 %v4854, %v4393
    %v4863 = vrot.slane %v4855, 1
    %v4864 = vrot.slane %v4856, 1
    %v4865 = vsel %vm359, %v4863, %v4864
    %v4866 = vrot.slane %v4857, 1
    %v4867 = vrot.slane %v4858, 1
    %v4868 = vsel %vm359, %v4866, %v4867
    %4869 = vrot.lane.b32.xlu0 %v4865, 126
    %v4870 = vpop.permute.xlu0 %4869
    %4871 = vrot.lane.b32.xlu0 %v4864, 126
    %v4872 = vpop.permute.xlu0 %4871
    %4873 = vrot.lane.b32.xlu0 %v4868, 126
    %v4874 = vpop.permute.xlu0 %4873
    %4875 = vrot.lane.b32.xlu0 %v4867, 126
    %v4876 = vpop.permute.xlu0 %4875
    %v4881 = vadd.f32 %v4785, %v4870
    %v4882 = vadd.f32 %v4786, %v4872
    %v4883 = vadd.f32 %v4787, %v4874
    %v4884 = vadd.f32 %v4788, %v4876
    %s4885 = sld [smem:[#allocation11 + $0x3b]]
    %v4886 = vstv %s4885
    %v4887 = vmul.f32 %v4886, %v4390
    %v4888 = vmul.f32 %v4886, %v4391
    %v4889 = vmul.f32 %v4886, %v4392
    %v4890 = vmul.f32 %v4886, %v4393
    %v4895 = vrot.slane %v4887, 1
    %v4896 = vrot.slane %v4888, 1
    %v4897 = vsel %vm359, %v4895, %v4896
    %v4898 = vrot.slane %v4889, 1
    %v4899 = vrot.slane %v4890, 1
    %v4900 = vsel %vm359, %v4898, %v4899
    %4901 = vrot.lane.b32.xlu0 %v4897, 126
    %v4902 = vpop.permute.xlu0 %4901
    %4903 = vrot.lane.b32.xlu0 %v4896, 126
    %v4904 = vpop.permute.xlu0 %4903
    %4905 = vrot.lane.b32.xlu0 %v4900, 126
    %v4906 = vpop.permute.xlu0 %4905
    %4907 = vrot.lane.b32.xlu0 %v4899, 126
    %v4908 = vpop.permute.xlu0 %4907
    %v4913 = vadd.f32 %v4817, %v4902
    %v4914 = vadd.f32 %v4818, %v4904
    %v4915 = vadd.f32 %v4819, %v4906
    %v4916 = vadd.f32 %v4820, %v4908
    %s4917 = sld [smem:[#allocation11 + $0x6]]
    %v4918 = vstv %s4917
    %v4919 = vmul.f32 %v4918, %v4390
    %v4920 = vmul.f32 %v4918, %v4391
    %v4921 = vmul.f32 %v4918, %v4392
    %v4922 = vmul.f32 %v4918, %v4393
    %v4927 = vrot.slane %v4919, 2
    %v4928 = vrot.slane %v4920, 2
    %v4929 = vsel %vm624, %v4927, %v4928
    %v4930 = vrot.slane %v4921, 2
    %v4931 = vrot.slane %v4922, 2
    %v4932 = vsel %vm624, %v4930, %v4931
    %v4937 = vadd.f32 %v4849, %v4929
    %v4938 = vadd.f32 %v4850, %v4928
    %v4939 = vadd.f32 %v4851, %v4932
    %v4940 = vadd.f32 %v4852, %v4931
    %s4941 = sld [smem:[#allocation11 + $0x21]]
    %v4942 = vstv %s4941
    %v4943 = vmul.f32 %v4942, %v4390
    %v4944 = vmul.f32 %v4942, %v4391
    %v4945 = vmul.f32 %v4942, %v4392
    %v4946 = vmul.f32 %v4942, %v4393
    %v4951 = vrot.slane %v4943, 2
    %v4952 = vrot.slane %v4944, 2
    %v4953 = vsel %vm624, %v4951, %v4952
    %v4954 = vrot.slane %v4945, 2
    %v4955 = vrot.slane %v4946, 2
    %v4956 = vsel %vm624, %v4954, %v4955
    %v4961 = vadd.f32 %v4881, %v4953
    %v4962 = vadd.f32 %v4882, %v4952
    %v4963 = vadd.f32 %v4883, %v4956
    %v4964 = vadd.f32 %v4884, %v4955
    %s4965 = sld [smem:[#allocation11 + $0x3c]]
    %v4966 = vstv %s4965
    %v4967 = vmul.f32 %v4966, %v4390
    %v4968 = vmul.f32 %v4966, %v4391
    %v4969 = vmul.f32 %v4966, %v4392
    %v4970 = vmul.f32 %v4966, %v4393
    %v4975 = vrot.slane %v4967, 2
    %v4976 = vrot.slane %v4968, 2
    %v4977 = vsel %vm624, %v4975, %v4976
    %v4978 = vrot.slane %v4969, 2
    %v4979 = vrot.slane %v4970, 2
    %v4980 = vsel %vm624, %v4978, %v4979
    %v4985 = vadd.f32 %v4913, %v4977
    %v4986 = vadd.f32 %v4914, %v4976
    %v4987 = vadd.f32 %v4915, %v4980
    %v4988 = vadd.f32 %v4916, %v4979
    %s4989 = sld [smem:[#allocation11 + $0x7]]
    %v4990 = vstv %s4989
    %v4991 = vmul.f32 %v4990, %v4390
    %v4992 = vmul.f32 %v4990, %v4391
    %v4993 = vmul.f32 %v4990, %v4392
    %v4994 = vmul.f32 %v4990, %v4393
    %v4999 = vrot.slane %v4991, 2
    %v5000 = vrot.slane %v4992, 2
    %v5001 = vsel %vm624, %v4999, %v5000
    %v5002 = vrot.slane %v4993, 2
    %v5003 = vrot.slane %v4994, 2
    %v5004 = vsel %vm624, %v5002, %v5003
    %5005 = vrot.lane.b32.xlu0 %v5001, 127
    %v5006 = vpop.permute.xlu0 %5005
    %5007 = vrot.lane.b32.xlu0 %v5000, 127
    %v5008 = vpop.permute.xlu0 %5007
    %5009 = vrot.lane.b32.xlu0 %v5004, 127
    %v5010 = vpop.permute.xlu0 %5009
    %5011 = vrot.lane.b32.xlu0 %v5003, 127
    %v5012 = vpop.permute.xlu0 %5011
    %v5017 = vadd.f32 %v4937, %v5006
    %v5018 = vadd.f32 %v4938, %v5008
    %v5019 = vadd.f32 %v4939, %v5010
    %v5020 = vadd.f32 %v4940, %v5012
    %s5021 = sld [smem:[#allocation11 + $0x22]]
    %v5022 = vstv %s5021
    %v5023 = vmul.f32 %v5022, %v4390
    %v5024 = vmul.f32 %v5022, %v4391
    %v5025 = vmul.f32 %v5022, %v4392
    %v5026 = vmul.f32 %v5022, %v4393
    %v5031 = vrot.slane %v5023, 2
    %v5032 = vrot.slane %v5024, 2
    %v5033 = vsel %vm624, %v5031, %v5032
    %v5034 = vrot.slane %v5025, 2
    %v5035 = vrot.slane %v5026, 2
    %v5036 = vsel %vm624, %v5034, %v5035
    %5037 = vrot.lane.b32.xlu0 %v5033, 127
    %v5038 = vpop.permute.xlu0 %5037
    %5039 = vrot.lane.b32.xlu0 %v5032, 127
    %v5040 = vpop.permute.xlu0 %5039
    %5041 = vrot.lane.b32.xlu0 %v5036, 127
    %v5042 = vpop.permute.xlu0 %5041
    %5043 = vrot.lane.b32.xlu0 %v5035, 127
    %v5044 = vpop.permute.xlu0 %5043
    %v5049 = vadd.f32 %v4961, %v5038
    %v5050 = vadd.f32 %v4962, %v5040
    %v5051 = vadd.f32 %v4963, %v5042
    %v5052 = vadd.f32 %v4964, %v5044
    %s5053 = sld [smem:[#allocation11 + $0x3d]]
    %v5054 = vstv %s5053
    %v5055 = vmul.f32 %v5054, %v4390
    %v5056 = vmul.f32 %v5054, %v4391
    %v5057 = vmul.f32 %v5054, %v4392
    %v5058 = vmul.f32 %v5054, %v4393
    %v5063 = vrot.slane %v5055, 2
    %v5064 = vrot.slane %v5056, 2
    %v5065 = vsel %vm624, %v5063, %v5064
    %v5066 = vrot.slane %v5057, 2
    %v5067 = vrot.slane %v5058, 2
    %v5068 = vsel %vm624, %v5066, %v5067
    %5069 = vrot.lane.b32.xlu0 %v5065, 127
    %v5070 = vpop.permute.xlu0 %5069
    %5071 = vrot.lane.b32.xlu0 %v5064, 127
    %v5072 = vpop.permute.xlu0 %5071
    %5073 = vrot.lane.b32.xlu0 %v5068, 127
    %v5074 = vpop.permute.xlu0 %5073
    %5075 = vrot.lane.b32.xlu0 %v5067, 127
    %v5076 = vpop.permute.xlu0 %5075
    %v5081 = vadd.f32 %v4985, %v5070
    %v5082 = vadd.f32 %v4986, %v5072
    %v5083 = vadd.f32 %v4987, %v5074
    %v5084 = vadd.f32 %v4988, %v5076
    %s5085 = sld [smem:[#allocation11 + $0x8]]
    %v5086 = vstv %s5085
    %v5087 = vmul.f32 %v5086, %v4390
    %v5088 = vmul.f32 %v5086, %v4391
    %v5089 = vmul.f32 %v5086, %v4392
    %v5090 = vmul.f32 %v5086, %v4393
    %v5095 = vrot.slane %v5087, 2
    %v5096 = vrot.slane %v5088, 2
    %v5097 = vsel %vm624, %v5095, %v5096
    %v5098 = vrot.slane %v5089, 2
    %v5099 = vrot.slane %v5090, 2
    %v5100 = vsel %vm624, %v5098, %v5099
    %5101 = vrot.lane.b32.xlu0 %v5097, 126
    %v5102 = vpop.permute.xlu0 %5101
    %5103 = vrot.lane.b32.xlu0 %v5096, 126
    %v5104 = vpop.permute.xlu0 %5103
    %5105 = vrot.lane.b32.xlu0 %v5100, 126
    %v5106 = vpop.permute.xlu0 %5105
    %5107 = vrot.lane.b32.xlu0 %v5099, 126
    %v5108 = vpop.permute.xlu0 %5107
    %v5113 = vadd.f32 %v5017, %v5102
    %v5114 = vadd.f32 %v5018, %v5104
    %v5115 = vadd.f32 %v5019, %v5106
    %v5116 = vadd.f32 %v5020, %v5108
    %s5117 = sld [smem:[#allocation11 + $0x23]]
    %v5118 = vstv %s5117
    %v5119 = vmul.f32 %v5118, %v4390
    %v5120 = vmul.f32 %v5118, %v4391
    %v5121 = vmul.f32 %v5118, %v4392
    %v5122 = vmul.f32 %v5118, %v4393
    %v5127 = vrot.slane %v5119, 2
    %v5128 = vrot.slane %v5120, 2
    %v5129 = vsel %vm624, %v5127, %v5128
    %v5130 = vrot.slane %v5121, 2
    %v5131 = vrot.slane %v5122, 2
    %v5132 = vsel %vm624, %v5130, %v5131
    %5133 = vrot.lane.b32.xlu0 %v5129, 126
    %v5134 = vpop.permute.xlu0 %5133
    %5135 = vrot.lane.b32.xlu0 %v5128, 126
    %v5136 = vpop.permute.xlu0 %5135
    %5137 = vrot.lane.b32.xlu0 %v5132, 126
    %v5138 = vpop.permute.xlu0 %5137
    %5139 = vrot.lane.b32.xlu0 %v5131, 126
    %v5140 = vpop.permute.xlu0 %5139
    %v5145 = vadd.f32 %v5049, %v5134
    %v5146 = vadd.f32 %v5050, %v5136
    %v5147 = vadd.f32 %v5051, %v5138
    %v5148 = vadd.f32 %v5052, %v5140
    %s5149 = sld [smem:[#allocation11 + $0x3e]]
    %v5150 = vstv %s5149
    %v5151 = vmul.f32 %v5150, %v4390
    %v5152 = vmul.f32 %v5150, %v4391
    %v5153 = vmul.f32 %v5150, %v4392
    %v5154 = vmul.f32 %v5150, %v4393
    %v5159 = vrot.slane %v5151, 2
    %v5160 = vrot.slane %v5152, 2
    %v5161 = vsel %vm624, %v5159, %v5160
    %v5162 = vrot.slane %v5153, 2
    %v5163 = vrot.slane %v5154, 2
    %v5164 = vsel %vm624, %v5162, %v5163
    %5165 = vrot.lane.b32.xlu0 %v5161, 126
    %v5166 = vpop.permute.xlu0 %5165
    %5167 = vrot.lane.b32.xlu0 %v5160, 126
    %v5168 = vpop.permute.xlu0 %5167
    %5169 = vrot.lane.b32.xlu0 %v5164, 126
    %v5170 = vpop.permute.xlu0 %5169
    %5171 = vrot.lane.b32.xlu0 %v5163, 126
    %v5172 = vpop.permute.xlu0 %5171
    %v5177 = vadd.f32 %v5081, %v5166
    %v5178 = vadd.f32 %v5082, %v5168
    %v5179 = vadd.f32 %v5083, %v5170
    %v5180 = vadd.f32 %v5084, %v5172
    %s5181 = sld [smem:[#allocation11 + $0x9]]
    %v5182 = vstv %s5181
    %v5183 = vmul.f32 %v5182, %v4422
    %v5184 = vmul.f32 %v5182, %v4423
    %v5185 = vmul.f32 %v5182, %v4424
    %v5186 = vmul.f32 %v5182, %v4425
    %v5187 = vadd.f32 %v5113, %v5183
    %v5188 = vadd.f32 %v5114, %v5184
    %v5189 = vadd.f32 %v5115, %v5185
    %v5190 = vadd.f32 %v5116, %v5186
    %s5191 = sld [smem:[#allocation11 + $0x24]]
    %v5192 = vstv %s5191
    %v5193 = vmul.f32 %v5192, %v4422
    %v5194 = vmul.f32 %v5192, %v4423
    %v5195 = vmul.f32 %v5192, %v4424
    %v5196 = vmul.f32 %v5192, %v4425
    %v5197 = vadd.f32 %v5145, %v5193
    %v5198 = vadd.f32 %v5146, %v5194
    %v5199 = vadd.f32 %v5147, %v5195
    %v5200 = vadd.f32 %v5148, %v5196
    %s5201 = sld [smem:[#allocation11 + $0x3f]]
    %v5202 = vstv %s5201
    %v5203 = vmul.f32 %v5202, %v4422
    %v5204 = vmul.f32 %v5202, %v4423
    %v5205 = vmul.f32 %v5202, %v4424
    %v5206 = vmul.f32 %v5202, %v4425
    %v5207 = vadd.f32 %v5177, %v5203
    %v5208 = vadd.f32 %v5178, %v5204
    %v5209 = vadd.f32 %v5179, %v5205
    %v5210 = vadd.f32 %v5180, %v5206
    %s5211 = sld [smem:[#allocation11 + $0xa]]
    %v5212 = vstv %s5211
    %v5213 = vmul.f32 %v5212, %v4422
    %v5214 = vmul.f32 %v5212, %v4423
    %v5215 = vmul.f32 %v5212, %v4424
    %v5216 = vmul.f32 %v5212, %v4425
    %5221 = vrot.lane.b32.xlu0 %v5213, 127
    %v5222 = vpop.permute.xlu0 %5221
    %5223 = vrot.lane.b32.xlu0 %v5214, 127
    %v5224 = vpop.permute.xlu0 %5223
    %5225 = vrot.lane.b32.xlu0 %v5215, 127
    %v5226 = vpop.permute.xlu0 %5225
    %5227 = vrot.lane.b32.xlu0 %v5216, 127
    %v5228 = vpop.permute.xlu0 %5227
    %v5233 = vadd.f32 %v5187, %v5222
    %v5234 = vadd.f32 %v5188, %v5224
    %v5235 = vadd.f32 %v5189, %v5226
    %v5236 = vadd.f32 %v5190, %v5228
    %s5237 = sld [smem:[#allocation11 + $0x25]]
    %v5238 = vstv %s5237
    %v5239 = vmul.f32 %v5238, %v4422
    %v5240 = vmul.f32 %v5238, %v4423
    %v5241 = vmul.f32 %v5238, %v4424
    %v5242 = vmul.f32 %v5238, %v4425
    %5247 = vrot.lane.b32.xlu0 %v5239, 127
    %v5248 = vpop.permute.xlu0 %5247
    %5249 = vrot.lane.b32.xlu0 %v5240, 127
    %v5250 = vpop.permute.xlu0 %5249
    %5251 = vrot.lane.b32.xlu0 %v5241, 127
    %v5252 = vpop.permute.xlu0 %5251
    %5253 = vrot.lane.b32.xlu0 %v5242, 127
    %v5254 = vpop.permute.xlu0 %5253
    %v5259 = vadd.f32 %v5197, %v5248
    %v5260 = vadd.f32 %v5198, %v5250
    %v5261 = vadd.f32 %v5199, %v5252
    %v5262 = vadd.f32 %v5200, %v5254
    %s5263 = sld [smem:[#allocation11 + $0x40]]
    %v5264 = vstv %s5263
    %v5265 = vmul.f32 %v5264, %v4422
    %v5266 = vmul.f32 %v5264, %v4423
    %v5267 = vmul.f32 %v5264, %v4424
    %v5268 = vmul.f32 %v5264, %v4425
    %5273 = vrot.lane.b32.xlu0 %v5265, 127
    %v5274 = vpop.permute.xlu0 %5273
    %5275 = vrot.lane.b32.xlu0 %v5266, 127
    %v5276 = vpop.permute.xlu0 %5275
    %5277 = vrot.lane.b32.xlu0 %v5267, 127
    %v5278 = vpop.permute.xlu0 %5277
    %5279 = vrot.lane.b32.xlu0 %v5268, 127
    %v5280 = vpop.permute.xlu0 %5279
    %v5285 = vadd.f32 %v5207, %v5274
    %v5286 = vadd.f32 %v5208, %v5276
    %v5287 = vadd.f32 %v5209, %v5278
    %v5288 = vadd.f32 %v5210, %v5280
    %s5289 = sld [smem:[#allocation11 + $0xb]]
    %v5290 = vstv %s5289
    %v5291 = vmul.f32 %v5290, %v4422
    %v5292 = vmul.f32 %v5290, %v4423
    %v5293 = vmul.f32 %v5290, %v4424
    %v5294 = vmul.f32 %v5290, %v4425
    %5299 = vrot.lane.b32.xlu0 %v5291, 126
    %v5300 = vpop.permute.xlu0 %5299
    %5301 = vrot.lane.b32.xlu0 %v5292, 126
    %v5302 = vpop.permute.xlu0 %5301
    %5303 = vrot.lane.b32.xlu0 %v5293, 126
    %v5304 = vpop.permute.xlu0 %5303
    %5305 = vrot.lane.b32.xlu0 %v5294, 126
    %v5306 = vpop.permute.xlu0 %5305
    %v5311 = vadd.f32 %v5233, %v5300
    %v5312 = vadd.f32 %v5234, %v5302
    %v5313 = vadd.f32 %v5235, %v5304
    %v5314 = vadd.f32 %v5236, %v5306
    %s5315 = sld [smem:[#allocation11 + $0x26]]
    %v5316 = vstv %s5315
    %v5317 = vmul.f32 %v5316, %v4422
    %v5318 = vmul.f32 %v5316, %v4423
    %v5319 = vmul.f32 %v5316, %v4424
    %v5320 = vmul.f32 %v5316, %v4425
    %5325 = vrot.lane.b32.xlu0 %v5317, 126
    %v5326 = vpop.permute.xlu0 %5325
    %5327 = vrot.lane.b32.xlu0 %v5318, 126
    %v5328 = vpop.permute.xlu0 %5327
    %5329 = vrot.lane.b32.xlu0 %v5319, 126
    %v5330 = vpop.permute.xlu0 %5329
    %5331 = vrot.lane.b32.xlu0 %v5320, 126
    %v5332 = vpop.permute.xlu0 %5331
    %v5337 = vadd.f32 %v5259, %v5326
    %v5338 = vadd.f32 %v5260, %v5328
    %v5339 = vadd.f32 %v5261, %v5330
    %v5340 = vadd.f32 %v5262, %v5332
    %s5341 = sld [smem:[#allocation11 + $0x41]]
    %v5342 = vstv %s5341
    %v5343 = vmul.f32 %v5342, %v4422
    %v5344 = vmul.f32 %v5342, %v4423
    %v5345 = vmul.f32 %v5342, %v4424
    %v5346 = vmul.f32 %v5342, %v4425
    %5351 = vrot.lane.b32.xlu0 %v5343, 126
    %v5352 = vpop.permute.xlu0 %5351
    %5353 = vrot.lane.b32.xlu0 %v5344, 126
    %v5354 = vpop.permute.xlu0 %5353
    %5355 = vrot.lane.b32.xlu0 %v5345, 126
    %v5356 = vpop.permute.xlu0 %5355
    %5357 = vrot.lane.b32.xlu0 %v5346, 126
    %v5358 = vpop.permute.xlu0 %5357
    %v5363 = vadd.f32 %v5285, %v5352
    %v5364 = vadd.f32 %v5286, %v5354
    %v5365 = vadd.f32 %v5287, %v5356
    %v5366 = vadd.f32 %v5288, %v5358
    %s5367 = sld [smem:[#allocation11 + $0xc]]
    %v5368 = vstv %s5367
    %v5369 = vmul.f32 %v5368, %v4422
    %v5370 = vmul.f32 %v5368, %v4423
    %v5371 = vmul.f32 %v5368, %v4424
    %v5372 = vmul.f32 %v5368, %v4425
    %v5377 = vrot.slane %v5369, 1
    %v5378 = vrot.slane %v5370, 1
    %v5379 = vsel %vm359, %v5377, %v5378
    %v5380 = vrot.slane %v5371, 1
    %v5381 = vrot.slane %v5372, 1
    %v5382 = vsel %vm359, %v5380, %v5381
    %v5387 = vadd.f32 %v5311, %v5379
    %v5388 = vadd.f32 %v5312, %v5378
    %v5389 = vadd.f32 %v5313, %v5382
    %v5390 = vadd.f32 %v5314, %v5381
    %s5391 = sld [smem:[#allocation11 + $0x27]]
    %v5392 = vstv %s5391
    %v5393 = vmul.f32 %v5392, %v4422
    %v5394 = vmul.f32 %v5392, %v4423
    %v5395 = vmul.f32 %v5392, %v4424
    %v5396 = vmul.f32 %v5392, %v4425
    %v5401 = vrot.slane %v5393, 1
    %v5402 = vrot.slane %v5394, 1
    %v5403 = vsel %vm359, %v5401, %v5402
    %v5404 = vrot.slane %v5395, 1
    %v5405 = vrot.slane %v5396, 1
    %v5406 = vsel %vm359, %v5404, %v5405
    %v5411 = vadd.f32 %v5337, %v5403
    %v5412 = vadd.f32 %v5338, %v5402
    %v5413 = vadd.f32 %v5339, %v5406
    %v5414 = vadd.f32 %v5340, %v5405
    %s5415 = sld [smem:[#allocation11 + $0x42]]
    %v5416 = vstv %s5415
    %v5417 = vmul.f32 %v5416, %v4422
    %v5418 = vmul.f32 %v5416, %v4423
    %v5419 = vmul.f32 %v5416, %v4424
    %v5420 = vmul.f32 %v5416, %v4425
    %v5425 = vrot.slane %v5417, 1
    %v5426 = vrot.slane %v5418, 1
    %v5427 = vsel %vm359, %v5425, %v5426
    %v5428 = vrot.slane %v5419, 1
    %v5429 = vrot.slane %v5420, 1
    %v5430 = vsel %vm359, %v5428, %v5429
    %v5435 = vadd.f32 %v5363, %v5427
    %v5436 = vadd.f32 %v5364, %v5426
    %v5437 = vadd.f32 %v5365, %v5430
    %v5438 = vadd.f32 %v5366, %v5429
    %s5439 = sld [smem:[#allocation11 + $0xd]]
    %v5440 = vstv %s5439
    %v5441 = vmul.f32 %v5440, %v4422
    %v5442 = vmul.f32 %v5440, %v4423
    %v5443 = vmul.f32 %v5440, %v4424
    %v5444 = vmul.f32 %v5440, %v4425
    %v5449 = vrot.slane %v5441, 1
    %v5450 = vrot.slane %v5442, 1
    %v5451 = vsel %vm359, %v5449, %v5450
    %v5452 = vrot.slane %v5443, 1
    %v5453 = vrot.slane %v5444, 1
    %v5454 = vsel %vm359, %v5452, %v5453
    %5455 = vrot.lane.b32.xlu0 %v5451, 127
    %v5456 = vpop.permute.xlu0 %5455
    %5457 = vrot.lane.b32.xlu0 %v5450, 127
    %v5458 = vpop.permute.xlu0 %5457
    %5459 = vrot.lane.b32.xlu0 %v5454, 127
    %v5460 = vpop.permute.xlu0 %5459
    %5461 = vrot.lane.b32.xlu0 %v5453, 127
    %v5462 = vpop.permute.xlu0 %5461
    %v5467 = vadd.f32 %v5387, %v5456
    %v5468 = vadd.f32 %v5388, %v5458
    %v5469 = vadd.f32 %v5389, %v5460
    %v5470 = vadd.f32 %v5390, %v5462
    %s5471 = sld [smem:[#allocation11 + $0x28]]
    %v5472 = vstv %s5471
    %v5473 = vmul.f32 %v5472, %v4422
    %v5474 = vmul.f32 %v5472, %v4423
    %v5475 = vmul.f32 %v5472, %v4424
    %v5476 = vmul.f32 %v5472, %v4425
    %v5481 = vrot.slane %v5473, 1
    %v5482 = vrot.slane %v5474, 1
    %v5483 = vsel %vm359, %v5481, %v5482
    %v5484 = vrot.slane %v5475, 1
    %v5485 = vrot.slane %v5476, 1
    %v5486 = vsel %vm359, %v5484, %v5485
    %5487 = vrot.lane.b32.xlu0 %v5483, 127
    %v5488 = vpop.permute.xlu0 %5487
    %5489 = vrot.lane.b32.xlu0 %v5482, 127
    %v5490 = vpop.permute.xlu0 %5489
    %5491 = vrot.lane.b32.xlu0 %v5486, 127
    %v5492 = vpop.permute.xlu0 %5491
    %5493 = vrot.lane.b32.xlu0 %v5485, 127
    %v5494 = vpop.permute.xlu0 %5493
    %v5499 = vadd.f32 %v5411, %v5488
    %v5500 = vadd.f32 %v5412, %v5490
    %v5501 = vadd.f32 %v5413, %v5492
    %v5502 = vadd.f32 %v5414, %v5494
    %s5503 = sld [smem:[#allocation11 + $0x43]]
    %v5504 = vstv %s5503
    %v5505 = vmul.f32 %v5504, %v4422
    %v5506 = vmul.f32 %v5504, %v4423
    %v5507 = vmul.f32 %v5504, %v4424
    %v5508 = vmul.f32 %v5504, %v4425
    %v5513 = vrot.slane %v5505, 1
    %v5514 = vrot.slane %v5506, 1
    %v5515 = vsel %vm359, %v5513, %v5514
    %v5516 = vrot.slane %v5507, 1
    %v5517 = vrot.slane %v5508, 1
    %v5518 = vsel %vm359, %v5516, %v5517
    %5519 = vrot.lane.b32.xlu0 %v5515, 127
    %v5520 = vpop.permute.xlu0 %5519
    %5521 = vrot.lane.b32.xlu0 %v5514, 127
    %v5522 = vpop.permute.xlu0 %5521
    %5523 = vrot.lane.b32.xlu0 %v5518, 127
    %v5524 = vpop.permute.xlu0 %5523
    %5525 = vrot.lane.b32.xlu0 %v5517, 127
    %v5526 = vpop.permute.xlu0 %5525
    %v5531 = vadd.f32 %v5435, %v5520
    %v5532 = vadd.f32 %v5436, %v5522
    %v5533 = vadd.f32 %v5437, %v5524
    %v5534 = vadd.f32 %v5438, %v5526
    %s5535 = sld [smem:[#allocation11 + $0xe]]
    %v5536 = vstv %s5535
    %v5537 = vmul.f32 %v5536, %v4422
    %v5538 = vmul.f32 %v5536, %v4423
    %v5539 = vmul.f32 %v5536, %v4424
    %v5540 = vmul.f32 %v5536, %v4425
    %v5545 = vrot.slane %v5537, 1
    %v5546 = vrot.slane %v5538, 1
    %v5547 = vsel %vm359, %v5545, %v5546
    %v5548 = vrot.slane %v5539, 1
    %v5549 = vrot.slane %v5540, 1
    %v5550 = vsel %vm359, %v5548, %v5549
    %5551 = vrot.lane.b32.xlu0 %v5547, 126
    %v5552 = vpop.permute.xlu0 %5551
    %5553 = vrot.lane.b32.xlu0 %v5546, 126
    %v5554 = vpop.permute.xlu0 %5553
    %5555 = vrot.lane.b32.xlu0 %v5550, 126
    %v5556 = vpop.permute.xlu0 %5555
    %5557 = vrot.lane.b32.xlu0 %v5549, 126
    %v5558 = vpop.permute.xlu0 %5557
    %v5563 = vadd.f32 %v5467, %v5552
    %v5564 = vadd.f32 %v5468, %v5554
    %v5565 = vadd.f32 %v5469, %v5556
    %v5566 = vadd.f32 %v5470, %v5558
    %s5567 = sld [smem:[#allocation11 + $0x29]]
    %v5568 = vstv %s5567
    %v5569 = vmul.f32 %v5568, %v4422
    %v5570 = vmul.f32 %v5568, %v4423
    %v5571 = vmul.f32 %v5568, %v4424
    %v5572 = vmul.f32 %v5568, %v4425
    %v5577 = vrot.slane %v5569, 1
    %v5578 = vrot.slane %v5570, 1
    %v5579 = vsel %vm359, %v5577, %v5578
    %v5580 = vrot.slane %v5571, 1
    %v5581 = vrot.slane %v5572, 1
    %v5582 = vsel %vm359, %v5580, %v5581
    %5583 = vrot.lane.b32.xlu0 %v5579, 126
    %v5584 = vpop.permute.xlu0 %5583
    %5585 = vrot.lane.b32.xlu0 %v5578, 126
    %v5586 = vpop.permute.xlu0 %5585
    %5587 = vrot.lane.b32.xlu0 %v5582, 126
    %v5588 = vpop.permute.xlu0 %5587
    %5589 = vrot.lane.b32.xlu0 %v5581, 126
    %v5590 = vpop.permute.xlu0 %5589
    %v5595 = vadd.f32 %v5499, %v5584
    %v5596 = vadd.f32 %v5500, %v5586
    %v5597 = vadd.f32 %v5501, %v5588
    %v5598 = vadd.f32 %v5502, %v5590
    %s5599 = sld [smem:[#allocation11 + $0x44]]
    %v5600 = vstv %s5599
    %v5601 = vmul.f32 %v5600, %v4422
    %v5602 = vmul.f32 %v5600, %v4423
    %v5603 = vmul.f32 %v5600, %v4424
    %v5604 = vmul.f32 %v5600, %v4425
    %v5609 = vrot.slane %v5601, 1
    %v5610 = vrot.slane %v5602, 1
    %v5611 = vsel %vm359, %v5609, %v5610
    %v5612 = vrot.slane %v5603, 1
    %v5613 = vrot.slane %v5604, 1
    %v5614 = vsel %vm359, %v5612, %v5613
    %5615 = vrot.lane.b32.xlu0 %v5611, 126
    %v5616 = vpop.permute.xlu0 %5615
    %5617 = vrot.lane.b32.xlu0 %v5610, 126
    %v5618 = vpop.permute.xlu0 %5617
    %5619 = vrot.lane.b32.xlu0 %v5614, 126
    %v5620 = vpop.permute.xlu0 %5619
    %5621 = vrot.lane.b32.xlu0 %v5613, 126
    %v5622 = vpop.permute.xlu0 %5621
    %v5627 = vadd.f32 %v5531, %v5616
    %v5628 = vadd.f32 %v5532, %v5618
    %v5629 = vadd.f32 %v5533, %v5620
    %v5630 = vadd.f32 %v5534, %v5622
    %s5631 = sld [smem:[#allocation11 + $0xf]]
    %v5632 = vstv %s5631
    %v5633 = vmul.f32 %v5632, %v4422
    %v5634 = vmul.f32 %v5632, %v4423
    %v5635 = vmul.f32 %v5632, %v4424
    %v5636 = vmul.f32 %v5632, %v4425
    %v5641 = vrot.slane %v5633, 2
    %v5642 = vrot.slane %v5634, 2
    %v5643 = vsel %vm624, %v5641, %v5642
    %v5644 = vrot.slane %v5635, 2
    %v5645 = vrot.slane %v5636, 2
    %v5646 = vsel %vm624, %v5644, %v5645
    %v5651 = vadd.f32 %v5563, %v5643
    %v5652 = vadd.f32 %v5564, %v5642
    %v5653 = vadd.f32 %v5565, %v5646
    %v5654 = vadd.f32 %v5566, %v5645
    %s5655 = sld [smem:[#allocation11 + $0x2a]]
    %v5656 = vstv %s5655
    %v5657 = vmul.f32 %v5656, %v4422
    %v5658 = vmul.f32 %v5656, %v4423
    %v5659 = vmul.f32 %v5656, %v4424
    %v5660 = vmul.f32 %v5656, %v4425
    %v5665 = vrot.slane %v5657, 2
    %v5666 = vrot.slane %v5658, 2
    %v5667 = vsel %vm624, %v5665, %v5666
    %v5668 = vrot.slane %v5659, 2
    %v5669 = vrot.slane %v5660, 2
    %v5670 = vsel %vm624, %v5668, %v5669
    %v5675 = vadd.f32 %v5595, %v5667
    %v5676 = vadd.f32 %v5596, %v5666
    %v5677 = vadd.f32 %v5597, %v5670
    %v5678 = vadd.f32 %v5598, %v5669
    %s5679 = sld [smem:[#allocation11 + $0x45]]
    %v5680 = vstv %s5679
    %v5681 = vmul.f32 %v5680, %v4422
    %v5682 = vmul.f32 %v5680, %v4423
    %v5683 = vmul.f32 %v5680, %v4424
    %v5684 = vmul.f32 %v5680, %v4425
    %v5689 = vrot.slane %v5681, 2
    %v5690 = vrot.slane %v5682, 2
    %v5691 = vsel %vm624, %v5689, %v5690
    %v5692 = vrot.slane %v5683, 2
    %v5693 = vrot.slane %v5684, 2
    %v5694 = vsel %vm624, %v5692, %v5693
    %v5699 = vadd.f32 %v5627, %v5691
    %v5700 = vadd.f32 %v5628, %v5690
    %v5701 = vadd.f32 %v5629, %v5694
    %v5702 = vadd.f32 %v5630, %v5693
    %s5703 = sld [smem:[#allocation11 + $0x10]]
    %v5704 = vstv %s5703
    %v5705 = vmul.f32 %v5704, %v4422
    %v5706 = vmul.f32 %v5704, %v4423
    %v5707 = vmul.f32 %v5704, %v4424
    %v5708 = vmul.f32 %v5704, %v4425
    %v5713 = vrot.slane %v5705, 2
    %v5714 = vrot.slane %v5706, 2
    %v5715 = vsel %vm624, %v5713, %v5714
    %v5716 = vrot.slane %v5707, 2
    %v5717 = vrot.slane %v5708, 2
    %v5718 = vsel %vm624, %v5716, %v5717
    %5719 = vrot.lane.b32.xlu0 %v5715, 127
    %v5720 = vpop.permute.xlu0 %5719
    %5721 = vrot.lane.b32.xlu0 %v5714, 127
    %v5722 = vpop.permute.xlu0 %5721
    %5723 = vrot.lane.b32.xlu0 %v5718, 127
    %v5724 = vpop.permute.xlu0 %5723
    %5725 = vrot.lane.b32.xlu0 %v5717, 127
    %v5726 = vpop.permute.xlu0 %5725
    %v5731 = vadd.f32 %v5651, %v5720
    %v5732 = vadd.f32 %v5652, %v5722
    %v5733 = vadd.f32 %v5653, %v5724
    %v5734 = vadd.f32 %v5654, %v5726
    %s5735 = sld [smem:[#allocation11 + $0x2b]]
    %v5736 = vstv %s5735
    %v5737 = vmul.f32 %v5736, %v4422
    %v5738 = vmul.f32 %v5736, %v4423
    %v5739 = vmul.f32 %v5736, %v4424
    %v5740 = vmul.f32 %v5736, %v4425
    %v5745 = vrot.slane %v5737, 2
    %v5746 = vrot.slane %v5738, 2
    %v5747 = vsel %vm624, %v5745, %v5746
    %v5748 = vrot.slane %v5739, 2
    %v5749 = vrot.slane %v5740, 2
    %v5750 = vsel %vm624, %v5748, %v5749
    %5751 = vrot.lane.b32.xlu0 %v5747, 127
    %v5752 = vpop.permute.xlu0 %5751
    %5753 = vrot.lane.b32.xlu0 %v5746, 127
    %v5754 = vpop.permute.xlu0 %5753
    %5755 = vrot.lane.b32.xlu0 %v5750, 127
    %v5756 = vpop.permute.xlu0 %5755
    %5757 = vrot.lane.b32.xlu0 %v5749, 127
    %v5758 = vpop.permute.xlu0 %5757
    %v5763 = vadd.f32 %v5675, %v5752
    %v5764 = vadd.f32 %v5676, %v5754
    %v5765 = vadd.f32 %v5677, %v5756
    %v5766 = vadd.f32 %v5678, %v5758
    %s5767 = sld [smem:[#allocation11 + $0x46]]
    %v5768 = vstv %s5767
    %v5769 = vmul.f32 %v5768, %v4422
    %v5770 = vmul.f32 %v5768, %v4423
    %v5771 = vmul.f32 %v5768, %v4424
    %v5772 = vmul.f32 %v5768, %v4425
    %v5777 = vrot.slane %v5769, 2
    %v5778 = vrot.slane %v5770, 2
    %v5779 = vsel %vm624, %v5777, %v5778
    %v5780 = vrot.slane %v5771, 2
    %v5781 = vrot.slane %v5772, 2
    %v5782 = vsel %vm624, %v5780, %v5781
    %5783 = vrot.lane.b32.xlu0 %v5779, 127
    %v5784 = vpop.permute.xlu0 %5783
    %5785 = vrot.lane.b32.xlu0 %v5778, 127
    %v5786 = vpop.permute.xlu0 %5785
    %5787 = vrot.lane.b32.xlu0 %v5782, 127
    %v5788 = vpop.permute.xlu0 %5787
    %5789 = vrot.lane.b32.xlu0 %v5781, 127
    %v5790 = vpop.permute.xlu0 %5789
    %v5795 = vadd.f32 %v5699, %v5784
    %v5796 = vadd.f32 %v5700, %v5786
    %v5797 = vadd.f32 %v5701, %v5788
    %v5798 = vadd.f32 %v5702, %v5790
    %s5799 = sld [smem:[#allocation11 + $0x11]]
    %v5800 = vstv %s5799
    %v5801 = vmul.f32 %v5800, %v4422
    %v5802 = vmul.f32 %v5800, %v4423
    %v5803 = vmul.f32 %v5800, %v4424
    %v5804 = vmul.f32 %v5800, %v4425
    %v5809 = vrot.slane %v5801, 2
    %v5810 = vrot.slane %v5802, 2
    %v5811 = vsel %vm624, %v5809, %v5810
    %v5812 = vrot.slane %v5803, 2
    %v5813 = vrot.slane %v5804, 2
    %v5814 = vsel %vm624, %v5812, %v5813
    %5815 = vrot.lane.b32.xlu0 %v5811, 126
    %v5816 = vpop.permute.xlu0 %5815
    %5817 = vrot.lane.b32.xlu0 %v5810, 126
    %v5818 = vpop.permute.xlu0 %5817
    %5819 = vrot.lane.b32.xlu0 %v5814, 126
    %v5820 = vpop.permute.xlu0 %5819
    %5821 = vrot.lane.b32.xlu0 %v5813, 126
    %v5822 = vpop.permute.xlu0 %5821
    %v5827 = vadd.f32 %v5731, %v5816
    %v5828 = vadd.f32 %v5732, %v5818
    %v5829 = vadd.f32 %v5733, %v5820
    %v5830 = vadd.f32 %v5734, %v5822
    %s5831 = sld [smem:[#allocation11 + $0x2c]]
    %v5832 = vstv %s5831
    %v5833 = vmul.f32 %v5832, %v4422
    %v5834 = vmul.f32 %v5832, %v4423
    %v5835 = vmul.f32 %v5832, %v4424
    %v5836 = vmul.f32 %v5832, %v4425
    %v5841 = vrot.slane %v5833, 2
    %v5842 = vrot.slane %v5834, 2
    %v5843 = vsel %vm624, %v5841, %v5842
    %v5844 = vrot.slane %v5835, 2
    %v5845 = vrot.slane %v5836, 2
    %v5846 = vsel %vm624, %v5844, %v5845
    %5847 = vrot.lane.b32.xlu0 %v5843, 126
    %v5848 = vpop.permute.xlu0 %5847
    %5849 = vrot.lane.b32.xlu0 %v5842, 126
    %v5850 = vpop.permute.xlu0 %5849
    %5851 = vrot.lane.b32.xlu0 %v5846, 126
    %v5852 = vpop.permute.xlu0 %5851
    %5853 = vrot.lane.b32.xlu0 %v5845, 126
    %v5854 = vpop.permute.xlu0 %5853
    %v5859 = vadd.f32 %v5763, %v5848
    %v5860 = vadd.f32 %v5764, %v5850
    %v5861 = vadd.f32 %v5765, %v5852
    %v5862 = vadd.f32 %v5766, %v5854
    %s5863 = sld [smem:[#allocation11 + $0x47]]
    %v5864 = vstv %s5863
    %v5865 = vmul.f32 %v5864, %v4422
    %v5866 = vmul.f32 %v5864, %v4423
    %v5867 = vmul.f32 %v5864, %v4424
    %v5868 = vmul.f32 %v5864, %v4425
    %v5873 = vrot.slane %v5865, 2
    %v5874 = vrot.slane %v5866, 2
    %v5875 = vsel %vm624, %v5873, %v5874
    %v5876 = vrot.slane %v5867, 2
    %v5877 = vrot.slane %v5868, 2
    %v5878 = vsel %vm624, %v5876, %v5877
    %5879 = vrot.lane.b32.xlu0 %v5875, 126
    %v5880 = vpop.permute.xlu0 %5879
    %5881 = vrot.lane.b32.xlu0 %v5874, 126
    %v5882 = vpop.permute.xlu0 %5881
    %5883 = vrot.lane.b32.xlu0 %v5878, 126
    %v5884 = vpop.permute.xlu0 %5883
    %5885 = vrot.lane.b32.xlu0 %v5877, 126
    %v5886 = vpop.permute.xlu0 %5885
    %v5891 = vadd.f32 %v5795, %v5880
    %v5892 = vadd.f32 %v5796, %v5882
    %v5893 = vadd.f32 %v5797, %v5884
    %v5894 = vadd.f32 %v5798, %v5886
    %s5895 = sld [smem:[#allocation11 + $0x12]]
    %v5896 = vstv %s5895
    %v5897 = vmul.f32 %v5896, %v4454
    %v5898 = vmul.f32 %v5896, %v4455
    %v5899 = vmul.f32 %v5896, %v4456
    %v5900 = vmul.f32 %v5896, %v4457
    %v5901 = vadd.f32 %v5827, %v5897
    %v5902 = vadd.f32 %v5828, %v5898
    %v5903 = vadd.f32 %v5829, %v5899
    %v5904 = vadd.f32 %v5830, %v5900
    %s5905 = sld [smem:[#allocation11 + $0x2d]]
    %v5906 = vstv %s5905
    %v5907 = vmul.f32 %v5906, %v4454
    %v5908 = vmul.f32 %v5906, %v4455
    %v5909 = vmul.f32 %v5906, %v4456
    %v5910 = vmul.f32 %v5906, %v4457
    %v5911 = vadd.f32 %v5859, %v5907
    %v5912 = vadd.f32 %v5860, %v5908
    %v5913 = vadd.f32 %v5861, %v5909
    %v5914 = vadd.f32 %v5862, %v5910
    %s5915 = sld [smem:[#allocation11 + $0x48]]
    %v5916 = vstv %s5915
    %v5917 = vmul.f32 %v5916, %v4454
    %v5918 = vmul.f32 %v5916, %v4455
    %v5919 = vmul.f32 %v5916, %v4456
    %v5920 = vmul.f32 %v5916, %v4457
    %v5921 = vadd.f32 %v5891, %v5917
    %v5922 = vadd.f32 %v5892, %v5918
    %v5923 = vadd.f32 %v5893, %v5919
    %v5924 = vadd.f32 %v5894, %v5920
    %s5925 = sld [smem:[#allocation11 + $0x13]]
    %v5926 = vstv %s5925
    %v5927 = vmul.f32 %v5926, %v4454
    %v5928 = vmul.f32 %v5926, %v4455
    %v5929 = vmul.f32 %v5926, %v4456
    %v5930 = vmul.f32 %v5926, %v4457
    %5935 = vrot.lane.b32.xlu0 %v5927, 127
    %v5936 = vpop.permute.xlu0 %5935
    %5937 = vrot.lane.b32.xlu0 %v5928, 127
    %v5938 = vpop.permute.xlu0 %5937
    %5939 = vrot.lane.b32.xlu0 %v5929, 127
    %v5940 = vpop.permute.xlu0 %5939
    %5941 = vrot.lane.b32.xlu0 %v5930, 127
    %v5942 = vpop.permute.xlu0 %5941
    %v5947 = vadd.f32 %v5901, %v5936
    %v5948 = vadd.f32 %v5902, %v5938
    %v5949 = vadd.f32 %v5903, %v5940
    %v5950 = vadd.f32 %v5904, %v5942
    %s5951 = sld [smem:[#allocation11 + $0x2e]]
    %v5952 = vstv %s5951
    %v5953 = vmul.f32 %v5952, %v4454
    %v5954 = vmul.f32 %v5952, %v4455
    %v5955 = vmul.f32 %v5952, %v4456
    %v5956 = vmul.f32 %v5952, %v4457
    %5961 = vrot.lane.b32.xlu0 %v5953, 127
    %v5962 = vpop.permute.xlu0 %5961
    %5963 = vrot.lane.b32.xlu0 %v5954, 127
    %v5964 = vpop.permute.xlu0 %5963
    %5965 = vrot.lane.b32.xlu0 %v5955, 127
    %v5966 = vpop.permute.xlu0 %5965
    %5967 = vrot.lane.b32.xlu0 %v5956, 127
    %v5968 = vpop.permute.xlu0 %5967
    %v5973 = vadd.f32 %v5911, %v5962
    %v5974 = vadd.f32 %v5912, %v5964
    %v5975 = vadd.f32 %v5913, %v5966
    %v5976 = vadd.f32 %v5914, %v5968
    %s5977 = sld [smem:[#allocation11 + $0x49]]
    %v5978 = vstv %s5977
    %v5979 = vmul.f32 %v5978, %v4454
    %v5980 = vmul.f32 %v5978, %v4455
    %v5981 = vmul.f32 %v5978, %v4456
    %v5982 = vmul.f32 %v5978, %v4457
    %5987 = vrot.lane.b32.xlu0 %v5979, 127
    %v5988 = vpop.permute.xlu0 %5987
    %5989 = vrot.lane.b32.xlu0 %v5980, 127
    %v5990 = vpop.permute.xlu0 %5989
    %5991 = vrot.lane.b32.xlu0 %v5981, 127
    %v5992 = vpop.permute.xlu0 %5991
    %5993 = vrot.lane.b32.xlu0 %v5982, 127
    %v5994 = vpop.permute.xlu0 %5993
    %v5999 = vadd.f32 %v5921, %v5988
    %v6000 = vadd.f32 %v5922, %v5990
    %v6001 = vadd.f32 %v5923, %v5992
    %v6002 = vadd.f32 %v5924, %v5994
    %s6003 = sld [smem:[#allocation11 + $0x14]]
    %v6004 = vstv %s6003
    %v6005 = vmul.f32 %v6004, %v4454
    %v6006 = vmul.f32 %v6004, %v4455
    %v6007 = vmul.f32 %v6004, %v4456
    %v6008 = vmul.f32 %v6004, %v4457
    %6013 = vrot.lane.b32.xlu0 %v6005, 126
    %v6014 = vpop.permute.xlu0 %6013
    %6015 = vrot.lane.b32.xlu0 %v6006, 126
    %v6016 = vpop.permute.xlu0 %6015
    %6017 = vrot.lane.b32.xlu0 %v6007, 126
    %v6018 = vpop.permute.xlu0 %6017
    %6019 = vrot.lane.b32.xlu0 %v6008, 126
    %v6020 = vpop.permute.xlu0 %6019
    %v6025 = vadd.f32 %v5947, %v6014
    %v6026 = vadd.f32 %v5948, %v6016
    %v6027 = vadd.f32 %v5949, %v6018
    %v6028 = vadd.f32 %v5950, %v6020
    %s6029 = sld [smem:[#allocation11 + $0x2f]]
    %v6030 = vstv %s6029
    %v6031 = vmul.f32 %v6030, %v4454
    %v6032 = vmul.f32 %v6030, %v4455
    %v6033 = vmul.f32 %v6030, %v4456
    %v6034 = vmul.f32 %v6030, %v4457
    %6039 = vrot.lane.b32.xlu0 %v6031, 126
    %v6040 = vpop.permute.xlu0 %6039
    %6041 = vrot.lane.b32.xlu0 %v6032, 126
    %v6042 = vpop.permute.xlu0 %6041
    %6043 = vrot.lane.b32.xlu0 %v6033, 126
    %v6044 = vpop.permute.xlu0 %6043
    %6045 = vrot.lane.b32.xlu0 %v6034, 126
    %v6046 = vpop.permute.xlu0 %6045
    %v6051 = vadd.f32 %v5973, %v6040
    %v6052 = vadd.f32 %v5974, %v6042
    %v6053 = vadd.f32 %v5975, %v6044
    %v6054 = vadd.f32 %v5976, %v6046
    %s6055 = sld [smem:[#allocation11 + $0x4a]]
    %v6056 = vstv %s6055
    %v6057 = vmul.f32 %v6056, %v4454
    %v6058 = vmul.f32 %v6056, %v4455
    %v6059 = vmul.f32 %v6056, %v4456
    %v6060 = vmul.f32 %v6056, %v4457
    %6065 = vrot.lane.b32.xlu0 %v6057, 126
    %v6066 = vpop.permute.xlu0 %6065
    %6067 = vrot.lane.b32.xlu0 %v6058, 126
    %v6068 = vpop.permute.xlu0 %6067
    %6069 = vrot.lane.b32.xlu0 %v6059, 126
    %v6070 = vpop.permute.xlu0 %6069
    %6071 = vrot.lane.b32.xlu0 %v6060, 126
    %v6072 = vpop.permute.xlu0 %6071
    %v6077 = vadd.f32 %v5999, %v6066
    %v6078 = vadd.f32 %v6000, %v6068
    %v6079 = vadd.f32 %v6001, %v6070
    %v6080 = vadd.f32 %v6002, %v6072
    %s6081 = sld [smem:[#allocation11 + $0x15]]
    %v6082 = vstv %s6081
    %v6083 = vmul.f32 %v6082, %v4454
    %v6084 = vmul.f32 %v6082, %v4455
    %v6085 = vmul.f32 %v6082, %v4456
    %v6086 = vmul.f32 %v6082, %v4457
    %v6091 = vrot.slane %v6083, 1
    %v6092 = vrot.slane %v6084, 1
    %v6093 = vsel %vm359, %v6091, %v6092
    %v6094 = vrot.slane %v6085, 1
    %v6095 = vrot.slane %v6086, 1
    %v6096 = vsel %vm359, %v6094, %v6095
    %v6101 = vadd.f32 %v6025, %v6093
    %v6102 = vadd.f32 %v6026, %v6092
    %v6103 = vadd.f32 %v6027, %v6096
    %v6104 = vadd.f32 %v6028, %v6095
    %s6105 = sld [smem:[#allocation11 + $0x30]]
    %v6106 = vstv %s6105
    %v6107 = vmul.f32 %v6106, %v4454
    %v6108 = vmul.f32 %v6106, %v4455
    %v6109 = vmul.f32 %v6106, %v4456
    %v6110 = vmul.f32 %v6106, %v4457
    %v6115 = vrot.slane %v6107, 1
    %v6116 = vrot.slane %v6108, 1
    %v6117 = vsel %vm359, %v6115, %v6116
    %v6118 = vrot.slane %v6109, 1
    %v6119 = vrot.slane %v6110, 1
    %v6120 = vsel %vm359, %v6118, %v6119
    %v6125 = vadd.f32 %v6051, %v6117
    %v6126 = vadd.f32 %v6052, %v6116
    %v6127 = vadd.f32 %v6053, %v6120
    %v6128 = vadd.f32 %v6054, %v6119
    %s6129 = sld [smem:[#allocation11 + $0x4b]]
    %v6130 = vstv %s6129
    %v6131 = vmul.f32 %v6130, %v4454
    %v6132 = vmul.f32 %v6130, %v4455
    %v6133 = vmul.f32 %v6130, %v4456
    %v6134 = vmul.f32 %v6130, %v4457
    %v6139 = vrot.slane %v6131, 1
    %v6140 = vrot.slane %v6132, 1
    %v6141 = vsel %vm359, %v6139, %v6140
    %v6142 = vrot.slane %v6133, 1
    %v6143 = vrot.slane %v6134, 1
    %v6144 = vsel %vm359, %v6142, %v6143
    %v6149 = vadd.f32 %v6077, %v6141
    %v6150 = vadd.f32 %v6078, %v6140
    %v6151 = vadd.f32 %v6079, %v6144
    %v6152 = vadd.f32 %v6080, %v6143
    %s6153 = sld [smem:[#allocation11 + $0x16]]
    %v6154 = vstv %s6153
    %v6155 = vmul.f32 %v6154, %v4454
    %v6156 = vmul.f32 %v6154, %v4455
    %v6157 = vmul.f32 %v6154, %v4456
    %v6158 = vmul.f32 %v6154, %v4457
    %v6163 = vrot.slane %v6155, 1
    %v6164 = vrot.slane %v6156, 1
    %v6165 = vsel %vm359, %v6163, %v6164
    %v6166 = vrot.slane %v6157, 1
    %v6167 = vrot.slane %v6158, 1
    %v6168 = vsel %vm359, %v6166, %v6167
    %6169 = vrot.lane.b32.xlu0 %v6165, 127
    %v6170 = vpop.permute.xlu0 %6169
    %6171 = vrot.lane.b32.xlu0 %v6164, 127
    %v6172 = vpop.permute.xlu0 %6171
    %6173 = vrot.lane.b32.xlu0 %v6168, 127
    %v6174 = vpop.permute.xlu0 %6173
    %6175 = vrot.lane.b32.xlu0 %v6167, 127
    %v6176 = vpop.permute.xlu0 %6175
    %v6181 = vadd.f32 %v6101, %v6170
    %v6182 = vadd.f32 %v6102, %v6172
    %v6183 = vadd.f32 %v6103, %v6174
    %v6184 = vadd.f32 %v6104, %v6176
    %s6185 = sld [smem:[#allocation11 + $0x31]]
    %v6186 = vstv %s6185
    %v6187 = vmul.f32 %v6186, %v4454
    %v6188 = vmul.f32 %v6186, %v4455
    %v6189 = vmul.f32 %v6186, %v4456
    %v6190 = vmul.f32 %v6186, %v4457
    %v6195 = vrot.slane %v6187, 1
    %v6196 = vrot.slane %v6188, 1
    %v6197 = vsel %vm359, %v6195, %v6196
    %v6198 = vrot.slane %v6189, 1
    %v6199 = vrot.slane %v6190, 1
    %v6200 = vsel %vm359, %v6198, %v6199
    %6201 = vrot.lane.b32.xlu0 %v6197, 127
    %v6202 = vpop.permute.xlu0 %6201
    %6203 = vrot.lane.b32.xlu0 %v6196, 127
    %v6204 = vpop.permute.xlu0 %6203
    %6205 = vrot.lane.b32.xlu0 %v6200, 127
    %v6206 = vpop.permute.xlu0 %6205
    %6207 = vrot.lane.b32.xlu0 %v6199, 127
    %v6208 = vpop.permute.xlu0 %6207
    %v6213 = vadd.f32 %v6125, %v6202
    %v6214 = vadd.f32 %v6126, %v6204
    %v6215 = vadd.f32 %v6127, %v6206
    %v6216 = vadd.f32 %v6128, %v6208
    %s6217 = sld [smem:[#allocation11 + $0x4c]]
    %v6218 = vstv %s6217
    %v6219 = vmul.f32 %v6218, %v4454
    %v6220 = vmul.f32 %v6218, %v4455
    %v6221 = vmul.f32 %v6218, %v4456
    %v6222 = vmul.f32 %v6218, %v4457
    %v6227 = vrot.slane %v6219, 1
    %v6228 = vrot.slane %v6220, 1
    %v6229 = vsel %vm359, %v6227, %v6228
    %v6230 = vrot.slane %v6221, 1
    %v6231 = vrot.slane %v6222, 1
    %v6232 = vsel %vm359, %v6230, %v6231
    %6233 = vrot.lane.b32.xlu0 %v6229, 127
    %v6234 = vpop.permute.xlu0 %6233
    %6235 = vrot.lane.b32.xlu0 %v6228, 127
    %v6236 = vpop.permute.xlu0 %6235
    %6237 = vrot.lane.b32.xlu0 %v6232, 127
    %v6238 = vpop.permute.xlu0 %6237
    %6239 = vrot.lane.b32.xlu0 %v6231, 127
    %v6240 = vpop.permute.xlu0 %6239
    %v6245 = vadd.f32 %v6149, %v6234
    %v6246 = vadd.f32 %v6150, %v6236
    %v6247 = vadd.f32 %v6151, %v6238
    %v6248 = vadd.f32 %v6152, %v6240
    %s6249 = sld [smem:[#allocation11 + $0x17]]
    %v6250 = vstv %s6249
    %v6251 = vmul.f32 %v6250, %v4454
    %v6252 = vmul.f32 %v6250, %v4455
    %v6253 = vmul.f32 %v6250, %v4456
    %v6254 = vmul.f32 %v6250, %v4457
    %v6259 = vrot.slane %v6251, 1
    %v6260 = vrot.slane %v6252, 1
    %v6261 = vsel %vm359, %v6259, %v6260
    %v6262 = vrot.slane %v6253, 1
    %v6263 = vrot.slane %v6254, 1
    %v6264 = vsel %vm359, %v6262, %v6263
    %6265 = vrot.lane.b32.xlu0 %v6261, 126
    %v6266 = vpop.permute.xlu0 %6265
    %6267 = vrot.lane.b32.xlu0 %v6260, 126
    %v6268 = vpop.permute.xlu0 %6267
    %6269 = vrot.lane.b32.xlu0 %v6264, 126
    %v6270 = vpop.permute.xlu0 %6269
    %6271 = vrot.lane.b32.xlu0 %v6263, 126
    %v6272 = vpop.permute.xlu0 %6271
    %v6277 = vadd.f32 %v6181, %v6266
    %v6278 = vadd.f32 %v6182, %v6268
    %v6279 = vadd.f32 %v6183, %v6270
    %v6280 = vadd.f32 %v6184, %v6272
    %s6281 = sld [smem:[#allocation11 + $0x32]]
    %v6282 = vstv %s6281
    %v6283 = vmul.f32 %v6282, %v4454
    %v6284 = vmul.f32 %v6282, %v4455
    %v6285 = vmul.f32 %v6282, %v4456
    %v6286 = vmul.f32 %v6282, %v4457
    %v6291 = vrot.slane %v6283, 1
    %v6292 = vrot.slane %v6284, 1
    %v6293 = vsel %vm359, %v6291, %v6292
    %v6294 = vrot.slane %v6285, 1
    %v6295 = vrot.slane %v6286, 1
    %v6296 = vsel %vm359, %v6294, %v6295
    %6297 = vrot.lane.b32.xlu0 %v6293, 126
    %v6298 = vpop.permute.xlu0 %6297
    %6299 = vrot.lane.b32.xlu0 %v6292, 126
    %v6300 = vpop.permute.xlu0 %6299
    %6301 = vrot.lane.b32.xlu0 %v6296, 126
    %v6302 = vpop.permute.xlu0 %6301
    %6303 = vrot.lane.b32.xlu0 %v6295, 126
    %v6304 = vpop.permute.xlu0 %6303
    %v6309 = vadd.f32 %v6213, %v6298
    %v6310 = vadd.f32 %v6214, %v6300
    %v6311 = vadd.f32 %v6215, %v6302
    %v6312 = vadd.f32 %v6216, %v6304
    %s6313 = sld [smem:[#allocation11 + $0x4d]]
    %v6314 = vstv %s6313
    %v6315 = vmul.f32 %v6314, %v4454
    %v6316 = vmul.f32 %v6314, %v4455
    %v6317 = vmul.f32 %v6314, %v4456
    %v6318 = vmul.f32 %v6314, %v4457
    %v6323 = vrot.slane %v6315, 1
    %v6324 = vrot.slane %v6316, 1
    %v6325 = vsel %vm359, %v6323, %v6324
    %v6326 = vrot.slane %v6317, 1
    %v6327 = vrot.slane %v6318, 1
    %v6328 = vsel %vm359, %v6326, %v6327
    %6329 = vrot.lane.b32.xlu0 %v6325, 126
    %v6330 = vpop.permute.xlu0 %6329
    %6331 = vrot.lane.b32.xlu0 %v6324, 126
    %v6332 = vpop.permute.xlu0 %6331
    %6333 = vrot.lane.b32.xlu0 %v6328, 126
    %v6334 = vpop.permute.xlu0 %6333
    %6335 = vrot.lane.b32.xlu0 %v6327, 126
    %v6336 = vpop.permute.xlu0 %6335
    %v6341 = vadd.f32 %v6245, %v6330
    %v6342 = vadd.f32 %v6246, %v6332
    %v6343 = vadd.f32 %v6247, %v6334
    %v6344 = vadd.f32 %v6248, %v6336
    %s6345 = sld [smem:[#allocation11 + $0x18]]
    %v6346 = vstv %s6345
    %v6347 = vmul.f32 %v6346, %v4454
    %v6348 = vmul.f32 %v6346, %v4455
    %v6349 = vmul.f32 %v6346, %v4456
    %v6350 = vmul.f32 %v6346, %v4457
    %v6355 = vrot.slane %v6347, 2
    %v6356 = vrot.slane %v6348, 2
    %v6357 = vsel %vm624, %v6355, %v6356
    %v6358 = vrot.slane %v6349, 2
    %v6359 = vrot.slane %v6350, 2
    %v6360 = vsel %vm624, %v6358, %v6359
    %v6365 = vadd.f32 %v6277, %v6357
    %v6366 = vadd.f32 %v6278, %v6356
    %v6367 = vadd.f32 %v6279, %v6360
    %v6368 = vadd.f32 %v6280, %v6359
    %s6369 = sld [smem:[#allocation11 + $0x33]]
    %v6370 = vstv %s6369
    %v6371 = vmul.f32 %v6370, %v4454
    %v6372 = vmul.f32 %v6370, %v4455
    %v6373 = vmul.f32 %v6370, %v4456
    %v6374 = vmul.f32 %v6370, %v4457
    %v6379 = vrot.slane %v6371, 2
    %v6380 = vrot.slane %v6372, 2
    %v6381 = vsel %vm624, %v6379, %v6380
    %v6382 = vrot.slane %v6373, 2
    %v6383 = vrot.slane %v6374, 2
    %v6384 = vsel %vm624, %v6382, %v6383
    %v6389 = vadd.f32 %v6309, %v6381
    %v6390 = vadd.f32 %v6310, %v6380
    %v6391 = vadd.f32 %v6311, %v6384
    %v6392 = vadd.f32 %v6312, %v6383
    %s6393 = sld [smem:[#allocation11 + $0x4e]]
    %v6394 = vstv %s6393
    %v6395 = vmul.f32 %v6394, %v4454
    %v6396 = vmul.f32 %v6394, %v4455
    %v6397 = vmul.f32 %v6394, %v4456
    %v6398 = vmul.f32 %v6394, %v4457
    %v6403 = vrot.slane %v6395, 2
    %v6404 = vrot.slane %v6396, 2
    %v6405 = vsel %vm624, %v6403, %v6404
    %v6406 = vrot.slane %v6397, 2
    %v6407 = vrot.slane %v6398, 2
    %v6408 = vsel %vm624, %v6406, %v6407
    %v6413 = vadd.f32 %v6341, %v6405
    %v6414 = vadd.f32 %v6342, %v6404
    %v6415 = vadd.f32 %v6343, %v6408
    %v6416 = vadd.f32 %v6344, %v6407
    %s6417 = sld [smem:[#allocation11 + $0x19]]
    %v6418 = vstv %s6417
    %v6419 = vmul.f32 %v6418, %v4454
    %v6420 = vmul.f32 %v6418, %v4455
    %v6421 = vmul.f32 %v6418, %v4456
    %v6422 = vmul.f32 %v6418, %v4457
    %v6427 = vrot.slane %v6419, 2
    %v6428 = vrot.slane %v6420, 2
    %v6429 = vsel %vm624, %v6427, %v6428
    %v6430 = vrot.slane %v6421, 2
    %v6431 = vrot.slane %v6422, 2
    %v6432 = vsel %vm624, %v6430, %v6431
    %6433 = vrot.lane.b32.xlu0 %v6429, 127
    %v6434 = vpop.permute.xlu0 %6433
    %6435 = vrot.lane.b32.xlu0 %v6428, 127
    %v6436 = vpop.permute.xlu0 %6435
    %6437 = vrot.lane.b32.xlu0 %v6432, 127
    %v6438 = vpop.permute.xlu0 %6437
    %6439 = vrot.lane.b32.xlu0 %v6431, 127
    %v6440 = vpop.permute.xlu0 %6439
    %v6445 = vadd.f32 %v6365, %v6434
    %v6446 = vadd.f32 %v6366, %v6436
    %v6447 = vadd.f32 %v6367, %v6438
    %v6448 = vadd.f32 %v6368, %v6440
    %s6449 = sld [smem:[#allocation11 + $0x34]]
    %v6450 = vstv %s6449
    %v6451 = vmul.f32 %v6450, %v4454
    %v6452 = vmul.f32 %v6450, %v4455
    %v6453 = vmul.f32 %v6450, %v4456
    %v6454 = vmul.f32 %v6450, %v4457
    %v6459 = vrot.slane %v6451, 2
    %v6460 = vrot.slane %v6452, 2
    %v6461 = vsel %vm624, %v6459, %v6460
    %v6462 = vrot.slane %v6453, 2
    %v6463 = vrot.slane %v6454, 2
    %v6464 = vsel %vm624, %v6462, %v6463
    %6465 = vrot.lane.b32.xlu0 %v6461, 127
    %v6466 = vpop.permute.xlu0 %6465
    %6467 = vrot.lane.b32.xlu0 %v6460, 127
    %v6468 = vpop.permute.xlu0 %6467
    %6469 = vrot.lane.b32.xlu0 %v6464, 127
    %v6470 = vpop.permute.xlu0 %6469
    %6471 = vrot.lane.b32.xlu0 %v6463, 127
    %v6472 = vpop.permute.xlu0 %6471
    %v6477 = vadd.f32 %v6389, %v6466
    %v6478 = vadd.f32 %v6390, %v6468
    %v6479 = vadd.f32 %v6391, %v6470
    %v6480 = vadd.f32 %v6392, %v6472
    %s6481 = sld [smem:[#allocation11 + $0x4f]]
    %v6482 = vstv %s6481
    %v6483 = vmul.f32 %v6482, %v4454
    %v6484 = vmul.f32 %v6482, %v4455
    %v6485 = vmul.f32 %v6482, %v4456
    %v6486 = vmul.f32 %v6482, %v4457
    %v6491 = vrot.slane %v6483, 2
    %v6492 = vrot.slane %v6484, 2
    %v6493 = vsel %vm624, %v6491, %v6492
    %v6494 = vrot.slane %v6485, 2
    %v6495 = vrot.slane %v6486, 2
    %v6496 = vsel %vm624, %v6494, %v6495
    %6497 = vrot.lane.b32.xlu0 %v6493, 127
    %v6498 = vpop.permute.xlu0 %6497
    %6499 = vrot.lane.b32.xlu0 %v6492, 127
    %v6500 = vpop.permute.xlu0 %6499
    %6501 = vrot.lane.b32.xlu0 %v6496, 127
    %v6502 = vpop.permute.xlu0 %6501
    %6503 = vrot.lane.b32.xlu0 %v6495, 127
    %v6504 = vpop.permute.xlu0 %6503
    %v6509 = vadd.f32 %v6413, %v6498
    %v6510 = vadd.f32 %v6414, %v6500
    %v6511 = vadd.f32 %v6415, %v6502
    %v6512 = vadd.f32 %v6416, %v6504
    %s6513 = sld [smem:[#allocation11 + $0x1a]]
    %v6514 = vstv %s6513
    %v6515 = vmul.f32 %v6514, %v4454
    %v6516 = vmul.f32 %v6514, %v4455
    %v6517 = vmul.f32 %v6514, %v4456
    %v6518 = vmul.f32 %v6514, %v4457
    %v6523 = vrot.slane %v6515, 2
    %v6524 = vrot.slane %v6516, 2
    %v6525 = vsel %vm624, %v6523, %v6524
    %v6526 = vrot.slane %v6517, 2
    %v6527 = vrot.slane %v6518, 2
    %v6528 = vsel %vm624, %v6526, %v6527
    %6529 = vrot.lane.b32.xlu0 %v6525, 126
    %v6530 = vpop.permute.xlu0 %6529
    %6531 = vrot.lane.b32.xlu0 %v6524, 126
    %v6532 = vpop.permute.xlu0 %6531
    %6533 = vrot.lane.b32.xlu0 %v6528, 126
    %v6534 = vpop.permute.xlu0 %6533
    %6535 = vrot.lane.b32.xlu0 %v6527, 126
    %v6536 = vpop.permute.xlu0 %6535
    %v6541 = vadd.f32 %v6445, %v6530
    %v6542 = vadd.f32 %v6446, %v6532
    %v6543 = vadd.f32 %v6447, %v6534
    %v6544 = vadd.f32 %v6448, %v6536
    %s6545 = sld [smem:[#allocation11 + $0x35]]
    %v6546 = vstv %s6545
    %v6547 = vmul.f32 %v6546, %v4454
    %v6548 = vmul.f32 %v6546, %v4455
    %v6549 = vmul.f32 %v6546, %v4456
    %v6550 = vmul.f32 %v6546, %v4457
    %v6555 = vrot.slane %v6547, 2
    %v6556 = vrot.slane %v6548, 2
    %v6557 = vsel %vm624, %v6555, %v6556
    %v6558 = vrot.slane %v6549, 2
    %v6559 = vrot.slane %v6550, 2
    %v6560 = vsel %vm624, %v6558, %v6559
    %6561 = vrot.lane.b32.xlu0 %v6557, 126
    %v6562 = vpop.permute.xlu0 %6561
    %6563 = vrot.lane.b32.xlu0 %v6556, 126
    %v6564 = vpop.permute.xlu0 %6563
    %6565 = vrot.lane.b32.xlu0 %v6560, 126
    %v6566 = vpop.permute.xlu0 %6565
    %6567 = vrot.lane.b32.xlu0 %v6559, 126
    %v6568 = vpop.permute.xlu0 %6567
    %v6573 = vadd.f32 %v6477, %v6562
    %v6574 = vadd.f32 %v6478, %v6564
    %v6575 = vadd.f32 %v6479, %v6566
    %v6576 = vadd.f32 %v6480, %v6568
    %s6577 = sld [smem:[#allocation11 + $0x50]]
    %v6578 = vstv %s6577
    %v6579 = vmul.f32 %v6578, %v4454
    %v6580 = vmul.f32 %v6578, %v4455
    %v6581 = vmul.f32 %v6578, %v4456
    %v6582 = vmul.f32 %v6578, %v4457
    %v6587 = vrot.slane %v6579, 2
    %v6588 = vrot.slane %v6580, 2
    %v6589 = vsel %vm624, %v6587, %v6588
    %v6590 = vrot.slane %v6581, 2
    %v6591 = vrot.slane %v6582, 2
    %v6592 = vsel %vm624, %v6590, %v6591
    %6593 = vrot.lane.b32.xlu0 %v6589, 126
    %v6594 = vpop.permute.xlu0 %6593
    %6595 = vrot.lane.b32.xlu0 %v6588, 126
    %v6596 = vpop.permute.xlu0 %6595
    %6597 = vrot.lane.b32.xlu0 %v6592, 126
    %v6598 = vpop.permute.xlu0 %6597
    %6599 = vrot.lane.b32.xlu0 %v6591, 126
    %v6600 = vpop.permute.xlu0 %6599
    %v6605 = vadd.f32 %v6509, %v6594
    %v6606 = vadd.f32 %v6510, %v6596
    %v6607 = vadd.f32 %v6511, %v6598
    %v6608 = vadd.f32 %v6512, %v6600
    %vm6609 = vcmask 80896
    %v6610 = vsel %vm6609, %v6541, 0.0
    %vm6611 = vcmask 74752
    %v6612 = vsel %vm6611, %v6542, 0.0
    %v6613 = vadd.f32 %v6610, %v6612
    %v6614 = vsel %vm6609, %v6543, 0.0
    %v6615 = vadd.f32 %v6613, %v6614
    %v6616 = vsel %vm6611, %v6544, 0.0
    %v6617 = vadd.f32 %v6615, %v6616
    %6618 = vadd.xlane.f32.xlu0 %v6617
    %v6619 = vpop.xlane.xlu0 %6618
    %v6620 = vrot.slane %v6619, 4
    %v6621 = vadd.f32 %v6619, %v6620
    %v6622 = vrot.slane %v6621, 2
    %v6623 = vadd.f32 %v6621, %v6622
    %v6624 = vrot.slane %v6623, 1
    %v6625 = vadd.f32 %v6623, %v6624
    %s6626 = vtos %v6625
    %v6627 = vstv %s6626
    %v6628 = vmul.f32 %v6541, %v6541
    %v6629 = vmul.f32 %v6542, %v6542
    %v6630 = vmul.f32 %v6543, %v6543
    %v6631 = vmul.f32 %v6544, %v6544
    %v6632 = vsel %vm6609, %v6628, 0.0
    %v6633 = vsel %vm6611, %v6629, 0.0
    %v6634 = vadd.f32 %v6632, %v6633
    %v6635 = vsel %vm6609, %v6630, 0.0
    %v6636 = vadd.f32 %v6634, %v6635
    %v6637 = vsel %vm6611, %v6631, 0.0
    %v6638 = vadd.f32 %v6636, %v6637
    %6639 = vadd.xlane.f32.xlu0 %v6638
    %v6640 = vpop.xlane.xlu0 %6639
    %v6641 = vrot.slane %v6640, 4
    %v6642 = vadd.f32 %v6640, %v6641
    %v6643 = vrot.slane %v6642, 2
    %v6644 = vadd.f32 %v6642, %v6643
    %v6645 = vrot.slane %v6644, 1
    %v6646 = vadd.f32 %v6644, %v6645
    %s6647 = vtos %v6646
    %v6648 = vstv %s6647
    %v6649 = vmul.f32 %v6627, 0.005
    %v6650 = vmul.f32 %v6648, 0.005
    %v6651 = vmul.f32 %v6649, %v6649
    %v6652 = vsub.f32 %v6650, %v6651
    %s6653 = sld [smem:[#allocation14]]
    %v6654 = vadd.f32 %v6652, 1e-05
    %v6655 = vrsqrt.pop %v6654
    %v6656 = vstv %s6653
    %v6657 = vmul.f32 %v6656, %v6655
    %s6658 = sld [smem:[#allocation15]]
    %v6659 = vmul.f32 %v6649, %v6657
    %v6660 = vstv %s6658
    %v6661 = vsub.f32 %v6660, %v6659
    %v6662 = vmul.f32 %v6541, %v6657
    %v6663 = vmul.f32 %v6542, %v6657
    %v6664 = vmul.f32 %v6543, %v6657
    %v6665 = vmul.f32 %v6544, %v6657
    %v6666 = vadd.f32 %v6662, %v6661
    %v6667 = vadd.f32 %v6663, %v6661
    %v6668 = vadd.f32 %v6664, %v6661
    %v6669 = vadd.f32 %v6665, %v6661
    %6670 = vst.msk [vmem:[%s9] sm:$0xff] %vm6609, %v6666
    %6671 = vst.msk [vmem:[%s9 + $0x8] sm:$0x3] %vm6611, %v6667
    %6672 = vst.msk [vmem:[%s9 + $0x10] sm:$0xff] %vm6609, %v6668
    %6673 = vst.msk [vmem:[%s9 + $0x18] sm:$0x3] %vm6611, %v6669
    %v6674 = vsel %vm6609, %v6573, 0.0
    %v6675 = vsel %vm6611, %v6574, 0.0
    %v6676 = vadd.f32 %v6674, %v6675
    %v6677 = vsel %vm6609, %v6575, 0.0
    %v6678 = vadd.f32 %v6676, %v6677
    %v6679 = vsel %vm6611, %v6576, 0.0
    %v6680 = vadd.f32 %v6678, %v6679
    %6681 = vadd.xlane.f32.xlu0 %v6680
    %v6682 = vpop.xlane.xlu0 %6681
    %v6683 = vrot.slane %v6682, 4
    %v6684 = vadd.f32 %v6682, %v6683
    %v6685 = vrot.slane %v6684, 2
    %v6686 = vadd.f32 %v6684, %v6685
    %v6687 = vrot.slane %v6686, 1
    %v6688 = vadd.f32 %v6686, %v6687
    %s6689 = vtos %v6688
    %v6690 = vstv %s6689
    %v6691 = vmul.f32 %v6573, %v6573
    %v6692 = vmul.f32 %v6574, %v6574
    %v6693 = vmul.f32 %v6575, %v6575
    %v6694 = vmul.f32 %v6576, %v6576
    %v6695 = vsel %vm6609, %v6691, 0.0
    %v6696 = vsel %vm6611, %v6692, 0.0
    %v6697 = vadd.f32 %v6695, %v6696
    %v6698 = vsel %vm6609, %v6693, 0.0
    %v6699 = vadd.f32 %v6697, %v6698
    %v6700 = vsel %vm6611, %v6694, 0.0
    %v6701 = vadd.f32 %v6699, %v6700
    %6702 = vadd.xlane.f32.xlu0 %v6701
    %v6703 = vpop.xlane.xlu0 %6702
    %v6704 = vrot.slane %v6703, 4
    %v6705 = vadd.f32 %v6703, %v6704
    %v6706 = vrot.slane %v6705, 2
    %v6707 = vadd.f32 %v6705, %v6706
    %v6708 = vrot.slane %v6707, 1
    %v6709 = vadd.f32 %v6707, %v6708
    %s6710 = vtos %v6709
    %v6711 = vstv %s6710
    %v6712 = vmul.f32 %v6690, 0.005
    %v6713 = vmul.f32 %v6711, 0.005
    %v6714 = vmul.f32 %v6712, %v6712
    %v6715 = vsub.f32 %v6713, %v6714
    %s6716 = sld [smem:[#allocation14 + $0x1]]
    %v6717 = vadd.f32 %v6715, 1e-05
    %v6718 = vrsqrt.pop %v6717
    %v6719 = vstv %s6716
    %v6720 = vmul.f32 %v6719, %v6718
    %s6721 = sld [smem:[#allocation15 + $0x1]]
    %v6722 = vmul.f32 %v6712, %v6720
    %v6723 = vstv %s6721
    %v6724 = vsub.f32 %v6723, %v6722
    %v6725 = vmul.f32 %v6573, %v6720
    %v6726 = vmul.f32 %v6574, %v6720
    %v6727 = vmul.f32 %v6575, %v6720
    %v6728 = vmul.f32 %v6576, %v6720
    %v6729 = vadd.f32 %v6725, %v6724
    %v6730 = vadd.f32 %v6726, %v6724
    %v6731 = vadd.f32 %v6727, %v6724
    %v6732 = vadd.f32 %v6728, %v6724
    %s6733 = scalar_lea.vmem %s9, 32
    %6734 = vst.msk [vmem:[%s6733] sm:$0xff] %vm6609, %v6729
    %6735 = vst.msk [vmem:[%s6733 + $0x8] sm:$0x3] %vm6611, %v6730
    %6736 = vst.msk [vmem:[%s6733 + $0x10] sm:$0xff] %vm6609, %v6731
    %6737 = vst.msk [vmem:[%s6733 + $0x18] sm:$0x3] %vm6611, %v6732
    %v6738 = vsel %vm6609, %v6605, 0.0
    %v6739 = vsel %vm6611, %v6606, 0.0
    %v6740 = vadd.f32 %v6738, %v6739
    %v6741 = vsel %vm6609, %v6607, 0.0
    %v6742 = vadd.f32 %v6740, %v6741
    %v6743 = vsel %vm6611, %v6608, 0.0
    %v6744 = vadd.f32 %v6742, %v6743
    %6745 = vadd.xlane.f32.xlu0 %v6744
    %v6746 = vpop.xlane.xlu0 %6745
    %v6747 = vrot.slane %v6746, 4
    %v6748 = vadd.f32 %v6746, %v6747
    %v6749 = vrot.slane %v6748, 2
    %v6750 = vadd.f32 %v6748, %v6749
    %v6751 = vrot.slane %v6750, 1
    %v6752 = vadd.f32 %v6750, %v6751
    %s6753 = vtos %v6752
    %v6754 = vstv %s6753
    %v6755 = vmul.f32 %v6605, %v6605
    %v6756 = vmul.f32 %v6606, %v6606
    %v6757 = vmul.f32 %v6607, %v6607
    %v6758 = vmul.f32 %v6608, %v6608
    %v6759 = vsel %vm6609, %v6755, 0.0
    %v6760 = vsel %vm6611, %v6756, 0.0
    %v6761 = vadd.f32 %v6759, %v6760
    %v6762 = vsel %vm6609, %v6757, 0.0
    %v6763 = vadd.f32 %v6761, %v6762
    %v6764 = vsel %vm6611, %v6758, 0.0
    %v6765 = vadd.f32 %v6763, %v6764
    %6766 = vadd.xlane.f32.xlu0 %v6765
    %v6767 = vpop.xlane.xlu0 %6766
    %v6768 = vrot.slane %v6767, 4
    %v6769 = vadd.f32 %v6767, %v6768
    %v6770 = vrot.slane %v6769, 2
    %v6771 = vadd.f32 %v6769, %v6770
    %v6772 = vrot.slane %v6771, 1
    %v6773 = vadd.f32 %v6771, %v6772
    %s6774 = vtos %v6773
    %v6775 = vstv %s6774
    %v6776 = vmul.f32 %v6754, 0.005
    %v6777 = vmul.f32 %v6775, 0.005
    %v6778 = vmul.f32 %v6776, %v6776
    %v6779 = vsub.f32 %v6777, %v6778
    %s6780 = sld [smem:[#allocation14 + $0x2]]
    %v6781 = vadd.f32 %v6779, 1e-05
    %v6782 = vrsqrt.pop %v6781
    %v6783 = vstv %s6780
    %v6784 = vmul.f32 %v6783, %v6782
    %s6785 = sld [smem:[#allocation15 + $0x2]]
    %v6786 = vmul.f32 %v6776, %v6784
    %v6787 = vstv %s6785
    %v6788 = vsub.f32 %v6787, %v6786
    %v6789 = vmul.f32 %v6605, %v6784
    %v6790 = vmul.f32 %v6606, %v6784
    %v6791 = vmul.f32 %v6607, %v6784
    %v6792 = vmul.f32 %v6608, %v6784
    %v6793 = vadd.f32 %v6789, %v6788
    %v6794 = vadd.f32 %v6790, %v6788
    %v6795 = vadd.f32 %v6791, %v6788
    %v6796 = vadd.f32 %v6792, %v6788
    %s6797 = scalar_lea.vmem %s9, 64
    %6798 = vst.msk [vmem:[%s6797] sm:$0xff] %vm6609, %v6793
    %6799 = vst.msk [vmem:[%s6797 + $0x8] sm:$0x3] %vm6611, %v6794
    %6800 = vst.msk [vmem:[%s6797 + $0x10] sm:$0xff] %vm6609, %v6795
    %6801 = vst.msk [vmem:[%s6797 + $0x18] sm:$0x3] %vm6611, %v6796
    // Predicated region
    $region74: #{tpu_custom_call.1} parent=1 // pred_check
      _
    $region75: #{tpu_custom_call.1} parent=1 // pred_check_branch
      %6803 = sbr.rel (0) target = $region77
    $region76: #{tpu_custom_call.1} parent=1 // pred_region
      _
    $region77: #{tpu_custom_call.1} parent=1 // pred_fallthru
      _
    // Predicated region
    $region78: #{tpu_custom_call.1} parent=1 // pred_check
      _
    $region79: #{tpu_custom_call.1} parent=1 // pred_check_branch
      %6805 = sbr.rel (0) target = $region81
    $region80: #{tpu_custom_call.1} parent=1 // pred_region
      _
    $region81: #{tpu_custom_call.1} parent=1 // pred_fallthru
      _
    %6806 = vsyncpa [#allocation3], 1
    %6807 = vsyncpa [#allocation4], 1
    %6808 = vsyncpa [#allocation7], 1
    %6809 = vsyncpa [#allocation10], 1
    %6810 = vsyncpa [#allocation13], 1
    %6811 = vsyncpa [#allocation16], 1

</llo_original>
